<compile_context>
chip_gen: v7x
topology: tpu7x:2x2x1
jax: 0.10.0
libtpu: 0.0.40
codegen_flags: <defaults>
</compile_context>

<pallas_src>
import functools

import numpy as np
import jax
import jax.numpy as jnp
from jax.experimental import pallas as pl
from jax.experimental.pallas import tpu as pltpu


def _round_up(x, m):
    return -(-x // m) * m


# ----------------------------------------------------------------------------
# Fused ResnetBlock kernel (NB images per grid step)
# ----------------------------------------------------------------------------
def _make_block_kernel(*, C, H, W, K, dilation, res_num, NB, CP, ROWS,
                       MARGIN, dw_index, compute_dtype):
    HW = H * W
    NBHW = NB * HW
    KKC = K * K * CP
    pads = tuple((K - 1) // 2 * d for d in dilation)

    def kernel(x_ref, w1_ref, w2_ref, mask_ref, o_ref,
               xpad_ref, pat_ref, act_ref):
        # --- per-step init of exactly the zero regions the convs rely on ----
        # (kept per-step, not program_id==0-gated: under megacore "parallel"
        #  splitting each core has its own scratch and only one core runs grid
        #  step 0; this is only ~10 vreg stores.)
        zmargin = jnp.zeros((NB, CP, MARGIN), jnp.float32)
        xpad_ref[:, :, 0:MARGIN] = zmargin                       # left margin
        xpad_ref[:, :, MARGIN + HW:MARGIN + HW + MARGIN] = zmargin  # right
        if CP > C:                                   # cin-padding rows stay 0
            xpad_ref[:, C:CP, MARGIN:MARGIN + HW] = jnp.zeros(
                (NB, CP - C, HW), jnp.float32)
        # slab tail: constant-one row (bias) + alignment-pad zero rows
        row_id = jax.lax.broadcasted_iota(jnp.int32, (ROWS - KKC, NBHW), 0)
        pat_ref[KKC:ROWS, :] = (row_id == 0).astype(compute_dtype)

        def conv(read_img, w_flat, dil, pad):
            # read_img(img) -> (C, HW) f32 current activation of image `img`.
            for img in range(NB):
                xpad_ref[img, 0:C, MARGIN:MARGIN + HW] = read_img(img)
            # im2col: tap (kh, kw) = activation shifted by s = dh*W + dw on the
            # flattened plane; taps that wrap across image rows are masked.
            for kh in range(K):
                dh = kh * dil - pad
                for kw in range(K):
                    dw = kw * dil - pad
                    t = kh * K + kw
                    s = dh * W + dw
                    for img in range(NB):
                        tap = xpad_ref[img, :, MARGIN + s:MARGIN + s + HW]
                        if dw != 0:
                            tap = tap * mask_ref[dw_index[dw]]   # (CP, HW)
                        pat_ref[t * CP:(t + 1) * CP,
                                img * HW:(img + 1) * HW] = tap.astype(compute_dtype)
            # one lane-dense MXU matmul per conv over all NB images; bias is
            # the last weight column against the constant-one slab row.
            return jnp.dot(w_flat, pat_ref[...],
                           preferred_element_type=jnp.float32)   # (C, NB*HW)

        # Running activation lives in an explicit f32 VMEM scratch.
        act_ref[...] = x_ref[...].astype(jnp.float32)
        for i in range(res_num):
            y = conv(lambda img: act_ref[img], w1_ref[i], dilation[0], pads[0])
            y = jnp.maximum(y, 0.1 * y)                      # LeakyReLU(0.1)
            z = conv(lambda img, y=y: y[:, img * HW:(img + 1) * HW],
                     w2_ref[i], dilation[1], pads[1])
            for img in range(NB):
                act_ref[img] = act_ref[img] + z[:, img * HW:(img + 1) * HW]
        if res_num > 1:
            o_ref[...] = (act_ref[...] + x_ref[...].astype(jnp.float32)
                          ).astype(o_ref.dtype)
        else:
            o_ref[...] = act_ref[...].astype(o_ref.dtype)

    return kernel


def _flatten_weight_bias(w_oihw, b, CP, ROWS, dtype):
    """torch Conv2d weight (Cout,Cin,K,K) + bias -> (Cout, ROWS).

    Columns ordered (kh, kw, cin zero-padded to CP) to match the im2col slab
    row layout, then the bias column, then zero padding up to ROWS."""
    Cout, Cin, K, _ = w_oihw.shape
    wt = jnp.transpose(w_oihw, (0, 2, 3, 1))                  # (Cout,K,K,Cin)
    wt = jnp.pad(wt, ((0, 0), (0, 0), (0, 0), (0, CP - Cin)))
    wf = wt.reshape(Cout, K * K * CP)
    wf = jnp.concatenate(
        [wf, b.reshape(Cout, 1),
         jnp.zeros((Cout, ROWS - K * K * CP - 1), wf.dtype)], axis=1)
    return wf.astype(dtype)


# ----------------------------------------------------------------------------
# ResnetBlock forward (NCHW in / NCHW out, same semantics as the torch module)
# ----------------------------------------------------------------------------
@functools.partial(
    jax.jit,
    static_argnames=("kernel_size", "dilation", "res_num", "images_per_step",
                     "compute_dtype", "single_buffer_weights"))
def resnet_block_forward(x_nchw, params, *, kernel_size, dilation, res_num,
                         images_per_step=None, compute_dtype=jnp.float32,
                         single_buffer_weights=True):
    N, C, H, W = x_nchw.shape
    K = kernel_size
    assert K % 2 == 1, "'same' padding requires odd kernel_size"
    HW = H * W

    # Images per grid step: batch as many as fit so the per-step fixed cost
    # and MXU weight push amortize over NB*HW lanes.  On v7x (2 TensorCores)
    # choose images_per_step so that the grid has >= 2 parallel steps.
    NB = N if images_per_step is None else images_per_step
    assert N % NB == 0, "images_per_step must divide the batch"

    cdt = jnp.dtype(compute_dtype)
    sub = 8 * (4 // cdt.itemsize)              # sublane pack: f32 -> 8, bf16 -> 16
    CP = _round_up(C, sub)                     # channels padded for aligned taps
    KKC = K * K * CP
    ROWS = _round_up(KKC + 1, sub)             # + constant-one (bias) row

    pads = tuple((K - 1) // 2 * d for d in dilation)
    max_shift = max(p * W + p for p in pads)
    MARGIN = max(128, _round_up(max_shift, 128))   # lane-aligned zero margins
    LBUF = MARGIN + HW + MARGIN

    # Distinct nonzero horizontal tap offsets -> static edge masks, already
    # broadcast to (CP, HW) so the kernel does a plain elementwise multiply.
    dws = sorted({kw * d - p for d, p in zip(dilation, pads)
                  for kw in range(K) if kw * d - p != 0})
    dw_index = {dw: i for i, dw in enumerate(dws)}
    wcol = np.arange(HW) % W
    if dws:
        m = np.stack([((wcol + dw >= 0) & (wcol + dw < W)).astype(np.float32)
                      for dw in dws])
    else:
        m = np.ones((1, HW), np.float32)
    masks = jnp.asarray(np.ascontiguousarray(
        np.broadcast_to(m[:, None, :], (m.shape[0], CP, HW))))
    n_masks = masks.shape[0]

    # Per-stem flattened weights with the bias folded in as the last column.
    W1 = jnp.stack([_flatten_weight_bias(p[0], p[1], CP, ROWS, cdt)
                    for p in params])                          # (R, C, ROWS)
    W2 = jnp.stack([_flatten_weight_bias(p[2], p[3], CP, ROWS, cdt)
                    for p in params])

    kernel = _make_block_kernel(
        C=C, H=H, W=W, K=K, dilation=dilation, res_num=res_num, NB=NB, CP=CP,
        ROWS=ROWS, MARGIN=MARGIN, dw_index=dw_index, compute_dtype=cdt)

    # Grid-invariant operands: their block never changes -> single-buffer.
    const_kw = dict(pipeline_mode=pl.Buffered(1)) if single_buffer_weights else {}
    w_spec = pl.BlockSpec((res_num, C, ROWS), lambda n: (0, 0, 0), **const_kw)
    m_spec = pl.BlockSpec((n_masks, CP, HW), lambda n: (0, 0, 0), **const_kw)

    out = pl.pallas_call(
        kernel,
        out_shape=jax.ShapeDtypeStruct((N, C, HW), x_nchw.dtype),
        grid=(N // NB,),
        in_specs=[
            pl.BlockSpec((NB, C, HW), lambda n: (n, 0, 0)),
            w_spec, w_spec, m_spec,
        ],
        out_specs=pl.BlockSpec((NB, C, HW), lambda n: (n, 0, 0)),
        scratch_shapes=[
            pltpu.VMEM((NB, CP, LBUF), jnp.float32),   # zero-margined line buf
            pltpu.VMEM((ROWS, NB * HW), cdt),          # im2col slab (+bias row)
            pltpu.VMEM((NB, C, HW), jnp.float32),      # running activation
        ],
        compiler_params=pltpu.CompilerParams(
            dimension_semantics=("parallel",)),
        # TODO(synk): raise vmem_limit_bytes here when scaling C/H/W (v5e's
        # default scoped VMEM is only 16 MiB of 128 MiB physical).
    )(x_nchw.reshape(N, C, HW), W1, W2, masks)

    return out.reshape(N, C, H, W)


# ----------------------------------------------------------------------------
# Pure-JAX reference (lax.conv) for correctness checking
# ----------------------------------------------------------------------------
def _ref_forward(x_nchw, params, kernel_size, dilation, res_num):
    def conv(x, w, b, d):
        pad = (kernel_size - 1) // 2 * d
        y = jax.lax.conv_general_dilated(
            x, w, window_strides=(1, 1),
            padding=[(pad, pad), (pad, pad)],
            rhs_dilation=(d, d),
            dimension_numbers=("NCHW", "OIHW", "NCHW"))
        return y + b.reshape(1, -1, 1, 1)

    x = x_nchw
    if res_num > 1:
        temp = x
    for (w1, b1, w2, b2) in params:
        y = conv(x, w1, b1, dilation[0])
        y = jnp.where(y >= 0.0, y, 0.1 * y)
        x = x + conv(y, w2, b2, dilation[1])
    if res_num > 1:
        x = x + temp
    return x


# ----------------------------------------------------------------------------
# Main
# ----------------------------------------------------------------------------
if __name__ == "__main__":
    in_channels = 4
    kernel_size = 3
    dilation = (1, 2)
    res_num = 2

    N, H, W = 2, 16, 16

    key = jax.random.PRNGKey(0)
    key, xk = jax.random.split(key)
    x = jax.random.normal(xk, (N, in_channels, H, W), dtype=jnp.float32)  # NCHW

    params = []
    for _ in range(res_num):
        key, k1, k2, k3, k4 = jax.random.split(key, 5)
        w1 = 0.1 * jax.random.normal(
            k1, (in_channels, in_channels, kernel_size, kernel_size), jnp.float32)
        b1 = 0.01 * jax.random.normal(k2, (in_channels,), jnp.float32)
        w2 = 0.1 * jax.random.normal(
            k3, (in_channels, in_channels, kernel_size, kernel_size), jnp.float32)
        b2 = 0.01 * jax.random.normal(k4, (in_channels,), jnp.float32)
        params.append((w1, b1, w2, b2))
    params = tuple(params)

    cfg = dict(kernel_size=kernel_size, dilation=dilation, res_num=res_num)

    def run(**kw):
        try:
            return jax.block_until_ready(
                resnet_block_forward(x, params, **cfg, **kw))
        except Exception:
            # Fallback if this JAX build rejects pl.Buffered(1) single-buffering.
            return jax.block_until_ready(
                resnet_block_forward(x, params, **cfg,
                                     single_buffer_weights=False, **kw))

    ref = _ref_forward(x, params, kernel_size, dilation, res_num)

    # f32 path: all N images batched into one grid step.
    out = run()
    assert out.shape == (N, in_channels, H, W)
    assert jnp.allclose(out, ref, atol=2e-3, rtol=2e-3), "f32 kernel mismatch"

    # bf16-MXU path (v6e/v7x): one image per step -> grid=(2,) exercises the
    # "parallel" axis with >=2 steps (v7x's two TensorCores) and the persisted
    # scratch across grid iterations.
    out_bf16 = run(images_per_step=1, compute_dtype=jnp.bfloat16)
    assert jnp.allclose(out_bf16, ref, atol=5e-2, rtol=5e-2), "bf16 kernel mismatch"

    print("KERNEL_OK")
</pallas_src>

<mosaic_0001>
module attributes {stable_mosaic.version = 11 : i64} {
  func.func @kernel(%arg0: i32, %arg1: memref<2x4x256xf32, #tpu.memory_space<vmem>>, %arg2: memref<2x4x80xf32, #tpu.memory_space<vmem>>, %arg3: memref<2x4x80xf32, #tpu.memory_space<vmem>>, %arg4: memref<4x8x256xf32, #tpu.memory_space<vmem>>, %arg5: memref<2x4x256xf32, #tpu.memory_space<vmem>>, %arg6: memref<2x8x512xf32, #tpu.memory_space<vmem>>, %arg7: memref<80x512xf32, #tpu.memory_space<vmem>>, %arg8: memref<2x4x256xf32, #tpu.memory_space<vmem>>) attributes {dimension_semantics = [#tpu.dimension_semantics<parallel>], iteration_bounds = array<i64: 1>, scalar_prefetch = 0 : i64, scratch_operands = 3 : i64, tpu.core_type = #tpu.core_type<tc>, window_params = [{transform_indices = @transform_0, window_bounds = array<i64: 2, 4, 256>}, {pipeline_mode = #tpu.pipeline_mode<synchronous>, transform_indices = @transform_1, window_bounds = array<i64: 2, 4, 80>}, {pipeline_mode = #tpu.pipeline_mode<synchronous>, transform_indices = @transform_2, window_bounds = array<i64: 2, 4, 80>}, {pipeline_mode = #tpu.pipeline_mode<synchronous>, transform_indices = @transform_3, window_bounds = array<i64: 4, 8, 256>}, {transform_indices = @transform_4, window_bounds = array<i64: 2, 4, 256>}]} {
    %cst = arith.constant 0.000000e+00 : f32
    %0 = vector.broadcast %cst : f32 to vector<2x8x128xf32>
    %c0 = arith.constant 0 : index
    %c0_0 = arith.constant 0 : index
    %c0_1 = arith.constant 0 : index
    %1 = vector.load %arg6[%c0, %c0_0, %c0_1] : memref<2x8x512xf32, #tpu.memory_space<vmem>>, vector<2x8x128xf32>
    tpu.vector_store %arg6[%c0, %c0_0, %c0_1], %0 {strides = array<i32>} : memref<2x8x512xf32, #tpu.memory_space<vmem>>, vector<2x8x128xf32>,
    %c0_2 = arith.constant 0 : index
    %c0_3 = arith.constant 0 : index
    %c384 = arith.constant 384 : index
    %2 = vector.load %arg6[%c0_2, %c0_3, %c384] : memref<2x8x512xf32, #tpu.memory_space<vmem>>, vector<2x8x128xf32>
    tpu.vector_store %arg6[%c0_2, %c0_3, %c384], %0 {strides = array<i32>} : memref<2x8x512xf32, #tpu.memory_space<vmem>>, vector<2x8x128xf32>,
    %cst_4 = arith.constant 0.000000e+00 : f32
    %3 = vector.broadcast %cst_4 : f32 to vector<2x4x256xf32>
    %c0_5 = arith.constant 0 : index
    %c4 = arith.constant 4 : index
    %c128 = arith.constant 128 : index
    %4 = vector.load %arg6[%c0_5, %c4, %c128] : memref<2x8x512xf32, #tpu.memory_space<vmem>>, vector<2x4x256xf32>
    tpu.vector_store %arg6[%c0_5, %c4, %c128], %3 {strides = array<i32>} : memref<2x8x512xf32, #tpu.memory_space<vmem>>, vector<2x4x256xf32>,
    %5 = tpu.iota {dimensions = array<i32: 0>} : vector<8x512xi32>
    %c0_i32 = arith.constant 0 : i32
    %6 = vector.broadcast %c0_i32 : i32 to vector<8x512xi32>
    %7 = arith.cmpi eq, %5, %6 : vector<8x512xi32>
    %8 = arith.extui %7 : vector<8x512xi1> to vector<8x512xi32>
    %9 = arith.sitofp %8 : vector<8x512xi32> to vector<8x512xf32>
    %c72 = arith.constant 72 : index
    %c0_6 = arith.constant 0 : index
    %10 = vector.load %arg7[%c72, %c0_6] : memref<80x512xf32, #tpu.memory_space<vmem>>, vector<8x512xf32>
    tpu.vector_store %arg7[%c72, %c0_6], %9 {strides = array<i32>} : memref<80x512xf32, #tpu.memory_space<vmem>>, vector<8x512xf32>,
    %c0_7 = arith.constant 0 : index
    %c0_8 = arith.constant 0 : index
    %c0_9 = arith.constant 0 : index
    %11 = vector.load %arg1[%c0_7, %c0_8, %c0_9] : memref<2x4x256xf32, #tpu.memory_space<vmem>>, vector<2x4x256xf32>
    %c0_10 = arith.constant 0 : index
    %c0_11 = arith.constant 0 : index
    %c0_12 = arith.constant 0 : index
    %12 = vector.load %arg8[%c0_10, %c0_11, %c0_12] : memref<2x4x256xf32, #tpu.memory_space<vmem>>, vector<2x4x256xf32>
    tpu.vector_store %arg8[%c0_10, %c0_11, %c0_12], %11 {strides = array<i32>} : memref<2x4x256xf32, #tpu.memory_space<vmem>>, vector<2x4x256xf32>,
    %c0_13 = arith.constant 0 : index
    %c0_14 = arith.constant 0 : index
    %c0_15 = arith.constant 0 : index
    %13 = vector.load %arg2[%c0_13, %c0_14, %c0_15] : memref<2x4x80xf32, #tpu.memory_space<vmem>>, vector<1x4x80xf32>
    %14 = vector.shape_cast %13 : vector<1x4x80xf32> to vector<4x80xf32>
    %c0_16 = arith.constant 0 : index
    %c0_17 = arith.constant 0 : index
    %c0_18 = arith.constant 0 : index
    %15 = vector.load %arg8[%c0_16, %c0_17, %c0_18] : memref<2x4x256xf32, #tpu.memory_space<vmem>>, vector<1x4x256xf32>
    %16 = vector.shape_cast %15 : vector<1x4x256xf32> to vector<4x256xf32>
    %c0_19 = arith.constant 0 : index
    %c0_20 = arith.constant 0 : index
    %c128_21 = arith.constant 128 : index
    %17 = vector.load %arg6[%c0_19, %c0_20, %c128_21] : memref<2x8x512xf32, #tpu.memory_space<vmem>>, vector<1x4x256xf32>
    %18 = vector.shape_cast %17 : vector<1x4x256xf32> to vector<4x256xf32>
    %19 = vector.shape_cast %16 : vector<4x256xf32> to vector<1x4x256xf32>
    tpu.vector_store %arg6[%c0_19, %c0_20, %c128_21], %19 {strides = array<i32>} : memref<2x8x512xf32, #tpu.memory_space<vmem>>, vector<1x4x256xf32>,
    %c1 = arith.constant 1 : index
    %c0_22 = arith.constant 0 : index
    %c0_23 = arith.constant 0 : index
    %20 = vector.load %arg8[%c1, %c0_22, %c0_23] : memref<2x4x256xf32, #tpu.memory_space<vmem>>, vector<1x4x256xf32>
    %21 = vector.shape_cast %20 : vector<1x4x256xf32> to vector<4x256xf32>
    %c1_24 = arith.constant 1 : index
    %c0_25 = arith.constant 0 : index
    %c128_26 = arith.constant 128 : index
    %22 = vector.load %arg6[%c1_24, %c0_25, %c128_26] : memref<2x8x512xf32, #tpu.memory_space<vmem>>, vector<1x4x256xf32>
    %23 = vector.shape_cast %22 : vector<1x4x256xf32> to vector<4x256xf32>
    %24 = vector.shape_cast %21 : vector<4x256xf32> to vector<1x4x256xf32>
    tpu.vector_store %arg6[%c1_24, %c0_25, %c128_26], %24 {strides = array<i32>} : memref<2x8x512xf32, #tpu.memory_space<vmem>>, vector<1x4x256xf32>,
    %c0_27 = arith.constant 0 : index
    %c0_28 = arith.constant 0 : index
    %c111 = arith.constant 111 : index
    %25 = vector.load %arg6[%c0_27, %c0_28, %c111] : memref<2x8x512xf32, #tpu.memory_space<vmem>>, vector<1x8x256xf32>
    %26 = vector.shape_cast %25 : vector<1x8x256xf32> to vector<8x256xf32>
    %c1_29 = arith.constant 1 : index
    %c0_30 = arith.constant 0 : index
    %c0_31 = arith.constant 0 : index
    %27 = vector.load %arg4[%c1_29, %c0_30, %c0_31] : memref<4x8x256xf32, #tpu.memory_space<vmem>>, vector<1x8x256xf32>
    %28 = vector.shape_cast %27 : vector<1x8x256xf32> to vector<8x256xf32>
    %29 = arith.mulf %26, %28 : vector<8x256xf32>
    %c0_32 = arith.constant 0 : index
    %c0_33 = arith.constant 0 : index
    %30 = vector.load %arg7[%c0_32, %c0_33] : memref<80x512xf32, #tpu.memory_space<vmem>>, vector<8x256xf32>
    tpu.vector_store %arg7[%c0_32, %c0_33], %29 {strides = array<i32>} : memref<80x512xf32, #tpu.memory_space<vmem>>, vector<8x256xf32>,
    %c1_34 = arith.constant 1 : index
    %c0_35 = arith.constant 0 : index
    %c111_36 = arith.constant 111 : index
    %31 = vector.load %arg6[%c1_34, %c0_35, %c111_36] : memref<2x8x512xf32, #tpu.memory_space<vmem>>, vector<1x8x256xf32>
    %32 = vector.shape_cast %31 : vector<1x8x256xf32> to vector<8x256xf32>
    %c1_37 = arith.constant 1 : index
    %c0_38 = arith.constant 0 : index
    %c0_39 = arith.constant 0 : index
    %33 = vector.load %arg4[%c1_37, %c0_38, %c0_39] : memref<4x8x256xf32, #tpu.memory_space<vmem>>, vector<1x8x256xf32>
    %34 = vector.shape_cast %33 : vector<1x8x256xf32> to vector<8x256xf32>
    %35 = arith.mulf %32, %34 : vector<8x256xf32>
    %c0_40 = arith.constant 0 : index
    %c256 = arith.constant 256 : index
    %36 = vector.load %arg7[%c0_40, %c256] : memref<80x512xf32, #tpu.memory_space<vmem>>, vector<8x256xf32>
    tpu.vector_store %arg7[%c0_40, %c256], %35 {strides = array<i32>} : memref<80x512xf32, #tpu.memory_space<vmem>>, vector<8x256xf32>,
    %c0_41 = arith.constant 0 : index
    %c0_42 = arith.constant 0 : index
    %c112 = arith.constant 112 : index
    %37 = vector.load %arg6[%c0_41, %c0_42, %c112] : memref<2x8x512xf32, #tpu.memory_space<vmem>>, vector<1x8x256xf32>
    %38 = vector.shape_cast %37 : vector<1x8x256xf32> to vector<8x256xf32>
    %c8 = arith.constant 8 : index
    %c0_43 = arith.constant 0 : index
    %39 = vector.load %arg7[%c8, %c0_43] : memref<80x512xf32, #tpu.memory_space<vmem>>, vector<8x256xf32>
    tpu.vector_store %arg7[%c8, %c0_43], %38 {strides = array<i32>} : memref<80x512xf32, #tpu.memory_space<vmem>>, vector<8x256xf32>,
    %c1_44 = arith.constant 1 : index
    %c0_45 = arith.constant 0 : index
    %c112_46 = arith.constant 112 : index
    %40 = vector.load %arg6[%c1_44, %c0_45, %c112_46] : memref<2x8x512xf32, #tpu.memory_space<vmem>>, vector<1x8x256xf32>
    %41 = vector.shape_cast %40 : vector<1x8x256xf32> to vector<8x256xf32>
    %c8_47 = arith.constant 8 : index
    %c256_48 = arith.constant 256 : index
    %42 = vector.load %arg7[%c8_47, %c256_48] : memref<80x512xf32, #tpu.memory_space<vmem>>, vector<8x256xf32>
    tpu.vector_store %arg7[%c8_47, %c256_48], %41 {strides = array<i32>} : memref<80x512xf32, #tpu.memory_space<vmem>>, vector<8x256xf32>,
    %c0_49 = arith.constant 0 : index
    %c0_50 = arith.constant 0 : index
    %c113 = arith.constant 113 : index
    %43 = vector.load %arg6[%c0_49, %c0_50, %c113] : memref<2x8x512xf32, #tpu.memory_space<vmem>>, vector<1x8x256xf32>
    %44 = vector.shape_cast %43 : vector<1x8x256xf32> to vector<8x256xf32>
    %c2 = arith.constant 2 : index
    %c0_51 = arith.constant 0 : index
    %c0_52 = arith.constant 0 : index
    %45 = vector.load %arg4[%c2, %c0_51, %c0_52] : memref<4x8x256xf32, #tpu.memory_space<vmem>>, vector<1x8x256xf32>
    %46 = vector.shape_cast %45 : vector<1x8x256xf32> to vector<8x256xf32>
    %47 = arith.mulf %44, %46 : vector<8x256xf32>
    %c16 = arith.constant 16 : index
    %c0_53 = arith.constant 0 : index
    %48 = vector.load %arg7[%c16, %c0_53] : memref<80x512xf32, #tpu.memory_space<vmem>>, vector<8x256xf32>
    tpu.vector_store %arg7[%c16, %c0_53], %47 {strides = array<i32>} : memref<80x512xf32, #tpu.memory_space<vmem>>, vector<8x256xf32>,
    %c1_54 = arith.constant 1 : index
    %c0_55 = arith.constant 0 : index
    %c113_56 = arith.constant 113 : index
    %49 = vector.load %arg6[%c1_54, %c0_55, %c113_56] : memref<2x8x512xf32, #tpu.memory_space<vmem>>, vector<1x8x256xf32>
    %50 = vector.shape_cast %49 : vector<1x8x256xf32> to vector<8x256xf32>
    %c2_57 = arith.constant 2 : index
    %c0_58 = arith.constant 0 : index
    %c0_59 = arith.constant 0 : index
    %51 = vector.load %arg4[%c2_57, %c0_58, %c0_59] : memref<4x8x256xf32, #tpu.memory_space<vmem>>, vector<1x8x256xf32>
    %52 = vector.shape_cast %51 : vector<1x8x256xf32> to vector<8x256xf32>
    %53 = arith.mulf %50, %52 : vector<8x256xf32>
    %c16_60 = arith.constant 16 : index
    %c256_61 = arith.constant 256 : index
    %54 = vector.load %arg7[%c16_60, %c256_61] : memref<80x512xf32, #tpu.memory_space<vmem>>, vector<8x256xf32>
    tpu.vector_store %arg7[%c16_60, %c256_61], %53 {strides = array<i32>} : memref<80x512xf32, #tpu.memory_space<vmem>>, vector<8x256xf32>,
    %c0_62 = arith.constant 0 : index
    %c0_63 = arith.constant 0 : index
    %c127 = arith.constant 127 : index
    %55 = vector.load %arg6[%c0_62, %c0_63, %c127] : memref<2x8x512xf32, #tpu.memory_space<vmem>>, vector<1x8x256xf32>
    %56 = vector.shape_cast %55 : vector<1x8x256xf32> to vector<8x256xf32>
    %c1_64 = arith.constant 1 : index
    %c0_65 = arith.constant 0 : index
    %c0_66 = arith.constant 0 : index
    %57 = vector.load %arg4[%c1_64, %c0_65, %c0_66] : memref<4x8x256xf32, #tpu.memory_space<vmem>>, vector<1x8x256xf32>
    %58 = vector.shape_cast %57 : vector<1x8x256xf32> to vector<8x256xf32>
    %59 = arith.mulf %56, %58 : vector<8x256xf32>
    %c24 = arith.constant 24 : index
    %c0_67 = arith.constant 0 : index
    %60 = vector.load %arg7[%c24, %c0_67] : memref<80x512xf32, #tpu.memory_space<vmem>>, vector<8x256xf32>
    tpu.vector_store %arg7[%c24, %c0_67], %59 {strides = array<i32>} : memref<80x512xf32, #tpu.memory_space<vmem>>, vector<8x256xf32>,
    %c1_68 = arith.constant 1 : index
    %c0_69 = arith.constant 0 : index
    %c127_70 = arith.constant 127 : index
    %61 = vector.load %arg6[%c1_68, %c0_69, %c127_70] : memref<2x8x512xf32, #tpu.memory_space<vmem>>, vector<1x8x256xf32>
    %62 = vector.shape_cast %61 : vector<1x8x256xf32> to vector<8x256xf32>
    %c1_71 = arith.constant 1 : index
    %c0_72 = arith.constant 0 : index
    %c0_73 = arith.constant 0 : index
    %63 = vector.load %arg4[%c1_71, %c0_72, %c0_73] : memref<4x8x256xf32, #tpu.memory_space<vmem>>, vector<1x8x256xf32>
    %64 = vector.shape_cast %63 : vector<1x8x256xf32> to vector<8x256xf32>
    %65 = arith.mulf %62, %64 : vector<8x256xf32>
    %c24_74 = arith.constant 24 : index
    %c256_75 = arith.constant 256 : index
    %66 = vector.load %arg7[%c24_74, %c256_75] : memref<80x512xf32, #tpu.memory_space<vmem>>, vector<8x256xf32>
    tpu.vector_store %arg7[%c24_74, %c256_75], %65 {strides = array<i32>} : memref<80x512xf32, #tpu.memory_space<vmem>>, vector<8x256xf32>,
    %c0_76 = arith.constant 0 : index
    %c0_77 = arith.constant 0 : index
    %c128_78 = arith.constant 128 : index
    %67 = vector.load %arg6[%c0_76, %c0_77, %c128_78] : memref<2x8x512xf32, #tpu.memory_space<vmem>>, vector<1x8x256xf32>
    %68 = vector.shape_cast %67 : vector<1x8x256xf32> to vector<8x256xf32>
    %c32 = arith.constant 32 : index
    %c0_79 = arith.constant 0 : index
    %69 = vector.load %arg7[%c32, %c0_79] : memref<80x512xf32, #tpu.memory_space<vmem>>, vector<8x256xf32>
    tpu.vector_store %arg7[%c32, %c0_79], %68 {strides = array<i32>} : memref<80x512xf32, #tpu.memory_space<vmem>>, vector<8x256xf32>,
    %c1_80 = arith.constant 1 : index
    %c0_81 = arith.constant 0 : index
    %c128_82 = arith.constant 128 : index
    %70 = vector.load %arg6[%c1_80, %c0_81, %c128_82] : memref<2x8x512xf32, #tpu.memory_space<vmem>>, vector<1x8x256xf32>
    %71 = vector.shape_cast %70 : vector<1x8x256xf32> to vector<8x256xf32>
    %c32_83 = arith.constant 32 : index
    %c256_84 = arith.constant 256 : index
    %72 = vector.load %arg7[%c32_83, %c256_84] : memref<80x512xf32, #tpu.memory_space<vmem>>, vector<8x256xf32>
    tpu.vector_store %arg7[%c32_83, %c256_84], %71 {strides = array<i32>} : memref<80x512xf32, #tpu.memory_space<vmem>>, vector<8x256xf32>,
    %c0_85 = arith.constant 0 : index
    %c0_86 = arith.constant 0 : index
    %c129 = arith.constant 129 : index
    %73 = vector.load %arg6[%c0_85, %c0_86, %c129] : memref<2x8x512xf32, #tpu.memory_space<vmem>>, vector<1x8x256xf32>
    %74 = vector.shape_cast %73 : vector<1x8x256xf32> to vector<8x256xf32>
    %c2_87 = arith.constant 2 : index
    %c0_88 = arith.constant 0 : index
    %c0_89 = arith.constant 0 : index
    %75 = vector.load %arg4[%c2_87, %c0_88, %c0_89] : memref<4x8x256xf32, #tpu.memory_space<vmem>>, vector<1x8x256xf32>
    %76 = vector.shape_cast %75 : vector<1x8x256xf32> to vector<8x256xf32>
    %77 = arith.mulf %74, %76 : vector<8x256xf32>
    %c40 = arith.constant 40 : index
    %c0_90 = arith.constant 0 : index
    %78 = vector.load %arg7[%c40, %c0_90] : memref<80x512xf32, #tpu.memory_space<vmem>>, vector<8x256xf32>
    tpu.vector_store %arg7[%c40, %c0_90], %77 {strides = array<i32>} : memref<80x512xf32, #tpu.memory_space<vmem>>, vector<8x256xf32>,
    %c1_91 = arith.constant 1 : index
    %c0_92 = arith.constant 0 : index
    %c129_93 = arith.constant 129 : index
    %79 = vector.load %arg6[%c1_91, %c0_92, %c129_93] : memref<2x8x512xf32, #tpu.memory_space<vmem>>, vector<1x8x256xf32>
    %80 = vector.shape_cast %79 : vector<1x8x256xf32> to vector<8x256xf32>
    %c2_94 = arith.constant 2 : index
    %c0_95 = arith.constant 0 : index
    %c0_96 = arith.constant 0 : index
    %81 = vector.load %arg4[%c2_94, %c0_95, %c0_96] : memref<4x8x256xf32, #tpu.memory_space<vmem>>, vector<1x8x256xf32>
    %82 = vector.shape_cast %81 : vector<1x8x256xf32> to vector<8x256xf32>
    %83 = arith.mulf %80, %82 : vector<8x256xf32>
    %c40_97 = arith.constant 40 : index
    %c256_98 = arith.constant 256 : index
    %84 = vector.load %arg7[%c40_97, %c256_98] : memref<80x512xf32, #tpu.memory_space<vmem>>, vector<8x256xf32>
    tpu.vector_store %arg7[%c40_97, %c256_98], %83 {strides = array<i32>} : memref<80x512xf32, #tpu.memory_space<vmem>>, vector<8x256xf32>,
    %c0_99 = arith.constant 0 : index
    %c0_100 = arith.constant 0 : index
    %c143 = arith.constant 143 : index
    %85 = vector.load %arg6[%c0_99, %c0_100, %c143] : memref<2x8x512xf32, #tpu.memory_space<vmem>>, vector<1x8x256xf32>
    %86 = vector.shape_cast %85 : vector<1x8x256xf32> to vector<8x256xf32>
    %c1_101 = arith.constant 1 : index
    %c0_102 = arith.constant 0 : index
    %c0_103 = arith.constant 0 : index
    %87 = vector.load %arg4[%c1_101, %c0_102, %c0_103] : memref<4x8x256xf32, #tpu.memory_space<vmem>>, vector<1x8x256xf32>
    %88 = vector.shape_cast %87 : vector<1x8x256xf32> to vector<8x256xf32>
    %89 = arith.mulf %86, %88 : vector<8x256xf32>
    %c48 = arith.constant 48 : index
    %c0_104 = arith.constant 0 : index
    %90 = vector.load %arg7[%c48, %c0_104] : memref<80x512xf32, #tpu.memory_space<vmem>>, vector<8x256xf32>
    tpu.vector_store %arg7[%c48, %c0_104], %89 {strides = array<i32>} : memref<80x512xf32, #tpu.memory_space<vmem>>, vector<8x256xf32>,
    %c1_105 = arith.constant 1 : index
    %c0_106 = arith.constant 0 : index
    %c143_107 = arith.constant 143 : index
    %91 = vector.load %arg6[%c1_105, %c0_106, %c143_107] : memref<2x8x512xf32, #tpu.memory_space<vmem>>, vector<1x8x256xf32>
    %92 = vector.shape_cast %91 : vector<1x8x256xf32> to vector<8x256xf32>
    %c1_108 = arith.constant 1 : index
    %c0_109 = arith.constant 0 : index
    %c0_110 = arith.constant 0 : index
    %93 = vector.load %arg4[%c1_108, %c0_109, %c0_110] : memref<4x8x256xf32, #tpu.memory_space<vmem>>, vector<1x8x256xf32>
    %94 = vector.shape_cast %93 : vector<1x8x256xf32> to vector<8x256xf32>
    %95 = arith.mulf %92, %94 : vector<8x256xf32>
    %c48_111 = arith.constant 48 : index
    %c256_112 = arith.constant 256 : index
    %96 = vector.load %arg7[%c48_111, %c256_112] : memref<80x512xf32, #tpu.memory_space<vmem>>, vector<8x256xf32>
    tpu.vector_store %arg7[%c48_111, %c256_112], %95 {strides = array<i32>} : memref<80x512xf32, #tpu.memory_space<vmem>>, vector<8x256xf32>,
    %c0_113 = arith.constant 0 : index
    %c0_114 = arith.constant 0 : index
    %c144 = arith.constant 144 : index
    %97 = vector.load %arg6[%c0_113, %c0_114, %c144] : memref<2x8x512xf32, #tpu.memory_space<vmem>>, vector<1x8x256xf32>
    %98 = vector.shape_cast %97 : vector<1x8x256xf32> to vector<8x256xf32>
    %c56 = arith.constant 56 : index
    %c0_115 = arith.constant 0 : index
    %99 = vector.load %arg7[%c56, %c0_115] : memref<80x512xf32, #tpu.memory_space<vmem>>, vector<8x256xf32>
    tpu.vector_store %arg7[%c56, %c0_115], %98 {strides = array<i32>} : memref<80x512xf32, #tpu.memory_space<vmem>>, vector<8x256xf32>,
    %c1_116 = arith.constant 1 : index
    %c0_117 = arith.constant 0 : index
    %c144_118 = arith.constant 144 : index
    %100 = vector.load %arg6[%c1_116, %c0_117, %c144_118] : memref<2x8x512xf32, #tpu.memory_space<vmem>>, vector<1x8x256xf32>
    %101 = vector.shape_cast %100 : vector<1x8x256xf32> to vector<8x256xf32>
    %c56_119 = arith.constant 56 : index
    %c256_120 = arith.constant 256 : index
    %102 = vector.load %arg7[%c56_119, %c256_120] : memref<80x512xf32, #tpu.memory_space<vmem>>, vector<8x256xf32>
    tpu.vector_store %arg7[%c56_119, %c256_120], %101 {strides = array<i32>} : memref<80x512xf32, #tpu.memory_space<vmem>>, vector<8x256xf32>,
    %c0_121 = arith.constant 0 : index
    %c0_122 = arith.constant 0 : index
    %c145 = arith.constant 145 : index
    %103 = vector.load %arg6[%c0_121, %c0_122, %c145] : memref<2x8x512xf32, #tpu.memory_space<vmem>>, vector<1x8x256xf32>
    %104 = vector.shape_cast %103 : vector<1x8x256xf32> to vector<8x256xf32>
    %c2_123 = arith.constant 2 : index
    %c0_124 = arith.constant 0 : index
    %c0_125 = arith.constant 0 : index
    %105 = vector.load %arg4[%c2_123, %c0_124, %c0_125] : memref<4x8x256xf32, #tpu.memory_space<vmem>>, vector<1x8x256xf32>
    %106 = vector.shape_cast %105 : vector<1x8x256xf32> to vector<8x256xf32>
    %107 = arith.mulf %104, %106 : vector<8x256xf32>
    %c64 = arith.constant 64 : index
    %c0_126 = arith.constant 0 : index
    %108 = vector.load %arg7[%c64, %c0_126] : memref<80x512xf32, #tpu.memory_space<vmem>>, vector<8x256xf32>
    tpu.vector_store %arg7[%c64, %c0_126], %107 {strides = array<i32>} : memref<80x512xf32, #tpu.memory_space<vmem>>, vector<8x256xf32>,
    %c1_127 = arith.constant 1 : index
    %c0_128 = arith.constant 0 : index
    %c145_129 = arith.constant 145 : index
    %109 = vector.load %arg6[%c1_127, %c0_128, %c145_129] : memref<2x8x512xf32, #tpu.memory_space<vmem>>, vector<1x8x256xf32>
    %110 = vector.shape_cast %109 : vector<1x8x256xf32> to vector<8x256xf32>
    %c2_130 = arith.constant 2 : index
    %c0_131 = arith.constant 0 : index
    %c0_132 = arith.constant 0 : index
    %111 = vector.load %arg4[%c2_130, %c0_131, %c0_132] : memref<4x8x256xf32, #tpu.memory_space<vmem>>, vector<1x8x256xf32>
    %112 = vector.shape_cast %111 : vector<1x8x256xf32> to vector<8x256xf32>
    %113 = arith.mulf %110, %112 : vector<8x256xf32>
    %c64_133 = arith.constant 64 : index
    %c256_134 = arith.constant 256 : index
    %114 = vector.load %arg7[%c64_133, %c256_134] : memref<80x512xf32, #tpu.memory_space<vmem>>, vector<8x256xf32>
    tpu.vector_store %arg7[%c64_133, %c256_134], %113 {strides = array<i32>} : memref<80x512xf32, #tpu.memory_space<vmem>>, vector<8x256xf32>,
    %c0_135 = arith.constant 0 : index
    %c0_136 = arith.constant 0 : index
    %115 = vector.load %arg7[%c0_135, %c0_136] : memref<80x512xf32, #tpu.memory_space<vmem>>, vector<80x512xf32>
    %cst_137 = arith.constant dense<0.000000e+00> : vector<4x512xf32>
    %116 = tpu.matmul %14, %115, %cst_137 {dimension_numbers = #tpu.dot_dimension_numbers<[1], [0], [0], [1], [0, 0, 1, 1], [], []>} : vector<4x80xf32>, vector<80x512xf32>, vector<4x512xf32> -> vector<4x512xf32>
    %cst_138 = arith.constant 1.000000e-01 : f32
    %117 = vector.broadcast %cst_138 : f32 to vector<4x512xf32>
    %118 = arith.mulf %117, %116 : vector<4x512xf32>
    %119 = arith.maximumf %116, %118 : vector<4x512xf32>
    %c0_139 = arith.constant 0 : index
    %c0_140 = arith.constant 0 : index
    %c0_141 = arith.constant 0 : index
    %120 = vector.load %arg3[%c0_139, %c0_140, %c0_141] : memref<2x4x80xf32, #tpu.memory_space<vmem>>, vector<1x4x80xf32>
    %121 = vector.shape_cast %120 : vector<1x4x80xf32> to vector<4x80xf32>
    %122 = vector.extract_strided_slice %119 {offsets = [0, 0], sizes = [4, 256], strides = [1, 1]} : vector<4x512xf32> to vector<4x256xf32>
    %c0_142 = arith.constant 0 : index
    %c0_143 = arith.constant 0 : index
    %c128_144 = arith.constant 128 : index
    %123 = vector.load %arg6[%c0_142, %c0_143, %c128_144] : memref<2x8x512xf32, #tpu.memory_space<vmem>>, vector<1x4x256xf32>
    %124 = vector.shape_cast %123 : vector<1x4x256xf32> to vector<4x256xf32>
    %125 = vector.shape_cast %122 : vector<4x256xf32> to vector<1x4x256xf32>
    tpu.vector_store %arg6[%c0_142, %c0_143, %c128_144], %125 {strides = array<i32>} : memref<2x8x512xf32, #tpu.memory_space<vmem>>, vector<1x4x256xf32>,
    %126 = vector.extract_strided_slice %119 {offsets = [0, 256], sizes = [4, 256], strides = [1, 1]} : vector<4x512xf32> to vector<4x256xf32>
    %c1_145 = arith.constant 1 : index
    %c0_146 = arith.constant 0 : index
    %c128_147 = arith.constant 128 : index
    %127 = vector.load %arg6[%c1_145, %c0_146, %c128_147] : memref<2x8x512xf32, #tpu.memory_space<vmem>>, vector<1x4x256xf32>
    %128 = vector.shape_cast %127 : vector<1x4x256xf32> to vector<4x256xf32>
    %129 = vector.shape_cast %126 : vector<4x256xf32> to vector<1x4x256xf32>
    tpu.vector_store %arg6[%c1_145, %c0_146, %c128_147], %129 {strides = array<i32>} : memref<2x8x512xf32, #tpu.memory_space<vmem>>, vector<1x4x256xf32>,
    %c0_148 = arith.constant 0 : index
    %c0_149 = arith.constant 0 : index
    %c94 = arith.constant 94 : index
    %130 = vector.load %arg6[%c0_148, %c0_149, %c94] : memref<2x8x512xf32, #tpu.memory_space<vmem>>, vector<1x8x256xf32>
    %131 = vector.shape_cast %130 : vector<1x8x256xf32> to vector<8x256xf32>
    %c0_150 = arith.constant 0 : index
    %c0_151 = arith.constant 0 : index
    %c0_152 = arith.constant 0 : index
    %132 = vector.load %arg4[%c0_150, %c0_151, %c0_152] : memref<4x8x256xf32, #tpu.memory_space<vmem>>, vector<1x8x256xf32>
    %133 = vector.shape_cast %132 : vector<1x8x256xf32> to vector<8x256xf32>
    %134 = arith.mulf %131, %133 : vector<8x256xf32>
    %c0_153 = arith.constant 0 : index
    %c0_154 = arith.constant 0 : index
    %135 = vector.load %arg7[%c0_153, %c0_154] : memref<80x512xf32, #tpu.memory_space<vmem>>, vector<8x256xf32>
    tpu.vector_store %arg7[%c0_153, %c0_154], %134 {strides = array<i32>} : memref<80x512xf32, #tpu.memory_space<vmem>>, vector<8x256xf32>,
    %c1_155 = arith.constant 1 : index
    %c0_156 = arith.constant 0 : index
    %c94_157 = arith.constant 94 : index
    %136 = vector.load %arg6[%c1_155, %c0_156, %c94_157] : memref<2x8x512xf32, #tpu.memory_space<vmem>>, vector<1x8x256xf32>
    %137 = vector.shape_cast %136 : vector<1x8x256xf32> to vector<8x256xf32>
    %c0_158 = arith.constant 0 : index
    %c0_159 = arith.constant 0 : index
    %c0_160 = arith.constant 0 : index
    %138 = vector.load %arg4[%c0_158, %c0_159, %c0_160] : memref<4x8x256xf32, #tpu.memory_space<vmem>>, vector<1x8x256xf32>
    %139 = vector.shape_cast %138 : vector<1x8x256xf32> to vector<8x256xf32>
    %140 = arith.mulf %137, %139 : vector<8x256xf32>
    %c0_161 = arith.constant 0 : index
    %c256_162 = arith.constant 256 : index
    %141 = vector.load %arg7[%c0_161, %c256_162] : memref<80x512xf32, #tpu.memory_space<vmem>>, vector<8x256xf32>
    tpu.vector_store %arg7[%c0_161, %c256_162], %140 {strides = array<i32>} : memref<80x512xf32, #tpu.memory_space<vmem>>, vector<8x256xf32>,
    %c0_163 = arith.constant 0 : index
    %c0_164 = arith.constant 0 : index
    %c96 = arith.constant 96 : index
    %142 = vector.load %arg6[%c0_163, %c0_164, %c96] : memref<2x8x512xf32, #tpu.memory_space<vmem>>, vector<1x8x256xf32>
    %143 = vector.shape_cast %142 : vector<1x8x256xf32> to vector<8x256xf32>
    %c8_165 = arith.constant 8 : index
    %c0_166 = arith.constant 0 : index
    %144 = vector.load %arg7[%c8_165, %c0_166] : memref<80x512xf32, #tpu.memory_space<vmem>>, vector<8x256xf32>
    tpu.vector_store %arg7[%c8_165, %c0_166], %143 {strides = array<i32>} : memref<80x512xf32, #tpu.memory_space<vmem>>, vector<8x256xf32>,
    %c1_167 = arith.constant 1 : index
    %c0_168 = arith.constant 0 : index
    %c96_169 = arith.constant 96 : index
    %145 = vector.load %arg6[%c1_167, %c0_168, %c96_169] : memref<2x8x512xf32, #tpu.memory_space<vmem>>, vector<1x8x256xf32>
    %146 = vector.shape_cast %145 : vector<1x8x256xf32> to vector<8x256xf32>
    %c8_170 = arith.constant 8 : index
    %c256_171 = arith.constant 256 : index
    %147 = vector.load %arg7[%c8_170, %c256_171] : memref<80x512xf32, #tpu.memory_space<vmem>>, vector<8x256xf32>
    tpu.vector_store %arg7[%c8_170, %c256_171], %146 {strides = array<i32>} : memref<80x512xf32, #tpu.memory_space<vmem>>, vector<8x256xf32>,
    %c0_172 = arith.constant 0 : index
    %c0_173 = arith.constant 0 : index
    %c98 = arith.constant 98 : index
    %148 = vector.load %arg6[%c0_172, %c0_173, %c98] : memref<2x8x512xf32, #tpu.memory_space<vmem>>, vector<1x8x256xf32>
    %149 = vector.shape_cast %148 : vector<1x8x256xf32> to vector<8x256xf32>
    %c3 = arith.constant 3 : index
    %c0_174 = arith.constant 0 : index
    %c0_175 = arith.constant 0 : index
    %150 = vector.load %arg4[%c3, %c0_174, %c0_175] : memref<4x8x256xf32, #tpu.memory_space<vmem>>, vector<1x8x256xf32>
    %151 = vector.shape_cast %150 : vector<1x8x256xf32> to vector<8x256xf32>
    %152 = arith.mulf %149, %151 : vector<8x256xf32>
    %c16_176 = arith.constant 16 : index
    %c0_177 = arith.constant 0 : index
    %153 = vector.load %arg7[%c16_176, %c0_177] : memref<80x512xf32, #tpu.memory_space<vmem>>, vector<8x256xf32>
    tpu.vector_store %arg7[%c16_176, %c0_177], %152 {strides = array<i32>} : memref<80x512xf32, #tpu.memory_space<vmem>>, vector<8x256xf32>,
    %c1_178 = arith.constant 1 : index
    %c0_179 = arith.constant 0 : index
    %c98_180 = arith.constant 98 : index
    %154 = vector.load %arg6[%c1_178, %c0_179, %c98_180] : memref<2x8x512xf32, #tpu.memory_space<vmem>>, vector<1x8x256xf32>
    %155 = vector.shape_cast %154 : vector<1x8x256xf32> to vector<8x256xf32>
    %c3_181 = arith.constant 3 : index
    %c0_182 = arith.constant 0 : index
    %c0_183 = arith.constant 0 : index
    %156 = vector.load %arg4[%c3_181, %c0_182, %c0_183] : memref<4x8x256xf32, #tpu.memory_space<vmem>>, vector<1x8x256xf32>
    %157 = vector.shape_cast %156 : vector<1x8x256xf32> to vector<8x256xf32>
    %158 = arith.mulf %155, %157 : vector<8x256xf32>
    %c16_184 = arith.constant 16 : index
    %c256_185 = arith.constant 256 : index
    %159 = vector.load %arg7[%c16_184, %c256_185] : memref<80x512xf32, #tpu.memory_space<vmem>>, vector<8x256xf32>
    tpu.vector_store %arg7[%c16_184, %c256_185], %158 {strides = array<i32>} : memref<80x512xf32, #tpu.memory_space<vmem>>, vector<8x256xf32>,
    %c0_186 = arith.constant 0 : index
    %c0_187 = arith.constant 0 : index
    %c126 = arith.constant 126 : index
    %160 = vector.load %arg6[%c0_186, %c0_187, %c126] : memref<2x8x512xf32, #tpu.memory_space<vmem>>, vector<1x8x256xf32>
    %161 = vector.shape_cast %160 : vector<1x8x256xf32> to vector<8x256xf32>
    %c0_188 = arith.constant 0 : index
    %c0_189 = arith.constant 0 : index
    %c0_190 = arith.constant 0 : index
    %162 = vector.load %arg4[%c0_188, %c0_189, %c0_190] : memref<4x8x256xf32, #tpu.memory_space<vmem>>, vector<1x8x256xf32>
    %163 = vector.shape_cast %162 : vector<1x8x256xf32> to vector<8x256xf32>
    %164 = arith.mulf %161, %163 : vector<8x256xf32>
    %c24_191 = arith.constant 24 : index
    %c0_192 = arith.constant 0 : index
    %165 = vector.load %arg7[%c24_191, %c0_192] : memref<80x512xf32, #tpu.memory_space<vmem>>, vector<8x256xf32>
    tpu.vector_store %arg7[%c24_191, %c0_192], %164 {strides = array<i32>} : memref<80x512xf32, #tpu.memory_space<vmem>>, vector<8x256xf32>,
    %c1_193 = arith.constant 1 : index
    %c0_194 = arith.constant 0 : index
    %c126_195 = arith.constant 126 : index
    %166 = vector.load %arg6[%c1_193, %c0_194, %c126_195] : memref<2x8x512xf32, #tpu.memory_space<vmem>>, vector<1x8x256xf32>
    %167 = vector.shape_cast %166 : vector<1x8x256xf32> to vector<8x256xf32>
    %c0_196 = arith.constant 0 : index
    %c0_197 = arith.constant 0 : index
    %c0_198 = arith.constant 0 : index
    %168 = vector.load %arg4[%c0_196, %c0_197, %c0_198] : memref<4x8x256xf32, #tpu.memory_space<vmem>>, vector<1x8x256xf32>
    %169 = vector.shape_cast %168 : vector<1x8x256xf32> to vector<8x256xf32>
    %170 = arith.mulf %167, %169 : vector<8x256xf32>
    %c24_199 = arith.constant 24 : index
    %c256_200 = arith.constant 256 : index
    %171 = vector.load %arg7[%c24_199, %c256_200] : memref<80x512xf32, #tpu.memory_space<vmem>>, vector<8x256xf32>
    tpu.vector_store %arg7[%c24_199, %c256_200], %170 {strides = array<i32>} : memref<80x512xf32, #tpu.memory_space<vmem>>, vector<8x256xf32>,
    %c0_201 = arith.constant 0 : index
    %c0_202 = arith.constant 0 : index
    %c128_203 = arith.constant 128 : index
    %172 = vector.load %arg6[%c0_201, %c0_202, %c128_203] : memref<2x8x512xf32, #tpu.memory_space<vmem>>, vector<1x8x256xf32>
    %173 = vector.shape_cast %172 : vector<1x8x256xf32> to vector<8x256xf32>
    %c32_204 = arith.constant 32 : index
    %c0_205 = arith.constant 0 : index
    %174 = vector.load %arg7[%c32_204, %c0_205] : memref<80x512xf32, #tpu.memory_space<vmem>>, vector<8x256xf32>
    tpu.vector_store %arg7[%c32_204, %c0_205], %173 {strides = array<i32>} : memref<80x512xf32, #tpu.memory_space<vmem>>, vector<8x256xf32>,
    %c1_206 = arith.constant 1 : index
    %c0_207 = arith.constant 0 : index
    %c128_208 = arith.constant 128 : index
    %175 = vector.load %arg6[%c1_206, %c0_207, %c128_208] : memref<2x8x512xf32, #tpu.memory_space<vmem>>, vector<1x8x256xf32>
    %176 = vector.shape_cast %175 : vector<1x8x256xf32> to vector<8x256xf32>
    %c32_209 = arith.constant 32 : index
    %c256_210 = arith.constant 256 : index
    %177 = vector.load %arg7[%c32_209, %c256_210] : memref<80x512xf32, #tpu.memory_space<vmem>>, vector<8x256xf32>
    tpu.vector_store %arg7[%c32_209, %c256_210], %176 {strides = array<i32>} : memref<80x512xf32, #tpu.memory_space<vmem>>, vector<8x256xf32>,
    %c0_211 = arith.constant 0 : index
    %c0_212 = arith.constant 0 : index
    %c130 = arith.constant 130 : index
    %178 = vector.load %arg6[%c0_211, %c0_212, %c130] : memref<2x8x512xf32, #tpu.memory_space<vmem>>, vector<1x8x256xf32>
    %179 = vector.shape_cast %178 : vector<1x8x256xf32> to vector<8x256xf32>
    %c3_213 = arith.constant 3 : index
    %c0_214 = arith.constant 0 : index
    %c0_215 = arith.constant 0 : index
    %180 = vector.load %arg4[%c3_213, %c0_214, %c0_215] : memref<4x8x256xf32, #tpu.memory_space<vmem>>, vector<1x8x256xf32>
    %181 = vector.shape_cast %180 : vector<1x8x256xf32> to vector<8x256xf32>
    %182 = arith.mulf %179, %181 : vector<8x256xf32>
    %c40_216 = arith.constant 40 : index
    %c0_217 = arith.constant 0 : index
    %183 = vector.load %arg7[%c40_216, %c0_217] : memref<80x512xf32, #tpu.memory_space<vmem>>, vector<8x256xf32>
    tpu.vector_store %arg7[%c40_216, %c0_217], %182 {strides = array<i32>} : memref<80x512xf32, #tpu.memory_space<vmem>>, vector<8x256xf32>,
    %c1_218 = arith.constant 1 : index
    %c0_219 = arith.constant 0 : index
    %c130_220 = arith.constant 130 : index
    %184 = vector.load %arg6[%c1_218, %c0_219, %c130_220] : memref<2x8x512xf32, #tpu.memory_space<vmem>>, vector<1x8x256xf32>
    %185 = vector.shape_cast %184 : vector<1x8x256xf32> to vector<8x256xf32>
    %c3_221 = arith.constant 3 : index
    %c0_222 = arith.constant 0 : index
    %c0_223 = arith.constant 0 : index
    %186 = vector.load %arg4[%c3_221, %c0_222, %c0_223] : memref<4x8x256xf32, #tpu.memory_space<vmem>>, vector<1x8x256xf32>
    %187 = vector.shape_cast %186 : vector<1x8x256xf32> to vector<8x256xf32>
    %188 = arith.mulf %185, %187 : vector<8x256xf32>
    %c40_224 = arith.constant 40 : index
    %c256_225 = arith.constant 256 : index
    %189 = vector.load %arg7[%c40_224, %c256_225] : memref<80x512xf32, #tpu.memory_space<vmem>>, vector<8x256xf32>
    tpu.vector_store %arg7[%c40_224, %c256_225], %188 {strides = array<i32>} : memref<80x512xf32, #tpu.memory_space<vmem>>, vector<8x256xf32>,
    %c0_226 = arith.constant 0 : index
    %c0_227 = arith.constant 0 : index
    %c158 = arith.constant 158 : index
    %190 = vector.load %arg6[%c0_226, %c0_227, %c158] : memref<2x8x512xf32, #tpu.memory_space<vmem>>, vector<1x8x256xf32>
    %191 = vector.shape_cast %190 : vector<1x8x256xf32> to vector<8x256xf32>
    %c0_228 = arith.constant 0 : index
    %c0_229 = arith.constant 0 : index
    %c0_230 = arith.constant 0 : index
    %192 = vector.load %arg4[%c0_228, %c0_229, %c0_230] : memref<4x8x256xf32, #tpu.memory_space<vmem>>, vector<1x8x256xf32>
    %193 = vector.shape_cast %192 : vector<1x8x256xf32> to vector<8x256xf32>
    %194 = arith.mulf %191, %193 : vector<8x256xf32>
    %c48_231 = arith.constant 48 : index
    %c0_232 = arith.constant 0 : index
    %195 = vector.load %arg7[%c48_231, %c0_232] : memref<80x512xf32, #tpu.memory_space<vmem>>, vector<8x256xf32>
    tpu.vector_store %arg7[%c48_231, %c0_232], %194 {strides = array<i32>} : memref<80x512xf32, #tpu.memory_space<vmem>>, vector<8x256xf32>,
    %c1_233 = arith.constant 1 : index
    %c0_234 = arith.constant 0 : index
    %c158_235 = arith.constant 158 : index
    %196 = vector.load %arg6[%c1_233, %c0_234, %c158_235] : memref<2x8x512xf32, #tpu.memory_space<vmem>>, vector<1x8x256xf32>
    %197 = vector.shape_cast %196 : vector<1x8x256xf32> to vector<8x256xf32>
    %c0_236 = arith.constant 0 : index
    %c0_237 = arith.constant 0 : index
    %c0_238 = arith.constant 0 : index
    %198 = vector.load %arg4[%c0_236, %c0_237, %c0_238] : memref<4x8x256xf32, #tpu.memory_space<vmem>>, vector<1x8x256xf32>
    %199 = vector.shape_cast %198 : vector<1x8x256xf32> to vector<8x256xf32>
    %200 = arith.mulf %197, %199 : vector<8x256xf32>
    %c48_239 = arith.constant 48 : index
    %c256_240 = arith.constant 256 : index
    %201 = vector.load %arg7[%c48_239, %c256_240] : memref<80x512xf32, #tpu.memory_space<vmem>>, vector<8x256xf32>
    tpu.vector_store %arg7[%c48_239, %c256_240], %200 {strides = array<i32>} : memref<80x512xf32, #tpu.memory_space<vmem>>, vector<8x256xf32>,
    %c0_241 = arith.constant 0 : index
    %c0_242 = arith.constant 0 : index
    %c160 = arith.constant 160 : index
    %202 = vector.load %arg6[%c0_241, %c0_242, %c160] : memref<2x8x512xf32, #tpu.memory_space<vmem>>, vector<1x8x256xf32>
    %203 = vector.shape_cast %202 : vector<1x8x256xf32> to vector<8x256xf32>
    %c56_243 = arith.constant 56 : index
    %c0_244 = arith.constant 0 : index
    %204 = vector.load %arg7[%c56_243, %c0_244] : memref<80x512xf32, #tpu.memory_space<vmem>>, vector<8x256xf32>
    tpu.vector_store %arg7[%c56_243, %c0_244], %203 {strides = array<i32>} : memref<80x512xf32, #tpu.memory_space<vmem>>, vector<8x256xf32>,
    %c1_245 = arith.constant 1 : index
    %c0_246 = arith.constant 0 : index
    %c160_247 = arith.constant 160 : index
    %205 = vector.load %arg6[%c1_245, %c0_246, %c160_247] : memref<2x8x512xf32, #tpu.memory_space<vmem>>, vector<1x8x256xf32>
    %206 = vector.shape_cast %205 : vector<1x8x256xf32> to vector<8x256xf32>
    %c56_248 = arith.constant 56 : index
    %c256_249 = arith.constant 256 : index
    %207 = vector.load %arg7[%c56_248, %c256_249] : memref<80x512xf32, #tpu.memory_space<vmem>>, vector<8x256xf32>
    tpu.vector_store %arg7[%c56_248, %c256_249], %206 {strides = array<i32>} : memref<80x512xf32, #tpu.memory_space<vmem>>, vector<8x256xf32>,
    %c0_250 = arith.constant 0 : index
    %c0_251 = arith.constant 0 : index
    %c162 = arith.constant 162 : index
    %208 = vector.load %arg6[%c0_250, %c0_251, %c162] : memref<2x8x512xf32, #tpu.memory_space<vmem>>, vector<1x8x256xf32>
    %209 = vector.shape_cast %208 : vector<1x8x256xf32> to vector<8x256xf32>
    %c3_252 = arith.constant 3 : index
    %c0_253 = arith.constant 0 : index
    %c0_254 = arith.constant 0 : index
    %210 = vector.load %arg4[%c3_252, %c0_253, %c0_254] : memref<4x8x256xf32, #tpu.memory_space<vmem>>, vector<1x8x256xf32>
    %211 = vector.shape_cast %210 : vector<1x8x256xf32> to vector<8x256xf32>
    %212 = arith.mulf %209, %211 : vector<8x256xf32>
    %c64_255 = arith.constant 64 : index
    %c0_256 = arith.constant 0 : index
    %213 = vector.load %arg7[%c64_255, %c0_256] : memref<80x512xf32, #tpu.memory_space<vmem>>, vector<8x256xf32>
    tpu.vector_store %arg7[%c64_255, %c0_256], %212 {strides = array<i32>} : memref<80x512xf32, #tpu.memory_space<vmem>>, vector<8x256xf32>,
    %c1_257 = arith.constant 1 : index
    %c0_258 = arith.constant 0 : index
    %c162_259 = arith.constant 162 : index
    %214 = vector.load %arg6[%c1_257, %c0_258, %c162_259] : memref<2x8x512xf32, #tpu.memory_space<vmem>>, vector<1x8x256xf32>
    %215 = vector.shape_cast %214 : vector<1x8x256xf32> to vector<8x256xf32>
    %c3_260 = arith.constant 3 : index
    %c0_261 = arith.constant 0 : index
    %c0_262 = arith.constant 0 : index
    %216 = vector.load %arg4[%c3_260, %c0_261, %c0_262] : memref<4x8x256xf32, #tpu.memory_space<vmem>>, vector<1x8x256xf32>
    %217 = vector.shape_cast %216 : vector<1x8x256xf32> to vector<8x256xf32>
    %218 = arith.mulf %215, %217 : vector<8x256xf32>
    %c64_263 = arith.constant 64 : index
    %c256_264 = arith.constant 256 : index
    %219 = vector.load %arg7[%c64_263, %c256_264] : memref<80x512xf32, #tpu.memory_space<vmem>>, vector<8x256xf32>
    tpu.vector_store %arg7[%c64_263, %c256_264], %218 {strides = array<i32>} : memref<80x512xf32, #tpu.memory_space<vmem>>, vector<8x256xf32>,
    %c0_265 = arith.constant 0 : index
    %c0_266 = arith.constant 0 : index
    %220 = vector.load %arg7[%c0_265, %c0_266] : memref<80x512xf32, #tpu.memory_space<vmem>>, vector<80x512xf32>
    %cst_267 = arith.constant dense<0.000000e+00> : vector<4x512xf32>
    %221 = tpu.matmul %121, %220, %cst_267 {dimension_numbers = #tpu.dot_dimension_numbers<[1], [0], [0], [1], [0, 0, 1, 1], [], []>} : vector<4x80xf32>, vector<80x512xf32>, vector<4x512xf32> -> vector<4x512xf32>
    %c0_268 = arith.constant 0 : index
    %c0_269 = arith.constant 0 : index
    %c0_270 = arith.constant 0 : index
    %222 = vector.load %arg8[%c0_268, %c0_269, %c0_270] : memref<2x4x256xf32, #tpu.memory_space<vmem>>, vector<1x4x256xf32>
    %223 = vector.shape_cast %222 : vector<1x4x256xf32> to vector<4x256xf32>
    %224 = vector.extract_strided_slice %221 {offsets = [0, 0], sizes = [4, 256], strides = [1, 1]} : vector<4x512xf32> to vector<4x256xf32>
    %225 = arith.addf %223, %224 : vector<4x256xf32>
    %c0_271 = arith.constant 0 : index
    %c0_272 = arith.constant 0 : index
    %c0_273 = arith.constant 0 : index
    %226 = vector.load %arg8[%c0_271, %c0_272, %c0_273] : memref<2x4x256xf32, #tpu.memory_space<vmem>>, vector<1x4x256xf32>
    %227 = vector.shape_cast %226 : vector<1x4x256xf32> to vector<4x256xf32>
    %228 = vector.shape_cast %225 : vector<4x256xf32> to vector<1x4x256xf32>
    tpu.vector_store %arg8[%c0_271, %c0_272, %c0_273], %228 {strides = array<i32>} : memref<2x4x256xf32, #tpu.memory_space<vmem>>, vector<1x4x256xf32>,
    %c1_274 = arith.constant 1 : index
    %c0_275 = arith.constant 0 : index
    %c0_276 = arith.constant 0 : index
    %229 = vector.load %arg8[%c1_274, %c0_275, %c0_276] : memref<2x4x256xf32, #tpu.memory_space<vmem>>, vector<1x4x256xf32>
    %230 = vector.shape_cast %229 : vector<1x4x256xf32> to vector<4x256xf32>
    %231 = vector.extract_strided_slice %221 {offsets = [0, 256], sizes = [4, 256], strides = [1, 1]} : vector<4x512xf32> to vector<4x256xf32>
    %232 = arith.addf %230, %231 : vector<4x256xf32>
    %c1_277 = arith.constant 1 : index
    %c0_278 = arith.constant 0 : index
    %c0_279 = arith.constant 0 : index
    %233 = vector.load %arg8[%c1_277, %c0_278, %c0_279] : memref<2x4x256xf32, #tpu.memory_space<vmem>>, vector<1x4x256xf32>
    %234 = vector.shape_cast %233 : vector<1x4x256xf32> to vector<4x256xf32>
    %235 = vector.shape_cast %232 : vector<4x256xf32> to vector<1x4x256xf32>
    tpu.vector_store %arg8[%c1_277, %c0_278, %c0_279], %235 {strides = array<i32>} : memref<2x4x256xf32, #tpu.memory_space<vmem>>, vector<1x4x256xf32>,
    %c1_280 = arith.constant 1 : index
    %c0_281 = arith.constant 0 : index
    %c0_282 = arith.constant 0 : index
    %236 = vector.load %arg2[%c1_280, %c0_281, %c0_282] : memref<2x4x80xf32, #tpu.memory_space<vmem>>, vector<1x4x80xf32>
    %237 = vector.shape_cast %236 : vector<1x4x80xf32> to vector<4x80xf32>
    %c0_283 = arith.constant 0 : index
    %c0_284 = arith.constant 0 : index
    %c0_285 = arith.constant 0 : index
    %238 = vector.load %arg8[%c0_283, %c0_284, %c0_285] : memref<2x4x256xf32, #tpu.memory_space<vmem>>, vector<1x4x256xf32>
    %239 = vector.shape_cast %238 : vector<1x4x256xf32> to vector<4x256xf32>
    %c0_286 = arith.constant 0 : index
    %c0_287 = arith.constant 0 : index
    %c128_288 = arith.constant 128 : index
    %240 = vector.load %arg6[%c0_286, %c0_287, %c128_288] : memref<2x8x512xf32, #tpu.memory_space<vmem>>, vector<1x4x256xf32>
    %241 = vector.shape_cast %240 : vector<1x4x256xf32> to vector<4x256xf32>
    %242 = vector.shape_cast %239 : vector<4x256xf32> to vector<1x4x256xf32>
    tpu.vector_store %arg6[%c0_286, %c0_287, %c128_288], %242 {strides = array<i32>} : memref<2x8x512xf32, #tpu.memory_space<vmem>>, vector<1x4x256xf32>,
    %c1_289 = arith.constant 1 : index
    %c0_290 = arith.constant 0 : index
    %c0_291 = arith.constant 0 : index
    %243 = vector.load %arg8[%c1_289, %c0_290, %c0_291] : memref<2x4x256xf32, #tpu.memory_space<vmem>>, vector<1x4x256xf32>
    %244 = vector.shape_cast %243 : vector<1x4x256xf32> to vector<4x256xf32>
    %c1_292 = arith.constant 1 : index
    %c0_293 = arith.constant 0 : index
    %c128_294 = arith.constant 128 : index
    %245 = vector.load %arg6[%c1_292, %c0_293, %c128_294] : memref<2x8x512xf32, #tpu.memory_space<vmem>>, vector<1x4x256xf32>
    %246 = vector.shape_cast %245 : vector<1x4x256xf32> to vector<4x256xf32>
    %247 = vector.shape_cast %244 : vector<4x256xf32> to vector<1x4x256xf32>
    tpu.vector_store %arg6[%c1_292, %c0_293, %c128_294], %247 {strides = array<i32>} : memref<2x8x512xf32, #tpu.memory_space<vmem>>, vector<1x4x256xf32>,
    %c0_295 = arith.constant 0 : index
    %c0_296 = arith.constant 0 : index
    %c111_297 = arith.constant 111 : index
    %248 = vector.load %arg6[%c0_295, %c0_296, %c111_297] : memref<2x8x512xf32, #tpu.memory_space<vmem>>, vector<1x8x256xf32>
    %249 = vector.shape_cast %248 : vector<1x8x256xf32> to vector<8x256xf32>
    %c1_298 = arith.constant 1 : index
    %c0_299 = arith.constant 0 : index
    %c0_300 = arith.constant 0 : index
    %250 = vector.load %arg4[%c1_298, %c0_299, %c0_300] : memref<4x8x256xf32, #tpu.memory_space<vmem>>, vector<1x8x256xf32>
    %251 = vector.shape_cast %250 : vector<1x8x256xf32> to vector<8x256xf32>
    %252 = arith.mulf %249, %251 : vector<8x256xf32>
    %c0_301 = arith.constant 0 : index
    %c0_302 = arith.constant 0 : index
    %253 = vector.load %arg7[%c0_301, %c0_302] : memref<80x512xf32, #tpu.memory_space<vmem>>, vector<8x256xf32>
    tpu.vector_store %arg7[%c0_301, %c0_302], %252 {strides = array<i32>} : memref<80x512xf32, #tpu.memory_space<vmem>>, vector<8x256xf32>,
    %c1_303 = arith.constant 1 : index
    %c0_304 = arith.constant 0 : index
    %c111_305 = arith.constant 111 : index
    %254 = vector.load %arg6[%c1_303, %c0_304, %c111_305] : memref<2x8x512xf32, #tpu.memory_space<vmem>>, vector<1x8x256xf32>
    %255 = vector.shape_cast %254 : vector<1x8x256xf32> to vector<8x256xf32>
    %c1_306 = arith.constant 1 : index
    %c0_307 = arith.constant 0 : index
    %c0_308 = arith.constant 0 : index
    %256 = vector.load %arg4[%c1_306, %c0_307, %c0_308] : memref<4x8x256xf32, #tpu.memory_space<vmem>>, vector<1x8x256xf32>
    %257 = vector.shape_cast %256 : vector<1x8x256xf32> to vector<8x256xf32>
    %258 = arith.mulf %255, %257 : vector<8x256xf32>
    %c0_309 = arith.constant 0 : index
    %c256_310 = arith.constant 256 : index
    %259 = vector.load %arg7[%c0_309, %c256_310] : memref<80x512xf32, #tpu.memory_space<vmem>>, vector<8x256xf32>
    tpu.vector_store %arg7[%c0_309, %c256_310], %258 {strides = array<i32>} : memref<80x512xf32, #tpu.memory_space<vmem>>, vector<8x256xf32>,
    %c0_311 = arith.constant 0 : index
    %c0_312 = arith.constant 0 : index
    %c112_313 = arith.constant 112 : index
    %260 = vector.load %arg6[%c0_311, %c0_312, %c112_313] : memref<2x8x512xf32, #tpu.memory_space<vmem>>, vector<1x8x256xf32>
    %261 = vector.shape_cast %260 : vector<1x8x256xf32> to vector<8x256xf32>
    %c8_314 = arith.constant 8 : index
    %c0_315 = arith.constant 0 : index
    %262 = vector.load %arg7[%c8_314, %c0_315] : memref<80x512xf32, #tpu.memory_space<vmem>>, vector<8x256xf32>
    tpu.vector_store %arg7[%c8_314, %c0_315], %261 {strides = array<i32>} : memref<80x512xf32, #tpu.memory_space<vmem>>, vector<8x256xf32>,
    %c1_316 = arith.constant 1 : index
    %c0_317 = arith.constant 0 : index
    %c112_318 = arith.constant 112 : index
    %263 = vector.load %arg6[%c1_316, %c0_317, %c112_318] : memref<2x8x512xf32, #tpu.memory_space<vmem>>, vector<1x8x256xf32>
    %264 = vector.shape_cast %263 : vector<1x8x256xf32> to vector<8x256xf32>
    %c8_319 = arith.constant 8 : index
    %c256_320 = arith.constant 256 : index
    %265 = vector.load %arg7[%c8_319, %c256_320] : memref<80x512xf32, #tpu.memory_space<vmem>>, vector<8x256xf32>
    tpu.vector_store %arg7[%c8_319, %c256_320], %264 {strides = array<i32>} : memref<80x512xf32, #tpu.memory_space<vmem>>, vector<8x256xf32>,
    %c0_321 = arith.constant 0 : index
    %c0_322 = arith.constant 0 : index
    %c113_323 = arith.constant 113 : index
    %266 = vector.load %arg6[%c0_321, %c0_322, %c113_323] : memref<2x8x512xf32, #tpu.memory_space<vmem>>, vector<1x8x256xf32>
    %267 = vector.shape_cast %266 : vector<1x8x256xf32> to vector<8x256xf32>
    %c2_324 = arith.constant 2 : index
    %c0_325 = arith.constant 0 : index
    %c0_326 = arith.constant 0 : index
    %268 = vector.load %arg4[%c2_324, %c0_325, %c0_326] : memref<4x8x256xf32, #tpu.memory_space<vmem>>, vector<1x8x256xf32>
    %269 = vector.shape_cast %268 : vector<1x8x256xf32> to vector<8x256xf32>
    %270 = arith.mulf %267, %269 : vector<8x256xf32>
    %c16_327 = arith.constant 16 : index
    %c0_328 = arith.constant 0 : index
    %271 = vector.load %arg7[%c16_327, %c0_328] : memref<80x512xf32, #tpu.memory_space<vmem>>, vector<8x256xf32>
    tpu.vector_store %arg7[%c16_327, %c0_328], %270 {strides = array<i32>} : memref<80x512xf32, #tpu.memory_space<vmem>>, vector<8x256xf32>,
    %c1_329 = arith.constant 1 : index
    %c0_330 = arith.constant 0 : index
    %c113_331 = arith.constant 113 : index
    %272 = vector.load %arg6[%c1_329, %c0_330, %c113_331] : memref<2x8x512xf32, #tpu.memory_space<vmem>>, vector<1x8x256xf32>
    %273 = vector.shape_cast %272 : vector<1x8x256xf32> to vector<8x256xf32>
    %c2_332 = arith.constant 2 : index
    %c0_333 = arith.constant 0 : index
    %c0_334 = arith.constant 0 : index
    %274 = vector.load %arg4[%c2_332, %c0_333, %c0_334] : memref<4x8x256xf32, #tpu.memory_space<vmem>>, vector<1x8x256xf32>
    %275 = vector.shape_cast %274 : vector<1x8x256xf32> to vector<8x256xf32>
    %276 = arith.mulf %273, %275 : vector<8x256xf32>
    %c16_335 = arith.constant 16 : index
    %c256_336 = arith.constant 256 : index
    %277 = vector.load %arg7[%c16_335, %c256_336] : memref<80x512xf32, #tpu.memory_space<vmem>>, vector<8x256xf32>
    tpu.vector_store %arg7[%c16_335, %c256_336], %276 {strides = array<i32>} : memref<80x512xf32, #tpu.memory_space<vmem>>, vector<8x256xf32>,
    %c0_337 = arith.constant 0 : index
    %c0_338 = arith.constant 0 : index
    %c127_339 = arith.constant 127 : index
    %278 = vector.load %arg6[%c0_337, %c0_338, %c127_339] : memref<2x8x512xf32, #tpu.memory_space<vmem>>, vector<1x8x256xf32>
    %279 = vector.shape_cast %278 : vector<1x8x256xf32> to vector<8x256xf32>
    %c1_340 = arith.constant 1 : index
    %c0_341 = arith.constant 0 : index
    %c0_342 = arith.constant 0 : index
    %280 = vector.load %arg4[%c1_340, %c0_341, %c0_342] : memref<4x8x256xf32, #tpu.memory_space<vmem>>, vector<1x8x256xf32>
    %281 = vector.shape_cast %280 : vector<1x8x256xf32> to vector<8x256xf32>
    %282 = arith.mulf %279, %281 : vector<8x256xf32>
    %c24_343 = arith.constant 24 : index
    %c0_344 = arith.constant 0 : index
    %283 = vector.load %arg7[%c24_343, %c0_344] : memref<80x512xf32, #tpu.memory_space<vmem>>, vector<8x256xf32>
    tpu.vector_store %arg7[%c24_343, %c0_344], %282 {strides = array<i32>} : memref<80x512xf32, #tpu.memory_space<vmem>>, vector<8x256xf32>,
    %c1_345 = arith.constant 1 : index
    %c0_346 = arith.constant 0 : index
    %c127_347 = arith.constant 127 : index
    %284 = vector.load %arg6[%c1_345, %c0_346, %c127_347] : memref<2x8x512xf32, #tpu.memory_space<vmem>>, vector<1x8x256xf32>
    %285 = vector.shape_cast %284 : vector<1x8x256xf32> to vector<8x256xf32>
    %c1_348 = arith.constant 1 : index
    %c0_349 = arith.constant 0 : index
    %c0_350 = arith.constant 0 : index
    %286 = vector.load %arg4[%c1_348, %c0_349, %c0_350] : memref<4x8x256xf32, #tpu.memory_space<vmem>>, vector<1x8x256xf32>
    %287 = vector.shape_cast %286 : vector<1x8x256xf32> to vector<8x256xf32>
    %288 = arith.mulf %285, %287 : vector<8x256xf32>
    %c24_351 = arith.constant 24 : index
    %c256_352 = arith.constant 256 : index
    %289 = vector.load %arg7[%c24_351, %c256_352] : memref<80x512xf32, #tpu.memory_space<vmem>>, vector<8x256xf32>
    tpu.vector_store %arg7[%c24_351, %c256_352], %288 {strides = array<i32>} : memref<80x512xf32, #tpu.memory_space<vmem>>, vector<8x256xf32>,
    %c0_353 = arith.constant 0 : index
    %c0_354 = arith.constant 0 : index
    %c128_355 = arith.constant 128 : index
    %290 = vector.load %arg6[%c0_353, %c0_354, %c128_355] : memref<2x8x512xf32, #tpu.memory_space<vmem>>, vector<1x8x256xf32>
    %291 = vector.shape_cast %290 : vector<1x8x256xf32> to vector<8x256xf32>
    %c32_356 = arith.constant 32 : index
    %c0_357 = arith.constant 0 : index
    %292 = vector.load %arg7[%c32_356, %c0_357] : memref<80x512xf32, #tpu.memory_space<vmem>>, vector<8x256xf32>
    tpu.vector_store %arg7[%c32_356, %c0_357], %291 {strides = array<i32>} : memref<80x512xf32, #tpu.memory_space<vmem>>, vector<8x256xf32>,
    %c1_358 = arith.constant 1 : index
    %c0_359 = arith.constant 0 : index
    %c128_360 = arith.constant 128 : index
    %293 = vector.load %arg6[%c1_358, %c0_359, %c128_360] : memref<2x8x512xf32, #tpu.memory_space<vmem>>, vector<1x8x256xf32>
    %294 = vector.shape_cast %293 : vector<1x8x256xf32> to vector<8x256xf32>
    %c32_361 = arith.constant 32 : index
    %c256_362 = arith.constant 256 : index
    %295 = vector.load %arg7[%c32_361, %c256_362] : memref<80x512xf32, #tpu.memory_space<vmem>>, vector<8x256xf32>
    tpu.vector_store %arg7[%c32_361, %c256_362], %294 {strides = array<i32>} : memref<80x512xf32, #tpu.memory_space<vmem>>, vector<8x256xf32>,
    %c0_363 = arith.constant 0 : index
    %c0_364 = arith.constant 0 : index
    %c129_365 = arith.constant 129 : index
    %296 = vector.load %arg6[%c0_363, %c0_364, %c129_365] : memref<2x8x512xf32, #tpu.memory_space<vmem>>, vector<1x8x256xf32>
    %297 = vector.shape_cast %296 : vector<1x8x256xf32> to vector<8x256xf32>
    %c2_366 = arith.constant 2 : index
    %c0_367 = arith.constant 0 : index
    %c0_368 = arith.constant 0 : index
    %298 = vector.load %arg4[%c2_366, %c0_367, %c0_368] : memref<4x8x256xf32, #tpu.memory_space<vmem>>, vector<1x8x256xf32>
    %299 = vector.shape_cast %298 : vector<1x8x256xf32> to vector<8x256xf32>
    %300 = arith.mulf %297, %299 : vector<8x256xf32>
    %c40_369 = arith.constant 40 : index
    %c0_370 = arith.constant 0 : index
    %301 = vector.load %arg7[%c40_369, %c0_370] : memref<80x512xf32, #tpu.memory_space<vmem>>, vector<8x256xf32>
    tpu.vector_store %arg7[%c40_369, %c0_370], %300 {strides = array<i32>} : memref<80x512xf32, #tpu.memory_space<vmem>>, vector<8x256xf32>,
    %c1_371 = arith.constant 1 : index
    %c0_372 = arith.constant 0 : index
    %c129_373 = arith.constant 129 : index
    %302 = vector.load %arg6[%c1_371, %c0_372, %c129_373] : memref<2x8x512xf32, #tpu.memory_space<vmem>>, vector<1x8x256xf32>
    %303 = vector.shape_cast %302 : vector<1x8x256xf32> to vector<8x256xf32>
    %c2_374 = arith.constant 2 : index
    %c0_375 = arith.constant 0 : index
    %c0_376 = arith.constant 0 : index
    %304 = vector.load %arg4[%c2_374, %c0_375, %c0_376] : memref<4x8x256xf32, #tpu.memory_space<vmem>>, vector<1x8x256xf32>
    %305 = vector.shape_cast %304 : vector<1x8x256xf32> to vector<8x256xf32>
    %306 = arith.mulf %303, %305 : vector<8x256xf32>
    %c40_377 = arith.constant 40 : index
    %c256_378 = arith.constant 256 : index
    %307 = vector.load %arg7[%c40_377, %c256_378] : memref<80x512xf32, #tpu.memory_space<vmem>>, vector<8x256xf32>
    tpu.vector_store %arg7[%c40_377, %c256_378], %306 {strides = array<i32>} : memref<80x512xf32, #tpu.memory_space<vmem>>, vector<8x256xf32>,
    %c0_379 = arith.constant 0 : index
    %c0_380 = arith.constant 0 : index
    %c143_381 = arith.constant 143 : index
    %308 = vector.load %arg6[%c0_379, %c0_380, %c143_381] : memref<2x8x512xf32, #tpu.memory_space<vmem>>, vector<1x8x256xf32>
    %309 = vector.shape_cast %308 : vector<1x8x256xf32> to vector<8x256xf32>
    %c1_382 = arith.constant 1 : index
    %c0_383 = arith.constant 0 : index
    %c0_384 = arith.constant 0 : index
    %310 = vector.load %arg4[%c1_382, %c0_383, %c0_384] : memref<4x8x256xf32, #tpu.memory_space<vmem>>, vector<1x8x256xf32>
    %311 = vector.shape_cast %310 : vector<1x8x256xf32> to vector<8x256xf32>
    %312 = arith.mulf %309, %311 : vector<8x256xf32>
    %c48_385 = arith.constant 48 : index
    %c0_386 = arith.constant 0 : index
    %313 = vector.load %arg7[%c48_385, %c0_386] : memref<80x512xf32, #tpu.memory_space<vmem>>, vector<8x256xf32>
    tpu.vector_store %arg7[%c48_385, %c0_386], %312 {strides = array<i32>} : memref<80x512xf32, #tpu.memory_space<vmem>>, vector<8x256xf32>,
    %c1_387 = arith.constant 1 : index
    %c0_388 = arith.constant 0 : index
    %c143_389 = arith.constant 143 : index
    %314 = vector.load %arg6[%c1_387, %c0_388, %c143_389] : memref<2x8x512xf32, #tpu.memory_space<vmem>>, vector<1x8x256xf32>
    %315 = vector.shape_cast %314 : vector<1x8x256xf32> to vector<8x256xf32>
    %c1_390 = arith.constant 1 : index
    %c0_391 = arith.constant 0 : index
    %c0_392 = arith.constant 0 : index
    %316 = vector.load %arg4[%c1_390, %c0_391, %c0_392] : memref<4x8x256xf32, #tpu.memory_space<vmem>>, vector<1x8x256xf32>
    %317 = vector.shape_cast %316 : vector<1x8x256xf32> to vector<8x256xf32>
    %318 = arith.mulf %315, %317 : vector<8x256xf32>
    %c48_393 = arith.constant 48 : index
    %c256_394 = arith.constant 256 : index
    %319 = vector.load %arg7[%c48_393, %c256_394] : memref<80x512xf32, #tpu.memory_space<vmem>>, vector<8x256xf32>
    tpu.vector_store %arg7[%c48_393, %c256_394], %318 {strides = array<i32>} : memref<80x512xf32, #tpu.memory_space<vmem>>, vector<8x256xf32>,
    %c0_395 = arith.constant 0 : index
    %c0_396 = arith.constant 0 : index
    %c144_397 = arith.constant 144 : index
    %320 = vector.load %arg6[%c0_395, %c0_396, %c144_397] : memref<2x8x512xf32, #tpu.memory_space<vmem>>, vector<1x8x256xf32>
    %321 = vector.shape_cast %320 : vector<1x8x256xf32> to vector<8x256xf32>
    %c56_398 = arith.constant 56 : index
    %c0_399 = arith.constant 0 : index
    %322 = vector.load %arg7[%c56_398, %c0_399] : memref<80x512xf32, #tpu.memory_space<vmem>>, vector<8x256xf32>
    tpu.vector_store %arg7[%c56_398, %c0_399], %321 {strides = array<i32>} : memref<80x512xf32, #tpu.memory_space<vmem>>, vector<8x256xf32>,
    %c1_400 = arith.constant 1 : index
    %c0_401 = arith.constant 0 : index
    %c144_402 = arith.constant 144 : index
    %323 = vector.load %arg6[%c1_400, %c0_401, %c144_402] : memref<2x8x512xf32, #tpu.memory_space<vmem>>, vector<1x8x256xf32>
    %324 = vector.shape_cast %323 : vector<1x8x256xf32> to vector<8x256xf32>
    %c56_403 = arith.constant 56 : index
    %c256_404 = arith.constant 256 : index
    %325 = vector.load %arg7[%c56_403, %c256_404] : memref<80x512xf32, #tpu.memory_space<vmem>>, vector<8x256xf32>
    tpu.vector_store %arg7[%c56_403, %c256_404], %324 {strides = array<i32>} : memref<80x512xf32, #tpu.memory_space<vmem>>, vector<8x256xf32>,
    %c0_405 = arith.constant 0 : index
    %c0_406 = arith.constant 0 : index
    %c145_407 = arith.constant 145 : index
    %326 = vector.load %arg6[%c0_405, %c0_406, %c145_407] : memref<2x8x512xf32, #tpu.memory_space<vmem>>, vector<1x8x256xf32>
    %327 = vector.shape_cast %326 : vector<1x8x256xf32> to vector<8x256xf32>
    %c2_408 = arith.constant 2 : index
    %c0_409 = arith.constant 0 : index
    %c0_410 = arith.constant 0 : index
    %328 = vector.load %arg4[%c2_408, %c0_409, %c0_410] : memref<4x8x256xf32, #tpu.memory_space<vmem>>, vector<1x8x256xf32>
    %329 = vector.shape_cast %328 : vector<1x8x256xf32> to vector<8x256xf32>
    %330 = arith.mulf %327, %329 : vector<8x256xf32>
    %c64_411 = arith.constant 64 : index
    %c0_412 = arith.constant 0 : index
    %331 = vector.load %arg7[%c64_411, %c0_412] : memref<80x512xf32, #tpu.memory_space<vmem>>, vector<8x256xf32>
    tpu.vector_store %arg7[%c64_411, %c0_412], %330 {strides = array<i32>} : memref<80x512xf32, #tpu.memory_space<vmem>>, vector<8x256xf32>,
    %c1_413 = arith.constant 1 : index
    %c0_414 = arith.constant 0 : index
    %c145_415 = arith.constant 145 : index
    %332 = vector.load %arg6[%c1_413, %c0_414, %c145_415] : memref<2x8x512xf32, #tpu.memory_space<vmem>>, vector<1x8x256xf32>
    %333 = vector.shape_cast %332 : vector<1x8x256xf32> to vector<8x256xf32>
    %c2_416 = arith.constant 2 : index
    %c0_417 = arith.constant 0 : index
    %c0_418 = arith.constant 0 : index
    %334 = vector.load %arg4[%c2_416, %c0_417, %c0_418] : memref<4x8x256xf32, #tpu.memory_space<vmem>>, vector<1x8x256xf32>
    %335 = vector.shape_cast %334 : vector<1x8x256xf32> to vector<8x256xf32>
    %336 = arith.mulf %333, %335 : vector<8x256xf32>
    %c64_419 = arith.constant 64 : index
    %c256_420 = arith.constant 256 : index
    %337 = vector.load %arg7[%c64_419, %c256_420] : memref<80x512xf32, #tpu.memory_space<vmem>>, vector<8x256xf32>
    tpu.vector_store %arg7[%c64_419, %c256_420], %336 {strides = array<i32>} : memref<80x512xf32, #tpu.memory_space<vmem>>, vector<8x256xf32>,
    %c0_421 = arith.constant 0 : index
    %c0_422 = arith.constant 0 : index
    %338 = vector.load %arg7[%c0_421, %c0_422] : memref<80x512xf32, #tpu.memory_space<vmem>>, vector<80x512xf32>
    %cst_423 = arith.constant dense<0.000000e+00> : vector<4x512xf32>
    %339 = tpu.matmul %237, %338, %cst_423 {dimension_numbers = #tpu.dot_dimension_numbers<[1], [0], [0], [1], [0, 0, 1, 1], [], []>} : vector<4x80xf32>, vector<80x512xf32>, vector<4x512xf32> -> vector<4x512xf32>
    %cst_424 = arith.constant 1.000000e-01 : f32
    %340 = vector.broadcast %cst_424 : f32 to vector<4x512xf32>
    %341 = arith.mulf %340, %339 : vector<4x512xf32>
    %342 = arith.maximumf %339, %341 : vector<4x512xf32>
    %c1_425 = arith.constant 1 : index
    %c0_426 = arith.constant 0 : index
    %c0_427 = arith.constant 0 : index
    %343 = vector.load %arg3[%c1_425, %c0_426, %c0_427] : memref<2x4x80xf32, #tpu.memory_space<vmem>>, vector<1x4x80xf32>
    %344 = vector.shape_cast %343 : vector<1x4x80xf32> to vector<4x80xf32>
    %345 = vector.extract_strided_slice %342 {offsets = [0, 0], sizes = [4, 256], strides = [1, 1]} : vector<4x512xf32> to vector<4x256xf32>
    %c0_428 = arith.constant 0 : index
    %c0_429 = arith.constant 0 : index
    %c128_430 = arith.constant 128 : index
    %346 = vector.load %arg6[%c0_428, %c0_429, %c128_430] : memref<2x8x512xf32, #tpu.memory_space<vmem>>, vector<1x4x256xf32>
    %347 = vector.shape_cast %346 : vector<1x4x256xf32> to vector<4x256xf32>
    %348 = vector.shape_cast %345 : vector<4x256xf32> to vector<1x4x256xf32>
    tpu.vector_store %arg6[%c0_428, %c0_429, %c128_430], %348 {strides = array<i32>} : memref<2x8x512xf32, #tpu.memory_space<vmem>>, vector<1x4x256xf32>,
    %349 = vector.extract_strided_slice %342 {offsets = [0, 256], sizes = [4, 256], strides = [1, 1]} : vector<4x512xf32> to vector<4x256xf32>
    %c1_431 = arith.constant 1 : index
    %c0_432 = arith.constant 0 : index
    %c128_433 = arith.constant 128 : index
    %350 = vector.load %arg6[%c1_431, %c0_432, %c128_433] : memref<2x8x512xf32, #tpu.memory_space<vmem>>, vector<1x4x256xf32>
    %351 = vector.shape_cast %350 : vector<1x4x256xf32> to vector<4x256xf32>
    %352 = vector.shape_cast %349 : vector<4x256xf32> to vector<1x4x256xf32>
    tpu.vector_store %arg6[%c1_431, %c0_432, %c128_433], %352 {strides = array<i32>} : memref<2x8x512xf32, #tpu.memory_space<vmem>>, vector<1x4x256xf32>,
    %c0_434 = arith.constant 0 : index
    %c0_435 = arith.constant 0 : index
    %c94_436 = arith.constant 94 : index
    %353 = vector.load %arg6[%c0_434, %c0_435, %c94_436] : memref<2x8x512xf32, #tpu.memory_space<vmem>>, vector<1x8x256xf32>
    %354 = vector.shape_cast %353 : vector<1x8x256xf32> to vector<8x256xf32>
    %c0_437 = arith.constant 0 : index
    %c0_438 = arith.constant 0 : index
    %c0_439 = arith.constant 0 : index
    %355 = vector.load %arg4[%c0_437, %c0_438, %c0_439] : memref<4x8x256xf32, #tpu.memory_space<vmem>>, vector<1x8x256xf32>
    %356 = vector.shape_cast %355 : vector<1x8x256xf32> to vector<8x256xf32>
    %357 = arith.mulf %354, %356 : vector<8x256xf32>
    %c0_440 = arith.constant 0 : index
    %c0_441 = arith.constant 0 : index
    %358 = vector.load %arg7[%c0_440, %c0_441] : memref<80x512xf32, #tpu.memory_space<vmem>>, vector<8x256xf32>
    tpu.vector_store %arg7[%c0_440, %c0_441], %357 {strides = array<i32>} : memref<80x512xf32, #tpu.memory_space<vmem>>, vector<8x256xf32>,
    %c1_442 = arith.constant 1 : index
    %c0_443 = arith.constant 0 : index
    %c94_444 = arith.constant 94 : index
    %359 = vector.load %arg6[%c1_442, %c0_443, %c94_444] : memref<2x8x512xf32, #tpu.memory_space<vmem>>, vector<1x8x256xf32>
    %360 = vector.shape_cast %359 : vector<1x8x256xf32> to vector<8x256xf32>
    %c0_445 = arith.constant 0 : index
    %c0_446 = arith.constant 0 : index
    %c0_447 = arith.constant 0 : index
    %361 = vector.load %arg4[%c0_445, %c0_446, %c0_447] : memref<4x8x256xf32, #tpu.memory_space<vmem>>, vector<1x8x256xf32>
    %362 = vector.shape_cast %361 : vector<1x8x256xf32> to vector<8x256xf32>
    %363 = arith.mulf %360, %362 : vector<8x256xf32>
    %c0_448 = arith.constant 0 : index
    %c256_449 = arith.constant 256 : index
    %364 = vector.load %arg7[%c0_448, %c256_449] : memref<80x512xf32, #tpu.memory_space<vmem>>, vector<8x256xf32>
    tpu.vector_store %arg7[%c0_448, %c256_449], %363 {strides = array<i32>} : memref<80x512xf32, #tpu.memory_space<vmem>>, vector<8x256xf32>,
    %c0_450 = arith.constant 0 : index
    %c0_451 = arith.constant 0 : index
    %c96_452 = arith.constant 96 : index
    %365 = vector.load %arg6[%c0_450, %c0_451, %c96_452] : memref<2x8x512xf32, #tpu.memory_space<vmem>>, vector<1x8x256xf32>
    %366 = vector.shape_cast %365 : vector<1x8x256xf32> to vector<8x256xf32>
    %c8_453 = arith.constant 8 : index
    %c0_454 = arith.constant 0 : index
    %367 = vector.load %arg7[%c8_453, %c0_454] : memref<80x512xf32, #tpu.memory_space<vmem>>, vector<8x256xf32>
    tpu.vector_store %arg7[%c8_453, %c0_454], %366 {strides = array<i32>} : memref<80x512xf32, #tpu.memory_space<vmem>>, vector<8x256xf32>,
    %c1_455 = arith.constant 1 : index
    %c0_456 = arith.constant 0 : index
    %c96_457 = arith.constant 96 : index
    %368 = vector.load %arg6[%c1_455, %c0_456, %c96_457] : memref<2x8x512xf32, #tpu.memory_space<vmem>>, vector<1x8x256xf32>
    %369 = vector.shape_cast %368 : vector<1x8x256xf32> to vector<8x256xf32>
    %c8_458 = arith.constant 8 : index
    %c256_459 = arith.constant 256 : index
    %370 = vector.load %arg7[%c8_458, %c256_459] : memref<80x512xf32, #tpu.memory_space<vmem>>, vector<8x256xf32>
    tpu.vector_store %arg7[%c8_458, %c256_459], %369 {strides = array<i32>} : memref<80x512xf32, #tpu.memory_space<vmem>>, vector<8x256xf32>,
    %c0_460 = arith.constant 0 : index
    %c0_461 = arith.constant 0 : index
    %c98_462 = arith.constant 98 : index
    %371 = vector.load %arg6[%c0_460, %c0_461, %c98_462] : memref<2x8x512xf32, #tpu.memory_space<vmem>>, vector<1x8x256xf32>
    %372 = vector.shape_cast %371 : vector<1x8x256xf32> to vector<8x256xf32>
    %c3_463 = arith.constant 3 : index
    %c0_464 = arith.constant 0 : index
    %c0_465 = arith.constant 0 : index
    %373 = vector.load %arg4[%c3_463, %c0_464, %c0_465] : memref<4x8x256xf32, #tpu.memory_space<vmem>>, vector<1x8x256xf32>
    %374 = vector.shape_cast %373 : vector<1x8x256xf32> to vector<8x256xf32>
    %375 = arith.mulf %372, %374 : vector<8x256xf32>
    %c16_466 = arith.constant 16 : index
    %c0_467 = arith.constant 0 : index
    %376 = vector.load %arg7[%c16_466, %c0_467] : memref<80x512xf32, #tpu.memory_space<vmem>>, vector<8x256xf32>
    tpu.vector_store %arg7[%c16_466, %c0_467], %375 {strides = array<i32>} : memref<80x512xf32, #tpu.memory_space<vmem>>, vector<8x256xf32>,
    %c1_468 = arith.constant 1 : index
    %c0_469 = arith.constant 0 : index
    %c98_470 = arith.constant 98 : index
    %377 = vector.load %arg6[%c1_468, %c0_469, %c98_470] : memref<2x8x512xf32, #tpu.memory_space<vmem>>, vector<1x8x256xf32>
    %378 = vector.shape_cast %377 : vector<1x8x256xf32> to vector<8x256xf32>
    %c3_471 = arith.constant 3 : index
    %c0_472 = arith.constant 0 : index
    %c0_473 = arith.constant 0 : index
    %379 = vector.load %arg4[%c3_471, %c0_472, %c0_473] : memref<4x8x256xf32, #tpu.memory_space<vmem>>, vector<1x8x256xf32>
    %380 = vector.shape_cast %379 : vector<1x8x256xf32> to vector<8x256xf32>
    %381 = arith.mulf %378, %380 : vector<8x256xf32>
    %c16_474 = arith.constant 16 : index
    %c256_475 = arith.constant 256 : index
    %382 = vector.load %arg7[%c16_474, %c256_475] : memref<80x512xf32, #tpu.memory_space<vmem>>, vector<8x256xf32>
    tpu.vector_store %arg7[%c16_474, %c256_475], %381 {strides = array<i32>} : memref<80x512xf32, #tpu.memory_space<vmem>>, vector<8x256xf32>,
    %c0_476 = arith.constant 0 : index
    %c0_477 = arith.constant 0 : index
    %c126_478 = arith.constant 126 : index
    %383 = vector.load %arg6[%c0_476, %c0_477, %c126_478] : memref<2x8x512xf32, #tpu.memory_space<vmem>>, vector<1x8x256xf32>
    %384 = vector.shape_cast %383 : vector<1x8x256xf32> to vector<8x256xf32>
    %c0_479 = arith.constant 0 : index
    %c0_480 = arith.constant 0 : index
    %c0_481 = arith.constant 0 : index
    %385 = vector.load %arg4[%c0_479, %c0_480, %c0_481] : memref<4x8x256xf32, #tpu.memory_space<vmem>>, vector<1x8x256xf32>
    %386 = vector.shape_cast %385 : vector<1x8x256xf32> to vector<8x256xf32>
    %387 = arith.mulf %384, %386 : vector<8x256xf32>
    %c24_482 = arith.constant 24 : index
    %c0_483 = arith.constant 0 : index
    %388 = vector.load %arg7[%c24_482, %c0_483] : memref<80x512xf32, #tpu.memory_space<vmem>>, vector<8x256xf32>
    tpu.vector_store %arg7[%c24_482, %c0_483], %387 {strides = array<i32>} : memref<80x512xf32, #tpu.memory_space<vmem>>, vector<8x256xf32>,
    %c1_484 = arith.constant 1 : index
    %c0_485 = arith.constant 0 : index
    %c126_486 = arith.constant 126 : index
    %389 = vector.load %arg6[%c1_484, %c0_485, %c126_486] : memref<2x8x512xf32, #tpu.memory_space<vmem>>, vector<1x8x256xf32>
    %390 = vector.shape_cast %389 : vector<1x8x256xf32> to vector<8x256xf32>
    %c0_487 = arith.constant 0 : index
    %c0_488 = arith.constant 0 : index
    %c0_489 = arith.constant 0 : index
    %391 = vector.load %arg4[%c0_487, %c0_488, %c0_489] : memref<4x8x256xf32, #tpu.memory_space<vmem>>, vector<1x8x256xf32>
    %392 = vector.shape_cast %391 : vector<1x8x256xf32> to vector<8x256xf32>
    %393 = arith.mulf %390, %392 : vector<8x256xf32>
    %c24_490 = arith.constant 24 : index
    %c256_491 = arith.constant 256 : index
    %394 = vector.load %arg7[%c24_490, %c256_491] : memref<80x512xf32, #tpu.memory_space<vmem>>, vector<8x256xf32>
    tpu.vector_store %arg7[%c24_490, %c256_491], %393 {strides = array<i32>} : memref<80x512xf32, #tpu.memory_space<vmem>>, vector<8x256xf32>,
    %c0_492 = arith.constant 0 : index
    %c0_493 = arith.constant 0 : index
    %c128_494 = arith.constant 128 : index
    %395 = vector.load %arg6[%c0_492, %c0_493, %c128_494] : memref<2x8x512xf32, #tpu.memory_space<vmem>>, vector<1x8x256xf32>
    %396 = vector.shape_cast %395 : vector<1x8x256xf32> to vector<8x256xf32>
    %c32_495 = arith.constant 32 : index
    %c0_496 = arith.constant 0 : index
    %397 = vector.load %arg7[%c32_495, %c0_496] : memref<80x512xf32, #tpu.memory_space<vmem>>, vector<8x256xf32>
    tpu.vector_store %arg7[%c32_495, %c0_496], %396 {strides = array<i32>} : memref<80x512xf32, #tpu.memory_space<vmem>>, vector<8x256xf32>,
    %c1_497 = arith.constant 1 : index
    %c0_498 = arith.constant 0 : index
    %c128_499 = arith.constant 128 : index
    %398 = vector.load %arg6[%c1_497, %c0_498, %c128_499] : memref<2x8x512xf32, #tpu.memory_space<vmem>>, vector<1x8x256xf32>
    %399 = vector.shape_cast %398 : vector<1x8x256xf32> to vector<8x256xf32>
    %c32_500 = arith.constant 32 : index
    %c256_501 = arith.constant 256 : index
    %400 = vector.load %arg7[%c32_500, %c256_501] : memref<80x512xf32, #tpu.memory_space<vmem>>, vector<8x256xf32>
    tpu.vector_store %arg7[%c32_500, %c256_501], %399 {strides = array<i32>} : memref<80x512xf32, #tpu.memory_space<vmem>>, vector<8x256xf32>,
    %c0_502 = arith.constant 0 : index
    %c0_503 = arith.constant 0 : index
    %c130_504 = arith.constant 130 : index
    %401 = vector.load %arg6[%c0_502, %c0_503, %c130_504] : memref<2x8x512xf32, #tpu.memory_space<vmem>>, vector<1x8x256xf32>
    %402 = vector.shape_cast %401 : vector<1x8x256xf32> to vector<8x256xf32>
    %c3_505 = arith.constant 3 : index
    %c0_506 = arith.constant 0 : index
    %c0_507 = arith.constant 0 : index
    %403 = vector.load %arg4[%c3_505, %c0_506, %c0_507] : memref<4x8x256xf32, #tpu.memory_space<vmem>>, vector<1x8x256xf32>
    %404 = vector.shape_cast %403 : vector<1x8x256xf32> to vector<8x256xf32>
    %405 = arith.mulf %402, %404 : vector<8x256xf32>
    %c40_508 = arith.constant 40 : index
    %c0_509 = arith.constant 0 : index
    %406 = vector.load %arg7[%c40_508, %c0_509] : memref<80x512xf32, #tpu.memory_space<vmem>>, vector<8x256xf32>
    tpu.vector_store %arg7[%c40_508, %c0_509], %405 {strides = array<i32>} : memref<80x512xf32, #tpu.memory_space<vmem>>, vector<8x256xf32>,
    %c1_510 = arith.constant 1 : index
    %c0_511 = arith.constant 0 : index
    %c130_512 = arith.constant 130 : index
    %407 = vector.load %arg6[%c1_510, %c0_511, %c130_512] : memref<2x8x512xf32, #tpu.memory_space<vmem>>, vector<1x8x256xf32>
    %408 = vector.shape_cast %407 : vector<1x8x256xf32> to vector<8x256xf32>
    %c3_513 = arith.constant 3 : index
    %c0_514 = arith.constant 0 : index
    %c0_515 = arith.constant 0 : index
    %409 = vector.load %arg4[%c3_513, %c0_514, %c0_515] : memref<4x8x256xf32, #tpu.memory_space<vmem>>, vector<1x8x256xf32>
    %410 = vector.shape_cast %409 : vector<1x8x256xf32> to vector<8x256xf32>
    %411 = arith.mulf %408, %410 : vector<8x256xf32>
    %c40_516 = arith.constant 40 : index
    %c256_517 = arith.constant 256 : index
    %412 = vector.load %arg7[%c40_516, %c256_517] : memref<80x512xf32, #tpu.memory_space<vmem>>, vector<8x256xf32>
    tpu.vector_store %arg7[%c40_516, %c256_517], %411 {strides = array<i32>} : memref<80x512xf32, #tpu.memory_space<vmem>>, vector<8x256xf32>,
    %c0_518 = arith.constant 0 : index
    %c0_519 = arith.constant 0 : index
    %c158_520 = arith.constant 158 : index
    %413 = vector.load %arg6[%c0_518, %c0_519, %c158_520] : memref<2x8x512xf32, #tpu.memory_space<vmem>>, vector<1x8x256xf32>
    %414 = vector.shape_cast %413 : vector<1x8x256xf32> to vector<8x256xf32>
    %c0_521 = arith.constant 0 : index
    %c0_522 = arith.constant 0 : index
    %c0_523 = arith.constant 0 : index
    %415 = vector.load %arg4[%c0_521, %c0_522, %c0_523] : memref<4x8x256xf32, #tpu.memory_space<vmem>>, vector<1x8x256xf32>
    %416 = vector.shape_cast %415 : vector<1x8x256xf32> to vector<8x256xf32>
    %417 = arith.mulf %414, %416 : vector<8x256xf32>
    %c48_524 = arith.constant 48 : index
    %c0_525 = arith.constant 0 : index
    %418 = vector.load %arg7[%c48_524, %c0_525] : memref<80x512xf32, #tpu.memory_space<vmem>>, vector<8x256xf32>
    tpu.vector_store %arg7[%c48_524, %c0_525], %417 {strides = array<i32>} : memref<80x512xf32, #tpu.memory_space<vmem>>, vector<8x256xf32>,
    %c1_526 = arith.constant 1 : index
    %c0_527 = arith.constant 0 : index
    %c158_528 = arith.constant 158 : index
    %419 = vector.load %arg6[%c1_526, %c0_527, %c158_528] : memref<2x8x512xf32, #tpu.memory_space<vmem>>, vector<1x8x256xf32>
    %420 = vector.shape_cast %419 : vector<1x8x256xf32> to vector<8x256xf32>
    %c0_529 = arith.constant 0 : index
    %c0_530 = arith.constant 0 : index
    %c0_531 = arith.constant 0 : index
    %421 = vector.load %arg4[%c0_529, %c0_530, %c0_531] : memref<4x8x256xf32, #tpu.memory_space<vmem>>, vector<1x8x256xf32>
    %422 = vector.shape_cast %421 : vector<1x8x256xf32> to vector<8x256xf32>
    %423 = arith.mulf %420, %422 : vector<8x256xf32>
    %c48_532 = arith.constant 48 : index
    %c256_533 = arith.constant 256 : index
    %424 = vector.load %arg7[%c48_532, %c256_533] : memref<80x512xf32, #tpu.memory_space<vmem>>, vector<8x256xf32>
    tpu.vector_store %arg7[%c48_532, %c256_533], %423 {strides = array<i32>} : memref<80x512xf32, #tpu.memory_space<vmem>>, vector<8x256xf32>,
    %c0_534 = arith.constant 0 : index
    %c0_535 = arith.constant 0 : index
    %c160_536 = arith.constant 160 : index
    %425 = vector.load %arg6[%c0_534, %c0_535, %c160_536] : memref<2x8x512xf32, #tpu.memory_space<vmem>>, vector<1x8x256xf32>
    %426 = vector.shape_cast %425 : vector<1x8x256xf32> to vector<8x256xf32>
    %c56_537 = arith.constant 56 : index
    %c0_538 = arith.constant 0 : index
    %427 = vector.load %arg7[%c56_537, %c0_538] : memref<80x512xf32, #tpu.memory_space<vmem>>, vector<8x256xf32>
    tpu.vector_store %arg7[%c56_537, %c0_538], %426 {strides = array<i32>} : memref<80x512xf32, #tpu.memory_space<vmem>>, vector<8x256xf32>,
    %c1_539 = arith.constant 1 : index
    %c0_540 = arith.constant 0 : index
    %c160_541 = arith.constant 160 : index
    %428 = vector.load %arg6[%c1_539, %c0_540, %c160_541] : memref<2x8x512xf32, #tpu.memory_space<vmem>>, vector<1x8x256xf32>
    %429 = vector.shape_cast %428 : vector<1x8x256xf32> to vector<8x256xf32>
    %c56_542 = arith.constant 56 : index
    %c256_543 = arith.constant 256 : index
    %430 = vector.load %arg7[%c56_542, %c256_543] : memref<80x512xf32, #tpu.memory_space<vmem>>, vector<8x256xf32>
    tpu.vector_store %arg7[%c56_542, %c256_543], %429 {strides = array<i32>} : memref<80x512xf32, #tpu.memory_space<vmem>>, vector<8x256xf32>,
    %c0_544 = arith.constant 0 : index
    %c0_545 = arith.constant 0 : index
    %c162_546 = arith.constant 162 : index
    %431 = vector.load %arg6[%c0_544, %c0_545, %c162_546] : memref<2x8x512xf32, #tpu.memory_space<vmem>>, vector<1x8x256xf32>
    %432 = vector.shape_cast %431 : vector<1x8x256xf32> to vector<8x256xf32>
    %c3_547 = arith.constant 3 : index
    %c0_548 = arith.constant 0 : index
    %c0_549 = arith.constant 0 : index
    %433 = vector.load %arg4[%c3_547, %c0_548, %c0_549] : memref<4x8x256xf32, #tpu.memory_space<vmem>>, vector<1x8x256xf32>
    %434 = vector.shape_cast %433 : vector<1x8x256xf32> to vector<8x256xf32>
    %435 = arith.mulf %432, %434 : vector<8x256xf32>
    %c64_550 = arith.constant 64 : index
    %c0_551 = arith.constant 0 : index
    %436 = vector.load %arg7[%c64_550, %c0_551] : memref<80x512xf32, #tpu.memory_space<vmem>>, vector<8x256xf32>
    tpu.vector_store %arg7[%c64_550, %c0_551], %435 {strides = array<i32>} : memref<80x512xf32, #tpu.memory_space<vmem>>, vector<8x256xf32>,
    %c1_552 = arith.constant 1 : index
    %c0_553 = arith.constant 0 : index
    %c162_554 = arith.constant 162 : index
    %437 = vector.load %arg6[%c1_552, %c0_553, %c162_554] : memref<2x8x512xf32, #tpu.memory_space<vmem>>, vector<1x8x256xf32>
    %438 = vector.shape_cast %437 : vector<1x8x256xf32> to vector<8x256xf32>
    %c3_555 = arith.constant 3 : index
    %c0_556 = arith.constant 0 : index
    %c0_557 = arith.constant 0 : index
    %439 = vector.load %arg4[%c3_555, %c0_556, %c0_557] : memref<4x8x256xf32, #tpu.memory_space<vmem>>, vector<1x8x256xf32>
    %440 = vector.shape_cast %439 : vector<1x8x256xf32> to vector<8x256xf32>
    %441 = arith.mulf %438, %440 : vector<8x256xf32>
    %c64_558 = arith.constant 64 : index
    %c256_559 = arith.constant 256 : index
    %442 = vector.load %arg7[%c64_558, %c256_559] : memref<80x512xf32, #tpu.memory_space<vmem>>, vector<8x256xf32>
    tpu.vector_store %arg7[%c64_558, %c256_559], %441 {strides = array<i32>} : memref<80x512xf32, #tpu.memory_space<vmem>>, vector<8x256xf32>,
    %c0_560 = arith.constant 0 : index
    %c0_561 = arith.constant 0 : index
    %443 = vector.load %arg7[%c0_560, %c0_561] : memref<80x512xf32, #tpu.memory_space<vmem>>, vector<80x512xf32>
    %cst_562 = arith.constant dense<0.000000e+00> : vector<4x512xf32>
    %444 = tpu.matmul %344, %443, %cst_562 {dimension_numbers = #tpu.dot_dimension_numbers<[1], [0], [0], [1], [0, 0, 1, 1], [], []>} : vector<4x80xf32>, vector<80x512xf32>, vector<4x512xf32> -> vector<4x512xf32>
    %c0_563 = arith.constant 0 : index
    %c0_564 = arith.constant 0 : index
    %c0_565 = arith.constant 0 : index
    %445 = vector.load %arg8[%c0_563, %c0_564, %c0_565] : memref<2x4x256xf32, #tpu.memory_space<vmem>>, vector<1x4x256xf32>
    %446 = vector.shape_cast %445 : vector<1x4x256xf32> to vector<4x256xf32>
    %447 = vector.extract_strided_slice %444 {offsets = [0, 0], sizes = [4, 256], strides = [1, 1]} : vector<4x512xf32> to vector<4x256xf32>
    %448 = arith.addf %446, %447 : vector<4x256xf32>
    %c0_566 = arith.constant 0 : index
    %c0_567 = arith.constant 0 : index
    %c0_568 = arith.constant 0 : index
    %449 = vector.load %arg8[%c0_566, %c0_567, %c0_568] : memref<2x4x256xf32, #tpu.memory_space<vmem>>, vector<1x4x256xf32>
    %450 = vector.shape_cast %449 : vector<1x4x256xf32> to vector<4x256xf32>
    %451 = vector.shape_cast %448 : vector<4x256xf32> to vector<1x4x256xf32>
    tpu.vector_store %arg8[%c0_566, %c0_567, %c0_568], %451 {strides = array<i32>} : memref<2x4x256xf32, #tpu.memory_space<vmem>>, vector<1x4x256xf32>,
    %c1_569 = arith.constant 1 : index
    %c0_570 = arith.constant 0 : index
    %c0_571 = arith.constant 0 : index
    %452 = vector.load %arg8[%c1_569, %c0_570, %c0_571] : memref<2x4x256xf32, #tpu.memory_space<vmem>>, vector<1x4x256xf32>
    %453 = vector.shape_cast %452 : vector<1x4x256xf32> to vector<4x256xf32>
    %454 = vector.extract_strided_slice %444 {offsets = [0, 256], sizes = [4, 256], strides = [1, 1]} : vector<4x512xf32> to vector<4x256xf32>
    %455 = arith.addf %453, %454 : vector<4x256xf32>
    %c1_572 = arith.constant 1 : index
    %c0_573 = arith.constant 0 : index
    %c0_574 = arith.constant 0 : index
    %456 = vector.load %arg8[%c1_572, %c0_573, %c0_574] : memref<2x4x256xf32, #tpu.memory_space<vmem>>, vector<1x4x256xf32>
    %457 = vector.shape_cast %456 : vector<1x4x256xf32> to vector<4x256xf32>
    %458 = vector.shape_cast %455 : vector<4x256xf32> to vector<1x4x256xf32>
    tpu.vector_store %arg8[%c1_572, %c0_573, %c0_574], %458 {strides = array<i32>} : memref<2x4x256xf32, #tpu.memory_space<vmem>>, vector<1x4x256xf32>,
    %c0_575 = arith.constant 0 : index
    %c0_576 = arith.constant 0 : index
    %c0_577 = arith.constant 0 : index
    %459 = vector.load %arg8[%c0_575, %c0_576, %c0_577] : memref<2x4x256xf32, #tpu.memory_space<vmem>>, vector<2x4x256xf32>
    %c0_578 = arith.constant 0 : index
    %c0_579 = arith.constant 0 : index
    %c0_580 = arith.constant 0 : index
    %460 = vector.load %arg1[%c0_578, %c0_579, %c0_580] : memref<2x4x256xf32, #tpu.memory_space<vmem>>, vector<2x4x256xf32>
    %461 = arith.addf %459, %460 : vector<2x4x256xf32>
    %c0_581 = arith.constant 0 : index
    %c0_582 = arith.constant 0 : index
    %c0_583 = arith.constant 0 : index
    %462 = vector.load %arg5[%c0_581, %c0_582, %c0_583] : memref<2x4x256xf32, #tpu.memory_space<vmem>>, vector<2x4x256xf32>
    tpu.vector_store %arg5[%c0_581, %c0_582, %c0_583], %461 {strides = array<i32>} : memref<2x4x256xf32, #tpu.memory_space<vmem>>, vector<2x4x256xf32>,
    return
  }
  func.func @transform_0(%arg0: i32) -> (i32, i32, i32) {
    %c0_i32 = arith.constant 0 : i32
    %c0_i32_0 = arith.constant 0 : i32
    %c0_i32_1 = arith.constant 0 : i32
    return %arg0, %c0_i32, %c0_i32_0 : i32, i32, i32
  }
  func.func @transform_1(%arg0: i32) -> (i32, i32, i32) {
    %c0_i32 = arith.constant 0 : i32
    %c0_i32_0 = arith.constant 0 : i32
    %c0_i32_1 = arith.constant 0 : i32
    %c0_i32_2 = arith.constant 0 : i32
    return %c0_i32, %c0_i32_0, %c0_i32_1 : i32, i32, i32
  }
  func.func @transform_2(%arg0: i32) -> (i32, i32, i32) {
    %c0_i32 = arith.constant 0 : i32
    %c0_i32_0 = arith.constant 0 : i32
    %c0_i32_1 = arith.constant 0 : i32
    %c0_i32_2 = arith.constant 0 : i32
    return %c0_i32, %c0_i32_0, %c0_i32_1 : i32, i32, i32
  }
  func.func @transform_3(%arg0: i32) -> (i32, i32, i32) {
    %c0_i32 = arith.constant 0 : i32
    %c0_i32_0 = arith.constant 0 : i32
    %c0_i32_1 = arith.constant 0 : i32
    %c0_i32_2 = arith.constant 0 : i32
    return %c0_i32, %c0_i32_0, %c0_i32_1 : i32, i32, i32
  }
  func.func @transform_4(%arg0: i32) -> (i32, i32, i32) {
    %c0_i32 = arith.constant 0 : i32
    %c0_i32_0 = arith.constant 0 : i32
    %c0_i32_1 = arith.constant 0 : i32
    return %arg0, %c0_i32, %c0_i32_0 : i32, i32, i32
  }
}

module attributes {stable_mosaic.version = 11 : i64} {
  func.func @kernel(%arg0: i32, %arg1: memref<2x4x256xf32, #tpu.memory_space<vmem>>, %arg2: memref<2x4x80xf32, #tpu.memory_space<vmem>>, %arg3: memref<2x4x80xf32, #tpu.memory_space<vmem>>, %arg4: memref<4x8x256xf32, #tpu.memory_space<vmem>>, %arg5: memref<2x4x256xf32, #tpu.memory_space<vmem>>, %arg6: memref<2x8x512xf32, #tpu.memory_space<vmem>>, %arg7: memref<80x512xf32, #tpu.memory_space<vmem>>, %arg8: memref<2x4x256xf32, #tpu.memory_space<vmem>>) attributes {dimension_semantics = [#tpu.dimension_semantics<parallel>], iteration_bounds = array<i64: 1>, scalar_prefetch = 0 : i64, scratch_operands = 3 : i64, tpu.core_type = #tpu.core_type<tc>, window_params = [{transform_indices = @transform_0, window_bounds = array<i64: 2, 4, 256>}, {pipeline_mode = #tpu.pipeline_mode<synchronous>, transform_indices = @transform_1, window_bounds = array<i64: 2, 4, 80>}, {pipeline_mode = #tpu.pipeline_mode<synchronous>, transform_indices = @transform_2, window_bounds = array<i64: 2, 4, 80>}, {pipeline_mode = #tpu.pipeline_mode<synchronous>, transform_indices = @transform_3, window_bounds = array<i64: 4, 8, 256>}, {transform_indices = @transform_4, window_bounds = array<i64: 2, 4, 256>}]} {
    %cst = arith.constant 0.000000e+00 : f32
    %0 = vector.broadcast %cst : f32 to vector<2x8x128xf32>
    %c0 = arith.constant 0 : index
    %c0_0 = arith.constant 0 : index
    %c0_1 = arith.constant 0 : index
    %1 = vector.load %arg6[%c0, %c0_0, %c0_1] : memref<2x8x512xf32, #tpu.memory_space<vmem>>, vector<2x8x128xf32>
    tpu.vector_store %arg6[%c0, %c0_0, %c0_1], %0 {strides = array<i32>} : memref<2x8x512xf32, #tpu.memory_space<vmem>>, vector<2x8x128xf32>,
    %c0_2 = arith.constant 0 : index
    %c0_3 = arith.constant 0 : index
    %c384 = arith.constant 384 : index
    %2 = vector.load %arg6[%c0_2, %c0_3, %c384] : memref<2x8x512xf32, #tpu.memory_space<vmem>>, vector<2x8x128xf32>
    tpu.vector_store %arg6[%c0_2, %c0_3, %c384], %0 {strides = array<i32>} : memref<2x8x512xf32, #tpu.memory_space<vmem>>, vector<2x8x128xf32>,
    %cst_4 = arith.constant 0.000000e+00 : f32
    %3 = vector.broadcast %cst_4 : f32 to vector<2x4x256xf32>
    %c0_5 = arith.constant 0 : index
    %c4 = arith.constant 4 : index
    %c128 = arith.constant 128 : index
    %4 = vector.load %arg6[%c0_5, %c4, %c128] : memref<2x8x512xf32, #tpu.memory_space<vmem>>, vector<2x4x256xf32>
    tpu.vector_store %arg6[%c0_5, %c4, %c128], %3 {strides = array<i32>} : memref<2x8x512xf32, #tpu.memory_space<vmem>>, vector<2x4x256xf32>,
    %5 = tpu.iota {dimensions = array<i32: 0>} : vector<8x512xi32>
    %c0_i32 = arith.constant 0 : i32
    %6 = vector.broadcast %c0_i32 : i32 to vector<8x512xi32>
    %7 = arith.cmpi eq, %5, %6 : vector<8x512xi32>
    %8 = arith.extui %7 : vector<8x512xi1> to vector<8x512xi32>
    %9 = arith.sitofp %8 : vector<8x512xi32> to vector<8x512xf32>
    %c72 = arith.constant 72 : index
    %c0_6 = arith.constant 0 : index
    %10 = vector.load %arg7[%c72, %c0_6] : memref<80x512xf32, #tpu.memory_space<vmem>>, vector<8x512xf32>
    tpu.vector_store %arg7[%c72, %c0_6], %9 {strides = array<i32>} : memref<80x512xf32, #tpu.memory_space<vmem>>, vector<8x512xf32>,
    %c0_7 = arith.constant 0 : index
    %c0_8 = arith.constant 0 : index
    %c0_9 = arith.constant 0 : index
    %11 = vector.load %arg1[%c0_7, %c0_8, %c0_9] : memref<2x4x256xf32, #tpu.memory_space<vmem>>, vector<2x4x256xf32>
    %c0_10 = arith.constant 0 : index
    %c0_11 = arith.constant 0 : index
    %c0_12 = arith.constant 0 : index
    %12 = vector.load %arg8[%c0_10, %c0_11, %c0_12] : memref<2x4x256xf32, #tpu.memory_space<vmem>>, vector<2x4x256xf32>
    tpu.vector_store %arg8[%c0_10, %c0_11, %c0_12], %11 {strides = array<i32>} : memref<2x4x256xf32, #tpu.memory_space<vmem>>, vector<2x4x256xf32>,
    %c0_13 = arith.constant 0 : index
    %c0_14 = arith.constant 0 : index
    %c0_15 = arith.constant 0 : index
    %13 = vector.load %arg2[%c0_13, %c0_14, %c0_15] : memref<2x4x80xf32, #tpu.memory_space<vmem>>, vector<1x4x80xf32>
    %14 = vector.shape_cast %13 : vector<1x4x80xf32> to vector<4x80xf32>
    %c0_16 = arith.constant 0 : index
    %c0_17 = arith.constant 0 : index
    %c0_18 = arith.constant 0 : index
    %15 = vector.load %arg8[%c0_16, %c0_17, %c0_18] : memref<2x4x256xf32, #tpu.memory_space<vmem>>, vector<1x4x256xf32>
    %16 = vector.shape_cast %15 : vector<1x4x256xf32> to vector<4x256xf32>
    %c0_19 = arith.constant 0 : index
    %c0_20 = arith.constant 0 : index
    %c128_21 = arith.constant 128 : index
    %17 = vector.load %arg6[%c0_19, %c0_20, %c128_21] : memref<2x8x512xf32, #tpu.memory_space<vmem>>, vector<1x4x256xf32>
    %18 = vector.shape_cast %17 : vector<1x4x256xf32> to vector<4x256xf32>
    %19 = vector.shape_cast %16 : vector<4x256xf32> to vector<1x4x256xf32>
    tpu.vector_store %arg6[%c0_19, %c0_20, %c128_21], %19 {strides = array<i32>} : memref<2x8x512xf32, #tpu.memory_space<vmem>>, vector<1x4x256xf32>,
    %c1 = arith.constant 1 : index
    %c0_22 = arith.constant 0 : index
    %c0_23 = arith.constant 0 : index
    %20 = vector.load %arg8[%c1, %c0_22, %c0_23] : memref<2x4x256xf32, #tpu.memory_space<vmem>>, vector<1x4x256xf32>
    %21 = vector.shape_cast %20 : vector<1x4x256xf32> to vector<4x256xf32>
    %c1_24 = arith.constant 1 : index
    %c0_25 = arith.constant 0 : index
    %c128_26 = arith.constant 128 : index
    %22 = vector.load %arg6[%c1_24, %c0_25, %c128_26] : memref<2x8x512xf32, #tpu.memory_space<vmem>>, vector<1x4x256xf32>
    %23 = vector.shape_cast %22 : vector<1x4x256xf32> to vector<4x256xf32>
    %24 = vector.shape_cast %21 : vector<4x256xf32> to vector<1x4x256xf32>
    tpu.vector_store %arg6[%c1_24, %c0_25, %c128_26], %24 {strides = array<i32>} : memref<2x8x512xf32, #tpu.memory_space<vmem>>, vector<1x4x256xf32>,
    %c0_27 = arith.constant 0 : index
    %c0_28 = arith.constant 0 : index
    %c111 = arith.constant 111 : index
    %25 = vector.load %arg6[%c0_27, %c0_28, %c111] : memref<2x8x512xf32, #tpu.memory_space<vmem>>, vector<1x8x256xf32>
    %26 = vector.shape_cast %25 : vector<1x8x256xf32> to vector<8x256xf32>
    %c1_29 = arith.constant 1 : index
    %c0_30 = arith.constant 0 : index
    %c0_31 = arith.constant 0 : index
    %27 = vector.load %arg4[%c1_29, %c0_30, %c0_31] : memref<4x8x256xf32, #tpu.memory_space<vmem>>, vector<1x8x256xf32>
    %28 = vector.shape_cast %27 : vector<1x8x256xf32> to vector<8x256xf32>
    %29 = arith.mulf %26, %28 : vector<8x256xf32>
    %c0_32 = arith.constant 0 : index
    %c0_33 = arith.constant 0 : index
    %30 = vector.load %arg7[%c0_32, %c0_33] : memref<80x512xf32, #tpu.memory_space<vmem>>, vector<8x256xf32>
    tpu.vector_store %arg7[%c0_32, %c0_33], %29 {strides = array<i32>} : memref<80x512xf32, #tpu.memory_space<vmem>>, vector<8x256xf32>,
    %c1_34 = arith.constant 1 : index
    %c0_35 = arith.constant 0 : index
    %c111_36 = arith.constant 111 : index
    %31 = vector.load %arg6[%c1_34, %c0_35, %c111_36] : memref<2x8x512xf32, #tpu.memory_space<vmem>>, vector<1x8x256xf32>
    %32 = vector.shape_cast %31 : vector<1x8x256xf32> to vector<8x256xf32>
    %c1_37 = arith.constant 1 : index
    %c0_38 = arith.constant 0 : index
    %c0_39 = arith.constant 0 : index
    %33 = vector.load %arg4[%c1_37, %c0_38, %c0_39] : memref<4x8x256xf32, #tpu.memory_space<vmem>>, vector<1x8x256xf32>
    %34 = vector.shape_cast %33 : vector<1x8x256xf32> to vector<8x256xf32>
    %35 = arith.mulf %32, %34 : vector<8x256xf32>
    %c0_40 = arith.constant 0 : index
    %c256 = arith.constant 256 : index
    %36 = vector.load %arg7[%c0_40, %c256] : memref<80x512xf32, #tpu.memory_space<vmem>>, vector<8x256xf32>
    tpu.vector_store %arg7[%c0_40, %c256], %35 {strides = array<i32>} : memref<80x512xf32, #tpu.memory_space<vmem>>, vector<8x256xf32>,
    %c0_41 = arith.constant 0 : index
    %c0_42 = arith.constant 0 : index
    %c112 = arith.constant 112 : index
    %37 = vector.load %arg6[%c0_41, %c0_42, %c112] : memref<2x8x512xf32, #tpu.memory_space<vmem>>, vector<1x8x256xf32>
    %38 = vector.shape_cast %37 : vector<1x8x256xf32> to vector<8x256xf32>
    %c8 = arith.constant 8 : index
    %c0_43 = arith.constant 0 : index
    %39 = vector.load %arg7[%c8, %c0_43] : memref<80x512xf32, #tpu.memory_space<vmem>>, vector<8x256xf32>
    tpu.vector_store %arg7[%c8, %c0_43], %38 {strides = array<i32>} : memref<80x512xf32, #tpu.memory_space<vmem>>, vector<8x256xf32>,
    %c1_44 = arith.constant 1 : index
    %c0_45 = arith.constant 0 : index
    %c112_46 = arith.constant 112 : index
    %40 = vector.load %arg6[%c1_44, %c0_45, %c112_46] : memref<2x8x512xf32, #tpu.memory_space<vmem>>, vector<1x8x256xf32>
    %41 = vector.shape_cast %40 : vector<1x8x256xf32> to vector<8x256xf32>
    %c8_47 = arith.constant 8 : index
    %c256_48 = arith.constant 256 : index
    %42 = vector.load %arg7[%c8_47, %c256_48] : memref<80x512xf32, #tpu.memory_space<vmem>>, vector<8x256xf32>
    tpu.vector_store %arg7[%c8_47, %c256_48], %41 {strides = array<i32>} : memref<80x512xf32, #tpu.memory_space<vmem>>, vector<8x256xf32>,
    %c0_49 = arith.constant 0 : index
    %c0_50 = arith.constant 0 : index
    %c113 = arith.constant 113 : index
    %43 = vector.load %arg6[%c0_49, %c0_50, %c113] : memref<2x8x512xf32, #tpu.memory_space<vmem>>, vector<1x8x256xf32>
    %44 = vector.shape_cast %43 : vector<1x8x256xf32> to vector<8x256xf32>
    %c2 = arith.constant 2 : index
    %c0_51 = arith.constant 0 : index
    %c0_52 = arith.constant 0 : index
    %45 = vector.load %arg4[%c2, %c0_51, %c0_52] : memref<4x8x256xf32, #tpu.memory_space<vmem>>, vector<1x8x256xf32>
    %46 = vector.shape_cast %45 : vector<1x8x256xf32> to vector<8x256xf32>
    %47 = arith.mulf %44, %46 : vector<8x256xf32>
    %c16 = arith.constant 16 : index
    %c0_53 = arith.constant 0 : index
    %48 = vector.load %arg7[%c16, %c0_53] : memref<80x512xf32, #tpu.memory_space<vmem>>, vector<8x256xf32>
    tpu.vector_store %arg7[%c16, %c0_53], %47 {strides = array<i32>} : memref<80x512xf32, #tpu.memory_space<vmem>>, vector<8x256xf32>,
    %c1_54 = arith.constant 1 : index
    %c0_55 = arith.constant 0 : index
    %c113_56 = arith.constant 113 : index
    %49 = vector.load %arg6[%c1_54, %c0_55, %c113_56] : memref<2x8x512xf32, #tpu.memory_space<vmem>>, vector<1x8x256xf32>
    %50 = vector.shape_cast %49 : vector<1x8x256xf32> to vector<8x256xf32>
    %c2_57 = arith.constant 2 : index
    %c0_58 = arith.constant 0 : index
    %c0_59 = arith.constant 0 : index
    %51 = vector.load %arg4[%c2_57, %c0_58, %c0_59] : memref<4x8x256xf32, #tpu.memory_space<vmem>>, vector<1x8x256xf32>
    %52 = vector.shape_cast %51 : vector<1x8x256xf32> to vector<8x256xf32>
    %53 = arith.mulf %50, %52 : vector<8x256xf32>
    %c16_60 = arith.constant 16 : index
    %c256_61 = arith.constant 256 : index
    %54 = vector.load %arg7[%c16_60, %c256_61] : memref<80x512xf32, #tpu.memory_space<vmem>>, vector<8x256xf32>
    tpu.vector_store %arg7[%c16_60, %c256_61], %53 {strides = array<i32>} : memref<80x512xf32, #tpu.memory_space<vmem>>, vector<8x256xf32>,
    %c0_62 = arith.constant 0 : index
    %c0_63 = arith.constant 0 : index
    %c127 = arith.constant 127 : index
    %55 = vector.load %arg6[%c0_62, %c0_63, %c127] : memref<2x8x512xf32, #tpu.memory_space<vmem>>, vector<1x8x256xf32>
    %56 = vector.shape_cast %55 : vector<1x8x256xf32> to vector<8x256xf32>
    %c1_64 = arith.constant 1 : index
    %c0_65 = arith.constant 0 : index
    %c0_66 = arith.constant 0 : index
    %57 = vector.load %arg4[%c1_64, %c0_65, %c0_66] : memref<4x8x256xf32, #tpu.memory_space<vmem>>, vector<1x8x256xf32>
    %58 = vector.shape_cast %57 : vector<1x8x256xf32> to vector<8x256xf32>
    %59 = arith.mulf %56, %58 : vector<8x256xf32>
    %c24 = arith.constant 24 : index
    %c0_67 = arith.constant 0 : index
    %60 = vector.load %arg7[%c24, %c0_67] : memref<80x512xf32, #tpu.memory_space<vmem>>, vector<8x256xf32>
    tpu.vector_store %arg7[%c24, %c0_67], %59 {strides = array<i32>} : memref<80x512xf32, #tpu.memory_space<vmem>>, vector<8x256xf32>,
    %c1_68 = arith.constant 1 : index
    %c0_69 = arith.constant 0 : index
    %c127_70 = arith.constant 127 : index
    %61 = vector.load %arg6[%c1_68, %c0_69, %c127_70] : memref<2x8x512xf32, #tpu.memory_space<vmem>>, vector<1x8x256xf32>
    %62 = vector.shape_cast %61 : vector<1x8x256xf32> to vector<8x256xf32>
    %c1_71 = arith.constant 1 : index
    %c0_72 = arith.constant 0 : index
    %c0_73 = arith.constant 0 : index
    %63 = vector.load %arg4[%c1_71, %c0_72, %c0_73] : memref<4x8x256xf32, #tpu.memory_space<vmem>>, vector<1x8x256xf32>
    %64 = vector.shape_cast %63 : vector<1x8x256xf32> to vector<8x256xf32>
    %65 = arith.mulf %62, %64 : vector<8x256xf32>
    %c24_74 = arith.constant 24 : index
    %c256_75 = arith.constant 256 : index
    %66 = vector.load %arg7[%c24_74, %c256_75] : memref<80x512xf32, #tpu.memory_space<vmem>>, vector<8x256xf32>
    tpu.vector_store %arg7[%c24_74, %c256_75], %65 {strides = array<i32>} : memref<80x512xf32, #tpu.memory_space<vmem>>, vector<8x256xf32>,
    %c0_76 = arith.constant 0 : index
    %c0_77 = arith.constant 0 : index
    %c128_78 = arith.constant 128 : index
    %67 = vector.load %arg6[%c0_76, %c0_77, %c128_78] : memref<2x8x512xf32, #tpu.memory_space<vmem>>, vector<1x8x256xf32>
    %68 = vector.shape_cast %67 : vector<1x8x256xf32> to vector<8x256xf32>
    %c32 = arith.constant 32 : index
    %c0_79 = arith.constant 0 : index
    %69 = vector.load %arg7[%c32, %c0_79] : memref<80x512xf32, #tpu.memory_space<vmem>>, vector<8x256xf32>
    tpu.vector_store %arg7[%c32, %c0_79], %68 {strides = array<i32>} : memref<80x512xf32, #tpu.memory_space<vmem>>, vector<8x256xf32>,
    %c1_80 = arith.constant 1 : index
    %c0_81 = arith.constant 0 : index
    %c128_82 = arith.constant 128 : index
    %70 = vector.load %arg6[%c1_80, %c0_81, %c128_82] : memref<2x8x512xf32, #tpu.memory_space<vmem>>, vector<1x8x256xf32>
    %71 = vector.shape_cast %70 : vector<1x8x256xf32> to vector<8x256xf32>
    %c32_83 = arith.constant 32 : index
    %c256_84 = arith.constant 256 : index
    %72 = vector.load %arg7[%c32_83, %c256_84] : memref<80x512xf32, #tpu.memory_space<vmem>>, vector<8x256xf32>
    tpu.vector_store %arg7[%c32_83, %c256_84], %71 {strides = array<i32>} : memref<80x512xf32, #tpu.memory_space<vmem>>, vector<8x256xf32>,
    %c0_85 = arith.constant 0 : index
    %c0_86 = arith.constant 0 : index
    %c129 = arith.constant 129 : index
    %73 = vector.load %arg6[%c0_85, %c0_86, %c129] : memref<2x8x512xf32, #tpu.memory_space<vmem>>, vector<1x8x256xf32>
    %74 = vector.shape_cast %73 : vector<1x8x256xf32> to vector<8x256xf32>
    %c2_87 = arith.constant 2 : index
    %c0_88 = arith.constant 0 : index
    %c0_89 = arith.constant 0 : index
    %75 = vector.load %arg4[%c2_87, %c0_88, %c0_89] : memref<4x8x256xf32, #tpu.memory_space<vmem>>, vector<1x8x256xf32>
    %76 = vector.shape_cast %75 : vector<1x8x256xf32> to vector<8x256xf32>
    %77 = arith.mulf %74, %76 : vector<8x256xf32>
    %c40 = arith.constant 40 : index
    %c0_90 = arith.constant 0 : index
    %78 = vector.load %arg7[%c40, %c0_90] : memref<80x512xf32, #tpu.memory_space<vmem>>, vector<8x256xf32>
    tpu.vector_store %arg7[%c40, %c0_90], %77 {strides = array<i32>} : memref<80x512xf32, #tpu.memory_space<vmem>>, vector<8x256xf32>,
    %c1_91 = arith.constant 1 : index
    %c0_92 = arith.constant 0 : index
    %c129_93 = arith.constant 129 : index
    %79 = vector.load %arg6[%c1_91, %c0_92, %c129_93] : memref<2x8x512xf32, #tpu.memory_space<vmem>>, vector<1x8x256xf32>
    %80 = vector.shape_cast %79 : vector<1x8x256xf32> to vector<8x256xf32>
    %c2_94 = arith.constant 2 : index
    %c0_95 = arith.constant 0 : index
    %c0_96 = arith.constant 0 : index
    %81 = vector.load %arg4[%c2_94, %c0_95, %c0_96] : memref<4x8x256xf32, #tpu.memory_space<vmem>>, vector<1x8x256xf32>
    %82 = vector.shape_cast %81 : vector<1x8x256xf32> to vector<8x256xf32>
    %83 = arith.mulf %80, %82 : vector<8x256xf32>
    %c40_97 = arith.constant 40 : index
    %c256_98 = arith.constant 256 : index
    %84 = vector.load %arg7[%c40_97, %c256_98] : memref<80x512xf32, #tpu.memory_space<vmem>>, vector<8x256xf32>
    tpu.vector_store %arg7[%c40_97, %c256_98], %83 {strides = array<i32>} : memref<80x512xf32, #tpu.memory_space<vmem>>, vector<8x256xf32>,
    %c0_99 = arith.constant 0 : index
    %c0_100 = arith.constant 0 : index
    %c143 = arith.constant 143 : index
    %85 = vector.load %arg6[%c0_99, %c0_100, %c143] : memref<2x8x512xf32, #tpu.memory_space<vmem>>, vector<1x8x256xf32>
    %86 = vector.shape_cast %85 : vector<1x8x256xf32> to vector<8x256xf32>
    %c1_101 = arith.constant 1 : index
    %c0_102 = arith.constant 0 : index
    %c0_103 = arith.constant 0 : index
    %87 = vector.load %arg4[%c1_101, %c0_102, %c0_103] : memref<4x8x256xf32, #tpu.memory_space<vmem>>, vector<1x8x256xf32>
    %88 = vector.shape_cast %87 : vector<1x8x256xf32> to vector<8x256xf32>
    %89 = arith.mulf %86, %88 : vector<8x256xf32>
    %c48 = arith.constant 48 : index
    %c0_104 = arith.constant 0 : index
    %90 = vector.load %arg7[%c48, %c0_104] : memref<80x512xf32, #tpu.memory_space<vmem>>, vector<8x256xf32>
    tpu.vector_store %arg7[%c48, %c0_104], %89 {strides = array<i32>} : memref<80x512xf32, #tpu.memory_space<vmem>>, vector<8x256xf32>,
    %c1_105 = arith.constant 1 : index
    %c0_106 = arith.constant 0 : index
    %c143_107 = arith.constant 143 : index
    %91 = vector.load %arg6[%c1_105, %c0_106, %c143_107] : memref<2x8x512xf32, #tpu.memory_space<vmem>>, vector<1x8x256xf32>
    %92 = vector.shape_cast %91 : vector<1x8x256xf32> to vector<8x256xf32>
    %c1_108 = arith.constant 1 : index
    %c0_109 = arith.constant 0 : index
    %c0_110 = arith.constant 0 : index
    %93 = vector.load %arg4[%c1_108, %c0_109, %c0_110] : memref<4x8x256xf32, #tpu.memory_space<vmem>>, vector<1x8x256xf32>
    %94 = vector.shape_cast %93 : vector<1x8x256xf32> to vector<8x256xf32>
    %95 = arith.mulf %92, %94 : vector<8x256xf32>
    %c48_111 = arith.constant 48 : index
    %c256_112 = arith.constant 256 : index
    %96 = vector.load %arg7[%c48_111, %c256_112] : memref<80x512xf32, #tpu.memory_space<vmem>>, vector<8x256xf32>
    tpu.vector_store %arg7[%c48_111, %c256_112], %95 {strides = array<i32>} : memref<80x512xf32, #tpu.memory_space<vmem>>, vector<8x256xf32>,
    %c0_113 = arith.constant 0 : index
    %c0_114 = arith.constant 0 : index
    %c144 = arith.constant 144 : index
    %97 = vector.load %arg6[%c0_113, %c0_114, %c144] : memref<2x8x512xf32, #tpu.memory_space<vmem>>, vector<1x8x256xf32>
    %98 = vector.shape_cast %97 : vector<1x8x256xf32> to vector<8x256xf32>
    %c56 = arith.constant 56 : index
    %c0_115 = arith.constant 0 : index
    %99 = vector.load %arg7[%c56, %c0_115] : memref<80x512xf32, #tpu.memory_space<vmem>>, vector<8x256xf32>
    tpu.vector_store %arg7[%c56, %c0_115], %98 {strides = array<i32>} : memref<80x512xf32, #tpu.memory_space<vmem>>, vector<8x256xf32>,
    %c1_116 = arith.constant 1 : index
    %c0_117 = arith.constant 0 : index
    %c144_118 = arith.constant 144 : index
    %100 = vector.load %arg6[%c1_116, %c0_117, %c144_118] : memref<2x8x512xf32, #tpu.memory_space<vmem>>, vector<1x8x256xf32>
    %101 = vector.shape_cast %100 : vector<1x8x256xf32> to vector<8x256xf32>
    %c56_119 = arith.constant 56 : index
    %c256_120 = arith.constant 256 : index
    %102 = vector.load %arg7[%c56_119, %c256_120] : memref<80x512xf32, #tpu.memory_space<vmem>>, vector<8x256xf32>
    tpu.vector_store %arg7[%c56_119, %c256_120], %101 {strides = array<i32>} : memref<80x512xf32, #tpu.memory_space<vmem>>, vector<8x256xf32>,
    %c0_121 = arith.constant 0 : index
    %c0_122 = arith.constant 0 : index
    %c145 = arith.constant 145 : index
    %103 = vector.load %arg6[%c0_121, %c0_122, %c145] : memref<2x8x512xf32, #tpu.memory_space<vmem>>, vector<1x8x256xf32>
    %104 = vector.shape_cast %103 : vector<1x8x256xf32> to vector<8x256xf32>
    %c2_123 = arith.constant 2 : index
    %c0_124 = arith.constant 0 : index
    %c0_125 = arith.constant 0 : index
    %105 = vector.load %arg4[%c2_123, %c0_124, %c0_125] : memref<4x8x256xf32, #tpu.memory_space<vmem>>, vector<1x8x256xf32>
    %106 = vector.shape_cast %105 : vector<1x8x256xf32> to vector<8x256xf32>
    %107 = arith.mulf %104, %106 : vector<8x256xf32>
    %c64 = arith.constant 64 : index
    %c0_126 = arith.constant 0 : index
    %108 = vector.load %arg7[%c64, %c0_126] : memref<80x512xf32, #tpu.memory_space<vmem>>, vector<8x256xf32>
    tpu.vector_store %arg7[%c64, %c0_126], %107 {strides = array<i32>} : memref<80x512xf32, #tpu.memory_space<vmem>>, vector<8x256xf32>,
    %c1_127 = arith.constant 1 : index
    %c0_128 = arith.constant 0 : index
    %c145_129 = arith.constant 145 : index
    %109 = vector.load %arg6[%c1_127, %c0_128, %c145_129] : memref<2x8x512xf32, #tpu.memory_space<vmem>>, vector<1x8x256xf32>
    %110 = vector.shape_cast %109 : vector<1x8x256xf32> to vector<8x256xf32>
    %c2_130 = arith.constant 2 : index
    %c0_131 = arith.constant 0 : index
    %c0_132 = arith.constant 0 : index
    %111 = vector.load %arg4[%c2_130, %c0_131, %c0_132] : memref<4x8x256xf32, #tpu.memory_space<vmem>>, vector<1x8x256xf32>
    %112 = vector.shape_cast %111 : vector<1x8x256xf32> to vector<8x256xf32>
    %113 = arith.mulf %110, %112 : vector<8x256xf32>
    %c64_133 = arith.constant 64 : index
    %c256_134 = arith.constant 256 : index
    %114 = vector.load %arg7[%c64_133, %c256_134] : memref<80x512xf32, #tpu.memory_space<vmem>>, vector<8x256xf32>
    tpu.vector_store %arg7[%c64_133, %c256_134], %113 {strides = array<i32>} : memref<80x512xf32, #tpu.memory_space<vmem>>, vector<8x256xf32>,
    %c0_135 = arith.constant 0 : index
    %c0_136 = arith.constant 0 : index
    %115 = vector.load %arg7[%c0_135, %c0_136] : memref<80x512xf32, #tpu.memory_space<vmem>>, vector<80x512xf32>
    %cst_137 = arith.constant dense<0.000000e+00> : vector<4x512xf32>
    %116 = tpu.matmul %14, %115, %cst_137 {dimension_numbers = #tpu.dot_dimension_numbers<[1], [0], [0], [1], [0, 0, 1, 1], [], []>} : vector<4x80xf32>, vector<80x512xf32>, vector<4x512xf32> -> vector<4x512xf32>
    %cst_138 = arith.constant 1.000000e-01 : f32
    %117 = vector.broadcast %cst_138 : f32 to vector<4x512xf32>
    %118 = arith.mulf %117, %116 : vector<4x512xf32>
    %119 = arith.maximumf %116, %118 : vector<4x512xf32>
    %c0_139 = arith.constant 0 : index
    %c0_140 = arith.constant 0 : index
    %c0_141 = arith.constant 0 : index
    %120 = vector.load %arg3[%c0_139, %c0_140, %c0_141] : memref<2x4x80xf32, #tpu.memory_space<vmem>>, vector<1x4x80xf32>
    %121 = vector.shape_cast %120 : vector<1x4x80xf32> to vector<4x80xf32>
    %122 = vector.extract_strided_slice %119 {offsets = [0, 0], sizes = [4, 256], strides = [1, 1]} : vector<4x512xf32> to vector<4x256xf32>
    %c0_142 = arith.constant 0 : index
    %c0_143 = arith.constant 0 : index
    %c128_144 = arith.constant 128 : index
    %123 = vector.load %arg6[%c0_142, %c0_143, %c128_144] : memref<2x8x512xf32, #tpu.memory_space<vmem>>, vector<1x4x256xf32>
    %124 = vector.shape_cast %123 : vector<1x4x256xf32> to vector<4x256xf32>
    %125 = vector.shape_cast %122 : vector<4x256xf32> to vector<1x4x256xf32>
    tpu.vector_store %arg6[%c0_142, %c0_143, %c128_144], %125 {strides = array<i32>} : memref<2x8x512xf32, #tpu.memory_space<vmem>>, vector<1x4x256xf32>,
    %126 = vector.extract_strided_slice %119 {offsets = [0, 256], sizes = [4, 256], strides = [1, 1]} : vector<4x512xf32> to vector<4x256xf32>
    %c1_145 = arith.constant 1 : index
    %c0_146 = arith.constant 0 : index
    %c128_147 = arith.constant 128 : index
    %127 = vector.load %arg6[%c1_145, %c0_146, %c128_147] : memref<2x8x512xf32, #tpu.memory_space<vmem>>, vector<1x4x256xf32>
    %128 = vector.shape_cast %127 : vector<1x4x256xf32> to vector<4x256xf32>
    %129 = vector.shape_cast %126 : vector<4x256xf32> to vector<1x4x256xf32>
    tpu.vector_store %arg6[%c1_145, %c0_146, %c128_147], %129 {strides = array<i32>} : memref<2x8x512xf32, #tpu.memory_space<vmem>>, vector<1x4x256xf32>,
    %c0_148 = arith.constant 0 : index
    %c0_149 = arith.constant 0 : index
    %c94 = arith.constant 94 : index
    %130 = vector.load %arg6[%c0_148, %c0_149, %c94] : memref<2x8x512xf32, #tpu.memory_space<vmem>>, vector<1x8x256xf32>
    %131 = vector.shape_cast %130 : vector<1x8x256xf32> to vector<8x256xf32>
    %c0_150 = arith.constant 0 : index
    %c0_151 = arith.constant 0 : index
    %c0_152 = arith.constant 0 : index
    %132 = vector.load %arg4[%c0_150, %c0_151, %c0_152] : memref<4x8x256xf32, #tpu.memory_space<vmem>>, vector<1x8x256xf32>
    %133 = vector.shape_cast %132 : vector<1x8x256xf32> to vector<8x256xf32>
    %134 = arith.mulf %131, %133 : vector<8x256xf32>
    %c0_153 = arith.constant 0 : index
    %c0_154 = arith.constant 0 : index
    %135 = vector.load %arg7[%c0_153, %c0_154] : memref<80x512xf32, #tpu.memory_space<vmem>>, vector<8x256xf32>
    tpu.vector_store %arg7[%c0_153, %c0_154], %134 {strides = array<i32>} : memref<80x512xf32, #tpu.memory_space<vmem>>, vector<8x256xf32>,
    %c1_155 = arith.constant 1 : index
    %c0_156 = arith.constant 0 : index
    %c94_157 = arith.constant 94 : index
    %136 = vector.load %arg6[%c1_155, %c0_156, %c94_157] : memref<2x8x512xf32, #tpu.memory_space<vmem>>, vector<1x8x256xf32>
    %137 = vector.shape_cast %136 : vector<1x8x256xf32> to vector<8x256xf32>
    %c0_158 = arith.constant 0 : index
    %c0_159 = arith.constant 0 : index
    %c0_160 = arith.constant 0 : index
    %138 = vector.load %arg4[%c0_158, %c0_159, %c0_160] : memref<4x8x256xf32, #tpu.memory_space<vmem>>, vector<1x8x256xf32>
    %139 = vector.shape_cast %138 : vector<1x8x256xf32> to vector<8x256xf32>
    %140 = arith.mulf %137, %139 : vector<8x256xf32>
    %c0_161 = arith.constant 0 : index
    %c256_162 = arith.constant 256 : index
    %141 = vector.load %arg7[%c0_161, %c256_162] : memref<80x512xf32, #tpu.memory_space<vmem>>, vector<8x256xf32>
    tpu.vector_store %arg7[%c0_161, %c256_162], %140 {strides = array<i32>} : memref<80x512xf32, #tpu.memory_space<vmem>>, vector<8x256xf32>,
    %c0_163 = arith.constant 0 : index
    %c0_164 = arith.constant 0 : index
    %c96 = arith.constant 96 : index
    %142 = vector.load %arg6[%c0_163, %c0_164, %c96] : memref<2x8x512xf32, #tpu.memory_space<vmem>>, vector<1x8x256xf32>
    %143 = vector.shape_cast %142 : vector<1x8x256xf32> to vector<8x256xf32>
    %c8_165 = arith.constant 8 : index
    %c0_166 = arith.constant 0 : index
    %144 = vector.load %arg7[%c8_165, %c0_166] : memref<80x512xf32, #tpu.memory_space<vmem>>, vector<8x256xf32>
    tpu.vector_store %arg7[%c8_165, %c0_166], %143 {strides = array<i32>} : memref<80x512xf32, #tpu.memory_space<vmem>>, vector<8x256xf32>,
    %c1_167 = arith.constant 1 : index
    %c0_168 = arith.constant 0 : index
    %c96_169 = arith.constant 96 : index
    %145 = vector.load %arg6[%c1_167, %c0_168, %c96_169] : memref<2x8x512xf32, #tpu.memory_space<vmem>>, vector<1x8x256xf32>
    %146 = vector.shape_cast %145 : vector<1x8x256xf32> to vector<8x256xf32>
    %c8_170 = arith.constant 8 : index
    %c256_171 = arith.constant 256 : index
    %147 = vector.load %arg7[%c8_170, %c256_171] : memref<80x512xf32, #tpu.memory_space<vmem>>, vector<8x256xf32>
    tpu.vector_store %arg7[%c8_170, %c256_171], %146 {strides = array<i32>} : memref<80x512xf32, #tpu.memory_space<vmem>>, vector<8x256xf32>,
    %c0_172 = arith.constant 0 : index
    %c0_173 = arith.constant 0 : index
    %c98 = arith.constant 98 : index
    %148 = vector.load %arg6[%c0_172, %c0_173, %c98] : memref<2x8x512xf32, #tpu.memory_space<vmem>>, vector<1x8x256xf32>
    %149 = vector.shape_cast %148 : vector<1x8x256xf32> to vector<8x256xf32>
    %c3 = arith.constant 3 : index
    %c0_174 = arith.constant 0 : index
    %c0_175 = arith.constant 0 : index
    %150 = vector.load %arg4[%c3, %c0_174, %c0_175] : memref<4x8x256xf32, #tpu.memory_space<vmem>>, vector<1x8x256xf32>
    %151 = vector.shape_cast %150 : vector<1x8x256xf32> to vector<8x256xf32>
    %152 = arith.mulf %149, %151 : vector<8x256xf32>
    %c16_176 = arith.constant 16 : index
    %c0_177 = arith.constant 0 : index
    %153 = vector.load %arg7[%c16_176, %c0_177] : memref<80x512xf32, #tpu.memory_space<vmem>>, vector<8x256xf32>
    tpu.vector_store %arg7[%c16_176, %c0_177], %152 {strides = array<i32>} : memref<80x512xf32, #tpu.memory_space<vmem>>, vector<8x256xf32>,
    %c1_178 = arith.constant 1 : index
    %c0_179 = arith.constant 0 : index
    %c98_180 = arith.constant 98 : index
    %154 = vector.load %arg6[%c1_178, %c0_179, %c98_180] : memref<2x8x512xf32, #tpu.memory_space<vmem>>, vector<1x8x256xf32>
    %155 = vector.shape_cast %154 : vector<1x8x256xf32> to vector<8x256xf32>
    %c3_181 = arith.constant 3 : index
    %c0_182 = arith.constant 0 : index
    %c0_183 = arith.constant 0 : index
    %156 = vector.load %arg4[%c3_181, %c0_182, %c0_183] : memref<4x8x256xf32, #tpu.memory_space<vmem>>, vector<1x8x256xf32>
    %157 = vector.shape_cast %156 : vector<1x8x256xf32> to vector<8x256xf32>
    %158 = arith.mulf %155, %157 : vector<8x256xf32>
    %c16_184 = arith.constant 16 : index
    %c256_185 = arith.constant 256 : index
    %159 = vector.load %arg7[%c16_184, %c256_185] : memref<80x512xf32, #tpu.memory_space<vmem>>, vector<8x256xf32>
    tpu.vector_store %arg7[%c16_184, %c256_185], %158 {strides = array<i32>} : memref<80x512xf32, #tpu.memory_space<vmem>>, vector<8x256xf32>,
    %c0_186 = arith.constant 0 : index
    %c0_187 = arith.constant 0 : index
    %c126 = arith.constant 126 : index
    %160 = vector.load %arg6[%c0_186, %c0_187, %c126] : memref<2x8x512xf32, #tpu.memory_space<vmem>>, vector<1x8x256xf32>
    %161 = vector.shape_cast %160 : vector<1x8x256xf32> to vector<8x256xf32>
    %c0_188 = arith.constant 0 : index
    %c0_189 = arith.constant 0 : index
    %c0_190 = arith.constant 0 : index
    %162 = vector.load %arg4[%c0_188, %c0_189, %c0_190] : memref<4x8x256xf32, #tpu.memory_space<vmem>>, vector<1x8x256xf32>
    %163 = vector.shape_cast %162 : vector<1x8x256xf32> to vector<8x256xf32>
    %164 = arith.mulf %161, %163 : vector<8x256xf32>
    %c24_191 = arith.constant 24 : index
    %c0_192 = arith.constant 0 : index
    %165 = vector.load %arg7[%c24_191, %c0_192] : memref<80x512xf32, #tpu.memory_space<vmem>>, vector<8x256xf32>
    tpu.vector_store %arg7[%c24_191, %c0_192], %164 {strides = array<i32>} : memref<80x512xf32, #tpu.memory_space<vmem>>, vector<8x256xf32>,
    %c1_193 = arith.constant 1 : index
    %c0_194 = arith.constant 0 : index
    %c126_195 = arith.constant 126 : index
    %166 = vector.load %arg6[%c1_193, %c0_194, %c126_195] : memref<2x8x512xf32, #tpu.memory_space<vmem>>, vector<1x8x256xf32>
    %167 = vector.shape_cast %166 : vector<1x8x256xf32> to vector<8x256xf32>
    %c0_196 = arith.constant 0 : index
    %c0_197 = arith.constant 0 : index
    %c0_198 = arith.constant 0 : index
    %168 = vector.load %arg4[%c0_196, %c0_197, %c0_198] : memref<4x8x256xf32, #tpu.memory_space<vmem>>, vector<1x8x256xf32>
    %169 = vector.shape_cast %168 : vector<1x8x256xf32> to vector<8x256xf32>
    %170 = arith.mulf %167, %169 : vector<8x256xf32>
    %c24_199 = arith.constant 24 : index
    %c256_200 = arith.constant 256 : index
    %171 = vector.load %arg7[%c24_199, %c256_200] : memref<80x512xf32, #tpu.memory_space<vmem>>, vector<8x256xf32>
    tpu.vector_store %arg7[%c24_199, %c256_200], %170 {strides = array<i32>} : memref<80x512xf32, #tpu.memory_space<vmem>>, vector<8x256xf32>,
    %c0_201 = arith.constant 0 : index
    %c0_202 = arith.constant 0 : index
    %c128_203 = arith.constant 128 : index
    %172 = vector.load %arg6[%c0_201, %c0_202, %c128_203] : memref<2x8x512xf32, #tpu.memory_space<vmem>>, vector<1x8x256xf32>
    %173 = vector.shape_cast %172 : vector<1x8x256xf32> to vector<8x256xf32>
    %c32_204 = arith.constant 32 : index
    %c0_205 = arith.constant 0 : index
    %174 = vector.load %arg7[%c32_204, %c0_205] : memref<80x512xf32, #tpu.memory_space<vmem>>, vector<8x256xf32>
    tpu.vector_store %arg7[%c32_204, %c0_205], %173 {strides = array<i32>} : memref<80x512xf32, #tpu.memory_space<vmem>>, vector<8x256xf32>,
    %c1_206 = arith.constant 1 : index
    %c0_207 = arith.constant 0 : index
    %c128_208 = arith.constant 128 : index
    %175 = vector.load %arg6[%c1_206, %c0_207, %c128_208] : memref<2x8x512xf32, #tpu.memory_space<vmem>>, vector<1x8x256xf32>
    %176 = vector.shape_cast %175 : vector<1x8x256xf32> to vector<8x256xf32>
    %c32_209 = arith.constant 32 : index
    %c256_210 = arith.constant 256 : index
    %177 = vector.load %arg7[%c32_209, %c256_210] : memref<80x512xf32, #tpu.memory_space<vmem>>, vector<8x256xf32>
    tpu.vector_store %arg7[%c32_209, %c256_210], %176 {strides = array<i32>} : memref<80x512xf32, #tpu.memory_space<vmem>>, vector<8x256xf32>,
    %c0_211 = arith.constant 0 : index
    %c0_212 = arith.constant 0 : index
    %c130 = arith.constant 130 : index
    %178 = vector.load %arg6[%c0_211, %c0_212, %c130] : memref<2x8x512xf32, #tpu.memory_space<vmem>>, vector<1x8x256xf32>
    %179 = vector.shape_cast %178 : vector<1x8x256xf32> to vector<8x256xf32>
    %c3_213 = arith.constant 3 : index
    %c0_214 = arith.constant 0 : index
    %c0_215 = arith.constant 0 : index
    %180 = vector.load %arg4[%c3_213, %c0_214, %c0_215] : memref<4x8x256xf32, #tpu.memory_space<vmem>>, vector<1x8x256xf32>
    %181 = vector.shape_cast %180 : vector<1x8x256xf32> to vector<8x256xf32>
    %182 = arith.mulf %179, %181 : vector<8x256xf32>
    %c40_216 = arith.constant 40 : index
    %c0_217 = arith.constant 0 : index
    %183 = vector.load %arg7[%c40_216, %c0_217] : memref<80x512xf32, #tpu.memory_space<vmem>>, vector<8x256xf32>
    tpu.vector_store %arg7[%c40_216, %c0_217], %182 {strides = array<i32>} : memref<80x512xf32, #tpu.memory_space<vmem>>, vector<8x256xf32>,
    %c1_218 = arith.constant 1 : index
    %c0_219 = arith.constant 0 : index
    %c130_220 = arith.constant 130 : index
    %184 = vector.load %arg6[%c1_218, %c0_219, %c130_220] : memref<2x8x512xf32, #tpu.memory_space<vmem>>, vector<1x8x256xf32>
    %185 = vector.shape_cast %184 : vector<1x8x256xf32> to vector<8x256xf32>
    %c3_221 = arith.constant 3 : index
    %c0_222 = arith.constant 0 : index
    %c0_223 = arith.constant 0 : index
    %186 = vector.load %arg4[%c3_221, %c0_222, %c0_223] : memref<4x8x256xf32, #tpu.memory_space<vmem>>, vector<1x8x256xf32>
    %187 = vector.shape_cast %186 : vector<1x8x256xf32> to vector<8x256xf32>
    %188 = arith.mulf %185, %187 : vector<8x256xf32>
    %c40_224 = arith.constant 40 : index
    %c256_225 = arith.constant 256 : index
    %189 = vector.load %arg7[%c40_224, %c256_225] : memref<80x512xf32, #tpu.memory_space<vmem>>, vector<8x256xf32>
    tpu.vector_store %arg7[%c40_224, %c256_225], %188 {strides = array<i32>} : memref<80x512xf32, #tpu.memory_space<vmem>>, vector<8x256xf32>,
    %c0_226 = arith.constant 0 : index
    %c0_227 = arith.constant 0 : index
    %c158 = arith.constant 158 : index
    %190 = vector.load %arg6[%c0_226, %c0_227, %c158] : memref<2x8x512xf32, #tpu.memory_space<vmem>>, vector<1x8x256xf32>
    %191 = vector.shape_cast %190 : vector<1x8x256xf32> to vector<8x256xf32>
    %c0_228 = arith.constant 0 : index
    %c0_229 = arith.constant 0 : index
    %c0_230 = arith.constant 0 : index
    %192 = vector.load %arg4[%c0_228, %c0_229, %c0_230] : memref<4x8x256xf32, #tpu.memory_space<vmem>>, vector<1x8x256xf32>
    %193 = vector.shape_cast %192 : vector<1x8x256xf32> to vector<8x256xf32>
    %194 = arith.mulf %191, %193 : vector<8x256xf32>
    %c48_231 = arith.constant 48 : index
    %c0_232 = arith.constant 0 : index
    %195 = vector.load %arg7[%c48_231, %c0_232] : memref<80x512xf32, #tpu.memory_space<vmem>>, vector<8x256xf32>
    tpu.vector_store %arg7[%c48_231, %c0_232], %194 {strides = array<i32>} : memref<80x512xf32, #tpu.memory_space<vmem>>, vector<8x256xf32>,
    %c1_233 = arith.constant 1 : index
    %c0_234 = arith.constant 0 : index
    %c158_235 = arith.constant 158 : index
    %196 = vector.load %arg6[%c1_233, %c0_234, %c158_235] : memref<2x8x512xf32, #tpu.memory_space<vmem>>, vector<1x8x256xf32>
    %197 = vector.shape_cast %196 : vector<1x8x256xf32> to vector<8x256xf32>
    %c0_236 = arith.constant 0 : index
    %c0_237 = arith.constant 0 : index
    %c0_238 = arith.constant 0 : index
    %198 = vector.load %arg4[%c0_236, %c0_237, %c0_238] : memref<4x8x256xf32, #tpu.memory_space<vmem>>, vector<1x8x256xf32>
    %199 = vector.shape_cast %198 : vector<1x8x256xf32> to vector<8x256xf32>
    %200 = arith.mulf %197, %199 : vector<8x256xf32>
    %c48_239 = arith.constant 48 : index
    %c256_240 = arith.constant 256 : index
    %201 = vector.load %arg7[%c48_239, %c256_240] : memref<80x512xf32, #tpu.memory_space<vmem>>, vector<8x256xf32>
    tpu.vector_store %arg7[%c48_239, %c256_240], %200 {strides = array<i32>} : memref<80x512xf32, #tpu.memory_space<vmem>>, vector<8x256xf32>,
    %c0_241 = arith.constant 0 : index
    %c0_242 = arith.constant 0 : index
    %c160 = arith.constant 160 : index
    %202 = vector.load %arg6[%c0_241, %c0_242, %c160] : memref<2x8x512xf32, #tpu.memory_space<vmem>>, vector<1x8x256xf32>
    %203 = vector.shape_cast %202 : vector<1x8x256xf32> to vector<8x256xf32>
    %c56_243 = arith.constant 56 : index
    %c0_244 = arith.constant 0 : index
    %204 = vector.load %arg7[%c56_243, %c0_244] : memref<80x512xf32, #tpu.memory_space<vmem>>, vector<8x256xf32>
    tpu.vector_store %arg7[%c56_243, %c0_244], %203 {strides = array<i32>} : memref<80x512xf32, #tpu.memory_space<vmem>>, vector<8x256xf32>,
    %c1_245 = arith.constant 1 : index
    %c0_246 = arith.constant 0 : index
    %c160_247 = arith.constant 160 : index
    %205 = vector.load %arg6[%c1_245, %c0_246, %c160_247] : memref<2x8x512xf32, #tpu.memory_space<vmem>>, vector<1x8x256xf32>
    %206 = vector.shape_cast %205 : vector<1x8x256xf32> to vector<8x256xf32>
    %c56_248 = arith.constant 56 : index
    %c256_249 = arith.constant 256 : index
    %207 = vector.load %arg7[%c56_248, %c256_249] : memref<80x512xf32, #tpu.memory_space<vmem>>, vector<8x256xf32>
    tpu.vector_store %arg7[%c56_248, %c256_249], %206 {strides = array<i32>} : memref<80x512xf32, #tpu.memory_space<vmem>>, vector<8x256xf32>,
    %c0_250 = arith.constant 0 : index
    %c0_251 = arith.constant 0 : index
    %c162 = arith.constant 162 : index
    %208 = vector.load %arg6[%c0_250, %c0_251, %c162] : memref<2x8x512xf32, #tpu.memory_space<vmem>>, vector<1x8x256xf32>
    %209 = vector.shape_cast %208 : vector<1x8x256xf32> to vector<8x256xf32>
    %c3_252 = arith.constant 3 : index
    %c0_253 = arith.constant 0 : index
    %c0_254 = arith.constant 0 : index
    %210 = vector.load %arg4[%c3_252, %c0_253, %c0_254] : memref<4x8x256xf32, #tpu.memory_space<vmem>>, vector<1x8x256xf32>
    %211 = vector.shape_cast %210 : vector<1x8x256xf32> to vector<8x256xf32>
    %212 = arith.mulf %209, %211 : vector<8x256xf32>
    %c64_255 = arith.constant 64 : index
    %c0_256 = arith.constant 0 : index
    %213 = vector.load %arg7[%c64_255, %c0_256] : memref<80x512xf32, #tpu.memory_space<vmem>>, vector<8x256xf32>
    tpu.vector_store %arg7[%c64_255, %c0_256], %212 {strides = array<i32>} : memref<80x512xf32, #tpu.memory_space<vmem>>, vector<8x256xf32>,
    %c1_257 = arith.constant 1 : index
    %c0_258 = arith.constant 0 : index
    %c162_259 = arith.constant 162 : index
    %214 = vector.load %arg6[%c1_257, %c0_258, %c162_259] : memref<2x8x512xf32, #tpu.memory_space<vmem>>, vector<1x8x256xf32>
    %215 = vector.shape_cast %214 : vector<1x8x256xf32> to vector<8x256xf32>
    %c3_260 = arith.constant 3 : index
    %c0_261 = arith.constant 0 : index
    %c0_262 = arith.constant 0 : index
    %216 = vector.load %arg4[%c3_260, %c0_261, %c0_262] : memref<4x8x256xf32, #tpu.memory_space<vmem>>, vector<1x8x256xf32>
    %217 = vector.shape_cast %216 : vector<1x8x256xf32> to vector<8x256xf32>
    %218 = arith.mulf %215, %217 : vector<8x256xf32>
    %c64_263 = arith.constant 64 : index
    %c256_264 = arith.constant 256 : index
    %219 = vector.load %arg7[%c64_263, %c256_264] : memref<80x512xf32, #tpu.memory_space<vmem>>, vector<8x256xf32>
    tpu.vector_store %arg7[%c64_263, %c256_264], %218 {strides = array<i32>} : memref<80x512xf32, #tpu.memory_space<vmem>>, vector<8x256xf32>,
    %c0_265 = arith.constant 0 : index
    %c0_266 = arith.constant 0 : index
    %220 = vector.load %arg7[%c0_265, %c0_266] : memref<80x512xf32, #tpu.memory_space<vmem>>, vector<80x512xf32>
    %cst_267 = arith.constant dense<0.000000e+00> : vector<4x512xf32>
    %221 = tpu.matmul %121, %220, %cst_267 {dimension_numbers = #tpu.dot_dimension_numbers<[1], [0], [0], [1], [0, 0, 1, 1], [], []>} : vector<4x80xf32>, vector<80x512xf32>, vector<4x512xf32> -> vector<4x512xf32>
    %c0_268 = arith.constant 0 : index
    %c0_269 = arith.constant 0 : index
    %c0_270 = arith.constant 0 : index
    %222 = vector.load %arg8[%c0_268, %c0_269, %c0_270] : memref<2x4x256xf32, #tpu.memory_space<vmem>>, vector<1x4x256xf32>
    %223 = vector.shape_cast %222 : vector<1x4x256xf32> to vector<4x256xf32>
    %224 = vector.extract_strided_slice %221 {offsets = [0, 0], sizes = [4, 256], strides = [1, 1]} : vector<4x512xf32> to vector<4x256xf32>
    %225 = arith.addf %223, %224 : vector<4x256xf32>
    %c0_271 = arith.constant 0 : index
    %c0_272 = arith.constant 0 : index
    %c0_273 = arith.constant 0 : index
    %226 = vector.load %arg8[%c0_271, %c0_272, %c0_273] : memref<2x4x256xf32, #tpu.memory_space<vmem>>, vector<1x4x256xf32>
    %227 = vector.shape_cast %226 : vector<1x4x256xf32> to vector<4x256xf32>
    %228 = vector.shape_cast %225 : vector<4x256xf32> to vector<1x4x256xf32>
    tpu.vector_store %arg8[%c0_271, %c0_272, %c0_273], %228 {strides = array<i32>} : memref<2x4x256xf32, #tpu.memory_space<vmem>>, vector<1x4x256xf32>,
    %c1_274 = arith.constant 1 : index
    %c0_275 = arith.constant 0 : index
    %c0_276 = arith.constant 0 : index
    %229 = vector.load %arg8[%c1_274, %c0_275, %c0_276] : memref<2x4x256xf32, #tpu.memory_space<vmem>>, vector<1x4x256xf32>
    %230 = vector.shape_cast %229 : vector<1x4x256xf32> to vector<4x256xf32>
    %231 = vector.extract_strided_slice %221 {offsets = [0, 256], sizes = [4, 256], strides = [1, 1]} : vector<4x512xf32> to vector<4x256xf32>
    %232 = arith.addf %230, %231 : vector<4x256xf32>
    %c1_277 = arith.constant 1 : index
    %c0_278 = arith.constant 0 : index
    %c0_279 = arith.constant 0 : index
    %233 = vector.load %arg8[%c1_277, %c0_278, %c0_279] : memref<2x4x256xf32, #tpu.memory_space<vmem>>, vector<1x4x256xf32>
    %234 = vector.shape_cast %233 : vector<1x4x256xf32> to vector<4x256xf32>
    %235 = vector.shape_cast %232 : vector<4x256xf32> to vector<1x4x256xf32>
    tpu.vector_store %arg8[%c1_277, %c0_278, %c0_279], %235 {strides = array<i32>} : memref<2x4x256xf32, #tpu.memory_space<vmem>>, vector<1x4x256xf32>,
    %c1_280 = arith.constant 1 : index
    %c0_281 = arith.constant 0 : index
    %c0_282 = arith.constant 0 : index
    %236 = vector.load %arg2[%c1_280, %c0_281, %c0_282] : memref<2x4x80xf32, #tpu.memory_space<vmem>>, vector<1x4x80xf32>
    %237 = vector.shape_cast %236 : vector<1x4x80xf32> to vector<4x80xf32>
    %c0_283 = arith.constant 0 : index
    %c0_284 = arith.constant 0 : index
    %c0_285 = arith.constant 0 : index
    %238 = vector.load %arg8[%c0_283, %c0_284, %c0_285] : memref<2x4x256xf32, #tpu.memory_space<vmem>>, vector<1x4x256xf32>
    %239 = vector.shape_cast %238 : vector<1x4x256xf32> to vector<4x256xf32>
    %c0_286 = arith.constant 0 : index
    %c0_287 = arith.constant 0 : index
    %c128_288 = arith.constant 128 : index
    %240 = vector.load %arg6[%c0_286, %c0_287, %c128_288] : memref<2x8x512xf32, #tpu.memory_space<vmem>>, vector<1x4x256xf32>
    %241 = vector.shape_cast %240 : vector<1x4x256xf32> to vector<4x256xf32>
    %242 = vector.shape_cast %239 : vector<4x256xf32> to vector<1x4x256xf32>
    tpu.vector_store %arg6[%c0_286, %c0_287, %c128_288], %242 {strides = array<i32>} : memref<2x8x512xf32, #tpu.memory_space<vmem>>, vector<1x4x256xf32>,
    %c1_289 = arith.constant 1 : index
    %c0_290 = arith.constant 0 : index
    %c0_291 = arith.constant 0 : index
    %243 = vector.load %arg8[%c1_289, %c0_290, %c0_291] : memref<2x4x256xf32, #tpu.memory_space<vmem>>, vector<1x4x256xf32>
    %244 = vector.shape_cast %243 : vector<1x4x256xf32> to vector<4x256xf32>
    %c1_292 = arith.constant 1 : index
    %c0_293 = arith.constant 0 : index
    %c128_294 = arith.constant 128 : index
    %245 = vector.load %arg6[%c1_292, %c0_293, %c128_294] : memref<2x8x512xf32, #tpu.memory_space<vmem>>, vector<1x4x256xf32>
    %246 = vector.shape_cast %245 : vector<1x4x256xf32> to vector<4x256xf32>
    %247 = vector.shape_cast %244 : vector<4x256xf32> to vector<1x4x256xf32>
    tpu.vector_store %arg6[%c1_292, %c0_293, %c128_294], %247 {strides = array<i32>} : memref<2x8x512xf32, #tpu.memory_space<vmem>>, vector<1x4x256xf32>,
    %c0_295 = arith.constant 0 : index
    %c0_296 = arith.constant 0 : index
    %c111_297 = arith.constant 111 : index
    %248 = vector.load %arg6[%c0_295, %c0_296, %c111_297] : memref<2x8x512xf32, #tpu.memory_space<vmem>>, vector<1x8x256xf32>
    %249 = vector.shape_cast %248 : vector<1x8x256xf32> to vector<8x256xf32>
    %c1_298 = arith.constant 1 : index
    %c0_299 = arith.constant 0 : index
    %c0_300 = arith.constant 0 : index
    %250 = vector.load %arg4[%c1_298, %c0_299, %c0_300] : memref<4x8x256xf32, #tpu.memory_space<vmem>>, vector<1x8x256xf32>
    %251 = vector.shape_cast %250 : vector<1x8x256xf32> to vector<8x256xf32>
    %252 = arith.mulf %249, %251 : vector<8x256xf32>
    %c0_301 = arith.constant 0 : index
    %c0_302 = arith.constant 0 : index
    %253 = vector.load %arg7[%c0_301, %c0_302] : memref<80x512xf32, #tpu.memory_space<vmem>>, vector<8x256xf32>
    tpu.vector_store %arg7[%c0_301, %c0_302], %252 {strides = array<i32>} : memref<80x512xf32, #tpu.memory_space<vmem>>, vector<8x256xf32>,
    %c1_303 = arith.constant 1 : index
    %c0_304 = arith.constant 0 : index
    %c111_305 = arith.constant 111 : index
    %254 = vector.load %arg6[%c1_303, %c0_304, %c111_305] : memref<2x8x512xf32, #tpu.memory_space<vmem>>, vector<1x8x256xf32>
    %255 = vector.shape_cast %254 : vector<1x8x256xf32> to vector<8x256xf32>
    %c1_306 = arith.constant 1 : index
    %c0_307 = arith.constant 0 : index
    %c0_308 = arith.constant 0 : index
    %256 = vector.load %arg4[%c1_306, %c0_307, %c0_308] : memref<4x8x256xf32, #tpu.memory_space<vmem>>, vector<1x8x256xf32>
    %257 = vector.shape_cast %256 : vector<1x8x256xf32> to vector<8x256xf32>
    %258 = arith.mulf %255, %257 : vector<8x256xf32>
    %c0_309 = arith.constant 0 : index
    %c256_310 = arith.constant 256 : index
    %259 = vector.load %arg7[%c0_309, %c256_310] : memref<80x512xf32, #tpu.memory_space<vmem>>, vector<8x256xf32>
    tpu.vector_store %arg7[%c0_309, %c256_310], %258 {strides = array<i32>} : memref<80x512xf32, #tpu.memory_space<vmem>>, vector<8x256xf32>,
    %c0_311 = arith.constant 0 : index
    %c0_312 = arith.constant 0 : index
    %c112_313 = arith.constant 112 : index
    %260 = vector.load %arg6[%c0_311, %c0_312, %c112_313] : memref<2x8x512xf32, #tpu.memory_space<vmem>>, vector<1x8x256xf32>
    %261 = vector.shape_cast %260 : vector<1x8x256xf32> to vector<8x256xf32>
    %c8_314 = arith.constant 8 : index
    %c0_315 = arith.constant 0 : index
    %262 = vector.load %arg7[%c8_314, %c0_315] : memref<80x512xf32, #tpu.memory_space<vmem>>, vector<8x256xf32>
    tpu.vector_store %arg7[%c8_314, %c0_315], %261 {strides = array<i32>} : memref<80x512xf32, #tpu.memory_space<vmem>>, vector<8x256xf32>,
    %c1_316 = arith.constant 1 : index
    %c0_317 = arith.constant 0 : index
    %c112_318 = arith.constant 112 : index
    %263 = vector.load %arg6[%c1_316, %c0_317, %c112_318] : memref<2x8x512xf32, #tpu.memory_space<vmem>>, vector<1x8x256xf32>
    %264 = vector.shape_cast %263 : vector<1x8x256xf32> to vector<8x256xf32>
    %c8_319 = arith.constant 8 : index
    %c256_320 = arith.constant 256 : index
    %265 = vector.load %arg7[%c8_319, %c256_320] : memref<80x512xf32, #tpu.memory_space<vmem>>, vector<8x256xf32>
    tpu.vector_store %arg7[%c8_319, %c256_320], %264 {strides = array<i32>} : memref<80x512xf32, #tpu.memory_space<vmem>>, vector<8x256xf32>,
    %c0_321 = arith.constant 0 : index
    %c0_322 = arith.constant 0 : index
    %c113_323 = arith.constant 113 : index
    %266 = vector.load %arg6[%c0_321, %c0_322, %c113_323] : memref<2x8x512xf32, #tpu.memory_space<vmem>>, vector<1x8x256xf32>
    %267 = vector.shape_cast %266 : vector<1x8x256xf32> to vector<8x256xf32>
    %c2_324 = arith.constant 2 : index
    %c0_325 = arith.constant 0 : index
    %c0_326 = arith.constant 0 : index
    %268 = vector.load %arg4[%c2_324, %c0_325, %c0_326] : memref<4x8x256xf32, #tpu.memory_space<vmem>>, vector<1x8x256xf32>
    %269 = vector.shape_cast %268 : vector<1x8x256xf32> to vector<8x256xf32>
    %270 = arith.mulf %267, %269 : vector<8x256xf32>
    %c16_327 = arith.constant 16 : index
    %c0_328 = arith.constant 0 : index
    %271 = vector.load %arg7[%c16_327, %c0_328] : memref<80x512xf32, #tpu.memory_space<vmem>>, vector<8x256xf32>
    tpu.vector_store %arg7[%c16_327, %c0_328], %270 {strides = array<i32>} : memref<80x512xf32, #tpu.memory_space<vmem>>, vector<8x256xf32>,
    %c1_329 = arith.constant 1 : index
    %c0_330 = arith.constant 0 : index
    %c113_331 = arith.constant 113 : index
    %272 = vector.load %arg6[%c1_329, %c0_330, %c113_331] : memref<2x8x512xf32, #tpu.memory_space<vmem>>, vector<1x8x256xf32>
    %273 = vector.shape_cast %272 : vector<1x8x256xf32> to vector<8x256xf32>
    %c2_332 = arith.constant 2 : index
    %c0_333 = arith.constant 0 : index
    %c0_334 = arith.constant 0 : index
    %274 = vector.load %arg4[%c2_332, %c0_333, %c0_334] : memref<4x8x256xf32, #tpu.memory_space<vmem>>, vector<1x8x256xf32>
    %275 = vector.shape_cast %274 : vector<1x8x256xf32> to vector<8x256xf32>
    %276 = arith.mulf %273, %275 : vector<8x256xf32>
    %c16_335 = arith.constant 16 : index
    %c256_336 = arith.constant 256 : index
    %277 = vector.load %arg7[%c16_335, %c256_336] : memref<80x512xf32, #tpu.memory_space<vmem>>, vector<8x256xf32>
    tpu.vector_store %arg7[%c16_335, %c256_336], %276 {strides = array<i32>} : memref<80x512xf32, #tpu.memory_space<vmem>>, vector<8x256xf32>,
    %c0_337 = arith.constant 0 : index
    %c0_338 = arith.constant 0 : index
    %c127_339 = arith.constant 127 : index
    %278 = vector.load %arg6[%c0_337, %c0_338, %c127_339] : memref<2x8x512xf32, #tpu.memory_space<vmem>>, vector<1x8x256xf32>
    %279 = vector.shape_cast %278 : vector<1x8x256xf32> to vector<8x256xf32>
    %c1_340 = arith.constant 1 : index
    %c0_341 = arith.constant 0 : index
    %c0_342 = arith.constant 0 : index
    %280 = vector.load %arg4[%c1_340, %c0_341, %c0_342] : memref<4x8x256xf32, #tpu.memory_space<vmem>>, vector<1x8x256xf32>
    %281 = vector.shape_cast %280 : vector<1x8x256xf32> to vector<8x256xf32>
    %282 = arith.mulf %279, %281 : vector<8x256xf32>
    %c24_343 = arith.constant 24 : index
    %c0_344 = arith.constant 0 : index
    %283 = vector.load %arg7[%c24_343, %c0_344] : memref<80x512xf32, #tpu.memory_space<vmem>>, vector<8x256xf32>
    tpu.vector_store %arg7[%c24_343, %c0_344], %282 {strides = array<i32>} : memref<80x512xf32, #tpu.memory_space<vmem>>, vector<8x256xf32>,
    %c1_345 = arith.constant 1 : index
    %c0_346 = arith.constant 0 : index
    %c127_347 = arith.constant 127 : index
    %284 = vector.load %arg6[%c1_345, %c0_346, %c127_347] : memref<2x8x512xf32, #tpu.memory_space<vmem>>, vector<1x8x256xf32>
    %285 = vector.shape_cast %284 : vector<1x8x256xf32> to vector<8x256xf32>
    %c1_348 = arith.constant 1 : index
    %c0_349 = arith.constant 0 : index
    %c0_350 = arith.constant 0 : index
    %286 = vector.load %arg4[%c1_348, %c0_349, %c0_350] : memref<4x8x256xf32, #tpu.memory_space<vmem>>, vector<1x8x256xf32>
    %287 = vector.shape_cast %286 : vector<1x8x256xf32> to vector<8x256xf32>
    %288 = arith.mulf %285, %287 : vector<8x256xf32>
    %c24_351 = arith.constant 24 : index
    %c256_352 = arith.constant 256 : index
    %289 = vector.load %arg7[%c24_351, %c256_352] : memref<80x512xf32, #tpu.memory_space<vmem>>, vector<8x256xf32>
    tpu.vector_store %arg7[%c24_351, %c256_352], %288 {strides = array<i32>} : memref<80x512xf32, #tpu.memory_space<vmem>>, vector<8x256xf32>,
    %c0_353 = arith.constant 0 : index
    %c0_354 = arith.constant 0 : index
    %c128_355 = arith.constant 128 : index
    %290 = vector.load %arg6[%c0_353, %c0_354, %c128_355] : memref<2x8x512xf32, #tpu.memory_space<vmem>>, vector<1x8x256xf32>
    %291 = vector.shape_cast %290 : vector<1x8x256xf32> to vector<8x256xf32>
    %c32_356 = arith.constant 32 : index
    %c0_357 = arith.constant 0 : index
    %292 = vector.load %arg7[%c32_356, %c0_357] : memref<80x512xf32, #tpu.memory_space<vmem>>, vector<8x256xf32>
    tpu.vector_store %arg7[%c32_356, %c0_357], %291 {strides = array<i32>} : memref<80x512xf32, #tpu.memory_space<vmem>>, vector<8x256xf32>,
    %c1_358 = arith.constant 1 : index
    %c0_359 = arith.constant 0 : index
    %c128_360 = arith.constant 128 : index
    %293 = vector.load %arg6[%c1_358, %c0_359, %c128_360] : memref<2x8x512xf32, #tpu.memory_space<vmem>>, vector<1x8x256xf32>
    %294 = vector.shape_cast %293 : vector<1x8x256xf32> to vector<8x256xf32>
    %c32_361 = arith.constant 32 : index
    %c256_362 = arith.constant 256 : index
    %295 = vector.load %arg7[%c32_361, %c256_362] : memref<80x512xf32, #tpu.memory_space<vmem>>, vector<8x256xf32>
    tpu.vector_store %arg7[%c32_361, %c256_362], %294 {strides = array<i32>} : memref<80x512xf32, #tpu.memory_space<vmem>>, vector<8x256xf32>,
    %c0_363 = arith.constant 0 : index
    %c0_364 = arith.constant 0 : index
    %c129_365 = arith.constant 129 : index
    %296 = vector.load %arg6[%c0_363, %c0_364, %c129_365] : memref<2x8x512xf32, #tpu.memory_space<vmem>>, vector<1x8x256xf32>
    %297 = vector.shape_cast %296 : vector<1x8x256xf32> to vector<8x256xf32>
    %c2_366 = arith.constant 2 : index
    %c0_367 = arith.constant 0 : index
    %c0_368 = arith.constant 0 : index
    %298 = vector.load %arg4[%c2_366, %c0_367, %c0_368] : memref<4x8x256xf32, #tpu.memory_space<vmem>>, vector<1x8x256xf32>
    %299 = vector.shape_cast %298 : vector<1x8x256xf32> to vector<8x256xf32>
    %300 = arith.mulf %297, %299 : vector<8x256xf32>
    %c40_369 = arith.constant 40 : index
    %c0_370 = arith.constant 0 : index
    %301 = vector.load %arg7[%c40_369, %c0_370] : memref<80x512xf32, #tpu.memory_space<vmem>>, vector<8x256xf32>
    tpu.vector_store %arg7[%c40_369, %c0_370], %300 {strides = array<i32>} : memref<80x512xf32, #tpu.memory_space<vmem>>, vector<8x256xf32>,
    %c1_371 = arith.constant 1 : index
    %c0_372 = arith.constant 0 : index
    %c129_373 = arith.constant 129 : index
    %302 = vector.load %arg6[%c1_371, %c0_372, %c129_373] : memref<2x8x512xf32, #tpu.memory_space<vmem>>, vector<1x8x256xf32>
    %303 = vector.shape_cast %302 : vector<1x8x256xf32> to vector<8x256xf32>
    %c2_374 = arith.constant 2 : index
    %c0_375 = arith.constant 0 : index
    %c0_376 = arith.constant 0 : index
    %304 = vector.load %arg4[%c2_374, %c0_375, %c0_376] : memref<4x8x256xf32, #tpu.memory_space<vmem>>, vector<1x8x256xf32>
    %305 = vector.shape_cast %304 : vector<1x8x256xf32> to vector<8x256xf32>
    %306 = arith.mulf %303, %305 : vector<8x256xf32>
    %c40_377 = arith.constant 40 : index
    %c256_378 = arith.constant 256 : index
    %307 = vector.load %arg7[%c40_377, %c256_378] : memref<80x512xf32, #tpu.memory_space<vmem>>, vector<8x256xf32>
    tpu.vector_store %arg7[%c40_377, %c256_378], %306 {strides = array<i32>} : memref<80x512xf32, #tpu.memory_space<vmem>>, vector<8x256xf32>,
    %c0_379 = arith.constant 0 : index
    %c0_380 = arith.constant 0 : index
    %c143_381 = arith.constant 143 : index
    %308 = vector.load %arg6[%c0_379, %c0_380, %c143_381] : memref<2x8x512xf32, #tpu.memory_space<vmem>>, vector<1x8x256xf32>
    %309 = vector.shape_cast %308 : vector<1x8x256xf32> to vector<8x256xf32>
    %c1_382 = arith.constant 1 : index
    %c0_383 = arith.constant 0 : index
    %c0_384 = arith.constant 0 : index
    %310 = vector.load %arg4[%c1_382, %c0_383, %c0_384] : memref<4x8x256xf32, #tpu.memory_space<vmem>>, vector<1x8x256xf32>
    %311 = vector.shape_cast %310 : vector<1x8x256xf32> to vector<8x256xf32>
    %312 = arith.mulf %309, %311 : vector<8x256xf32>
    %c48_385 = arith.constant 48 : index
    %c0_386 = arith.constant 0 : index
    %313 = vector.load %arg7[%c48_385, %c0_386] : memref<80x512xf32, #tpu.memory_space<vmem>>, vector<8x256xf32>
    tpu.vector_store %arg7[%c48_385, %c0_386], %312 {strides = array<i32>} : memref<80x512xf32, #tpu.memory_space<vmem>>, vector<8x256xf32>,
    %c1_387 = arith.constant 1 : index
    %c0_388 = arith.constant 0 : index
    %c143_389 = arith.constant 143 : index
    %314 = vector.load %arg6[%c1_387, %c0_388, %c143_389] : memref<2x8x512xf32, #tpu.memory_space<vmem>>, vector<1x8x256xf32>
    %315 = vector.shape_cast %314 : vector<1x8x256xf32> to vector<8x256xf32>
    %c1_390 = arith.constant 1 : index
    %c0_391 = arith.constant 0 : index
    %c0_392 = arith.constant 0 : index
    %316 = vector.load %arg4[%c1_390, %c0_391, %c0_392] : memref<4x8x256xf32, #tpu.memory_space<vmem>>, vector<1x8x256xf32>
    %317 = vector.shape_cast %316 : vector<1x8x256xf32> to vector<8x256xf32>
    %318 = arith.mulf %315, %317 : vector<8x256xf32>
    %c48_393 = arith.constant 48 : index
    %c256_394 = arith.constant 256 : index
    %319 = vector.load %arg7[%c48_393, %c256_394] : memref<80x512xf32, #tpu.memory_space<vmem>>, vector<8x256xf32>
    tpu.vector_store %arg7[%c48_393, %c256_394], %318 {strides = array<i32>} : memref<80x512xf32, #tpu.memory_space<vmem>>, vector<8x256xf32>,
    %c0_395 = arith.constant 0 : index
    %c0_396 = arith.constant 0 : index
    %c144_397 = arith.constant 144 : index
    %320 = vector.load %arg6[%c0_395, %c0_396, %c144_397] : memref<2x8x512xf32, #tpu.memory_space<vmem>>, vector<1x8x256xf32>
    %321 = vector.shape_cast %320 : vector<1x8x256xf32> to vector<8x256xf32>
    %c56_398 = arith.constant 56 : index
    %c0_399 = arith.constant 0 : index
    %322 = vector.load %arg7[%c56_398, %c0_399] : memref<80x512xf32, #tpu.memory_space<vmem>>, vector<8x256xf32>
    tpu.vector_store %arg7[%c56_398, %c0_399], %321 {strides = array<i32>} : memref<80x512xf32, #tpu.memory_space<vmem>>, vector<8x256xf32>,
    %c1_400 = arith.constant 1 : index
    %c0_401 = arith.constant 0 : index
    %c144_402 = arith.constant 144 : index
    %323 = vector.load %arg6[%c1_400, %c0_401, %c144_402] : memref<2x8x512xf32, #tpu.memory_space<vmem>>, vector<1x8x256xf32>
    %324 = vector.shape_cast %323 : vector<1x8x256xf32> to vector<8x256xf32>
    %c56_403 = arith.constant 56 : index
    %c256_404 = arith.constant 256 : index
    %325 = vector.load %arg7[%c56_403, %c256_404] : memref<80x512xf32, #tpu.memory_space<vmem>>, vector<8x256xf32>
    tpu.vector_store %arg7[%c56_403, %c256_404], %324 {strides = array<i32>} : memref<80x512xf32, #tpu.memory_space<vmem>>, vector<8x256xf32>,
    %c0_405 = arith.constant 0 : index
    %c0_406 = arith.constant 0 : index
    %c145_407 = arith.constant 145 : index
    %326 = vector.load %arg6[%c0_405, %c0_406, %c145_407] : memref<2x8x512xf32, #tpu.memory_space<vmem>>, vector<1x8x256xf32>
    %327 = vector.shape_cast %326 : vector<1x8x256xf32> to vector<8x256xf32>
    %c2_408 = arith.constant 2 : index
    %c0_409 = arith.constant 0 : index
    %c0_410 = arith.constant 0 : index
    %328 = vector.load %arg4[%c2_408, %c0_409, %c0_410] : memref<4x8x256xf32, #tpu.memory_space<vmem>>, vector<1x8x256xf32>
    %329 = vector.shape_cast %328 : vector<1x8x256xf32> to vector<8x256xf32>
    %330 = arith.mulf %327, %329 : vector<8x256xf32>
    %c64_411 = arith.constant 64 : index
    %c0_412 = arith.constant 0 : index
    %331 = vector.load %arg7[%c64_411, %c0_412] : memref<80x512xf32, #tpu.memory_space<vmem>>, vector<8x256xf32>
    tpu.vector_store %arg7[%c64_411, %c0_412], %330 {strides = array<i32>} : memref<80x512xf32, #tpu.memory_space<vmem>>, vector<8x256xf32>,
    %c1_413 = arith.constant 1 : index
    %c0_414 = arith.constant 0 : index
    %c145_415 = arith.constant 145 : index
    %332 = vector.load %arg6[%c1_413, %c0_414, %c145_415] : memref<2x8x512xf32, #tpu.memory_space<vmem>>, vector<1x8x256xf32>
    %333 = vector.shape_cast %332 : vector<1x8x256xf32> to vector<8x256xf32>
    %c2_416 = arith.constant 2 : index
    %c0_417 = arith.constant 0 : index
    %c0_418 = arith.constant 0 : index
    %334 = vector.load %arg4[%c2_416, %c0_417, %c0_418] : memref<4x8x256xf32, #tpu.memory_space<vmem>>, vector<1x8x256xf32>
    %335 = vector.shape_cast %334 : vector<1x8x256xf32> to vector<8x256xf32>
    %336 = arith.mulf %333, %335 : vector<8x256xf32>
    %c64_419 = arith.constant 64 : index
    %c256_420 = arith.constant 256 : index
    %337 = vector.load %arg7[%c64_419, %c256_420] : memref<80x512xf32, #tpu.memory_space<vmem>>, vector<8x256xf32>
    tpu.vector_store %arg7[%c64_419, %c256_420], %336 {strides = array<i32>} : memref<80x512xf32, #tpu.memory_space<vmem>>, vector<8x256xf32>,
    %c0_421 = arith.constant 0 : index
    %c0_422 = arith.constant 0 : index
    %338 = vector.load %arg7[%c0_421, %c0_422] : memref<80x512xf32, #tpu.memory_space<vmem>>, vector<80x512xf32>
    %cst_423 = arith.constant dense<0.000000e+00> : vector<4x512xf32>
    %339 = tpu.matmul %237, %338, %cst_423 {dimension_numbers = #tpu.dot_dimension_numbers<[1], [0], [0], [1], [0, 0, 1, 1], [], []>} : vector<4x80xf32>, vector<80x512xf32>, vector<4x512xf32> -> vector<4x512xf32>
    %cst_424 = arith.constant 1.000000e-01 : f32
    %340 = vector.broadcast %cst_424 : f32 to vector<4x512xf32>
    %341 = arith.mulf %340, %339 : vector<4x512xf32>
    %342 = arith.maximumf %339, %341 : vector<4x512xf32>
    %c1_425 = arith.constant 1 : index
    %c0_426 = arith.constant 0 : index
    %c0_427 = arith.constant 0 : index
    %343 = vector.load %arg3[%c1_425, %c0_426, %c0_427] : memref<2x4x80xf32, #tpu.memory_space<vmem>>, vector<1x4x80xf32>
    %344 = vector.shape_cast %343 : vector<1x4x80xf32> to vector<4x80xf32>
    %345 = vector.extract_strided_slice %342 {offsets = [0, 0], sizes = [4, 256], strides = [1, 1]} : vector<4x512xf32> to vector<4x256xf32>
    %c0_428 = arith.constant 0 : index
    %c0_429 = arith.constant 0 : index
    %c128_430 = arith.constant 128 : index
    %346 = vector.load %arg6[%c0_428, %c0_429, %c128_430] : memref<2x8x512xf32, #tpu.memory_space<vmem>>, vector<1x4x256xf32>
    %347 = vector.shape_cast %346 : vector<1x4x256xf32> to vector<4x256xf32>
    %348 = vector.shape_cast %345 : vector<4x256xf32> to vector<1x4x256xf32>
    tpu.vector_store %arg6[%c0_428, %c0_429, %c128_430], %348 {strides = array<i32>} : memref<2x8x512xf32, #tpu.memory_space<vmem>>, vector<1x4x256xf32>,
    %349 = vector.extract_strided_slice %342 {offsets = [0, 256], sizes = [4, 256], strides = [1, 1]} : vector<4x512xf32> to vector<4x256xf32>
    %c1_431 = arith.constant 1 : index
    %c0_432 = arith.constant 0 : index
    %c128_433 = arith.constant 128 : index
    %350 = vector.load %arg6[%c1_431, %c0_432, %c128_433] : memref<2x8x512xf32, #tpu.memory_space<vmem>>, vector<1x4x256xf32>
    %351 = vector.shape_cast %350 : vector<1x4x256xf32> to vector<4x256xf32>
    %352 = vector.shape_cast %349 : vector<4x256xf32> to vector<1x4x256xf32>
    tpu.vector_store %arg6[%c1_431, %c0_432, %c128_433], %352 {strides = array<i32>} : memref<2x8x512xf32, #tpu.memory_space<vmem>>, vector<1x4x256xf32>,
    %c0_434 = arith.constant 0 : index
    %c0_435 = arith.constant 0 : index
    %c94_436 = arith.constant 94 : index
    %353 = vector.load %arg6[%c0_434, %c0_435, %c94_436] : memref<2x8x512xf32, #tpu.memory_space<vmem>>, vector<1x8x256xf32>
    %354 = vector.shape_cast %353 : vector<1x8x256xf32> to vector<8x256xf32>
    %c0_437 = arith.constant 0 : index
    %c0_438 = arith.constant 0 : index
    %c0_439 = arith.constant 0 : index
    %355 = vector.load %arg4[%c0_437, %c0_438, %c0_439] : memref<4x8x256xf32, #tpu.memory_space<vmem>>, vector<1x8x256xf32>
    %356 = vector.shape_cast %355 : vector<1x8x256xf32> to vector<8x256xf32>
    %357 = arith.mulf %354, %356 : vector<8x256xf32>
    %c0_440 = arith.constant 0 : index
    %c0_441 = arith.constant 0 : index
    %358 = vector.load %arg7[%c0_440, %c0_441] : memref<80x512xf32, #tpu.memory_space<vmem>>, vector<8x256xf32>
    tpu.vector_store %arg7[%c0_440, %c0_441], %357 {strides = array<i32>} : memref<80x512xf32, #tpu.memory_space<vmem>>, vector<8x256xf32>,
    %c1_442 = arith.constant 1 : index
    %c0_443 = arith.constant 0 : index
    %c94_444 = arith.constant 94 : index
    %359 = vector.load %arg6[%c1_442, %c0_443, %c94_444] : memref<2x8x512xf32, #tpu.memory_space<vmem>>, vector<1x8x256xf32>
    %360 = vector.shape_cast %359 : vector<1x8x256xf32> to vector<8x256xf32>
    %c0_445 = arith.constant 0 : index
    %c0_446 = arith.constant 0 : index
    %c0_447 = arith.constant 0 : index
    %361 = vector.load %arg4[%c0_445, %c0_446, %c0_447] : memref<4x8x256xf32, #tpu.memory_space<vmem>>, vector<1x8x256xf32>
    %362 = vector.shape_cast %361 : vector<1x8x256xf32> to vector<8x256xf32>
    %363 = arith.mulf %360, %362 : vector<8x256xf32>
    %c0_448 = arith.constant 0 : index
    %c256_449 = arith.constant 256 : index
    %364 = vector.load %arg7[%c0_448, %c256_449] : memref<80x512xf32, #tpu.memory_space<vmem>>, vector<8x256xf32>
    tpu.vector_store %arg7[%c0_448, %c256_449], %363 {strides = array<i32>} : memref<80x512xf32, #tpu.memory_space<vmem>>, vector<8x256xf32>,
    %c0_450 = arith.constant 0 : index
    %c0_451 = arith.constant 0 : index
    %c96_452 = arith.constant 96 : index
    %365 = vector.load %arg6[%c0_450, %c0_451, %c96_452] : memref<2x8x512xf32, #tpu.memory_space<vmem>>, vector<1x8x256xf32>
    %366 = vector.shape_cast %365 : vector<1x8x256xf32> to vector<8x256xf32>
    %c8_453 = arith.constant 8 : index
    %c0_454 = arith.constant 0 : index
    %367 = vector.load %arg7[%c8_453, %c0_454] : memref<80x512xf32, #tpu.memory_space<vmem>>, vector<8x256xf32>
    tpu.vector_store %arg7[%c8_453, %c0_454], %366 {strides = array<i32>} : memref<80x512xf32, #tpu.memory_space<vmem>>, vector<8x256xf32>,
    %c1_455 = arith.constant 1 : index
    %c0_456 = arith.constant 0 : index
    %c96_457 = arith.constant 96 : index
    %368 = vector.load %arg6[%c1_455, %c0_456, %c96_457] : memref<2x8x512xf32, #tpu.memory_space<vmem>>, vector<1x8x256xf32>
    %369 = vector.shape_cast %368 : vector<1x8x256xf32> to vector<8x256xf32>
    %c8_458 = arith.constant 8 : index
    %c256_459 = arith.constant 256 : index
    %370 = vector.load %arg7[%c8_458, %c256_459] : memref<80x512xf32, #tpu.memory_space<vmem>>, vector<8x256xf32>
    tpu.vector_store %arg7[%c8_458, %c256_459], %369 {strides = array<i32>} : memref<80x512xf32, #tpu.memory_space<vmem>>, vector<8x256xf32>,
    %c0_460 = arith.constant 0 : index
    %c0_461 = arith.constant 0 : index
    %c98_462 = arith.constant 98 : index
    %371 = vector.load %arg6[%c0_460, %c0_461, %c98_462] : memref<2x8x512xf32, #tpu.memory_space<vmem>>, vector<1x8x256xf32>
    %372 = vector.shape_cast %371 : vector<1x8x256xf32> to vector<8x256xf32>
    %c3_463 = arith.constant 3 : index
    %c0_464 = arith.constant 0 : index
    %c0_465 = arith.constant 0 : index
    %373 = vector.load %arg4[%c3_463, %c0_464, %c0_465] : memref<4x8x256xf32, #tpu.memory_space<vmem>>, vector<1x8x256xf32>
    %374 = vector.shape_cast %373 : vector<1x8x256xf32> to vector<8x256xf32>
    %375 = arith.mulf %372, %374 : vector<8x256xf32>
    %c16_466 = arith.constant 16 : index
    %c0_467 = arith.constant 0 : index
    %376 = vector.load %arg7[%c16_466, %c0_467] : memref<80x512xf32, #tpu.memory_space<vmem>>, vector<8x256xf32>
    tpu.vector_store %arg7[%c16_466, %c0_467], %375 {strides = array<i32>} : memref<80x512xf32, #tpu.memory_space<vmem>>, vector<8x256xf32>,
    %c1_468 = arith.constant 1 : index
    %c0_469 = arith.constant 0 : index
    %c98_470 = arith.constant 98 : index
    %377 = vector.load %arg6[%c1_468, %c0_469, %c98_470] : memref<2x8x512xf32, #tpu.memory_space<vmem>>, vector<1x8x256xf32>
    %378 = vector.shape_cast %377 : vector<1x8x256xf32> to vector<8x256xf32>
    %c3_471 = arith.constant 3 : index
    %c0_472 = arith.constant 0 : index
    %c0_473 = arith.constant 0 : index
    %379 = vector.load %arg4[%c3_471, %c0_472, %c0_473] : memref<4x8x256xf32, #tpu.memory_space<vmem>>, vector<1x8x256xf32>
    %380 = vector.shape_cast %379 : vector<1x8x256xf32> to vector<8x256xf32>
    %381 = arith.mulf %378, %380 : vector<8x256xf32>
    %c16_474 = arith.constant 16 : index
    %c256_475 = arith.constant 256 : index
    %382 = vector.load %arg7[%c16_474, %c256_475] : memref<80x512xf32, #tpu.memory_space<vmem>>, vector<8x256xf32>
    tpu.vector_store %arg7[%c16_474, %c256_475], %381 {strides = array<i32>} : memref<80x512xf32, #tpu.memory_space<vmem>>, vector<8x256xf32>,
    %c0_476 = arith.constant 0 : index
    %c0_477 = arith.constant 0 : index
    %c126_478 = arith.constant 126 : index
    %383 = vector.load %arg6[%c0_476, %c0_477, %c126_478] : memref<2x8x512xf32, #tpu.memory_space<vmem>>, vector<1x8x256xf32>
    %384 = vector.shape_cast %383 : vector<1x8x256xf32> to vector<8x256xf32>
    %c0_479 = arith.constant 0 : index
    %c0_480 = arith.constant 0 : index
    %c0_481 = arith.constant 0 : index
    %385 = vector.load %arg4[%c0_479, %c0_480, %c0_481] : memref<4x8x256xf32, #tpu.memory_space<vmem>>, vector<1x8x256xf32>
    %386 = vector.shape_cast %385 : vector<1x8x256xf32> to vector<8x256xf32>
    %387 = arith.mulf %384, %386 : vector<8x256xf32>
    %c24_482 = arith.constant 24 : index
    %c0_483 = arith.constant 0 : index
    %388 = vector.load %arg7[%c24_482, %c0_483] : memref<80x512xf32, #tpu.memory_space<vmem>>, vector<8x256xf32>
    tpu.vector_store %arg7[%c24_482, %c0_483], %387 {strides = array<i32>} : memref<80x512xf32, #tpu.memory_space<vmem>>, vector<8x256xf32>,
    %c1_484 = arith.constant 1 : index
    %c0_485 = arith.constant 0 : index
    %c126_486 = arith.constant 126 : index
    %389 = vector.load %arg6[%c1_484, %c0_485, %c126_486] : memref<2x8x512xf32, #tpu.memory_space<vmem>>, vector<1x8x256xf32>
    %390 = vector.shape_cast %389 : vector<1x8x256xf32> to vector<8x256xf32>
    %c0_487 = arith.constant 0 : index
    %c0_488 = arith.constant 0 : index
    %c0_489 = arith.constant 0 : index
    %391 = vector.load %arg4[%c0_487, %c0_488, %c0_489] : memref<4x8x256xf32, #tpu.memory_space<vmem>>, vector<1x8x256xf32>
    %392 = vector.shape_cast %391 : vector<1x8x256xf32> to vector<8x256xf32>
    %393 = arith.mulf %390, %392 : vector<8x256xf32>
    %c24_490 = arith.constant 24 : index
    %c256_491 = arith.constant 256 : index
    %394 = vector.load %arg7[%c24_490, %c256_491] : memref<80x512xf32, #tpu.memory_space<vmem>>, vector<8x256xf32>
    tpu.vector_store %arg7[%c24_490, %c256_491], %393 {strides = array<i32>} : memref<80x512xf32, #tpu.memory_space<vmem>>, vector<8x256xf32>,
    %c0_492 = arith.constant 0 : index
    %c0_493 = arith.constant 0 : index
    %c128_494 = arith.constant 128 : index
    %395 = vector.load %arg6[%c0_492, %c0_493, %c128_494] : memref<2x8x512xf32, #tpu.memory_space<vmem>>, vector<1x8x256xf32>
    %396 = vector.shape_cast %395 : vector<1x8x256xf32> to vector<8x256xf32>
    %c32_495 = arith.constant 32 : index
    %c0_496 = arith.constant 0 : index
    %397 = vector.load %arg7[%c32_495, %c0_496] : memref<80x512xf32, #tpu.memory_space<vmem>>, vector<8x256xf32>
    tpu.vector_store %arg7[%c32_495, %c0_496], %396 {strides = array<i32>} : memref<80x512xf32, #tpu.memory_space<vmem>>, vector<8x256xf32>,
    %c1_497 = arith.constant 1 : index
    %c0_498 = arith.constant 0 : index
    %c128_499 = arith.constant 128 : index
    %398 = vector.load %arg6[%c1_497, %c0_498, %c128_499] : memref<2x8x512xf32, #tpu.memory_space<vmem>>, vector<1x8x256xf32>
    %399 = vector.shape_cast %398 : vector<1x8x256xf32> to vector<8x256xf32>
    %c32_500 = arith.constant 32 : index
    %c256_501 = arith.constant 256 : index
    %400 = vector.load %arg7[%c32_500, %c256_501] : memref<80x512xf32, #tpu.memory_space<vmem>>, vector<8x256xf32>
    tpu.vector_store %arg7[%c32_500, %c256_501], %399 {strides = array<i32>} : memref<80x512xf32, #tpu.memory_space<vmem>>, vector<8x256xf32>,
    %c0_502 = arith.constant 0 : index
    %c0_503 = arith.constant 0 : index
    %c130_504 = arith.constant 130 : index
    %401 = vector.load %arg6[%c0_502, %c0_503, %c130_504] : memref<2x8x512xf32, #tpu.memory_space<vmem>>, vector<1x8x256xf32>
    %402 = vector.shape_cast %401 : vector<1x8x256xf32> to vector<8x256xf32>
    %c3_505 = arith.constant 3 : index
    %c0_506 = arith.constant 0 : index
    %c0_507 = arith.constant 0 : index
    %403 = vector.load %arg4[%c3_505, %c0_506, %c0_507] : memref<4x8x256xf32, #tpu.memory_space<vmem>>, vector<1x8x256xf32>
    %404 = vector.shape_cast %403 : vector<1x8x256xf32> to vector<8x256xf32>
    %405 = arith.mulf %402, %404 : vector<8x256xf32>
    %c40_508 = arith.constant 40 : index
    %c0_509 = arith.constant 0 : index
    %406 = vector.load %arg7[%c40_508, %c0_509] : memref<80x512xf32, #tpu.memory_space<vmem>>, vector<8x256xf32>
    tpu.vector_store %arg7[%c40_508, %c0_509], %405 {strides = array<i32>} : memref<80x512xf32, #tpu.memory_space<vmem>>, vector<8x256xf32>,
    %c1_510 = arith.constant 1 : index
    %c0_511 = arith.constant 0 : index
    %c130_512 = arith.constant 130 : index
    %407 = vector.load %arg6[%c1_510, %c0_511, %c130_512] : memref<2x8x512xf32, #tpu.memory_space<vmem>>, vector<1x8x256xf32>
    %408 = vector.shape_cast %407 : vector<1x8x256xf32> to vector<8x256xf32>
    %c3_513 = arith.constant 3 : index
    %c0_514 = arith.constant 0 : index
    %c0_515 = arith.constant 0 : index
    %409 = vector.load %arg4[%c3_513, %c0_514, %c0_515] : memref<4x8x256xf32, #tpu.memory_space<vmem>>, vector<1x8x256xf32>
    %410 = vector.shape_cast %409 : vector<1x8x256xf32> to vector<8x256xf32>
    %411 = arith.mulf %408, %410 : vector<8x256xf32>
    %c40_516 = arith.constant 40 : index
    %c256_517 = arith.constant 256 : index
    %412 = vector.load %arg7[%c40_516, %c256_517] : memref<80x512xf32, #tpu.memory_space<vmem>>, vector<8x256xf32>
    tpu.vector_store %arg7[%c40_516, %c256_517], %411 {strides = array<i32>} : memref<80x512xf32, #tpu.memory_space<vmem>>, vector<8x256xf32>,
    %c0_518 = arith.constant 0 : index
    %c0_519 = arith.constant 0 : index
    %c158_520 = arith.constant 158 : index
    %413 = vector.load %arg6[%c0_518, %c0_519, %c158_520] : memref<2x8x512xf32, #tpu.memory_space<vmem>>, vector<1x8x256xf32>
    %414 = vector.shape_cast %413 : vector<1x8x256xf32> to vector<8x256xf32>
    %c0_521 = arith.constant 0 : index
    %c0_522 = arith.constant 0 : index
    %c0_523 = arith.constant 0 : index
    %415 = vector.load %arg4[%c0_521, %c0_522, %c0_523] : memref<4x8x256xf32, #tpu.memory_space<vmem>>, vector<1x8x256xf32>
    %416 = vector.shape_cast %415 : vector<1x8x256xf32> to vector<8x256xf32>
    %417 = arith.mulf %414, %416 : vector<8x256xf32>
    %c48_524 = arith.constant 48 : index
    %c0_525 = arith.constant 0 : index
    %418 = vector.load %arg7[%c48_524, %c0_525] : memref<80x512xf32, #tpu.memory_space<vmem>>, vector<8x256xf32>
    tpu.vector_store %arg7[%c48_524, %c0_525], %417 {strides = array<i32>} : memref<80x512xf32, #tpu.memory_space<vmem>>, vector<8x256xf32>,
    %c1_526 = arith.constant 1 : index
    %c0_527 = arith.constant 0 : index
    %c158_528 = arith.constant 158 : index
    %419 = vector.load %arg6[%c1_526, %c0_527, %c158_528] : memref<2x8x512xf32, #tpu.memory_space<vmem>>, vector<1x8x256xf32>
    %420 = vector.shape_cast %419 : vector<1x8x256xf32> to vector<8x256xf32>
    %c0_529 = arith.constant 0 : index
    %c0_530 = arith.constant 0 : index
    %c0_531 = arith.constant 0 : index
    %421 = vector.load %arg4[%c0_529, %c0_530, %c0_531] : memref<4x8x256xf32, #tpu.memory_space<vmem>>, vector<1x8x256xf32>
    %422 = vector.shape_cast %421 : vector<1x8x256xf32> to vector<8x256xf32>
    %423 = arith.mulf %420, %422 : vector<8x256xf32>
    %c48_532 = arith.constant 48 : index
    %c256_533 = arith.constant 256 : index
    %424 = vector.load %arg7[%c48_532, %c256_533] : memref<80x512xf32, #tpu.memory_space<vmem>>, vector<8x256xf32>
    tpu.vector_store %arg7[%c48_532, %c256_533], %423 {strides = array<i32>} : memref<80x512xf32, #tpu.memory_space<vmem>>, vector<8x256xf32>,
    %c0_534 = arith.constant 0 : index
    %c0_535 = arith.constant 0 : index
    %c160_536 = arith.constant 160 : index
    %425 = vector.load %arg6[%c0_534, %c0_535, %c160_536] : memref<2x8x512xf32, #tpu.memory_space<vmem>>, vector<1x8x256xf32>
    %426 = vector.shape_cast %425 : vector<1x8x256xf32> to vector<8x256xf32>
    %c56_537 = arith.constant 56 : index
    %c0_538 = arith.constant 0 : index
    %427 = vector.load %arg7[%c56_537, %c0_538] : memref<80x512xf32, #tpu.memory_space<vmem>>, vector<8x256xf32>
    tpu.vector_store %arg7[%c56_537, %c0_538], %426 {strides = array<i32>} : memref<80x512xf32, #tpu.memory_space<vmem>>, vector<8x256xf32>,
    %c1_539 = arith.constant 1 : index
    %c0_540 = arith.constant 0 : index
    %c160_541 = arith.constant 160 : index
    %428 = vector.load %arg6[%c1_539, %c0_540, %c160_541] : memref<2x8x512xf32, #tpu.memory_space<vmem>>, vector<1x8x256xf32>
    %429 = vector.shape_cast %428 : vector<1x8x256xf32> to vector<8x256xf32>
    %c56_542 = arith.constant 56 : index
    %c256_543 = arith.constant 256 : index
    %430 = vector.load %arg7[%c56_542, %c256_543] : memref<80x512xf32, #tpu.memory_space<vmem>>, vector<8x256xf32>
    tpu.vector_store %arg7[%c56_542, %c256_543], %429 {strides = array<i32>} : memref<80x512xf32, #tpu.memory_space<vmem>>, vector<8x256xf32>,
    %c0_544 = arith.constant 0 : index
    %c0_545 = arith.constant 0 : index
    %c162_546 = arith.constant 162 : index
    %431 = vector.load %arg6[%c0_544, %c0_545, %c162_546] : memref<2x8x512xf32, #tpu.memory_space<vmem>>, vector<1x8x256xf32>
    %432 = vector.shape_cast %431 : vector<1x8x256xf32> to vector<8x256xf32>
    %c3_547 = arith.constant 3 : index
    %c0_548 = arith.constant 0 : index
    %c0_549 = arith.constant 0 : index
    %433 = vector.load %arg4[%c3_547, %c0_548, %c0_549] : memref<4x8x256xf32, #tpu.memory_space<vmem>>, vector<1x8x256xf32>
    %434 = vector.shape_cast %433 : vector<1x8x256xf32> to vector<8x256xf32>
    %435 = arith.mulf %432, %434 : vector<8x256xf32>
    %c64_550 = arith.constant 64 : index
    %c0_551 = arith.constant 0 : index
    %436 = vector.load %arg7[%c64_550, %c0_551] : memref<80x512xf32, #tpu.memory_space<vmem>>, vector<8x256xf32>
    tpu.vector_store %arg7[%c64_550, %c0_551], %435 {strides = array<i32>} : memref<80x512xf32, #tpu.memory_space<vmem>>, vector<8x256xf32>,
    %c1_552 = arith.constant 1 : index
    %c0_553 = arith.constant 0 : index
    %c162_554 = arith.constant 162 : index
    %437 = vector.load %arg6[%c1_552, %c0_553, %c162_554] : memref<2x8x512xf32, #tpu.memory_space<vmem>>, vector<1x8x256xf32>
    %438 = vector.shape_cast %437 : vector<1x8x256xf32> to vector<8x256xf32>
    %c3_555 = arith.constant 3 : index
    %c0_556 = arith.constant 0 : index
    %c0_557 = arith.constant 0 : index
    %439 = vector.load %arg4[%c3_555, %c0_556, %c0_557] : memref<4x8x256xf32, #tpu.memory_space<vmem>>, vector<1x8x256xf32>
    %440 = vector.shape_cast %439 : vector<1x8x256xf32> to vector<8x256xf32>
    %441 = arith.mulf %438, %440 : vector<8x256xf32>
    %c64_558 = arith.constant 64 : index
    %c256_559 = arith.constant 256 : index
    %442 = vector.load %arg7[%c64_558, %c256_559] : memref<80x512xf32, #tpu.memory_space<vmem>>, vector<8x256xf32>
    tpu.vector_store %arg7[%c64_558, %c256_559], %441 {strides = array<i32>} : memref<80x512xf32, #tpu.memory_space<vmem>>, vector<8x256xf32>,
    %c0_560 = arith.constant 0 : index
    %c0_561 = arith.constant 0 : index
    %443 = vector.load %arg7[%c0_560, %c0_561] : memref<80x512xf32, #tpu.memory_space<vmem>>, vector<80x512xf32>
    %cst_562 = arith.constant dense<0.000000e+00> : vector<4x512xf32>
    %444 = tpu.matmul %344, %443, %cst_562 {dimension_numbers = #tpu.dot_dimension_numbers<[1], [0], [0], [1], [0, 0, 1, 1], [], []>} : vector<4x80xf32>, vector<80x512xf32>, vector<4x512xf32> -> vector<4x512xf32>
    %c0_563 = arith.constant 0 : index
    %c0_564 = arith.constant 0 : index
    %c0_565 = arith.constant 0 : index
    %445 = vector.load %arg8[%c0_563, %c0_564, %c0_565] : memref<2x4x256xf32, #tpu.memory_space<vmem>>, vector<1x4x256xf32>
    %446 = vector.shape_cast %445 : vector<1x4x256xf32> to vector<4x256xf32>
    %447 = vector.extract_strided_slice %444 {offsets = [0, 0], sizes = [4, 256], strides = [1, 1]} : vector<4x512xf32> to vector<4x256xf32>
    %448 = arith.addf %446, %447 : vector<4x256xf32>
    %c0_566 = arith.constant 0 : index
    %c0_567 = arith.constant 0 : index
    %c0_568 = arith.constant 0 : index
    %449 = vector.load %arg8[%c0_566, %c0_567, %c0_568] : memref<2x4x256xf32, #tpu.memory_space<vmem>>, vector<1x4x256xf32>
    %450 = vector.shape_cast %449 : vector<1x4x256xf32> to vector<4x256xf32>
    %451 = vector.shape_cast %448 : vector<4x256xf32> to vector<1x4x256xf32>
    tpu.vector_store %arg8[%c0_566, %c0_567, %c0_568], %451 {strides = array<i32>} : memref<2x4x256xf32, #tpu.memory_space<vmem>>, vector<1x4x256xf32>,
    %c1_569 = arith.constant 1 : index
    %c0_570 = arith.constant 0 : index
    %c0_571 = arith.constant 0 : index
    %452 = vector.load %arg8[%c1_569, %c0_570, %c0_571] : memref<2x4x256xf32, #tpu.memory_space<vmem>>, vector<1x4x256xf32>
    %453 = vector.shape_cast %452 : vector<1x4x256xf32> to vector<4x256xf32>
    %454 = vector.extract_strided_slice %444 {offsets = [0, 256], sizes = [4, 256], strides = [1, 1]} : vector<4x512xf32> to vector<4x256xf32>
    %455 = arith.addf %453, %454 : vector<4x256xf32>
    %c1_572 = arith.constant 1 : index
    %c0_573 = arith.constant 0 : index
    %c0_574 = arith.constant 0 : index
    %456 = vector.load %arg8[%c1_572, %c0_573, %c0_574] : memref<2x4x256xf32, #tpu.memory_space<vmem>>, vector<1x4x256xf32>
    %457 = vector.shape_cast %456 : vector<1x4x256xf32> to vector<4x256xf32>
    %458 = vector.shape_cast %455 : vector<4x256xf32> to vector<1x4x256xf32>
    tpu.vector_store %arg8[%c1_572, %c0_573, %c0_574], %458 {strides = array<i32>} : memref<2x4x256xf32, #tpu.memory_space<vmem>>, vector<1x4x256xf32>,
    %c0_575 = arith.constant 0 : index
    %c0_576 = arith.constant 0 : index
    %c0_577 = arith.constant 0 : index
    %459 = vector.load %arg8[%c0_575, %c0_576, %c0_577] : memref<2x4x256xf32, #tpu.memory_space<vmem>>, vector<2x4x256xf32>
    %c0_578 = arith.constant 0 : index
    %c0_579 = arith.constant 0 : index
    %c0_580 = arith.constant 0 : index
    %460 = vector.load %arg1[%c0_578, %c0_579, %c0_580] : memref<2x4x256xf32, #tpu.memory_space<vmem>>, vector<2x4x256xf32>
    %461 = arith.addf %459, %460 : vector<2x4x256xf32>
    %c0_581 = arith.constant 0 : index
    %c0_582 = arith.constant 0 : index
    %c0_583 = arith.constant 0 : index
    %462 = vector.load %arg5[%c0_581, %c0_582, %c0_583] : memref<2x4x256xf32, #tpu.memory_space<vmem>>, vector<2x4x256xf32>
    tpu.vector_store %arg5[%c0_581, %c0_582, %c0_583], %461 {strides = array<i32>} : memref<2x4x256xf32, #tpu.memory_space<vmem>>, vector<2x4x256xf32>,
    return
  }
  func.func @transform_0(%arg0: i32) -> (i32, i32, i32) {
    %c0_i32 = arith.constant 0 : i32
    %c0_i32_0 = arith.constant 0 : i32
    %c0_i32_1 = arith.constant 0 : i32
    return %arg0, %c0_i32, %c0_i32_0 : i32, i32, i32
  }
  func.func @transform_1(%arg0: i32) -> (i32, i32, i32) {
    %c0_i32 = arith.constant 0 : i32
    %c0_i32_0 = arith.constant 0 : i32
    %c0_i32_1 = arith.constant 0 : i32
    %c0_i32_2 = arith.constant 0 : i32
    return %c0_i32, %c0_i32_0, %c0_i32_1 : i32, i32, i32
  }
  func.func @transform_2(%arg0: i32) -> (i32, i32, i32) {
    %c0_i32 = arith.constant 0 : i32
    %c0_i32_0 = arith.constant 0 : i32
    %c0_i32_1 = arith.constant 0 : i32
    %c0_i32_2 = arith.constant 0 : i32
    return %c0_i32, %c0_i32_0, %c0_i32_1 : i32, i32, i32
  }
  func.func @transform_3(%arg0: i32) -> (i32, i32, i32) {
    %c0_i32 = arith.constant 0 : i32
    %c0_i32_0 = arith.constant 0 : i32
    %c0_i32_1 = arith.constant 0 : i32
    %c0_i32_2 = arith.constant 0 : i32
    return %c0_i32, %c0_i32_0, %c0_i32_1 : i32, i32, i32
  }
  func.func @transform_4(%arg0: i32) -> (i32, i32, i32) {
    %c0_i32 = arith.constant 0 : i32
    %c0_i32_0 = arith.constant 0 : i32
    %c0_i32_1 = arith.constant 0 : i32
    return %arg0, %c0_i32, %c0_i32_0 : i32, i32, i32
  }
}

</mosaic_0001>

<llo_original>
// kernel: resnet_block_forward.1
$region0: #{resnet_block_forward.1}
  #allocation0 [shape = 'u32[]', space=smem, size = 0x4, offset = 0x4, fixed_abs, tag = 'smem constant byte address 0x4 - core index']
  #allocation1 [shape = 'u32[144,128]{1,0:T(1,128)}', space=vmem, size = 0x12000, scoped, tag = 'internal scratch']
  #allocation2 [shape = 'f32[2,8,512]{2,1,0:T(8,128)}', space=vmem, size = 0x8000, scoped, tag = 'scratch operand']
  #allocation3 [shape = 'f32[80,512]{1,0:T(8,128)}', space=vmem, size = 0x28000, scoped, tag = 'scratch operand']
  #allocation4 [shape = 'f32[2,4,256]{2,1,0:T(4,128)}', space=vmem, size = 0x2000, scoped, tag = 'scratch operand']
  %s0 = inlined_call_operand.vmem [shape: f32[2,4,256], index: 0, kind: input, shape index: {}]
  %s1 = inlined_call_operand.vmem [shape: f32[2,4,80], index: 1, kind: input, shape index: {}]
  %s2 = inlined_call_operand.vmem [shape: f32[2,4,80], index: 2, kind: input, shape index: {}]
  %s3 = inlined_call_operand.vmem [shape: f32[4,8,256], index: 3, kind: input, shape index: {}]
  %s4 = inlined_call_operand.vmem [shape: f32[2,4,256], index: 4, kind: output, shape index: {}]
  %s5 = sld [smem:[#allocation0]]
  $region26: #{resnet_block_forward.1} parent=0
    _
  %s7 = ssub.s32 1, %s5
  %s8 = scalar_select 0, %s7, %s5
  // Predicated region
  $region2: #{resnet_block_forward.1} parent=0 // pred_check
    _
  $region3: #{resnet_block_forward.1} parent=0 // pred_check_branch
    %10 = sbr.rel (0) target = $region5
  $region4: #{resnet_block_forward.1} parent=0 // pred_region
    _
  $region5: #{resnet_block_forward.1} parent=0 // pred_fallthru
    _
  // Predicated region
  $region6: #{resnet_block_forward.1} parent=0 // pred_check
    _
  $region7: #{resnet_block_forward.1} parent=0 // pred_check_branch
    %12 = sbr.rel (0) target = $region9
  $region8: #{resnet_block_forward.1} parent=0 // pred_region
    _
  $region9: #{resnet_block_forward.1} parent=0 // pred_fallthru
    _
  // Predicated region
  $region10: #{resnet_block_forward.1} parent=0 // pred_check
    _
  $region11: #{resnet_block_forward.1} parent=0 // pred_check_branch
    %14 = sbr.rel (0) target = $region13
  $region12: #{resnet_block_forward.1} parent=0 // pred_region
    _
  $region13: #{resnet_block_forward.1} parent=0 // pred_fallthru
    _
  // Predicated region
  $region14: #{resnet_block_forward.1} parent=0 // pred_check
    _
  $region15: #{resnet_block_forward.1} parent=0 // pred_check_branch
    %16 = sbr.rel (0) target = $region17
  $region16: #{resnet_block_forward.1} parent=0 // pred_region
    _
  $region17: #{resnet_block_forward.1} parent=0 // pred_fallthru
    _
  %17 = vst [vmem:[#allocation2] sm:$0xff] 0.0
  %18 = vst [vmem:[#allocation2 + $0x20] sm:$0xff] 0.0
  %19 = vst [vmem:[#allocation2 + $0x18] sm:$0xff] 0.0
  %20 = vst [vmem:[#allocation2 + $0x38] sm:$0xff] 0.0
  %21 = vst [vmem:[#allocation2 + $0x8] sm:$0xf0] 0.0
  %22 = vst [vmem:[#allocation2 + $0x10] sm:$0xf0] 0.0
  %23 = vst [vmem:[#allocation2 + $0x28] sm:$0xf0] 0.0
  %24 = vst [vmem:[#allocation2 + $0x30] sm:$0xf0] 0.0
  %v25 = vlaneseq
  %v26 = vshrl.u32 %v25, 7
  %vm27 = vcmp.eq.s32.totalorder %v26, 0
  %v28 = vsel %vm27, 1, 0
  %v29 = vcvt.s32.f32 %v28
  %30 = vst [vmem:[#allocation3 + $0x120] sm:$0xff] %v29
  %31 = vst [vmem:[#allocation3 + $0x128] sm:$0xff] %v29
  %32 = vst [vmem:[#allocation3 + $0x130] sm:$0xff] %v29
  %33 = vst [vmem:[#allocation3 + $0x138] sm:$0xff] %v29
  %v34 = vld [vmem:[%s0] sm:$0xff]
  %v35 = vld [vmem:[%s0 + $0x8] sm:$0xff]
  %36 = vst [vmem:[#allocation4] sm:$0xff] %v34
  %37 = vst [vmem:[#allocation4 + $0x8] sm:$0xff] %v35
  %v38 = vld [vmem:[%s1] sm:$0xf]
  %v39 = vld [vmem:[#allocation4] sm:$0xff]
  %v41 = vcombine.high %v39, %v39
  %43 = vst [vmem:[#allocation2 + $0x8] sm:$0xf] %v39
  %44 = vst [vmem:[#allocation2 + $0x10] sm:$0xf] %v41
  %s45 = scalar_lea.vmem [#allocation4], 8
  %v46 = vld [vmem:[%s45] sm:$0xff]
  %v48 = vcombine.high %v46, %v46
  %s50 = scalar_lea.vmem [#allocation2], 32
  %51 = vst [vmem:[%s50 + $0x8] sm:$0xf] %v46
  %52 = vst [vmem:[%s50 + $0x10] sm:$0xf] %v48
  %v53 = vld [vmem:[#allocation2] sm:$0xff]
  %v54 = vld [vmem:[#allocation2 + $0x8] sm:$0xff]
  %v55 = vld [vmem:[#allocation2 + $0x10] sm:$0xff]
  %s56 = scalar_lea.vmem %s3, 16
  %v57 = vld [vmem:[%s56] sm:$0xff]
  %v58 = vld [vmem:[%s56 + $0x8] sm:$0xff]
  %61 = vrot.lane.b32.xlu0 %v57, 111
  %v62 = vpop.permute.xlu0 %61
  %63 = vrot.lane.b32.xlu0 %v58, 111
  %v64 = vpop.permute.xlu0 %63
  %vm65 = vcmask 908288
  %v66 = vsel %vm65, %v62, %v64
  %v70 = vmul.f32 %v53, %v62
  %v71 = vmul.f32 %v54, %v66
  %v72 = vmul.f32 %v55, %v64
  %76 = vrot.lane.b32.xlu0 %v70, 17
  %v77 = vpop.permute.xlu0 %76
  %78 = vrot.lane.b32.xlu0 %v71, 17
  %v79 = vpop.permute.xlu0 %78
  %80 = vrot.lane.b32.xlu0 %v72, 17
  %v81 = vpop.permute.xlu0 %80
  %vm82 = vcmask 138240
  %v83 = vsel %vm82, %v77, %v79
  %v84 = vsel %vm82, %v79, %v81
  %87 = vst [vmem:[#allocation3] sm:$0xff] %v83
  %88 = vst [vmem:[#allocation3 + $0x8] sm:$0xff] %v84
  %v89 = vld [vmem:[%s50] sm:$0xff]
  %v90 = vld [vmem:[%s50 + $0x8] sm:$0xff]
  %v91 = vld [vmem:[%s50 + $0x10] sm:$0xff]
  %v92 = vld [vmem:[%s56] sm:$0xff]
  %v93 = vld [vmem:[%s56 + $0x8] sm:$0xff]
  %96 = vrot.lane.b32.xlu0 %v92, 111
  %v97 = vpop.permute.xlu0 %96
  %98 = vrot.lane.b32.xlu0 %v93, 111
  %v99 = vpop.permute.xlu0 %98
  %v100 = vsel %vm65, %v97, %v99
  %v104 = vmul.f32 %v89, %v97
  %v105 = vmul.f32 %v90, %v100
  %v106 = vmul.f32 %v91, %v99
  %110 = vrot.lane.b32.xlu0 %v104, 17
  %v111 = vpop.permute.xlu0 %110
  %112 = vrot.lane.b32.xlu0 %v105, 17
  %v113 = vpop.permute.xlu0 %112
  %114 = vrot.lane.b32.xlu0 %v106, 17
  %v115 = vpop.permute.xlu0 %114
  %v116 = vsel %vm82, %v111, %v113
  %v117 = vsel %vm82, %v113, %v115
  %120 = vst [vmem:[#allocation3 + $0x10] sm:$0xff] %v116
  %121 = vst [vmem:[#allocation3 + $0x18] sm:$0xff] %v117
  %v122 = vld [vmem:[#allocation2] sm:$0xff]
  %v123 = vld [vmem:[#allocation2 + $0x8] sm:$0xff]
  %v124 = vld [vmem:[#allocation2 + $0x10] sm:$0xff]
  %128 = vrot.lane.b32.xlu0 %v122, 16
  %v129 = vpop.permute.xlu0 %128
  %130 = vrot.lane.b32.xlu0 %v123, 16
  %v131 = vpop.permute.xlu0 %130
  %132 = vrot.lane.b32.xlu0 %v124, 16
  %v133 = vpop.permute.xlu0 %132
  %vm134 = vcmask 130048
  %v135 = vsel %vm134, %v129, %v131
  %v136 = vsel %vm134, %v131, %v133
  %139 = vst [vmem:[#allocation3 + $0x20] sm:$0xff] %v135
  %140 = vst [vmem:[#allocation3 + $0x28] sm:$0xff] %v136
  %v141 = vld [vmem:[%s50] sm:$0xff]
  %v142 = vld [vmem:[%s50 + $0x8] sm:$0xff]
  %v143 = vld [vmem:[%s50 + $0x10] sm:$0xff]
  %147 = vrot.lane.b32.xlu0 %v141, 16
  %v148 = vpop.permute.xlu0 %147
  %149 = vrot.lane.b32.xlu0 %v142, 16
  %v150 = vpop.permute.xlu0 %149
  %151 = vrot.lane.b32.xlu0 %v143, 16
  %v152 = vpop.permute.xlu0 %151
  %v153 = vsel %vm134, %v148, %v150
  %v154 = vsel %vm134, %v150, %v152
  %157 = vst [vmem:[#allocation3 + $0x30] sm:$0xff] %v153
  %158 = vst [vmem:[#allocation3 + $0x38] sm:$0xff] %v154
  %v159 = vld [vmem:[#allocation2] sm:$0xff]
  %v160 = vld [vmem:[#allocation2 + $0x8] sm:$0xff]
  %v161 = vld [vmem:[#allocation2 + $0x10] sm:$0xff]
  %s162 = scalar_lea.vmem %s3, 32
  %v163 = vld [vmem:[%s162] sm:$0xff]
  %v164 = vld [vmem:[%s162 + $0x8] sm:$0xff]
  %167 = vrot.lane.b32.xlu0 %v163, 113
  %v168 = vpop.permute.xlu0 %167
  %169 = vrot.lane.b32.xlu0 %v164, 113
  %v170 = vpop.permute.xlu0 %169
  %vm171 = vcmask 924672
  %v172 = vsel %vm171, %v168, %v170
  %v176 = vmul.f32 %v159, %v168
  %v177 = vmul.f32 %v160, %v172
  %v178 = vmul.f32 %v161, %v170
  %182 = vrot.lane.b32.xlu0 %v176, 15
  %v183 = vpop.permute.xlu0 %182
  %184 = vrot.lane.b32.xlu0 %v177, 15
  %v185 = vpop.permute.xlu0 %184
  %186 = vrot.lane.b32.xlu0 %v178, 15
  %v187 = vpop.permute.xlu0 %186
  %vm188 = vcmask 121856
  %v189 = vsel %vm188, %v183, %v185
  %v190 = vsel %vm188, %v185, %v187
  %193 = vst [vmem:[#allocation3 + $0x40] sm:$0xff] %v189
  %194 = vst [vmem:[#allocation3 + $0x48] sm:$0xff] %v190
  %v195 = vld [vmem:[%s50] sm:$0xff]
  %v196 = vld [vmem:[%s50 + $0x8] sm:$0xff]
  %v197 = vld [vmem:[%s50 + $0x10] sm:$0xff]
  %v198 = vld [vmem:[%s162] sm:$0xff]
  %v199 = vld [vmem:[%s162 + $0x8] sm:$0xff]
  %202 = vrot.lane.b32.xlu0 %v198, 113
  %v203 = vpop.permute.xlu0 %202
  %204 = vrot.lane.b32.xlu0 %v199, 113
  %v205 = vpop.permute.xlu0 %204
  %v206 = vsel %vm171, %v203, %v205
  %v210 = vmul.f32 %v195, %v203
  %v211 = vmul.f32 %v196, %v206
  %v212 = vmul.f32 %v197, %v205
  %216 = vrot.lane.b32.xlu0 %v210, 15
  %v217 = vpop.permute.xlu0 %216
  %218 = vrot.lane.b32.xlu0 %v211, 15
  %v219 = vpop.permute.xlu0 %218
  %220 = vrot.lane.b32.xlu0 %v212, 15
  %v221 = vpop.permute.xlu0 %220
  %v222 = vsel %vm188, %v217, %v219
  %v223 = vsel %vm188, %v219, %v221
  %226 = vst [vmem:[#allocation3 + $0x50] sm:$0xff] %v222
  %227 = vst [vmem:[#allocation3 + $0x58] sm:$0xff] %v223
  %v228 = vld [vmem:[#allocation2] sm:$0xff]
  %v229 = vld [vmem:[#allocation2 + $0x8] sm:$0xff]
  %v230 = vld [vmem:[#allocation2 + $0x10] sm:$0xff]
  %v231 = vld [vmem:[%s56] sm:$0xff]
  %v232 = vld [vmem:[%s56 + $0x8] sm:$0xff]
  %235 = vrot.lane.b32.xlu0 %v231, 127
  %v236 = vpop.permute.xlu0 %235
  %237 = vrot.lane.b32.xlu0 %v232, 127
  %v238 = vpop.permute.xlu0 %237
  %vm239 = vcmask 1039360
  %v240 = vsel %vm239, %v236, %v238
  %v244 = vmul.f32 %v228, %v236
  %v245 = vmul.f32 %v229, %v240
  %v246 = vmul.f32 %v230, %v238
  %250 = vrot.lane.b32.xlu0 %v244, 1
  %v251 = vpop.permute.xlu0 %250
  %252 = vrot.lane.b32.xlu0 %v245, 1
  %v253 = vpop.permute.xlu0 %252
  %254 = vrot.lane.b32.xlu0 %v246, 1
  %v255 = vpop.permute.xlu0 %254
  %vm256 = vcmask 7168
  %v257 = vsel %vm256, %v251, %v253
  %v258 = vsel %vm256, %v253, %v255
  %261 = vst [vmem:[#allocation3 + $0x60] sm:$0xff] %v257
  %262 = vst [vmem:[#allocation3 + $0x68] sm:$0xff] %v258
  %v263 = vld [vmem:[%s50] sm:$0xff]
  %v264 = vld [vmem:[%s50 + $0x8] sm:$0xff]
  %v265 = vld [vmem:[%s50 + $0x10] sm:$0xff]
  %v266 = vld [vmem:[%s56] sm:$0xff]
  %v267 = vld [vmem:[%s56 + $0x8] sm:$0xff]
  %270 = vrot.lane.b32.xlu0 %v266, 127
  %v271 = vpop.permute.xlu0 %270
  %272 = vrot.lane.b32.xlu0 %v267, 127
  %v273 = vpop.permute.xlu0 %272
  %v274 = vsel %vm239, %v271, %v273
  %v278 = vmul.f32 %v263, %v271
  %v279 = vmul.f32 %v264, %v274
  %v280 = vmul.f32 %v265, %v273
  %284 = vrot.lane.b32.xlu0 %v278, 1
  %v285 = vpop.permute.xlu0 %284
  %286 = vrot.lane.b32.xlu0 %v279, 1
  %v287 = vpop.permute.xlu0 %286
  %288 = vrot.lane.b32.xlu0 %v280, 1
  %v289 = vpop.permute.xlu0 %288
  %v290 = vsel %vm256, %v285, %v287
  %v291 = vsel %vm256, %v287, %v289
  %294 = vst [vmem:[#allocation3 + $0x70] sm:$0xff] %v290
  %295 = vst [vmem:[#allocation3 + $0x78] sm:$0xff] %v291
  %v296 = vld [vmem:[#allocation2 + $0x8] sm:$0xff]
  %v297 = vld [vmem:[#allocation2 + $0x10] sm:$0xff]
  %298 = vst [vmem:[#allocation3 + $0x80] sm:$0xff] %v296
  %299 = vst [vmem:[#allocation3 + $0x88] sm:$0xff] %v297
  %v300 = vld [vmem:[%s50 + $0x8] sm:$0xff]
  %v301 = vld [vmem:[%s50 + $0x10] sm:$0xff]
  %302 = vst [vmem:[#allocation3 + $0x90] sm:$0xff] %v300
  %303 = vst [vmem:[#allocation3 + $0x98] sm:$0xff] %v301
  %v304 = vld [vmem:[#allocation2 + $0x8] sm:$0xff]
  %v305 = vld [vmem:[#allocation2 + $0x10] sm:$0xff]
  %v306 = vld [vmem:[#allocation2 + $0x18] sm:$0xff]
  %v307 = vld [vmem:[%s162] sm:$0xff]
  %v308 = vld [vmem:[%s162 + $0x8] sm:$0xff]
  %311 = vrot.lane.b32.xlu0 %v307, 1
  %v312 = vpop.permute.xlu0 %311
  %313 = vrot.lane.b32.xlu0 %v308, 1
  %v314 = vpop.permute.xlu0 %313
  %v315 = vsel %vm256, %v312, %v314
  %v319 = vmul.f32 %v304, %v312
  %v320 = vmul.f32 %v305, %v315
  %v321 = vmul.f32 %v306, %v314
  %325 = vrot.lane.b32.xlu0 %v319, 127
  %v326 = vpop.permute.xlu0 %325
  %327 = vrot.lane.b32.xlu0 %v320, 127
  %v328 = vpop.permute.xlu0 %327
  %329 = vrot.lane.b32.xlu0 %v321, 127
  %v330 = vpop.permute.xlu0 %329
  %v331 = vsel %vm239, %v326, %v328
  %v332 = vsel %vm239, %v328, %v330
  %335 = vst [vmem:[#allocation3 + $0xa0] sm:$0xff] %v331
  %336 = vst [vmem:[#allocation3 + $0xa8] sm:$0xff] %v332
  %v337 = vld [vmem:[%s50 + $0x8] sm:$0xff]
  %v338 = vld [vmem:[%s50 + $0x10] sm:$0xff]
  %v339 = vld [vmem:[%s50 + $0x18] sm:$0xff]
  %v340 = vld [vmem:[%s162] sm:$0xff]
  %v341 = vld [vmem:[%s162 + $0x8] sm:$0xff]
  %344 = vrot.lane.b32.xlu0 %v340, 1
  %v345 = vpop.permute.xlu0 %344
  %346 = vrot.lane.b32.xlu0 %v341, 1
  %v347 = vpop.permute.xlu0 %346
  %v348 = vsel %vm256, %v345, %v347
  %v352 = vmul.f32 %v337, %v345
  %v353 = vmul.f32 %v338, %v348
  %v354 = vmul.f32 %v339, %v347
  %358 = vrot.lane.b32.xlu0 %v352, 127
  %v359 = vpop.permute.xlu0 %358
  %360 = vrot.lane.b32.xlu0 %v353, 127
  %v361 = vpop.permute.xlu0 %360
  %362 = vrot.lane.b32.xlu0 %v354, 127
  %v363 = vpop.permute.xlu0 %362
  %v364 = vsel %vm239, %v359, %v361
  %v365 = vsel %vm239, %v361, %v363
  %368 = vst [vmem:[#allocation3 + $0xb0] sm:$0xff] %v364
  %369 = vst [vmem:[#allocation3 + $0xb8] sm:$0xff] %v365
  %v370 = vld [vmem:[#allocation2 + $0x8] sm:$0xff]
  %v371 = vld [vmem:[#allocation2 + $0x10] sm:$0xff]
  %v372 = vld [vmem:[#allocation2 + $0x18] sm:$0xff]
  %v373 = vld [vmem:[%s56] sm:$0xff]
  %v374 = vld [vmem:[%s56 + $0x8] sm:$0xff]
  %377 = vrot.lane.b32.xlu0 %v373, 15
  %v378 = vpop.permute.xlu0 %377
  %379 = vrot.lane.b32.xlu0 %v374, 15
  %v380 = vpop.permute.xlu0 %379
  %v381 = vsel %vm188, %v378, %v380
  %v385 = vmul.f32 %v370, %v378
  %v386 = vmul.f32 %v371, %v381
  %v387 = vmul.f32 %v372, %v380
  %391 = vrot.lane.b32.xlu0 %v385, 113
  %v392 = vpop.permute.xlu0 %391
  %393 = vrot.lane.b32.xlu0 %v386, 113
  %v394 = vpop.permute.xlu0 %393
  %395 = vrot.lane.b32.xlu0 %v387, 113
  %v396 = vpop.permute.xlu0 %395
  %v397 = vsel %vm171, %v392, %v394
  %v398 = vsel %vm171, %v394, %v396
  %401 = vst [vmem:[#allocation3 + $0xc0] sm:$0xff] %v397
  %402 = vst [vmem:[#allocation3 + $0xc8] sm:$0xff] %v398
  %v403 = vld [vmem:[%s50 + $0x8] sm:$0xff]
  %v404 = vld [vmem:[%s50 + $0x10] sm:$0xff]
  %v405 = vld [vmem:[%s50 + $0x18] sm:$0xff]
  %v406 = vld [vmem:[%s56] sm:$0xff]
  %v407 = vld [vmem:[%s56 + $0x8] sm:$0xff]
  %410 = vrot.lane.b32.xlu0 %v406, 15
  %v411 = vpop.permute.xlu0 %410
  %412 = vrot.lane.b32.xlu0 %v407, 15
  %v413 = vpop.permute.xlu0 %412
  %v414 = vsel %vm188, %v411, %v413
  %v418 = vmul.f32 %v403, %v411
  %v419 = vmul.f32 %v404, %v414
  %v420 = vmul.f32 %v405, %v413
  %424 = vrot.lane.b32.xlu0 %v418, 113
  %v425 = vpop.permute.xlu0 %424
  %426 = vrot.lane.b32.xlu0 %v419, 113
  %v427 = vpop.permute.xlu0 %426
  %428 = vrot.lane.b32.xlu0 %v420, 113
  %v429 = vpop.permute.xlu0 %428
  %v430 = vsel %vm171, %v425, %v427
  %v431 = vsel %vm171, %v427, %v429
  %434 = vst [vmem:[#allocation3 + $0xd0] sm:$0xff] %v430
  %435 = vst [vmem:[#allocation3 + $0xd8] sm:$0xff] %v431
  %v436 = vld [vmem:[#allocation2 + $0x8] sm:$0xff]
  %v437 = vld [vmem:[#allocation2 + $0x10] sm:$0xff]
  %v438 = vld [vmem:[#allocation2 + $0x18] sm:$0xff]
  %442 = vrot.lane.b32.xlu0 %v436, 112
  %v443 = vpop.permute.xlu0 %442
  %444 = vrot.lane.b32.xlu0 %v437, 112
  %v445 = vpop.permute.xlu0 %444
  %446 = vrot.lane.b32.xlu0 %v438, 112
  %v447 = vpop.permute.xlu0 %446
  %vm448 = vcmask 916480
  %v449 = vsel %vm448, %v443, %v445
  %v450 = vsel %vm448, %v445, %v447
  %453 = vst [vmem:[#allocation3 + $0xe0] sm:$0xff] %v449
  %454 = vst [vmem:[#allocation3 + $0xe8] sm:$0xff] %v450
  %v455 = vld [vmem:[%s50 + $0x8] sm:$0xff]
  %v456 = vld [vmem:[%s50 + $0x10] sm:$0xff]
  %v457 = vld [vmem:[%s50 + $0x18] sm:$0xff]
  %461 = vrot.lane.b32.xlu0 %v455, 112
  %v462 = vpop.permute.xlu0 %461
  %463 = vrot.lane.b32.xlu0 %v456, 112
  %v464 = vpop.permute.xlu0 %463
  %465 = vrot.lane.b32.xlu0 %v457, 112
  %v466 = vpop.permute.xlu0 %465
  %v467 = vsel %vm448, %v462, %v464
  %v468 = vsel %vm448, %v464, %v466
  %471 = vst [vmem:[#allocation3 + $0xf0] sm:$0xff] %v467
  %472 = vst [vmem:[#allocation3 + $0xf8] sm:$0xff] %v468
  %v473 = vld [vmem:[#allocation2 + $0x8] sm:$0xff]
  %v474 = vld [vmem:[#allocation2 + $0x10] sm:$0xff]
  %v475 = vld [vmem:[#allocation2 + $0x18] sm:$0xff]
  %v476 = vld [vmem:[%s162] sm:$0xff]
  %v477 = vld [vmem:[%s162 + $0x8] sm:$0xff]
  %480 = vrot.lane.b32.xlu0 %v476, 17
  %v481 = vpop.permute.xlu0 %480
  %482 = vrot.lane.b32.xlu0 %v477, 17
  %v483 = vpop.permute.xlu0 %482
  %v484 = vsel %vm82, %v481, %v483
  %v488 = vmul.f32 %v473, %v481
  %v489 = vmul.f32 %v474, %v484
  %v490 = vmul.f32 %v475, %v483
  %494 = vrot.lane.b32.xlu0 %v488, 111
  %v495 = vpop.permute.xlu0 %494
  %496 = vrot.lane.b32.xlu0 %v489, 111
  %v497 = vpop.permute.xlu0 %496
  %498 = vrot.lane.b32.xlu0 %v490, 111
  %v499 = vpop.permute.xlu0 %498
  %v500 = vsel %vm65, %v495, %v497
  %v501 = vsel %vm65, %v497, %v499
  %504 = vst [vmem:[#allocation3 + $0x100] sm:$0xff] %v500
  %505 = vst [vmem:[#allocation3 + $0x108] sm:$0xff] %v501
  %v506 = vld [vmem:[%s50 + $0x8] sm:$0xff]
  %v507 = vld [vmem:[%s50 + $0x10] sm:$0xff]
  %v508 = vld [vmem:[%s50 + $0x18] sm:$0xff]
  %v509 = vld [vmem:[%s162] sm:$0xff]
  %v510 = vld [vmem:[%s162 + $0x8] sm:$0xff]
  %513 = vrot.lane.b32.xlu0 %v509, 17
  %v514 = vpop.permute.xlu0 %513
  %515 = vrot.lane.b32.xlu0 %v510, 17
  %v516 = vpop.permute.xlu0 %515
  %v517 = vsel %vm82, %v514, %v516
  %v521 = vmul.f32 %v506, %v514
  %v522 = vmul.f32 %v507, %v517
  %v523 = vmul.f32 %v508, %v516
  %527 = vrot.lane.b32.xlu0 %v521, 111
  %v528 = vpop.permute.xlu0 %527
  %529 = vrot.lane.b32.xlu0 %v522, 111
  %v530 = vpop.permute.xlu0 %529
  %531 = vrot.lane.b32.xlu0 %v523, 111
  %v532 = vpop.permute.xlu0 %531
  %v533 = vsel %vm65, %v528, %v530
  %v534 = vsel %vm65, %v530, %v532
  %537 = vst [vmem:[#allocation3 + $0x110] sm:$0xff] %v533
  %538 = vst [vmem:[#allocation3 + $0x118] sm:$0xff] %v534
  %v539 = vld [vmem:[#allocation3] sm:$0xff]
  %v540 = vld [vmem:[#allocation3 + $0x8] sm:$0xff]
  %v541 = vld [vmem:[#allocation3 + $0x10] sm:$0xff]
  %v542 = vld [vmem:[#allocation3 + $0x18] sm:$0xff]
  %v543 = vld [vmem:[#allocation3 + $0x20] sm:$0xff]
  %v544 = vld [vmem:[#allocation3 + $0x28] sm:$0xff]
  %v545 = vld [vmem:[#allocation3 + $0x30] sm:$0xff]
  %v546 = vld [vmem:[#allocation3 + $0x38] sm:$0xff]
  %v547 = vld [vmem:[#allocation3 + $0x40] sm:$0xff]
  %v548 = vld [vmem:[#allocation3 + $0x48] sm:$0xff]
  %v549 = vld [vmem:[#allocation3 + $0x50] sm:$0xff]
  %v550 = vld [vmem:[#allocation3 + $0x58] sm:$0xff]
  %v551 = vld [vmem:[#allocation3 + $0x60] sm:$0xff]
  %v552 = vld [vmem:[#allocation3 + $0x68] sm:$0xff]
  %v553 = vld [vmem:[#allocation3 + $0x70] sm:$0xff]
  %v554 = vld [vmem:[#allocation3 + $0x78] sm:$0xff]
  %v555 = vld [vmem:[#allocation3 + $0x80] sm:$0xff]
  %v556 = vld [vmem:[#allocation3 + $0x88] sm:$0xff]
  %v557 = vld [vmem:[#allocation3 + $0x90] sm:$0xff]
  %v558 = vld [vmem:[#allocation3 + $0x98] sm:$0xff]
  %v559 = vld [vmem:[#allocation3 + $0xa0] sm:$0xff]
  %v560 = vld [vmem:[#allocation3 + $0xa8] sm:$0xff]
  %v561 = vld [vmem:[#allocation3 + $0xb0] sm:$0xff]
  %v562 = vld [vmem:[#allocation3 + $0xb8] sm:$0xff]
  %v563 = vld [vmem:[#allocation3 + $0xc0] sm:$0xff]
  %v564 = vld [vmem:[#allocation3 + $0xc8] sm:$0xff]
  %v565 = vld [vmem:[#allocation3 + $0xd0] sm:$0xff]
  %v566 = vld [vmem:[#allocation3 + $0xd8] sm:$0xff]
  %v567 = vld [vmem:[#allocation3 + $0xe0] sm:$0xff]
  %v568 = vld [vmem:[#allocation3 + $0xe8] sm:$0xff]
  %v569 = vld [vmem:[#allocation3 + $0xf0] sm:$0xff]
  %v570 = vld [vmem:[#allocation3 + $0xf8] sm:$0xff]
  %v571 = vld [vmem:[#allocation3 + $0x100] sm:$0xff]
  %v572 = vld [vmem:[#allocation3 + $0x108] sm:$0xff]
  %v573 = vld [vmem:[#allocation3 + $0x110] sm:$0xff]
  %v574 = vld [vmem:[#allocation3 + $0x118] sm:$0xff]
  %v575 = vld [vmem:[#allocation3 + $0x120] sm:$0xff]
  %v576 = vld [vmem:[#allocation3 + $0x128] sm:$0xff]
  %v577 = vld [vmem:[#allocation3 + $0x130] sm:$0xff]
  %v578 = vld [vmem:[#allocation3 + $0x138] sm:$0xff]
  %vm579 = vcmask 654336
  %v581 = vsel %vm579, %v38, 0
  %583 = vmatprep.subr.mxu0 %v540
  %584 = vmatpush1.msra.mxu0 %v539
  %585 = vmatprep.subr.mxu0 %v544
  %586 = vmatpush1.msra.mxu0 %v543
  %587 = vmatprep.subr.mxu0 %v548
  %588 = vmatpush1.msra.mxu0 %v547
  %589 = vmatprep.subr.mxu0 %v552
  %590 = vmatpush1.msra.mxu0 %v551
  %591 = vmatprep.subr.mxu0 %v556
  %592 = vmatpush1.msra.mxu0 %v555
  %593 = vmatprep.subr.mxu0 %v560
  %594 = vmatpush1.msra.mxu0 %v559
  %595 = vmatprep.subr.mxu0 %v564
  %596 = vmatpush1.msra.mxu0 %v563
  %597 = vmatprep.subr.mxu0 %v568
  %598 = vmatpush1.msra.mxu0 %v567
  %599 = vmatprep.subr.mxu0 %v572
  %600 = vmatpush1.msra.mxu0 %v571
  %601 = vmatprep.subr.mxu0 %v576
  %602 = vmatpush1.msra.mxu0 %v575
  %603 = vmatprep.subr.mxu0 0.0
  %604 = vmatpush1.msra.mxu0 0.0
  %605 = vmatprep.subr.mxu0 0.0
  %606 = vmatpush1.msra.mxu0 0.0
  %607 = vmatprep.subr.mxu0 0.0
  %608 = vmatpush1.msra.mxu0 0.0
  %609 = vmatprep.subr.mxu0 0.0
  %610 = vmatpush1.msra.mxu0 0.0
  %611 = vmatprep.subr.mxu0 0.0
  %612 = vmatpush1.msra.mxu0 0.0
  %613 = vmatprep.subr.mxu0 0.0
  %614 = vmatpush1.msra.mxu0 0.0
  %615 = vmatprep.subr.mxu0 0.0
  %616 = vmatpush1.msra.mxu0 0.0
  %617 = vmatprep.subr.mxu0 0.0
  %618 = vmatpush1.msra.mxu0 0.0
  %619 = vmatprep.subr.mxu0 0.0
  %620 = vmatpush1.msra.mxu0 0.0
  %621 = vmatprep.subr.mxu0 0.0
  %622 = vmatpush1.msra.mxu0 0.0
  %623 = vmatprep.subr.mxu0 0.0
  %624 = vmatpush1.msra.mxu0 0.0
  %625 = vmatprep.subr.mxu0 0.0
  %626 = vmatpush1.msra.mxu0 0.0
  %627 = vmatprep.subr.mxu0 0.0
  %628 = vmatpush1.msra.mxu0 0.0
  %629 = vmatprep.subr.mxu0 0.0
  %630 = vmatpush1.msra.mxu0 0.0
  %631 = vmatprep.subr.mxu0 0.0
  %632 = vmatpush1.msra.mxu0 0.0
  %633 = vmatprep.subr.mxu0 0.0
  %634 = vmatpush1.msra.mxu0 0.0
  %635 = vmatprep.subr.mxu0 0.0
  %636 = vmatpush1.msra.mxu0 0.0
  %637 = vmatprep.subr.mxu0 0.0
  %638 = vmatpush1.msra.mxu0 0.0
  %639 = vmatprep.subr.mxu0 0.0
  %640 = vmatpush1.msra.mxu0 0.0
  %641 = vmatprep.subr.mxu0 0.0
  %642 = vmatpush1.msra.mxu0 0.0
  %643 = vmatprep.subr.mxu0 0.0
  %644 = vmatpush1.msra.mxu0 0.0
  %645 = vmatprep.subr.mxu0 0.0
  %646 = vmatpush1.msra.mxu0 0.0
  %647 = vmatprep.mubr.f32.mxu0 0.0
  %648 = vmatmul.mubr.f32.gmra.mrb[0].mxu0 %v581
  %v649 = vpop.f32.mrb[0].mxu0
  %v650 = vadd.f32 0.0, %v649
  %v651 = vpop.f32.mrb[0].mxu0
  %v652 = vadd.f32 0.0, %v651
  %653 = vdwg.mxu0
  %654 = vmatprep.subr.mxu0 %v542
  %655 = vmatpush1.msra.mxu0 %v541
  %656 = vmatprep.subr.mxu0 %v546
  %657 = vmatpush1.msra.mxu0 %v545
  %658 = vmatprep.subr.mxu0 %v550
  %659 = vmatpush1.msra.mxu0 %v549
  %660 = vmatprep.subr.mxu0 %v554
  %661 = vmatpush1.msra.mxu0 %v553
  %662 = vmatprep.subr.mxu0 %v558
  %663 = vmatpush1.msra.mxu0 %v557
  %664 = vmatprep.subr.mxu0 %v562
  %665 = vmatpush1.msra.mxu0 %v561
  %666 = vmatprep.subr.mxu0 %v566
  %667 = vmatpush1.msra.mxu0 %v565
  %668 = vmatprep.subr.mxu0 %v570
  %669 = vmatpush1.msra.mxu0 %v569
  %670 = vmatprep.subr.mxu0 %v574
  %671 = vmatpush1.msra.mxu0 %v573
  %672 = vmatprep.subr.mxu0 %v578
  %673 = vmatpush1.msra.mxu0 %v577
  %674 = vmatprep.subr.mxu0 0.0
  %675 = vmatpush1.msra.mxu0 0.0
  %676 = vmatprep.subr.mxu0 0.0
  %677 = vmatpush1.msra.mxu0 0.0
  %678 = vmatprep.subr.mxu0 0.0
  %679 = vmatpush1.msra.mxu0 0.0
  %680 = vmatprep.subr.mxu0 0.0
  %681 = vmatpush1.msra.mxu0 0.0
  %682 = vmatprep.subr.mxu0 0.0
  %683 = vmatpush1.msra.mxu0 0.0
  %684 = vmatprep.subr.mxu0 0.0
  %685 = vmatpush1.msra.mxu0 0.0
  %686 = vmatprep.subr.mxu0 0.0
  %687 = vmatpush1.msra.mxu0 0.0
  %688 = vmatprep.subr.mxu0 0.0
  %689 = vmatpush1.msra.mxu0 0.0
  %690 = vmatprep.subr.mxu0 0.0
  %691 = vmatpush1.msra.mxu0 0.0
  %692 = vmatprep.subr.mxu0 0.0
  %693 = vmatpush1.msra.mxu0 0.0
  %694 = vmatprep.subr.mxu0 0.0
  %695 = vmatpush1.msra.mxu0 0.0
  %696 = vmatprep.subr.mxu0 0.0
  %697 = vmatpush1.msra.mxu0 0.0
  %698 = vmatprep.subr.mxu0 0.0
  %699 = vmatpush1.msra.mxu0 0.0
  %700 = vmatprep.subr.mxu0 0.0
  %701 = vmatpush1.msra.mxu0 0.0
  %702 = vmatprep.subr.mxu0 0.0
  %703 = vmatpush1.msra.mxu0 0.0
  %704 = vmatprep.subr.mxu0 0.0
  %705 = vmatpush1.msra.mxu0 0.0
  %706 = vmatprep.subr.mxu0 0.0
  %707 = vmatpush1.msra.mxu0 0.0
  %708 = vmatprep.subr.mxu0 0.0
  %709 = vmatpush1.msra.mxu0 0.0
  %710 = vmatprep.subr.mxu0 0.0
  %711 = vmatpush1.msra.mxu0 0.0
  %712 = vmatprep.subr.mxu0 0.0
  %713 = vmatpush1.msra.mxu0 0.0
  %714 = vmatprep.subr.mxu0 0.0
  %715 = vmatpush1.msra.mxu0 0.0
  %716 = vmatprep.subr.mxu0 0.0
  %717 = vmatpush1.msra.mxu0 0.0
  %718 = vmatprep.mubr.f32.mxu0 0.0
  %719 = vmatmul.mubr.f32.gmra.mrb[0].mxu0 %v581
  %v720 = vpop.f32.mrb[0].mxu0
  %v721 = vadd.f32 0.0, %v720
  %v722 = vpop.f32.mrb[0].mxu0
  %v723 = vadd.f32 0.0, %v722
  %724 = vdwg.mxu0
  %v725 = vmul.f32 %v650, 0.1
  %v726 = vmul.f32 %v652, 0.1
  %v727 = vmul.f32 %v721, 0.1
  %v728 = vmul.f32 %v723, 0.1
  %v729 = vmax.f32 %v650, %v725
  %v730 = vmax.f32 %v652, %v726
  %v731 = vmax.f32 %v721, %v727
  %v732 = vmax.f32 %v723, %v728
  %v733 = vld [vmem:[%s2] sm:$0xf]
  %734 = vst [vmem:[#allocation2 + $0x8] sm:$0xf] %v729
  %735 = vst [vmem:[#allocation2 + $0x10] sm:$0xf] %v730
  %736 = vst [vmem:[%s50 + $0x8] sm:$0xf] %v731
  %737 = vst [vmem:[%s50 + $0x10] sm:$0xf] %v732
  %v738 = vld [vmem:[#allocation2] sm:$0xff]
  %v739 = vld [vmem:[#allocation2 + $0x8] sm:$0xff]
  %v740 = vld [vmem:[#allocation2 + $0x10] sm:$0xff]
  %v741 = vld [vmem:[%s3] sm:$0xff]
  %v742 = vld [vmem:[%s3 + $0x8] sm:$0xff]
  %745 = vrot.lane.b32.xlu0 %v741, 94
  %v746 = vpop.permute.xlu0 %745
  %747 = vrot.lane.b32.xlu0 %v742, 94
  %v748 = vpop.permute.xlu0 %747
  %vm749 = vcmask 769024
  %v750 = vsel %vm749, %v746, %v748
  %v754 = vmul.f32 %v738, %v746
  %v755 = vmul.f32 %v739, %v750
  %v756 = vmul.f32 %v740, %v748
  %760 = vrot.lane.b32.xlu0 %v754, 34
  %v761 = vpop.permute.xlu0 %760
  %762 = vrot.lane.b32.xlu0 %v755, 34
  %v763 = vpop.permute.xlu0 %762
  %764 = vrot.lane.b32.xlu0 %v756, 34
  %v765 = vpop.permute.xlu0 %764
  %vm766 = vcmask 277504
  %v767 = vsel %vm766, %v761, %v763
  %v768 = vsel %vm766, %v763, %v765
  %771 = vst [vmem:[#allocation3] sm:$0xff] %v767
  %772 = vst [vmem:[#allocation3 + $0x8] sm:$0xff] %v768
  %v773 = vld [vmem:[%s50] sm:$0xff]
  %v774 = vld [vmem:[%s50 + $0x8] sm:$0xff]
  %v775 = vld [vmem:[%s50 + $0x10] sm:$0xff]
  %v776 = vld [vmem:[%s3] sm:$0xff]
  %v777 = vld [vmem:[%s3 + $0x8] sm:$0xff]
  %780 = vrot.lane.b32.xlu0 %v776, 94
  %v781 = vpop.permute.xlu0 %780
  %782 = vrot.lane.b32.xlu0 %v777, 94
  %v783 = vpop.permute.xlu0 %782
  %v784 = vsel %vm749, %v781, %v783
  %v788 = vmul.f32 %v773, %v781
  %v789 = vmul.f32 %v774, %v784
  %v790 = vmul.f32 %v775, %v783
  %794 = vrot.lane.b32.xlu0 %v788, 34
  %v795 = vpop.permute.xlu0 %794
  %796 = vrot.lane.b32.xlu0 %v789, 34
  %v797 = vpop.permute.xlu0 %796
  %798 = vrot.lane.b32.xlu0 %v790, 34
  %v799 = vpop.permute.xlu0 %798
  %v800 = vsel %vm766, %v795, %v797
  %v801 = vsel %vm766, %v797, %v799
  %804 = vst [vmem:[#allocation3 + $0x10] sm:$0xff] %v800
  %805 = vst [vmem:[#allocation3 + $0x18] sm:$0xff] %v801
  %v806 = vld [vmem:[#allocation2] sm:$0xff]
  %v807 = vld [vmem:[#allocation2 + $0x8] sm:$0xff]
  %v808 = vld [vmem:[#allocation2 + $0x10] sm:$0xff]
  %812 = vrot.lane.b32.xlu0 %v806, 32
  %v813 = vpop.permute.xlu0 %812
  %814 = vrot.lane.b32.xlu0 %v807, 32
  %v815 = vpop.permute.xlu0 %814
  %816 = vrot.lane.b32.xlu0 %v808, 32
  %v817 = vpop.permute.xlu0 %816
  %vm818 = vcmask 261120
  %v819 = vsel %vm818, %v813, %v815
  %v820 = vsel %vm818, %v815, %v817
  %823 = vst [vmem:[#allocation3 + $0x20] sm:$0xff] %v819
  %824 = vst [vmem:[#allocation3 + $0x28] sm:$0xff] %v820
  %v825 = vld [vmem:[%s50] sm:$0xff]
  %v826 = vld [vmem:[%s50 + $0x8] sm:$0xff]
  %v827 = vld [vmem:[%s50 + $0x10] sm:$0xff]
  %831 = vrot.lane.b32.xlu0 %v825, 32
  %v832 = vpop.permute.xlu0 %831
  %833 = vrot.lane.b32.xlu0 %v826, 32
  %v834 = vpop.permute.xlu0 %833
  %835 = vrot.lane.b32.xlu0 %v827, 32
  %v836 = vpop.permute.xlu0 %835
  %v837 = vsel %vm818, %v832, %v834
  %v838 = vsel %vm818, %v834, %v836
  %841 = vst [vmem:[#allocation3 + $0x30] sm:$0xff] %v837
  %842 = vst [vmem:[#allocation3 + $0x38] sm:$0xff] %v838
  %v843 = vld [vmem:[#allocation2] sm:$0xff]
  %v844 = vld [vmem:[#allocation2 + $0x8] sm:$0xff]
  %v845 = vld [vmem:[#allocation2 + $0x10] sm:$0xff]
  %s846 = scalar_lea.vmem %s3, 48
  %v847 = vld [vmem:[%s846] sm:$0xff]
  %v848 = vld [vmem:[%s846 + $0x8] sm:$0xff]
  %851 = vrot.lane.b32.xlu0 %v847, 98
  %v852 = vpop.permute.xlu0 %851
  %853 = vrot.lane.b32.xlu0 %v848, 98
  %v854 = vpop.permute.xlu0 %853
  %vm855 = vcmask 801792
  %v856 = vsel %vm855, %v852, %v854
  %v860 = vmul.f32 %v843, %v852
  %v861 = vmul.f32 %v844, %v856
  %v862 = vmul.f32 %v845, %v854
  %866 = vrot.lane.b32.xlu0 %v860, 30
  %v867 = vpop.permute.xlu0 %866
  %868 = vrot.lane.b32.xlu0 %v861, 30
  %v869 = vpop.permute.xlu0 %868
  %870 = vrot.lane.b32.xlu0 %v862, 30
  %v871 = vpop.permute.xlu0 %870
  %vm872 = vcmask 244736
  %v873 = vsel %vm872, %v867, %v869
  %v874 = vsel %vm872, %v869, %v871
  %877 = vst [vmem:[#allocation3 + $0x40] sm:$0xff] %v873
  %878 = vst [vmem:[#allocation3 + $0x48] sm:$0xff] %v874
  %v879 = vld [vmem:[%s50] sm:$0xff]
  %v880 = vld [vmem:[%s50 + $0x8] sm:$0xff]
  %v881 = vld [vmem:[%s50 + $0x10] sm:$0xff]
  %v882 = vld [vmem:[%s846] sm:$0xff]
  %v883 = vld [vmem:[%s846 + $0x8] sm:$0xff]
  %886 = vrot.lane.b32.xlu0 %v882, 98
  %v887 = vpop.permute.xlu0 %886
  %888 = vrot.lane.b32.xlu0 %v883, 98
  %v889 = vpop.permute.xlu0 %888
  %v890 = vsel %vm855, %v887, %v889
  %v894 = vmul.f32 %v879, %v887
  %v895 = vmul.f32 %v880, %v890
  %v896 = vmul.f32 %v881, %v889
  %900 = vrot.lane.b32.xlu0 %v894, 30
  %v901 = vpop.permute.xlu0 %900
  %902 = vrot.lane.b32.xlu0 %v895, 30
  %v903 = vpop.permute.xlu0 %902
  %904 = vrot.lane.b32.xlu0 %v896, 30
  %v905 = vpop.permute.xlu0 %904
  %v906 = vsel %vm872, %v901, %v903
  %v907 = vsel %vm872, %v903, %v905
  %910 = vst [vmem:[#allocation3 + $0x50] sm:$0xff] %v906
  %911 = vst [vmem:[#allocation3 + $0x58] sm:$0xff] %v907
  %v912 = vld [vmem:[#allocation2] sm:$0xff]
  %v913 = vld [vmem:[#allocation2 + $0x8] sm:$0xff]
  %v914 = vld [vmem:[#allocation2 + $0x10] sm:$0xff]
  %v915 = vld [vmem:[%s3] sm:$0xff]
  %v916 = vld [vmem:[%s3 + $0x8] sm:$0xff]
  %919 = vrot.lane.b32.xlu0 %v915, 126
  %v920 = vpop.permute.xlu0 %919
  %921 = vrot.lane.b32.xlu0 %v916, 126
  %v922 = vpop.permute.xlu0 %921
  %vm923 = vcmask 1031168
  %v924 = vsel %vm923, %v920, %v922
  %v928 = vmul.f32 %v912, %v920
  %v929 = vmul.f32 %v913, %v924
  %v930 = vmul.f32 %v914, %v922
  %934 = vrot.lane.b32.xlu0 %v928, 2
  %v935 = vpop.permute.xlu0 %934
  %936 = vrot.lane.b32.xlu0 %v929, 2
  %v937 = vpop.permute.xlu0 %936
  %938 = vrot.lane.b32.xlu0 %v930, 2
  %v939 = vpop.permute.xlu0 %938
  %vm940 = vcmask 15360
  %v941 = vsel %vm940, %v935, %v937
  %v942 = vsel %vm940, %v937, %v939
  %945 = vst [vmem:[#allocation3 + $0x60] sm:$0xff] %v941
  %946 = vst [vmem:[#allocation3 + $0x68] sm:$0xff] %v942
  %v947 = vld [vmem:[%s50] sm:$0xff]
  %v948 = vld [vmem:[%s50 + $0x8] sm:$0xff]
  %v949 = vld [vmem:[%s50 + $0x10] sm:$0xff]
  %v950 = vld [vmem:[%s3] sm:$0xff]
  %v951 = vld [vmem:[%s3 + $0x8] sm:$0xff]
  %954 = vrot.lane.b32.xlu0 %v950, 126
  %v955 = vpop.permute.xlu0 %954
  %956 = vrot.lane.b32.xlu0 %v951, 126
  %v957 = vpop.permute.xlu0 %956
  %v958 = vsel %vm923, %v955, %v957
  %v962 = vmul.f32 %v947, %v955
  %v963 = vmul.f32 %v948, %v958
  %v964 = vmul.f32 %v949, %v957
  %968 = vrot.lane.b32.xlu0 %v962, 2
  %v969 = vpop.permute.xlu0 %968
  %970 = vrot.lane.b32.xlu0 %v963, 2
  %v971 = vpop.permute.xlu0 %970
  %972 = vrot.lane.b32.xlu0 %v964, 2
  %v973 = vpop.permute.xlu0 %972
  %v974 = vsel %vm940, %v969, %v971
  %v975 = vsel %vm940, %v971, %v973
  %978 = vst [vmem:[#allocation3 + $0x70] sm:$0xff] %v974
  %979 = vst [vmem:[#allocation3 + $0x78] sm:$0xff] %v975
  %v980 = vld [vmem:[#allocation2 + $0x8] sm:$0xff]
  %v981 = vld [vmem:[#allocation2 + $0x10] sm:$0xff]
  %982 = vst [vmem:[#allocation3 + $0x80] sm:$0xff] %v980
  %983 = vst [vmem:[#allocation3 + $0x88] sm:$0xff] %v981
  %v984 = vld [vmem:[%s50 + $0x8] sm:$0xff]
  %v985 = vld [vmem:[%s50 + $0x10] sm:$0xff]
  %986 = vst [vmem:[#allocation3 + $0x90] sm:$0xff] %v984
  %987 = vst [vmem:[#allocation3 + $0x98] sm:$0xff] %v985
  %v988 = vld [vmem:[#allocation2 + $0x8] sm:$0xff]
  %v989 = vld [vmem:[#allocation2 + $0x10] sm:$0xff]
  %v990 = vld [vmem:[#allocation2 + $0x18] sm:$0xff]
  %v991 = vld [vmem:[%s846] sm:$0xff]
  %v992 = vld [vmem:[%s846 + $0x8] sm:$0xff]
  %995 = vrot.lane.b32.xlu0 %v991, 2
  %v996 = vpop.permute.xlu0 %995
  %997 = vrot.lane.b32.xlu0 %v992, 2
  %v998 = vpop.permute.xlu0 %997
  %v999 = vsel %vm940, %v996, %v998
  %v1003 = vmul.f32 %v988, %v996
  %v1004 = vmul.f32 %v989, %v999
  %v1005 = vmul.f32 %v990, %v998
  %1009 = vrot.lane.b32.xlu0 %v1003, 126
  %v1010 = vpop.permute.xlu0 %1009
  %1011 = vrot.lane.b32.xlu0 %v1004, 126
  %v1012 = vpop.permute.xlu0 %1011
  %1013 = vrot.lane.b32.xlu0 %v1005, 126
  %v1014 = vpop.permute.xlu0 %1013
  %v1015 = vsel %vm923, %v1010, %v1012
  %v1016 = vsel %vm923, %v1012, %v1014
  %1019 = vst [vmem:[#allocation3 + $0xa0] sm:$0xff] %v1015
  %1020 = vst [vmem:[#allocation3 + $0xa8] sm:$0xff] %v1016
  %v1021 = vld [vmem:[%s50 + $0x8] sm:$0xff]
  %v1022 = vld [vmem:[%s50 + $0x10] sm:$0xff]
  %v1023 = vld [vmem:[%s50 + $0x18] sm:$0xff]
  %v1024 = vld [vmem:[%s846] sm:$0xff]
  %v1025 = vld [vmem:[%s846 + $0x8] sm:$0xff]
  %1028 = vrot.lane.b32.xlu0 %v1024, 2
  %v1029 = vpop.permute.xlu0 %1028
  %1030 = vrot.lane.b32.xlu0 %v1025, 2
  %v1031 = vpop.permute.xlu0 %1030
  %v1032 = vsel %vm940, %v1029, %v1031
  %v1036 = vmul.f32 %v1021, %v1029
  %v1037 = vmul.f32 %v1022, %v1032
  %v1038 = vmul.f32 %v1023, %v1031
  %1042 = vrot.lane.b32.xlu0 %v1036, 126
  %v1043 = vpop.permute.xlu0 %1042
  %1044 = vrot.lane.b32.xlu0 %v1037, 126
  %v1045 = vpop.permute.xlu0 %1044
  %1046 = vrot.lane.b32.xlu0 %v1038, 126
  %v1047 = vpop.permute.xlu0 %1046
  %v1048 = vsel %vm923, %v1043, %v1045
  %v1049 = vsel %vm923, %v1045, %v1047
  %1052 = vst [vmem:[#allocation3 + $0xb0] sm:$0xff] %v1048
  %1053 = vst [vmem:[#allocation3 + $0xb8] sm:$0xff] %v1049
  %v1054 = vld [vmem:[#allocation2 + $0x8] sm:$0xff]
  %v1055 = vld [vmem:[#allocation2 + $0x10] sm:$0xff]
  %v1056 = vld [vmem:[#allocation2 + $0x18] sm:$0xff]
  %v1057 = vld [vmem:[%s3] sm:$0xff]
  %v1058 = vld [vmem:[%s3 + $0x8] sm:$0xff]
  %1061 = vrot.lane.b32.xlu0 %v1057, 30
  %v1062 = vpop.permute.xlu0 %1061
  %1063 = vrot.lane.b32.xlu0 %v1058, 30
  %v1064 = vpop.permute.xlu0 %1063
  %v1065 = vsel %vm872, %v1062, %v1064
  %v1069 = vmul.f32 %v1054, %v1062
  %v1070 = vmul.f32 %v1055, %v1065
  %v1071 = vmul.f32 %v1056, %v1064
  %1075 = vrot.lane.b32.xlu0 %v1069, 98
  %v1076 = vpop.permute.xlu0 %1075
  %1077 = vrot.lane.b32.xlu0 %v1070, 98
  %v1078 = vpop.permute.xlu0 %1077
  %1079 = vrot.lane.b32.xlu0 %v1071, 98
  %v1080 = vpop.permute.xlu0 %1079
  %v1081 = vsel %vm855, %v1076, %v1078
  %v1082 = vsel %vm855, %v1078, %v1080
  %1085 = vst [vmem:[#allocation3 + $0xc0] sm:$0xff] %v1081
  %1086 = vst [vmem:[#allocation3 + $0xc8] sm:$0xff] %v1082
  %v1087 = vld [vmem:[%s50 + $0x8] sm:$0xff]
  %v1088 = vld [vmem:[%s50 + $0x10] sm:$0xff]
  %v1089 = vld [vmem:[%s50 + $0x18] sm:$0xff]
  %v1090 = vld [vmem:[%s3] sm:$0xff]
  %v1091 = vld [vmem:[%s3 + $0x8] sm:$0xff]
  %1094 = vrot.lane.b32.xlu0 %v1090, 30
  %v1095 = vpop.permute.xlu0 %1094
  %1096 = vrot.lane.b32.xlu0 %v1091, 30
  %v1097 = vpop.permute.xlu0 %1096
  %v1098 = vsel %vm872, %v1095, %v1097
  %v1102 = vmul.f32 %v1087, %v1095
  %v1103 = vmul.f32 %v1088, %v1098
  %v1104 = vmul.f32 %v1089, %v1097
  %1108 = vrot.lane.b32.xlu0 %v1102, 98
  %v1109 = vpop.permute.xlu0 %1108
  %1110 = vrot.lane.b32.xlu0 %v1103, 98
  %v1111 = vpop.permute.xlu0 %1110
  %1112 = vrot.lane.b32.xlu0 %v1104, 98
  %v1113 = vpop.permute.xlu0 %1112
  %v1114 = vsel %vm855, %v1109, %v1111
  %v1115 = vsel %vm855, %v1111, %v1113
  %1118 = vst [vmem:[#allocation3 + $0xd0] sm:$0xff] %v1114
  %1119 = vst [vmem:[#allocation3 + $0xd8] sm:$0xff] %v1115
  %v1120 = vld [vmem:[#allocation2 + $0x8] sm:$0xff]
  %v1121 = vld [vmem:[#allocation2 + $0x10] sm:$0xff]
  %v1122 = vld [vmem:[#allocation2 + $0x18] sm:$0xff]
  %1126 = vrot.lane.b32.xlu0 %v1120, 96
  %v1127 = vpop.permute.xlu0 %1126
  %1128 = vrot.lane.b32.xlu0 %v1121, 96
  %v1129 = vpop.permute.xlu0 %1128
  %1130 = vrot.lane.b32.xlu0 %v1122, 96
  %v1131 = vpop.permute.xlu0 %1130
  %vm1132 = vcmask 785408
  %v1133 = vsel %vm1132, %v1127, %v1129
  %v1134 = vsel %vm1132, %v1129, %v1131
  %1137 = vst [vmem:[#allocation3 + $0xe0] sm:$0xff] %v1133
  %1138 = vst [vmem:[#allocation3 + $0xe8] sm:$0xff] %v1134
  %v1139 = vld [vmem:[%s50 + $0x8] sm:$0xff]
  %v1140 = vld [vmem:[%s50 + $0x10] sm:$0xff]
  %v1141 = vld [vmem:[%s50 + $0x18] sm:$0xff]
  %1145 = vrot.lane.b32.xlu0 %v1139, 96
  %v1146 = vpop.permute.xlu0 %1145
  %1147 = vrot.lane.b32.xlu0 %v1140, 96
  %v1148 = vpop.permute.xlu0 %1147
  %1149 = vrot.lane.b32.xlu0 %v1141, 96
  %v1150 = vpop.permute.xlu0 %1149
  %v1151 = vsel %vm1132, %v1146, %v1148
  %v1152 = vsel %vm1132, %v1148, %v1150
  %1155 = vst [vmem:[#allocation3 + $0xf0] sm:$0xff] %v1151
  %1156 = vst [vmem:[#allocation3 + $0xf8] sm:$0xff] %v1152
  %v1157 = vld [vmem:[#allocation2 + $0x8] sm:$0xff]
  %v1158 = vld [vmem:[#allocation2 + $0x10] sm:$0xff]
  %v1159 = vld [vmem:[#allocation2 + $0x18] sm:$0xff]
  %v1160 = vld [vmem:[%s846] sm:$0xff]
  %v1161 = vld [vmem:[%s846 + $0x8] sm:$0xff]
  %1164 = vrot.lane.b32.xlu0 %v1160, 34
  %v1165 = vpop.permute.xlu0 %1164
  %1166 = vrot.lane.b32.xlu0 %v1161, 34
  %v1167 = vpop.permute.xlu0 %1166
  %v1168 = vsel %vm766, %v1165, %v1167
  %v1172 = vmul.f32 %v1157, %v1165
  %v1173 = vmul.f32 %v1158, %v1168
  %v1174 = vmul.f32 %v1159, %v1167
  %1178 = vrot.lane.b32.xlu0 %v1172, 94
  %v1179 = vpop.permute.xlu0 %1178
  %1180 = vrot.lane.b32.xlu0 %v1173, 94
  %v1181 = vpop.permute.xlu0 %1180
  %1182 = vrot.lane.b32.xlu0 %v1174, 94
  %v1183 = vpop.permute.xlu0 %1182
  %v1184 = vsel %vm749, %v1179, %v1181
  %v1185 = vsel %vm749, %v1181, %v1183
  %1188 = vst [vmem:[#allocation3 + $0x100] sm:$0xff] %v1184
  %1189 = vst [vmem:[#allocation3 + $0x108] sm:$0xff] %v1185
  %v1190 = vld [vmem:[%s50 + $0x8] sm:$0xff]
  %v1191 = vld [vmem:[%s50 + $0x10] sm:$0xff]
  %v1192 = vld [vmem:[%s50 + $0x18] sm:$0xff]
  %v1193 = vld [vmem:[%s846] sm:$0xff]
  %v1194 = vld [vmem:[%s846 + $0x8] sm:$0xff]
  %1197 = vrot.lane.b32.xlu0 %v1193, 34
  %v1198 = vpop.permute.xlu0 %1197
  %1199 = vrot.lane.b32.xlu0 %v1194, 34
  %v1200 = vpop.permute.xlu0 %1199
  %v1201 = vsel %vm766, %v1198, %v1200
  %v1205 = vmul.f32 %v1190, %v1198
  %v1206 = vmul.f32 %v1191, %v1201
  %v1207 = vmul.f32 %v1192, %v1200
  %1211 = vrot.lane.b32.xlu0 %v1205, 94
  %v1212 = vpop.permute.xlu0 %1211
  %1213 = vrot.lane.b32.xlu0 %v1206, 94
  %v1214 = vpop.permute.xlu0 %1213
  %1215 = vrot.lane.b32.xlu0 %v1207, 94
  %v1216 = vpop.permute.xlu0 %1215
  %v1217 = vsel %vm749, %v1212, %v1214
  %v1218 = vsel %vm749, %v1214, %v1216
  %1221 = vst [vmem:[#allocation3 + $0x110] sm:$0xff] %v1217
  %1222 = vst [vmem:[#allocation3 + $0x118] sm:$0xff] %v1218
  %v1223 = vld [vmem:[#allocation3] sm:$0xff]
  %v1224 = vld [vmem:[#allocation3 + $0x8] sm:$0xff]
  %v1225 = vld [vmem:[#allocation3 + $0x10] sm:$0xff]
  %v1226 = vld [vmem:[#allocation3 + $0x18] sm:$0xff]
  %v1227 = vld [vmem:[#allocation3 + $0x20] sm:$0xff]
  %v1228 = vld [vmem:[#allocation3 + $0x28] sm:$0xff]
  %v1229 = vld [vmem:[#allocation3 + $0x30] sm:$0xff]
  %v1230 = vld [vmem:[#allocation3 + $0x38] sm:$0xff]
  %v1231 = vld [vmem:[#allocation3 + $0x40] sm:$0xff]
  %v1232 = vld [vmem:[#allocation3 + $0x48] sm:$0xff]
  %v1233 = vld [vmem:[#allocation3 + $0x50] sm:$0xff]
  %v1234 = vld [vmem:[#allocation3 + $0x58] sm:$0xff]
  %v1235 = vld [vmem:[#allocation3 + $0x60] sm:$0xff]
  %v1236 = vld [vmem:[#allocation3 + $0x68] sm:$0xff]
  %v1237 = vld [vmem:[#allocation3 + $0x70] sm:$0xff]
  %v1238 = vld [vmem:[#allocation3 + $0x78] sm:$0xff]
  %v1239 = vld [vmem:[#allocation3 + $0x80] sm:$0xff]
  %v1240 = vld [vmem:[#allocation3 + $0x88] sm:$0xff]
  %v1241 = vld [vmem:[#allocation3 + $0x90] sm:$0xff]
  %v1242 = vld [vmem:[#allocation3 + $0x98] sm:$0xff]
  %v1243 = vld [vmem:[#allocation3 + $0xa0] sm:$0xff]
  %v1244 = vld [vmem:[#allocation3 + $0xa8] sm:$0xff]
  %v1245 = vld [vmem:[#allocation3 + $0xb0] sm:$0xff]
  %v1246 = vld [vmem:[#allocation3 + $0xb8] sm:$0xff]
  %v1247 = vld [vmem:[#allocation3 + $0xc0] sm:$0xff]
  %v1248 = vld [vmem:[#allocation3 + $0xc8] sm:$0xff]
  %v1249 = vld [vmem:[#allocation3 + $0xd0] sm:$0xff]
  %v1250 = vld [vmem:[#allocation3 + $0xd8] sm:$0xff]
  %v1251 = vld [vmem:[#allocation3 + $0xe0] sm:$0xff]
  %v1252 = vld [vmem:[#allocation3 + $0xe8] sm:$0xff]
  %v1253 = vld [vmem:[#allocation3 + $0xf0] sm:$0xff]
  %v1254 = vld [vmem:[#allocation3 + $0xf8] sm:$0xff]
  %v1255 = vld [vmem:[#allocation3 + $0x100] sm:$0xff]
  %v1256 = vld [vmem:[#allocation3 + $0x108] sm:$0xff]
  %v1257 = vld [vmem:[#allocation3 + $0x110] sm:$0xff]
  %v1258 = vld [vmem:[#allocation3 + $0x118] sm:$0xff]
  %v1259 = vld [vmem:[#allocation3 + $0x120] sm:$0xff]
  %v1260 = vld [vmem:[#allocation3 + $0x128] sm:$0xff]
  %v1261 = vld [vmem:[#allocation3 + $0x130] sm:$0xff]
  %v1262 = vld [vmem:[#allocation3 + $0x138] sm:$0xff]
  %v1264 = vsel %vm579, %v733, 0
  %1266 = vmatprep.subr.mxu0 %v1224
  %1267 = vmatpush1.msra.mxu0 %v1223
  %1268 = vmatprep.subr.mxu0 %v1228
  %1269 = vmatpush1.msra.mxu0 %v1227
  %1270 = vmatprep.subr.mxu0 %v1232
  %1271 = vmatpush1.msra.mxu0 %v1231
  %1272 = vmatprep.subr.mxu0 %v1236
  %1273 = vmatpush1.msra.mxu0 %v1235
  %1274 = vmatprep.subr.mxu0 %v1240
  %1275 = vmatpush1.msra.mxu0 %v1239
  %1276 = vmatprep.subr.mxu0 %v1244
  %1277 = vmatpush1.msra.mxu0 %v1243
  %1278 = vmatprep.subr.mxu0 %v1248
  %1279 = vmatpush1.msra.mxu0 %v1247
  %1280 = vmatprep.subr.mxu0 %v1252
  %1281 = vmatpush1.msra.mxu0 %v1251
  %1282 = vmatprep.subr.mxu0 %v1256
  %1283 = vmatpush1.msra.mxu0 %v1255
  %1284 = vmatprep.subr.mxu0 %v1260
  %1285 = vmatpush1.msra.mxu0 %v1259
  %1286 = vmatprep.subr.mxu0 0.0
  %1287 = vmatpush1.msra.mxu0 0.0
  %1288 = vmatprep.subr.mxu0 0.0
  %1289 = vmatpush1.msra.mxu0 0.0
  %1290 = vmatprep.subr.mxu0 0.0
  %1291 = vmatpush1.msra.mxu0 0.0
  %1292 = vmatprep.subr.mxu0 0.0
  %1293 = vmatpush1.msra.mxu0 0.0
  %1294 = vmatprep.subr.mxu0 0.0
  %1295 = vmatpush1.msra.mxu0 0.0
  %1296 = vmatprep.subr.mxu0 0.0
  %1297 = vmatpush1.msra.mxu0 0.0
  %1298 = vmatprep.subr.mxu0 0.0
  %1299 = vmatpush1.msra.mxu0 0.0
  %1300 = vmatprep.subr.mxu0 0.0
  %1301 = vmatpush1.msra.mxu0 0.0
  %1302 = vmatprep.subr.mxu0 0.0
  %1303 = vmatpush1.msra.mxu0 0.0
  %1304 = vmatprep.subr.mxu0 0.0
  %1305 = vmatpush1.msra.mxu0 0.0
  %1306 = vmatprep.subr.mxu0 0.0
  %1307 = vmatpush1.msra.mxu0 0.0
  %1308 = vmatprep.subr.mxu0 0.0
  %1309 = vmatpush1.msra.mxu0 0.0
  %1310 = vmatprep.subr.mxu0 0.0
  %1311 = vmatpush1.msra.mxu0 0.0
  %1312 = vmatprep.subr.mxu0 0.0
  %1313 = vmatpush1.msra.mxu0 0.0
  %1314 = vmatprep.subr.mxu0 0.0
  %1315 = vmatpush1.msra.mxu0 0.0
  %1316 = vmatprep.subr.mxu0 0.0
  %1317 = vmatpush1.msra.mxu0 0.0
  %1318 = vmatprep.subr.mxu0 0.0
  %1319 = vmatpush1.msra.mxu0 0.0
  %1320 = vmatprep.subr.mxu0 0.0
  %1321 = vmatpush1.msra.mxu0 0.0
  %1322 = vmatprep.subr.mxu0 0.0
  %1323 = vmatpush1.msra.mxu0 0.0
  %1324 = vmatprep.subr.mxu0 0.0
  %1325 = vmatpush1.msra.mxu0 0.0
  %1326 = vmatprep.subr.mxu0 0.0
  %1327 = vmatpush1.msra.mxu0 0.0
  %1328 = vmatprep.subr.mxu0 0.0
  %1329 = vmatpush1.msra.mxu0 0.0
  %1330 = vmatprep.mubr.f32.mxu0 0.0
  %1331 = vmatmul.mubr.f32.gmra.mrb[0].mxu0 %v1264
  %v1332 = vpop.f32.mrb[0].mxu0
  %v1333 = vadd.f32 0.0, %v1332
  %v1334 = vpop.f32.mrb[0].mxu0
  %v1335 = vadd.f32 0.0, %v1334
  %1336 = vdwg.mxu0
  %1337 = vmatprep.subr.mxu0 %v1226
  %1338 = vmatpush1.msra.mxu0 %v1225
  %1339 = vmatprep.subr.mxu0 %v1230
  %1340 = vmatpush1.msra.mxu0 %v1229
  %1341 = vmatprep.subr.mxu0 %v1234
  %1342 = vmatpush1.msra.mxu0 %v1233
  %1343 = vmatprep.subr.mxu0 %v1238
  %1344 = vmatpush1.msra.mxu0 %v1237
  %1345 = vmatprep.subr.mxu0 %v1242
  %1346 = vmatpush1.msra.mxu0 %v1241
  %1347 = vmatprep.subr.mxu0 %v1246
  %1348 = vmatpush1.msra.mxu0 %v1245
  %1349 = vmatprep.subr.mxu0 %v1250
  %1350 = vmatpush1.msra.mxu0 %v1249
  %1351 = vmatprep.subr.mxu0 %v1254
  %1352 = vmatpush1.msra.mxu0 %v1253
  %1353 = vmatprep.subr.mxu0 %v1258
  %1354 = vmatpush1.msra.mxu0 %v1257
  %1355 = vmatprep.subr.mxu0 %v1262
  %1356 = vmatpush1.msra.mxu0 %v1261
  %1357 = vmatprep.subr.mxu0 0.0
  %1358 = vmatpush1.msra.mxu0 0.0
  %1359 = vmatprep.subr.mxu0 0.0
  %1360 = vmatpush1.msra.mxu0 0.0
  %1361 = vmatprep.subr.mxu0 0.0
  %1362 = vmatpush1.msra.mxu0 0.0
  %1363 = vmatprep.subr.mxu0 0.0
  %1364 = vmatpush1.msra.mxu0 0.0
  %1365 = vmatprep.subr.mxu0 0.0
  %1366 = vmatpush1.msra.mxu0 0.0
  %1367 = vmatprep.subr.mxu0 0.0
  %1368 = vmatpush1.msra.mxu0 0.0
  %1369 = vmatprep.subr.mxu0 0.0
  %1370 = vmatpush1.msra.mxu0 0.0
  %1371 = vmatprep.subr.mxu0 0.0
  %1372 = vmatpush1.msra.mxu0 0.0
  %1373 = vmatprep.subr.mxu0 0.0
  %1374 = vmatpush1.msra.mxu0 0.0
  %1375 = vmatprep.subr.mxu0 0.0
  %1376 = vmatpush1.msra.mxu0 0.0
  %1377 = vmatprep.subr.mxu0 0.0
  %1378 = vmatpush1.msra.mxu0 0.0
  %1379 = vmatprep.subr.mxu0 0.0
  %1380 = vmatpush1.msra.mxu0 0.0
  %1381 = vmatprep.subr.mxu0 0.0
  %1382 = vmatpush1.msra.mxu0 0.0
  %1383 = vmatprep.subr.mxu0 0.0
  %1384 = vmatpush1.msra.mxu0 0.0
  %1385 = vmatprep.subr.mxu0 0.0
  %1386 = vmatpush1.msra.mxu0 0.0
  %1387 = vmatprep.subr.mxu0 0.0
  %1388 = vmatpush1.msra.mxu0 0.0
  %1389 = vmatprep.subr.mxu0 0.0
  %1390 = vmatpush1.msra.mxu0 0.0
  %1391 = vmatprep.subr.mxu0 0.0
  %1392 = vmatpush1.msra.mxu0 0.0
  %1393 = vmatprep.subr.mxu0 0.0
  %1394 = vmatpush1.msra.mxu0 0.0
  %1395 = vmatprep.subr.mxu0 0.0
  %1396 = vmatpush1.msra.mxu0 0.0
  %1397 = vmatprep.subr.mxu0 0.0
  %1398 = vmatpush1.msra.mxu0 0.0
  %1399 = vmatprep.subr.mxu0 0.0
  %1400 = vmatpush1.msra.mxu0 0.0
  %1401 = vmatprep.mubr.f32.mxu0 0.0
  %1402 = vmatmul.mubr.f32.gmra.mrb[0].mxu0 %v1264
  %v1403 = vpop.f32.mrb[0].mxu0
  %v1404 = vadd.f32 0.0, %v1403
  %v1405 = vpop.f32.mrb[0].mxu0
  %v1406 = vadd.f32 0.0, %v1405
  %1407 = vdwg.mxu0
  %v1408 = vld [vmem:[#allocation4] sm:$0xff]
  %v1411 = vcombine.low %v1333, %v1335
  %v1413 = vadd.f32 %v1408, %v1411
  %1414 = vst [vmem:[#allocation4] sm:$0xff] %v1413
  %v1415 = vld [vmem:[%s45] sm:$0xff]
  %v1418 = vcombine.low %v1404, %v1406
  %v1420 = vadd.f32 %v1415, %v1418
  %1421 = vst [vmem:[%s45] sm:$0xff] %v1420
  %s1422 = scalar_lea.vmem %s1, 4
  %v1423 = vld [vmem:[%s1422] sm:$0xf]
  %v1424 = vld [vmem:[#allocation4] sm:$0xff]
  %v1426 = vcombine.high %v1424, %v1424
  %1428 = vst [vmem:[#allocation2 + $0x8] sm:$0xf] %v1424
  %1429 = vst [vmem:[#allocation2 + $0x10] sm:$0xf] %v1426
  %v1430 = vld [vmem:[%s45] sm:$0xff]
  %v1432 = vcombine.high %v1430, %v1430
  %1434 = vst [vmem:[%s50 + $0x8] sm:$0xf] %v1430
  %1435 = vst [vmem:[%s50 + $0x10] sm:$0xf] %v1432
  %v1436 = vld [vmem:[#allocation2] sm:$0xff]
  %v1437 = vld [vmem:[#allocation2 + $0x8] sm:$0xff]
  %v1438 = vld [vmem:[#allocation2 + $0x10] sm:$0xff]
  %v1439 = vld [vmem:[%s56] sm:$0xff]
  %v1440 = vld [vmem:[%s56 + $0x8] sm:$0xff]
  %1443 = vrot.lane.b32.xlu0 %v1439, 111
  %v1444 = vpop.permute.xlu0 %1443
  %1445 = vrot.lane.b32.xlu0 %v1440, 111
  %v1446 = vpop.permute.xlu0 %1445
  %v1447 = vsel %vm65, %v1444, %v1446
  %v1451 = vmul.f32 %v1436, %v1444
  %v1452 = vmul.f32 %v1437, %v1447
  %v1453 = vmul.f32 %v1438, %v1446
  %1457 = vrot.lane.b32.xlu0 %v1451, 17
  %v1458 = vpop.permute.xlu0 %1457
  %1459 = vrot.lane.b32.xlu0 %v1452, 17
  %v1460 = vpop.permute.xlu0 %1459
  %1461 = vrot.lane.b32.xlu0 %v1453, 17
  %v1462 = vpop.permute.xlu0 %1461
  %v1463 = vsel %vm82, %v1458, %v1460
  %v1464 = vsel %vm82, %v1460, %v1462
  %1467 = vst [vmem:[#allocation3] sm:$0xff] %v1463
  %1468 = vst [vmem:[#allocation3 + $0x8] sm:$0xff] %v1464
  %v1469 = vld [vmem:[%s50] sm:$0xff]
  %v1470 = vld [vmem:[%s50 + $0x8] sm:$0xff]
  %v1471 = vld [vmem:[%s50 + $0x10] sm:$0xff]
  %v1472 = vld [vmem:[%s56] sm:$0xff]
  %v1473 = vld [vmem:[%s56 + $0x8] sm:$0xff]
  %1476 = vrot.lane.b32.xlu0 %v1472, 111
  %v1477 = vpop.permute.xlu0 %1476
  %1478 = vrot.lane.b32.xlu0 %v1473, 111
  %v1479 = vpop.permute.xlu0 %1478
  %v1480 = vsel %vm65, %v1477, %v1479
  %v1484 = vmul.f32 %v1469, %v1477
  %v1485 = vmul.f32 %v1470, %v1480
  %v1486 = vmul.f32 %v1471, %v1479
  %1490 = vrot.lane.b32.xlu0 %v1484, 17
  %v1491 = vpop.permute.xlu0 %1490
  %1492 = vrot.lane.b32.xlu0 %v1485, 17
  %v1493 = vpop.permute.xlu0 %1492
  %1494 = vrot.lane.b32.xlu0 %v1486, 17
  %v1495 = vpop.permute.xlu0 %1494
  %v1496 = vsel %vm82, %v1491, %v1493
  %v1497 = vsel %vm82, %v1493, %v1495
  %1500 = vst [vmem:[#allocation3 + $0x10] sm:$0xff] %v1496
  %1501 = vst [vmem:[#allocation3 + $0x18] sm:$0xff] %v1497
  %v1502 = vld [vmem:[#allocation2] sm:$0xff]
  %v1503 = vld [vmem:[#allocation2 + $0x8] sm:$0xff]
  %v1504 = vld [vmem:[#allocation2 + $0x10] sm:$0xff]
  %1508 = vrot.lane.b32.xlu0 %v1502, 16
  %v1509 = vpop.permute.xlu0 %1508
  %1510 = vrot.lane.b32.xlu0 %v1503, 16
  %v1511 = vpop.permute.xlu0 %1510
  %1512 = vrot.lane.b32.xlu0 %v1504, 16
  %v1513 = vpop.permute.xlu0 %1512
  %v1514 = vsel %vm134, %v1509, %v1511
  %v1515 = vsel %vm134, %v1511, %v1513
  %1518 = vst [vmem:[#allocation3 + $0x20] sm:$0xff] %v1514
  %1519 = vst [vmem:[#allocation3 + $0x28] sm:$0xff] %v1515
  %v1520 = vld [vmem:[%s50] sm:$0xff]
  %v1521 = vld [vmem:[%s50 + $0x8] sm:$0xff]
  %v1522 = vld [vmem:[%s50 + $0x10] sm:$0xff]
  %1526 = vrot.lane.b32.xlu0 %v1520, 16
  %v1527 = vpop.permute.xlu0 %1526
  %1528 = vrot.lane.b32.xlu0 %v1521, 16
  %v1529 = vpop.permute.xlu0 %1528
  %1530 = vrot.lane.b32.xlu0 %v1522, 16
  %v1531 = vpop.permute.xlu0 %1530
  %v1532 = vsel %vm134, %v1527, %v1529
  %v1533 = vsel %vm134, %v1529, %v1531
  %1536 = vst [vmem:[#allocation3 + $0x30] sm:$0xff] %v1532
  %1537 = vst [vmem:[#allocation3 + $0x38] sm:$0xff] %v1533
  %v1538 = vld [vmem:[#allocation2] sm:$0xff]
  %v1539 = vld [vmem:[#allocation2 + $0x8] sm:$0xff]
  %v1540 = vld [vmem:[#allocation2 + $0x10] sm:$0xff]
  %v1541 = vld [vmem:[%s162] sm:$0xff]
  %v1542 = vld [vmem:[%s162 + $0x8] sm:$0xff]
  %1545 = vrot.lane.b32.xlu0 %v1541, 113
  %v1546 = vpop.permute.xlu0 %1545
  %1547 = vrot.lane.b32.xlu0 %v1542, 113
  %v1548 = vpop.permute.xlu0 %1547
  %v1549 = vsel %vm171, %v1546, %v1548
  %v1553 = vmul.f32 %v1538, %v1546
  %v1554 = vmul.f32 %v1539, %v1549
  %v1555 = vmul.f32 %v1540, %v1548
  %1559 = vrot.lane.b32.xlu0 %v1553, 15
  %v1560 = vpop.permute.xlu0 %1559
  %1561 = vrot.lane.b32.xlu0 %v1554, 15
  %v1562 = vpop.permute.xlu0 %1561
  %1563 = vrot.lane.b32.xlu0 %v1555, 15
  %v1564 = vpop.permute.xlu0 %1563
  %v1565 = vsel %vm188, %v1560, %v1562
  %v1566 = vsel %vm188, %v1562, %v1564
  %1569 = vst [vmem:[#allocation3 + $0x40] sm:$0xff] %v1565
  %1570 = vst [vmem:[#allocation3 + $0x48] sm:$0xff] %v1566
  %v1571 = vld [vmem:[%s50] sm:$0xff]
  %v1572 = vld [vmem:[%s50 + $0x8] sm:$0xff]
  %v1573 = vld [vmem:[%s50 + $0x10] sm:$0xff]
  %v1574 = vld [vmem:[%s162] sm:$0xff]
  %v1575 = vld [vmem:[%s162 + $0x8] sm:$0xff]
  %1578 = vrot.lane.b32.xlu0 %v1574, 113
  %v1579 = vpop.permute.xlu0 %1578
  %1580 = vrot.lane.b32.xlu0 %v1575, 113
  %v1581 = vpop.permute.xlu0 %1580
  %v1582 = vsel %vm171, %v1579, %v1581
  %v1586 = vmul.f32 %v1571, %v1579
  %v1587 = vmul.f32 %v1572, %v1582
  %v1588 = vmul.f32 %v1573, %v1581
  %1592 = vrot.lane.b32.xlu0 %v1586, 15
  %v1593 = vpop.permute.xlu0 %1592
  %1594 = vrot.lane.b32.xlu0 %v1587, 15
  %v1595 = vpop.permute.xlu0 %1594
  %1596 = vrot.lane.b32.xlu0 %v1588, 15
  %v1597 = vpop.permute.xlu0 %1596
  %v1598 = vsel %vm188, %v1593, %v1595
  %v1599 = vsel %vm188, %v1595, %v1597
  %1602 = vst [vmem:[#allocation3 + $0x50] sm:$0xff] %v1598
  %1603 = vst [vmem:[#allocation3 + $0x58] sm:$0xff] %v1599
  %v1604 = vld [vmem:[#allocation2] sm:$0xff]
  %v1605 = vld [vmem:[#allocation2 + $0x8] sm:$0xff]
  %v1606 = vld [vmem:[#allocation2 + $0x10] sm:$0xff]
  %v1607 = vld [vmem:[%s56] sm:$0xff]
  %v1608 = vld [vmem:[%s56 + $0x8] sm:$0xff]
  %1611 = vrot.lane.b32.xlu0 %v1607, 127
  %v1612 = vpop.permute.xlu0 %1611
  %1613 = vrot.lane.b32.xlu0 %v1608, 127
  %v1614 = vpop.permute.xlu0 %1613
  %v1615 = vsel %vm239, %v1612, %v1614
  %v1619 = vmul.f32 %v1604, %v1612
  %v1620 = vmul.f32 %v1605, %v1615
  %v1621 = vmul.f32 %v1606, %v1614
  %1625 = vrot.lane.b32.xlu0 %v1619, 1
  %v1626 = vpop.permute.xlu0 %1625
  %1627 = vrot.lane.b32.xlu0 %v1620, 1
  %v1628 = vpop.permute.xlu0 %1627
  %1629 = vrot.lane.b32.xlu0 %v1621, 1
  %v1630 = vpop.permute.xlu0 %1629
  %v1631 = vsel %vm256, %v1626, %v1628
  %v1632 = vsel %vm256, %v1628, %v1630
  %1635 = vst [vmem:[#allocation3 + $0x60] sm:$0xff] %v1631
  %1636 = vst [vmem:[#allocation3 + $0x68] sm:$0xff] %v1632
  %v1637 = vld [vmem:[%s50] sm:$0xff]
  %v1638 = vld [vmem:[%s50 + $0x8] sm:$0xff]
  %v1639 = vld [vmem:[%s50 + $0x10] sm:$0xff]
  %v1640 = vld [vmem:[%s56] sm:$0xff]
  %v1641 = vld [vmem:[%s56 + $0x8] sm:$0xff]
  %1644 = vrot.lane.b32.xlu0 %v1640, 127
  %v1645 = vpop.permute.xlu0 %1644
  %1646 = vrot.lane.b32.xlu0 %v1641, 127
  %v1647 = vpop.permute.xlu0 %1646
  %v1648 = vsel %vm239, %v1645, %v1647
  %v1652 = vmul.f32 %v1637, %v1645
  %v1653 = vmul.f32 %v1638, %v1648
  %v1654 = vmul.f32 %v1639, %v1647
  %1658 = vrot.lane.b32.xlu0 %v1652, 1
  %v1659 = vpop.permute.xlu0 %1658
  %1660 = vrot.lane.b32.xlu0 %v1653, 1
  %v1661 = vpop.permute.xlu0 %1660
  %1662 = vrot.lane.b32.xlu0 %v1654, 1
  %v1663 = vpop.permute.xlu0 %1662
  %v1664 = vsel %vm256, %v1659, %v1661
  %v1665 = vsel %vm256, %v1661, %v1663
  %1668 = vst [vmem:[#allocation3 + $0x70] sm:$0xff] %v1664
  %1669 = vst [vmem:[#allocation3 + $0x78] sm:$0xff] %v1665
  %v1670 = vld [vmem:[#allocation2 + $0x8] sm:$0xff]
  %v1671 = vld [vmem:[#allocation2 + $0x10] sm:$0xff]
  %1672 = vst [vmem:[#allocation3 + $0x80] sm:$0xff] %v1670
  %1673 = vst [vmem:[#allocation3 + $0x88] sm:$0xff] %v1671
  %v1674 = vld [vmem:[%s50 + $0x8] sm:$0xff]
  %v1675 = vld [vmem:[%s50 + $0x10] sm:$0xff]
  %1676 = vst [vmem:[#allocation3 + $0x90] sm:$0xff] %v1674
  %1677 = vst [vmem:[#allocation3 + $0x98] sm:$0xff] %v1675
  %v1678 = vld [vmem:[#allocation2 + $0x8] sm:$0xff]
  %v1679 = vld [vmem:[#allocation2 + $0x10] sm:$0xff]
  %v1680 = vld [vmem:[#allocation2 + $0x18] sm:$0xff]
  %v1681 = vld [vmem:[%s162] sm:$0xff]
  %v1682 = vld [vmem:[%s162 + $0x8] sm:$0xff]
  %1685 = vrot.lane.b32.xlu0 %v1681, 1
  %v1686 = vpop.permute.xlu0 %1685
  %1687 = vrot.lane.b32.xlu0 %v1682, 1
  %v1688 = vpop.permute.xlu0 %1687
  %v1689 = vsel %vm256, %v1686, %v1688
  %v1693 = vmul.f32 %v1678, %v1686
  %v1694 = vmul.f32 %v1679, %v1689
  %v1695 = vmul.f32 %v1680, %v1688
  %1699 = vrot.lane.b32.xlu0 %v1693, 127
  %v1700 = vpop.permute.xlu0 %1699
  %1701 = vrot.lane.b32.xlu0 %v1694, 127
  %v1702 = vpop.permute.xlu0 %1701
  %1703 = vrot.lane.b32.xlu0 %v1695, 127
  %v1704 = vpop.permute.xlu0 %1703
  %v1705 = vsel %vm239, %v1700, %v1702
  %v1706 = vsel %vm239, %v1702, %v1704
  %1709 = vst [vmem:[#allocation3 + $0xa0] sm:$0xff] %v1705
  %1710 = vst [vmem:[#allocation3 + $0xa8] sm:$0xff] %v1706
  %v1711 = vld [vmem:[%s50 + $0x8] sm:$0xff]
  %v1712 = vld [vmem:[%s50 + $0x10] sm:$0xff]
  %v1713 = vld [vmem:[%s50 + $0x18] sm:$0xff]
  %v1714 = vld [vmem:[%s162] sm:$0xff]
  %v1715 = vld [vmem:[%s162 + $0x8] sm:$0xff]
  %1718 = vrot.lane.b32.xlu0 %v1714, 1
  %v1719 = vpop.permute.xlu0 %1718
  %1720 = vrot.lane.b32.xlu0 %v1715, 1
  %v1721 = vpop.permute.xlu0 %1720
  %v1722 = vsel %vm256, %v1719, %v1721
  %v1726 = vmul.f32 %v1711, %v1719
  %v1727 = vmul.f32 %v1712, %v1722
  %v1728 = vmul.f32 %v1713, %v1721
  %1732 = vrot.lane.b32.xlu0 %v1726, 127
  %v1733 = vpop.permute.xlu0 %1732
  %1734 = vrot.lane.b32.xlu0 %v1727, 127
  %v1735 = vpop.permute.xlu0 %1734
  %1736 = vrot.lane.b32.xlu0 %v1728, 127
  %v1737 = vpop.permute.xlu0 %1736
  %v1738 = vsel %vm239, %v1733, %v1735
  %v1739 = vsel %vm239, %v1735, %v1737
  %1742 = vst [vmem:[#allocation3 + $0xb0] sm:$0xff] %v1738
  %1743 = vst [vmem:[#allocation3 + $0xb8] sm:$0xff] %v1739
  %v1744 = vld [vmem:[#allocation2 + $0x8] sm:$0xff]
  %v1745 = vld [vmem:[#allocation2 + $0x10] sm:$0xff]
  %v1746 = vld [vmem:[#allocation2 + $0x18] sm:$0xff]
  %v1747 = vld [vmem:[%s56] sm:$0xff]
  %v1748 = vld [vmem:[%s56 + $0x8] sm:$0xff]
  %1751 = vrot.lane.b32.xlu0 %v1747, 15
  %v1752 = vpop.permute.xlu0 %1751
  %1753 = vrot.lane.b32.xlu0 %v1748, 15
  %v1754 = vpop.permute.xlu0 %1753
  %v1755 = vsel %vm188, %v1752, %v1754
  %v1759 = vmul.f32 %v1744, %v1752
  %v1760 = vmul.f32 %v1745, %v1755
  %v1761 = vmul.f32 %v1746, %v1754
  %1765 = vrot.lane.b32.xlu0 %v1759, 113
  %v1766 = vpop.permute.xlu0 %1765
  %1767 = vrot.lane.b32.xlu0 %v1760, 113
  %v1768 = vpop.permute.xlu0 %1767
  %1769 = vrot.lane.b32.xlu0 %v1761, 113
  %v1770 = vpop.permute.xlu0 %1769
  %v1771 = vsel %vm171, %v1766, %v1768
  %v1772 = vsel %vm171, %v1768, %v1770
  %1775 = vst [vmem:[#allocation3 + $0xc0] sm:$0xff] %v1771
  %1776 = vst [vmem:[#allocation3 + $0xc8] sm:$0xff] %v1772
  %v1777 = vld [vmem:[%s50 + $0x8] sm:$0xff]
  %v1778 = vld [vmem:[%s50 + $0x10] sm:$0xff]
  %v1779 = vld [vmem:[%s50 + $0x18] sm:$0xff]
  %v1780 = vld [vmem:[%s56] sm:$0xff]
  %v1781 = vld [vmem:[%s56 + $0x8] sm:$0xff]
  %1784 = vrot.lane.b32.xlu0 %v1780, 15
  %v1785 = vpop.permute.xlu0 %1784
  %1786 = vrot.lane.b32.xlu0 %v1781, 15
  %v1787 = vpop.permute.xlu0 %1786
  %v1788 = vsel %vm188, %v1785, %v1787
  %v1792 = vmul.f32 %v1777, %v1785
  %v1793 = vmul.f32 %v1778, %v1788
  %v1794 = vmul.f32 %v1779, %v1787
  %1798 = vrot.lane.b32.xlu0 %v1792, 113
  %v1799 = vpop.permute.xlu0 %1798
  %1800 = vrot.lane.b32.xlu0 %v1793, 113
  %v1801 = vpop.permute.xlu0 %1800
  %1802 = vrot.lane.b32.xlu0 %v1794, 113
  %v1803 = vpop.permute.xlu0 %1802
  %v1804 = vsel %vm171, %v1799, %v1801
  %v1805 = vsel %vm171, %v1801, %v1803
  %1808 = vst [vmem:[#allocation3 + $0xd0] sm:$0xff] %v1804
  %1809 = vst [vmem:[#allocation3 + $0xd8] sm:$0xff] %v1805
  %v1810 = vld [vmem:[#allocation2 + $0x8] sm:$0xff]
  %v1811 = vld [vmem:[#allocation2 + $0x10] sm:$0xff]
  %v1812 = vld [vmem:[#allocation2 + $0x18] sm:$0xff]
  %1816 = vrot.lane.b32.xlu0 %v1810, 112
  %v1817 = vpop.permute.xlu0 %1816
  %1818 = vrot.lane.b32.xlu0 %v1811, 112
  %v1819 = vpop.permute.xlu0 %1818
  %1820 = vrot.lane.b32.xlu0 %v1812, 112
  %v1821 = vpop.permute.xlu0 %1820
  %v1822 = vsel %vm448, %v1817, %v1819
  %v1823 = vsel %vm448, %v1819, %v1821
  %1826 = vst [vmem:[#allocation3 + $0xe0] sm:$0xff] %v1822
  %1827 = vst [vmem:[#allocation3 + $0xe8] sm:$0xff] %v1823
  %v1828 = vld [vmem:[%s50 + $0x8] sm:$0xff]
  %v1829 = vld [vmem:[%s50 + $0x10] sm:$0xff]
  %v1830 = vld [vmem:[%s50 + $0x18] sm:$0xff]
  %1834 = vrot.lane.b32.xlu0 %v1828, 112
  %v1835 = vpop.permute.xlu0 %1834
  %1836 = vrot.lane.b32.xlu0 %v1829, 112
  %v1837 = vpop.permute.xlu0 %1836
  %1838 = vrot.lane.b32.xlu0 %v1830, 112
  %v1839 = vpop.permute.xlu0 %1838
  %v1840 = vsel %vm448, %v1835, %v1837
  %v1841 = vsel %vm448, %v1837, %v1839
  %1844 = vst [vmem:[#allocation3 + $0xf0] sm:$0xff] %v1840
  %1845 = vst [vmem:[#allocation3 + $0xf8] sm:$0xff] %v1841
  %v1846 = vld [vmem:[#allocation2 + $0x8] sm:$0xff]
  %v1847 = vld [vmem:[#allocation2 + $0x10] sm:$0xff]
  %v1848 = vld [vmem:[#allocation2 + $0x18] sm:$0xff]
  %v1849 = vld [vmem:[%s162] sm:$0xff]
  %v1850 = vld [vmem:[%s162 + $0x8] sm:$0xff]
  %1853 = vrot.lane.b32.xlu0 %v1849, 17
  %v1854 = vpop.permute.xlu0 %1853
  %1855 = vrot.lane.b32.xlu0 %v1850, 17
  %v1856 = vpop.permute.xlu0 %1855
  %v1857 = vsel %vm82, %v1854, %v1856
  %v1861 = vmul.f32 %v1846, %v1854
  %v1862 = vmul.f32 %v1847, %v1857
  %v1863 = vmul.f32 %v1848, %v1856
  %1867 = vrot.lane.b32.xlu0 %v1861, 111
  %v1868 = vpop.permute.xlu0 %1867
  %1869 = vrot.lane.b32.xlu0 %v1862, 111
  %v1870 = vpop.permute.xlu0 %1869
  %1871 = vrot.lane.b32.xlu0 %v1863, 111
  %v1872 = vpop.permute.xlu0 %1871
  %v1873 = vsel %vm65, %v1868, %v1870
  %v1874 = vsel %vm65, %v1870, %v1872
  %1877 = vst [vmem:[#allocation3 + $0x100] sm:$0xff] %v1873
  %1878 = vst [vmem:[#allocation3 + $0x108] sm:$0xff] %v1874
  %v1879 = vld [vmem:[%s50 + $0x8] sm:$0xff]
  %v1880 = vld [vmem:[%s50 + $0x10] sm:$0xff]
  %v1881 = vld [vmem:[%s50 + $0x18] sm:$0xff]
  %v1882 = vld [vmem:[%s162] sm:$0xff]
  %v1883 = vld [vmem:[%s162 + $0x8] sm:$0xff]
  %1886 = vrot.lane.b32.xlu0 %v1882, 17
  %v1887 = vpop.permute.xlu0 %1886
  %1888 = vrot.lane.b32.xlu0 %v1883, 17
  %v1889 = vpop.permute.xlu0 %1888
  %v1890 = vsel %vm82, %v1887, %v1889
  %v1894 = vmul.f32 %v1879, %v1887
  %v1895 = vmul.f32 %v1880, %v1890
  %v1896 = vmul.f32 %v1881, %v1889
  %1900 = vrot.lane.b32.xlu0 %v1894, 111
  %v1901 = vpop.permute.xlu0 %1900
  %1902 = vrot.lane.b32.xlu0 %v1895, 111
  %v1903 = vpop.permute.xlu0 %1902
  %1904 = vrot.lane.b32.xlu0 %v1896, 111
  %v1905 = vpop.permute.xlu0 %1904
  %v1906 = vsel %vm65, %v1901, %v1903
  %v1907 = vsel %vm65, %v1903, %v1905
  %1910 = vst [vmem:[#allocation3 + $0x110] sm:$0xff] %v1906
  %1911 = vst [vmem:[#allocation3 + $0x118] sm:$0xff] %v1907
  %v1912 = vld [vmem:[#allocation3] sm:$0xff]
  %v1913 = vld [vmem:[#allocation3 + $0x8] sm:$0xff]
  %v1914 = vld [vmem:[#allocation3 + $0x10] sm:$0xff]
  %v1915 = vld [vmem:[#allocation3 + $0x18] sm:$0xff]
  %v1916 = vld [vmem:[#allocation3 + $0x20] sm:$0xff]
  %v1917 = vld [vmem:[#allocation3 + $0x28] sm:$0xff]
  %v1918 = vld [vmem:[#allocation3 + $0x30] sm:$0xff]
  %v1919 = vld [vmem:[#allocation3 + $0x38] sm:$0xff]
  %v1920 = vld [vmem:[#allocation3 + $0x40] sm:$0xff]
  %v1921 = vld [vmem:[#allocation3 + $0x48] sm:$0xff]
  %v1922 = vld [vmem:[#allocation3 + $0x50] sm:$0xff]
  %v1923 = vld [vmem:[#allocation3 + $0x58] sm:$0xff]
  %v1924 = vld [vmem:[#allocation3 + $0x60] sm:$0xff]
  %v1925 = vld [vmem:[#allocation3 + $0x68] sm:$0xff]
  %v1926 = vld [vmem:[#allocation3 + $0x70] sm:$0xff]
  %v1927 = vld [vmem:[#allocation3 + $0x78] sm:$0xff]
  %v1928 = vld [vmem:[#allocation3 + $0x80] sm:$0xff]
  %v1929 = vld [vmem:[#allocation3 + $0x88] sm:$0xff]
  %v1930 = vld [vmem:[#allocation3 + $0x90] sm:$0xff]
  %v1931 = vld [vmem:[#allocation3 + $0x98] sm:$0xff]
  %v1932 = vld [vmem:[#allocation3 + $0xa0] sm:$0xff]
  %v1933 = vld [vmem:[#allocation3 + $0xa8] sm:$0xff]
  %v1934 = vld [vmem:[#allocation3 + $0xb0] sm:$0xff]
  %v1935 = vld [vmem:[#allocation3 + $0xb8] sm:$0xff]
  %v1936 = vld [vmem:[#allocation3 + $0xc0] sm:$0xff]
  %v1937 = vld [vmem:[#allocation3 + $0xc8] sm:$0xff]
  %v1938 = vld [vmem:[#allocation3 + $0xd0] sm:$0xff]
  %v1939 = vld [vmem:[#allocation3 + $0xd8] sm:$0xff]
  %v1940 = vld [vmem:[#allocation3 + $0xe0] sm:$0xff]
  %v1941 = vld [vmem:[#allocation3 + $0xe8] sm:$0xff]
  %v1942 = vld [vmem:[#allocation3 + $0xf0] sm:$0xff]
  %v1943 = vld [vmem:[#allocation3 + $0xf8] sm:$0xff]
  %v1944 = vld [vmem:[#allocation3 + $0x100] sm:$0xff]
  %v1945 = vld [vmem:[#allocation3 + $0x108] sm:$0xff]
  %v1946 = vld [vmem:[#allocation3 + $0x110] sm:$0xff]
  %v1947 = vld [vmem:[#allocation3 + $0x118] sm:$0xff]
  %v1948 = vld [vmem:[#allocation3 + $0x120] sm:$0xff]
  %v1949 = vld [vmem:[#allocation3 + $0x128] sm:$0xff]
  %v1950 = vld [vmem:[#allocation3 + $0x130] sm:$0xff]
  %v1951 = vld [vmem:[#allocation3 + $0x138] sm:$0xff]
  %v1953 = vsel %vm579, %v1423, 0
  %1955 = vmatprep.subr.mxu0 %v1913
  %1956 = vmatpush1.msra.mxu0 %v1912
  %1957 = vmatprep.subr.mxu0 %v1917
  %1958 = vmatpush1.msra.mxu0 %v1916
  %1959 = vmatprep.subr.mxu0 %v1921
  %1960 = vmatpush1.msra.mxu0 %v1920
  %1961 = vmatprep.subr.mxu0 %v1925
  %1962 = vmatpush1.msra.mxu0 %v1924
  %1963 = vmatprep.subr.mxu0 %v1929
  %1964 = vmatpush1.msra.mxu0 %v1928
  %1965 = vmatprep.subr.mxu0 %v1933
  %1966 = vmatpush1.msra.mxu0 %v1932
  %1967 = vmatprep.subr.mxu0 %v1937
  %1968 = vmatpush1.msra.mxu0 %v1936
  %1969 = vmatprep.subr.mxu0 %v1941
  %1970 = vmatpush1.msra.mxu0 %v1940
  %1971 = vmatprep.subr.mxu0 %v1945
  %1972 = vmatpush1.msra.mxu0 %v1944
  %1973 = vmatprep.subr.mxu0 %v1949
  %1974 = vmatpush1.msra.mxu0 %v1948
  %1975 = vmatprep.subr.mxu0 0.0
  %1976 = vmatpush1.msra.mxu0 0.0
  %1977 = vmatprep.subr.mxu0 0.0
  %1978 = vmatpush1.msra.mxu0 0.0
  %1979 = vmatprep.subr.mxu0 0.0
  %1980 = vmatpush1.msra.mxu0 0.0
  %1981 = vmatprep.subr.mxu0 0.0
  %1982 = vmatpush1.msra.mxu0 0.0
  %1983 = vmatprep.subr.mxu0 0.0
  %1984 = vmatpush1.msra.mxu0 0.0
  %1985 = vmatprep.subr.mxu0 0.0
  %1986 = vmatpush1.msra.mxu0 0.0
  %1987 = vmatprep.subr.mxu0 0.0
  %1988 = vmatpush1.msra.mxu0 0.0
  %1989 = vmatprep.subr.mxu0 0.0
  %1990 = vmatpush1.msra.mxu0 0.0
  %1991 = vmatprep.subr.mxu0 0.0
  %1992 = vmatpush1.msra.mxu0 0.0
  %1993 = vmatprep.subr.mxu0 0.0
  %1994 = vmatpush1.msra.mxu0 0.0
  %1995 = vmatprep.subr.mxu0 0.0
  %1996 = vmatpush1.msra.mxu0 0.0
  %1997 = vmatprep.subr.mxu0 0.0
  %1998 = vmatpush1.msra.mxu0 0.0
  %1999 = vmatprep.subr.mxu0 0.0
  %2000 = vmatpush1.msra.mxu0 0.0
  %2001 = vmatprep.subr.mxu0 0.0
  %2002 = vmatpush1.msra.mxu0 0.0
  %2003 = vmatprep.subr.mxu0 0.0
  %2004 = vmatpush1.msra.mxu0 0.0
  %2005 = vmatprep.subr.mxu0 0.0
  %2006 = vmatpush1.msra.mxu0 0.0
  %2007 = vmatprep.subr.mxu0 0.0
  %2008 = vmatpush1.msra.mxu0 0.0
  %2009 = vmatprep.subr.mxu0 0.0
  %2010 = vmatpush1.msra.mxu0 0.0
  %2011 = vmatprep.subr.mxu0 0.0
  %2012 = vmatpush1.msra.mxu0 0.0
  %2013 = vmatprep.subr.mxu0 0.0
  %2014 = vmatpush1.msra.mxu0 0.0
  %2015 = vmatprep.subr.mxu0 0.0
  %2016 = vmatpush1.msra.mxu0 0.0
  %2017 = vmatprep.subr.mxu0 0.0
  %2018 = vmatpush1.msra.mxu0 0.0
  %2019 = vmatprep.mubr.f32.mxu0 0.0
  %2020 = vmatmul.mubr.f32.gmra.mrb[0].mxu0 %v1953
  %v2021 = vpop.f32.mrb[0].mxu0
  %v2022 = vadd.f32 0.0, %v2021
  %v2023 = vpop.f32.mrb[0].mxu0
  %v2024 = vadd.f32 0.0, %v2023
  %2025 = vdwg.mxu0
  %2026 = vmatprep.subr.mxu0 %v1915
  %2027 = vmatpush1.msra.mxu0 %v1914
  %2028 = vmatprep.subr.mxu0 %v1919
  %2029 = vmatpush1.msra.mxu0 %v1918
  %2030 = vmatprep.subr.mxu0 %v1923
  %2031 = vmatpush1.msra.mxu0 %v1922
  %2032 = vmatprep.subr.mxu0 %v1927
  %2033 = vmatpush1.msra.mxu0 %v1926
  %2034 = vmatprep.subr.mxu0 %v1931
  %2035 = vmatpush1.msra.mxu0 %v1930
  %2036 = vmatprep.subr.mxu0 %v1935
  %2037 = vmatpush1.msra.mxu0 %v1934
  %2038 = vmatprep.subr.mxu0 %v1939
  %2039 = vmatpush1.msra.mxu0 %v1938
  %2040 = vmatprep.subr.mxu0 %v1943
  %2041 = vmatpush1.msra.mxu0 %v1942
  %2042 = vmatprep.subr.mxu0 %v1947
  %2043 = vmatpush1.msra.mxu0 %v1946
  %2044 = vmatprep.subr.mxu0 %v1951
  %2045 = vmatpush1.msra.mxu0 %v1950
  %2046 = vmatprep.subr.mxu0 0.0
  %2047 = vmatpush1.msra.mxu0 0.0
  %2048 = vmatprep.subr.mxu0 0.0
  %2049 = vmatpush1.msra.mxu0 0.0
  %2050 = vmatprep.subr.mxu0 0.0
  %2051 = vmatpush1.msra.mxu0 0.0
  %2052 = vmatprep.subr.mxu0 0.0
  %2053 = vmatpush1.msra.mxu0 0.0
  %2054 = vmatprep.subr.mxu0 0.0
  %2055 = vmatpush1.msra.mxu0 0.0
  %2056 = vmatprep.subr.mxu0 0.0
  %2057 = vmatpush1.msra.mxu0 0.0
  %2058 = vmatprep.subr.mxu0 0.0
  %2059 = vmatpush1.msra.mxu0 0.0
  %2060 = vmatprep.subr.mxu0 0.0
  %2061 = vmatpush1.msra.mxu0 0.0
  %2062 = vmatprep.subr.mxu0 0.0
  %2063 = vmatpush1.msra.mxu0 0.0
  %2064 = vmatprep.subr.mxu0 0.0
  %2065 = vmatpush1.msra.mxu0 0.0
  %2066 = vmatprep.subr.mxu0 0.0
  %2067 = vmatpush1.msra.mxu0 0.0
  %2068 = vmatprep.subr.mxu0 0.0
  %2069 = vmatpush1.msra.mxu0 0.0
  %2070 = vmatprep.subr.mxu0 0.0
  %2071 = vmatpush1.msra.mxu0 0.0
  %2072 = vmatprep.subr.mxu0 0.0
  %2073 = vmatpush1.msra.mxu0 0.0
  %2074 = vmatprep.subr.mxu0 0.0
  %2075 = vmatpush1.msra.mxu0 0.0
  %2076 = vmatprep.subr.mxu0 0.0
  %2077 = vmatpush1.msra.mxu0 0.0
  %2078 = vmatprep.subr.mxu0 0.0
  %2079 = vmatpush1.msra.mxu0 0.0
  %2080 = vmatprep.subr.mxu0 0.0
  %2081 = vmatpush1.msra.mxu0 0.0
  %2082 = vmatprep.subr.mxu0 0.0
  %2083 = vmatpush1.msra.mxu0 0.0
  %2084 = vmatprep.subr.mxu0 0.0
  %2085 = vmatpush1.msra.mxu0 0.0
  %2086 = vmatprep.subr.mxu0 0.0
  %2087 = vmatpush1.msra.mxu0 0.0
  %2088 = vmatprep.subr.mxu0 0.0
  %2089 = vmatpush1.msra.mxu0 0.0
  %2090 = vmatprep.mubr.f32.mxu0 0.0
  %2091 = vmatmul.mubr.f32.gmra.mrb[0].mxu0 %v1953
  %v2092 = vpop.f32.mrb[0].mxu0
  %v2093 = vadd.f32 0.0, %v2092
  %v2094 = vpop.f32.mrb[0].mxu0
  %v2095 = vadd.f32 0.0, %v2094
  %2096 = vdwg.mxu0
  %v2097 = vmul.f32 %v2022, 0.1
  %v2098 = vmul.f32 %v2024, 0.1
  %v2099 = vmul.f32 %v2093, 0.1
  %v2100 = vmul.f32 %v2095, 0.1
  %v2101 = vmax.f32 %v2022, %v2097
  %v2102 = vmax.f32 %v2024, %v2098
  %v2103 = vmax.f32 %v2093, %v2099
  %v2104 = vmax.f32 %v2095, %v2100
  %s2105 = scalar_lea.vmem %s2, 4
  %v2106 = vld [vmem:[%s2105] sm:$0xf]
  %2107 = vst [vmem:[#allocation2 + $0x8] sm:$0xf] %v2101
  %2108 = vst [vmem:[#allocation2 + $0x10] sm:$0xf] %v2102
  %2109 = vst [vmem:[%s50 + $0x8] sm:$0xf] %v2103
  %2110 = vst [vmem:[%s50 + $0x10] sm:$0xf] %v2104
  %v2111 = vld [vmem:[#allocation2] sm:$0xff]
  %v2112 = vld [vmem:[#allocation2 + $0x8] sm:$0xff]
  %v2113 = vld [vmem:[#allocation2 + $0x10] sm:$0xff]
  %v2114 = vld [vmem:[%s3] sm:$0xff]
  %v2115 = vld [vmem:[%s3 + $0x8] sm:$0xff]
  %2118 = vrot.lane.b32.xlu0 %v2114, 94
  %v2119 = vpop.permute.xlu0 %2118
  %2120 = vrot.lane.b32.xlu0 %v2115, 94
  %v2121 = vpop.permute.xlu0 %2120
  %v2122 = vsel %vm749, %v2119, %v2121
  %v2126 = vmul.f32 %v2111, %v2119
  %v2127 = vmul.f32 %v2112, %v2122
  %v2128 = vmul.f32 %v2113, %v2121
  %2132 = vrot.lane.b32.xlu0 %v2126, 34
  %v2133 = vpop.permute.xlu0 %2132
  %2134 = vrot.lane.b32.xlu0 %v2127, 34
  %v2135 = vpop.permute.xlu0 %2134
  %2136 = vrot.lane.b32.xlu0 %v2128, 34
  %v2137 = vpop.permute.xlu0 %2136
  %v2138 = vsel %vm766, %v2133, %v2135
  %v2139 = vsel %vm766, %v2135, %v2137
  %2142 = vst [vmem:[#allocation3] sm:$0xff] %v2138
  %2143 = vst [vmem:[#allocation3 + $0x8] sm:$0xff] %v2139
  %v2144 = vld [vmem:[%s50] sm:$0xff]
  %v2145 = vld [vmem:[%s50 + $0x8] sm:$0xff]
  %v2146 = vld [vmem:[%s50 + $0x10] sm:$0xff]
  %v2147 = vld [vmem:[%s3] sm:$0xff]
  %v2148 = vld [vmem:[%s3 + $0x8] sm:$0xff]
  %2151 = vrot.lane.b32.xlu0 %v2147, 94
  %v2152 = vpop.permute.xlu0 %2151
  %2153 = vrot.lane.b32.xlu0 %v2148, 94
  %v2154 = vpop.permute.xlu0 %2153
  %v2155 = vsel %vm749, %v2152, %v2154
  %v2159 = vmul.f32 %v2144, %v2152
  %v2160 = vmul.f32 %v2145, %v2155
  %v2161 = vmul.f32 %v2146, %v2154
  %2165 = vrot.lane.b32.xlu0 %v2159, 34
  %v2166 = vpop.permute.xlu0 %2165
  %2167 = vrot.lane.b32.xlu0 %v2160, 34
  %v2168 = vpop.permute.xlu0 %2167
  %2169 = vrot.lane.b32.xlu0 %v2161, 34
  %v2170 = vpop.permute.xlu0 %2169
  %v2171 = vsel %vm766, %v2166, %v2168
  %v2172 = vsel %vm766, %v2168, %v2170
  %2175 = vst [vmem:[#allocation3 + $0x10] sm:$0xff] %v2171
  %2176 = vst [vmem:[#allocation3 + $0x18] sm:$0xff] %v2172
  %v2177 = vld [vmem:[#allocation2] sm:$0xff]
  %v2178 = vld [vmem:[#allocation2 + $0x8] sm:$0xff]
  %v2179 = vld [vmem:[#allocation2 + $0x10] sm:$0xff]
  %2183 = vrot.lane.b32.xlu0 %v2177, 32
  %v2184 = vpop.permute.xlu0 %2183
  %2185 = vrot.lane.b32.xlu0 %v2178, 32
  %v2186 = vpop.permute.xlu0 %2185
  %2187 = vrot.lane.b32.xlu0 %v2179, 32
  %v2188 = vpop.permute.xlu0 %2187
  %v2189 = vsel %vm818, %v2184, %v2186
  %v2190 = vsel %vm818, %v2186, %v2188
  %2193 = vst [vmem:[#allocation3 + $0x20] sm:$0xff] %v2189
  %2194 = vst [vmem:[#allocation3 + $0x28] sm:$0xff] %v2190
  %v2195 = vld [vmem:[%s50] sm:$0xff]
  %v2196 = vld [vmem:[%s50 + $0x8] sm:$0xff]
  %v2197 = vld [vmem:[%s50 + $0x10] sm:$0xff]
  %2201 = vrot.lane.b32.xlu0 %v2195, 32
  %v2202 = vpop.permute.xlu0 %2201
  %2203 = vrot.lane.b32.xlu0 %v2196, 32
  %v2204 = vpop.permute.xlu0 %2203
  %2205 = vrot.lane.b32.xlu0 %v2197, 32
  %v2206 = vpop.permute.xlu0 %2205
  %v2207 = vsel %vm818, %v2202, %v2204
  %v2208 = vsel %vm818, %v2204, %v2206
  %2211 = vst [vmem:[#allocation3 + $0x30] sm:$0xff] %v2207
  %2212 = vst [vmem:[#allocation3 + $0x38] sm:$0xff] %v2208
  %v2213 = vld [vmem:[#allocation2] sm:$0xff]
  %v2214 = vld [vmem:[#allocation2 + $0x8] sm:$0xff]
  %v2215 = vld [vmem:[#allocation2 + $0x10] sm:$0xff]
  %v2216 = vld [vmem:[%s846] sm:$0xff]
  %v2217 = vld [vmem:[%s846 + $0x8] sm:$0xff]
  %2220 = vrot.lane.b32.xlu0 %v2216, 98
  %v2221 = vpop.permute.xlu0 %2220
  %2222 = vrot.lane.b32.xlu0 %v2217, 98
  %v2223 = vpop.permute.xlu0 %2222
  %v2224 = vsel %vm855, %v2221, %v2223
  %v2228 = vmul.f32 %v2213, %v2221
  %v2229 = vmul.f32 %v2214, %v2224
  %v2230 = vmul.f32 %v2215, %v2223
  %2234 = vrot.lane.b32.xlu0 %v2228, 30
  %v2235 = vpop.permute.xlu0 %2234
  %2236 = vrot.lane.b32.xlu0 %v2229, 30
  %v2237 = vpop.permute.xlu0 %2236
  %2238 = vrot.lane.b32.xlu0 %v2230, 30
  %v2239 = vpop.permute.xlu0 %2238
  %v2240 = vsel %vm872, %v2235, %v2237
  %v2241 = vsel %vm872, %v2237, %v2239
  %2244 = vst [vmem:[#allocation3 + $0x40] sm:$0xff] %v2240
  %2245 = vst [vmem:[#allocation3 + $0x48] sm:$0xff] %v2241
  %v2246 = vld [vmem:[%s50] sm:$0xff]
  %v2247 = vld [vmem:[%s50 + $0x8] sm:$0xff]
  %v2248 = vld [vmem:[%s50 + $0x10] sm:$0xff]
  %v2249 = vld [vmem:[%s846] sm:$0xff]
  %v2250 = vld [vmem:[%s846 + $0x8] sm:$0xff]
  %2253 = vrot.lane.b32.xlu0 %v2249, 98
  %v2254 = vpop.permute.xlu0 %2253
  %2255 = vrot.lane.b32.xlu0 %v2250, 98
  %v2256 = vpop.permute.xlu0 %2255
  %v2257 = vsel %vm855, %v2254, %v2256
  %v2261 = vmul.f32 %v2246, %v2254
  %v2262 = vmul.f32 %v2247, %v2257
  %v2263 = vmul.f32 %v2248, %v2256
  %2267 = vrot.lane.b32.xlu0 %v2261, 30
  %v2268 = vpop.permute.xlu0 %2267
  %2269 = vrot.lane.b32.xlu0 %v2262, 30
  %v2270 = vpop.permute.xlu0 %2269
  %2271 = vrot.lane.b32.xlu0 %v2263, 30
  %v2272 = vpop.permute.xlu0 %2271
  %v2273 = vsel %vm872, %v2268, %v2270
  %v2274 = vsel %vm872, %v2270, %v2272
  %2277 = vst [vmem:[#allocation3 + $0x50] sm:$0xff] %v2273
  %2278 = vst [vmem:[#allocation3 + $0x58] sm:$0xff] %v2274
  %v2279 = vld [vmem:[#allocation2] sm:$0xff]
  %v2280 = vld [vmem:[#allocation2 + $0x8] sm:$0xff]
  %v2281 = vld [vmem:[#allocation2 + $0x10] sm:$0xff]
  %v2282 = vld [vmem:[%s3] sm:$0xff]
  %v2283 = vld [vmem:[%s3 + $0x8] sm:$0xff]
  %2286 = vrot.lane.b32.xlu0 %v2282, 126
  %v2287 = vpop.permute.xlu0 %2286
  %2288 = vrot.lane.b32.xlu0 %v2283, 126
  %v2289 = vpop.permute.xlu0 %2288
  %v2290 = vsel %vm923, %v2287, %v2289
  %v2294 = vmul.f32 %v2279, %v2287
  %v2295 = vmul.f32 %v2280, %v2290
  %v2296 = vmul.f32 %v2281, %v2289
  %2300 = vrot.lane.b32.xlu0 %v2294, 2
  %v2301 = vpop.permute.xlu0 %2300
  %2302 = vrot.lane.b32.xlu0 %v2295, 2
  %v2303 = vpop.permute.xlu0 %2302
  %2304 = vrot.lane.b32.xlu0 %v2296, 2
  %v2305 = vpop.permute.xlu0 %2304
  %v2306 = vsel %vm940, %v2301, %v2303
  %v2307 = vsel %vm940, %v2303, %v2305
  %2310 = vst [vmem:[#allocation3 + $0x60] sm:$0xff] %v2306
  %2311 = vst [vmem:[#allocation3 + $0x68] sm:$0xff] %v2307
  %v2312 = vld [vmem:[%s50] sm:$0xff]
  %v2313 = vld [vmem:[%s50 + $0x8] sm:$0xff]
  %v2314 = vld [vmem:[%s50 + $0x10] sm:$0xff]
  %v2315 = vld [vmem:[%s3] sm:$0xff]
  %v2316 = vld [vmem:[%s3 + $0x8] sm:$0xff]
  %2319 = vrot.lane.b32.xlu0 %v2315, 126
  %v2320 = vpop.permute.xlu0 %2319
  %2321 = vrot.lane.b32.xlu0 %v2316, 126
  %v2322 = vpop.permute.xlu0 %2321
  %v2323 = vsel %vm923, %v2320, %v2322
  %v2327 = vmul.f32 %v2312, %v2320
  %v2328 = vmul.f32 %v2313, %v2323
  %v2329 = vmul.f32 %v2314, %v2322
  %2333 = vrot.lane.b32.xlu0 %v2327, 2
  %v2334 = vpop.permute.xlu0 %2333
  %2335 = vrot.lane.b32.xlu0 %v2328, 2
  %v2336 = vpop.permute.xlu0 %2335
  %2337 = vrot.lane.b32.xlu0 %v2329, 2
  %v2338 = vpop.permute.xlu0 %2337
  %v2339 = vsel %vm940, %v2334, %v2336
  %v2340 = vsel %vm940, %v2336, %v2338
  %2343 = vst [vmem:[#allocation3 + $0x70] sm:$0xff] %v2339
  %2344 = vst [vmem:[#allocation3 + $0x78] sm:$0xff] %v2340
  %v2345 = vld [vmem:[#allocation2 + $0x8] sm:$0xff]
  %v2346 = vld [vmem:[#allocation2 + $0x10] sm:$0xff]
  %2347 = vst [vmem:[#allocation3 + $0x80] sm:$0xff] %v2345
  %2348 = vst [vmem:[#allocation3 + $0x88] sm:$0xff] %v2346
  %v2349 = vld [vmem:[%s50 + $0x8] sm:$0xff]
  %v2350 = vld [vmem:[%s50 + $0x10] sm:$0xff]
  %2351 = vst [vmem:[#allocation3 + $0x90] sm:$0xff] %v2349
  %2352 = vst [vmem:[#allocation3 + $0x98] sm:$0xff] %v2350
  %v2353 = vld [vmem:[#allocation2 + $0x8] sm:$0xff]
  %v2354 = vld [vmem:[#allocation2 + $0x10] sm:$0xff]
  %v2355 = vld [vmem:[#allocation2 + $0x18] sm:$0xff]
  %v2356 = vld [vmem:[%s846] sm:$0xff]
  %v2357 = vld [vmem:[%s846 + $0x8] sm:$0xff]
  %2360 = vrot.lane.b32.xlu0 %v2356, 2
  %v2361 = vpop.permute.xlu0 %2360
  %2362 = vrot.lane.b32.xlu0 %v2357, 2
  %v2363 = vpop.permute.xlu0 %2362
  %v2364 = vsel %vm940, %v2361, %v2363
  %v2368 = vmul.f32 %v2353, %v2361
  %v2369 = vmul.f32 %v2354, %v2364
  %v2370 = vmul.f32 %v2355, %v2363
  %2374 = vrot.lane.b32.xlu0 %v2368, 126
  %v2375 = vpop.permute.xlu0 %2374
  %2376 = vrot.lane.b32.xlu0 %v2369, 126
  %v2377 = vpop.permute.xlu0 %2376
  %2378 = vrot.lane.b32.xlu0 %v2370, 126
  %v2379 = vpop.permute.xlu0 %2378
  %v2380 = vsel %vm923, %v2375, %v2377
  %v2381 = vsel %vm923, %v2377, %v2379
  %2384 = vst [vmem:[#allocation3 + $0xa0] sm:$0xff] %v2380
  %2385 = vst [vmem:[#allocation3 + $0xa8] sm:$0xff] %v2381
  %v2386 = vld [vmem:[%s50 + $0x8] sm:$0xff]
  %v2387 = vld [vmem:[%s50 + $0x10] sm:$0xff]
  %v2388 = vld [vmem:[%s50 + $0x18] sm:$0xff]
  %v2389 = vld [vmem:[%s846] sm:$0xff]
  %v2390 = vld [vmem:[%s846 + $0x8] sm:$0xff]
  %2393 = vrot.lane.b32.xlu0 %v2389, 2
  %v2394 = vpop.permute.xlu0 %2393
  %2395 = vrot.lane.b32.xlu0 %v2390, 2
  %v2396 = vpop.permute.xlu0 %2395
  %v2397 = vsel %vm940, %v2394, %v2396
  %v2401 = vmul.f32 %v2386, %v2394
  %v2402 = vmul.f32 %v2387, %v2397
  %v2403 = vmul.f32 %v2388, %v2396
  %2407 = vrot.lane.b32.xlu0 %v2401, 126
  %v2408 = vpop.permute.xlu0 %2407
  %2409 = vrot.lane.b32.xlu0 %v2402, 126
  %v2410 = vpop.permute.xlu0 %2409
  %2411 = vrot.lane.b32.xlu0 %v2403, 126
  %v2412 = vpop.permute.xlu0 %2411
  %v2413 = vsel %vm923, %v2408, %v2410
  %v2414 = vsel %vm923, %v2410, %v2412
  %2417 = vst [vmem:[#allocation3 + $0xb0] sm:$0xff] %v2413
  %2418 = vst [vmem:[#allocation3 + $0xb8] sm:$0xff] %v2414
  %v2419 = vld [vmem:[#allocation2 + $0x8] sm:$0xff]
  %v2420 = vld [vmem:[#allocation2 + $0x10] sm:$0xff]
  %v2421 = vld [vmem:[#allocation2 + $0x18] sm:$0xff]
  %v2422 = vld [vmem:[%s3] sm:$0xff]
  %v2423 = vld [vmem:[%s3 + $0x8] sm:$0xff]
  %2426 = vrot.lane.b32.xlu0 %v2422, 30
  %v2427 = vpop.permute.xlu0 %2426
  %2428 = vrot.lane.b32.xlu0 %v2423, 30
  %v2429 = vpop.permute.xlu0 %2428
  %v2430 = vsel %vm872, %v2427, %v2429
  %v2434 = vmul.f32 %v2419, %v2427
  %v2435 = vmul.f32 %v2420, %v2430
  %v2436 = vmul.f32 %v2421, %v2429
  %2440 = vrot.lane.b32.xlu0 %v2434, 98
  %v2441 = vpop.permute.xlu0 %2440
  %2442 = vrot.lane.b32.xlu0 %v2435, 98
  %v2443 = vpop.permute.xlu0 %2442
  %2444 = vrot.lane.b32.xlu0 %v2436, 98
  %v2445 = vpop.permute.xlu0 %2444
  %v2446 = vsel %vm855, %v2441, %v2443
  %v2447 = vsel %vm855, %v2443, %v2445
  %2450 = vst [vmem:[#allocation3 + $0xc0] sm:$0xff] %v2446
  %2451 = vst [vmem:[#allocation3 + $0xc8] sm:$0xff] %v2447
  %v2452 = vld [vmem:[%s50 + $0x8] sm:$0xff]
  %v2453 = vld [vmem:[%s50 + $0x10] sm:$0xff]
  %v2454 = vld [vmem:[%s50 + $0x18] sm:$0xff]
  %v2455 = vld [vmem:[%s3] sm:$0xff]
  %v2456 = vld [vmem:[%s3 + $0x8] sm:$0xff]
  %2459 = vrot.lane.b32.xlu0 %v2455, 30
  %v2460 = vpop.permute.xlu0 %2459
  %2461 = vrot.lane.b32.xlu0 %v2456, 30
  %v2462 = vpop.permute.xlu0 %2461
  %v2463 = vsel %vm872, %v2460, %v2462
  %v2467 = vmul.f32 %v2452, %v2460
  %v2468 = vmul.f32 %v2453, %v2463
  %v2469 = vmul.f32 %v2454, %v2462
  %2473 = vrot.lane.b32.xlu0 %v2467, 98
  %v2474 = vpop.permute.xlu0 %2473
  %2475 = vrot.lane.b32.xlu0 %v2468, 98
  %v2476 = vpop.permute.xlu0 %2475
  %2477 = vrot.lane.b32.xlu0 %v2469, 98
  %v2478 = vpop.permute.xlu0 %2477
  %v2479 = vsel %vm855, %v2474, %v2476
  %v2480 = vsel %vm855, %v2476, %v2478
  %2483 = vst [vmem:[#allocation3 + $0xd0] sm:$0xff] %v2479
  %2484 = vst [vmem:[#allocation3 + $0xd8] sm:$0xff] %v2480
  %v2485 = vld [vmem:[#allocation2 + $0x8] sm:$0xff]
  %v2486 = vld [vmem:[#allocation2 + $0x10] sm:$0xff]
  %v2487 = vld [vmem:[#allocation2 + $0x18] sm:$0xff]
  %2491 = vrot.lane.b32.xlu0 %v2485, 96
  %v2492 = vpop.permute.xlu0 %2491
  %2493 = vrot.lane.b32.xlu0 %v2486, 96
  %v2494 = vpop.permute.xlu0 %2493
  %2495 = vrot.lane.b32.xlu0 %v2487, 96
  %v2496 = vpop.permute.xlu0 %2495
  %v2497 = vsel %vm1132, %v2492, %v2494
  %v2498 = vsel %vm1132, %v2494, %v2496
  %2501 = vst [vmem:[#allocation3 + $0xe0] sm:$0xff] %v2497
  %2502 = vst [vmem:[#allocation3 + $0xe8] sm:$0xff] %v2498
  %v2503 = vld [vmem:[%s50 + $0x8] sm:$0xff]
  %v2504 = vld [vmem:[%s50 + $0x10] sm:$0xff]
  %v2505 = vld [vmem:[%s50 + $0x18] sm:$0xff]
  %2509 = vrot.lane.b32.xlu0 %v2503, 96
  %v2510 = vpop.permute.xlu0 %2509
  %2511 = vrot.lane.b32.xlu0 %v2504, 96
  %v2512 = vpop.permute.xlu0 %2511
  %2513 = vrot.lane.b32.xlu0 %v2505, 96
  %v2514 = vpop.permute.xlu0 %2513
  %v2515 = vsel %vm1132, %v2510, %v2512
  %v2516 = vsel %vm1132, %v2512, %v2514
  %2519 = vst [vmem:[#allocation3 + $0xf0] sm:$0xff] %v2515
  %2520 = vst [vmem:[#allocation3 + $0xf8] sm:$0xff] %v2516
  %v2521 = vld [vmem:[#allocation2 + $0x8] sm:$0xff]
  %v2522 = vld [vmem:[#allocation2 + $0x10] sm:$0xff]
  %v2523 = vld [vmem:[#allocation2 + $0x18] sm:$0xff]
  %v2524 = vld [vmem:[%s846] sm:$0xff]
  %v2525 = vld [vmem:[%s846 + $0x8] sm:$0xff]
  %2528 = vrot.lane.b32.xlu0 %v2524, 34
  %v2529 = vpop.permute.xlu0 %2528
  %2530 = vrot.lane.b32.xlu0 %v2525, 34
  %v2531 = vpop.permute.xlu0 %2530
  %v2532 = vsel %vm766, %v2529, %v2531
  %v2536 = vmul.f32 %v2521, %v2529
  %v2537 = vmul.f32 %v2522, %v2532
  %v2538 = vmul.f32 %v2523, %v2531
  %2542 = vrot.lane.b32.xlu0 %v2536, 94
  %v2543 = vpop.permute.xlu0 %2542
  %2544 = vrot.lane.b32.xlu0 %v2537, 94
  %v2545 = vpop.permute.xlu0 %2544
  %2546 = vrot.lane.b32.xlu0 %v2538, 94
  %v2547 = vpop.permute.xlu0 %2546
  %v2548 = vsel %vm749, %v2543, %v2545
  %v2549 = vsel %vm749, %v2545, %v2547
  %2552 = vst [vmem:[#allocation3 + $0x100] sm:$0xff] %v2548
  %2553 = vst [vmem:[#allocation3 + $0x108] sm:$0xff] %v2549
  %v2554 = vld [vmem:[%s50 + $0x8] sm:$0xff]
  %v2555 = vld [vmem:[%s50 + $0x10] sm:$0xff]
  %v2556 = vld [vmem:[%s50 + $0x18] sm:$0xff]
  %v2557 = vld [vmem:[%s846] sm:$0xff]
  %v2558 = vld [vmem:[%s846 + $0x8] sm:$0xff]
  %2561 = vrot.lane.b32.xlu0 %v2557, 34
  %v2562 = vpop.permute.xlu0 %2561
  %2563 = vrot.lane.b32.xlu0 %v2558, 34
  %v2564 = vpop.permute.xlu0 %2563
  %v2565 = vsel %vm766, %v2562, %v2564
  %v2569 = vmul.f32 %v2554, %v2562
  %v2570 = vmul.f32 %v2555, %v2565
  %v2571 = vmul.f32 %v2556, %v2564
  %2575 = vrot.lane.b32.xlu0 %v2569, 94
  %v2576 = vpop.permute.xlu0 %2575
  %2577 = vrot.lane.b32.xlu0 %v2570, 94
  %v2578 = vpop.permute.xlu0 %2577
  %2579 = vrot.lane.b32.xlu0 %v2571, 94
  %v2580 = vpop.permute.xlu0 %2579
  %v2581 = vsel %vm749, %v2576, %v2578
  %v2582 = vsel %vm749, %v2578, %v2580
  %2585 = vst [vmem:[#allocation3 + $0x110] sm:$0xff] %v2581
  %2586 = vst [vmem:[#allocation3 + $0x118] sm:$0xff] %v2582
  %v2587 = vld [vmem:[#allocation3] sm:$0xff]
  %v2588 = vld [vmem:[#allocation3 + $0x8] sm:$0xff]
  %v2589 = vld [vmem:[#allocation3 + $0x10] sm:$0xff]
  %v2590 = vld [vmem:[#allocation3 + $0x18] sm:$0xff]
  %v2591 = vld [vmem:[#allocation3 + $0x20] sm:$0xff]
  %v2592 = vld [vmem:[#allocation3 + $0x28] sm:$0xff]
  %v2593 = vld [vmem:[#allocation3 + $0x30] sm:$0xff]
  %v2594 = vld [vmem:[#allocation3 + $0x38] sm:$0xff]
  %v2595 = vld [vmem:[#allocation3 + $0x40] sm:$0xff]
  %v2596 = vld [vmem:[#allocation3 + $0x48] sm:$0xff]
  %v2597 = vld [vmem:[#allocation3 + $0x50] sm:$0xff]
  %v2598 = vld [vmem:[#allocation3 + $0x58] sm:$0xff]
  %v2599 = vld [vmem:[#allocation3 + $0x60] sm:$0xff]
  %v2600 = vld [vmem:[#allocation3 + $0x68] sm:$0xff]
  %v2601 = vld [vmem:[#allocation3 + $0x70] sm:$0xff]
  %v2602 = vld [vmem:[#allocation3 + $0x78] sm:$0xff]
  %v2603 = vld [vmem:[#allocation3 + $0x80] sm:$0xff]
  %v2604 = vld [vmem:[#allocation3 + $0x88] sm:$0xff]
  %v2605 = vld [vmem:[#allocation3 + $0x90] sm:$0xff]
  %v2606 = vld [vmem:[#allocation3 + $0x98] sm:$0xff]
  %v2607 = vld [vmem:[#allocation3 + $0xa0] sm:$0xff]
  %v2608 = vld [vmem:[#allocation3 + $0xa8] sm:$0xff]
  %v2609 = vld [vmem:[#allocation3 + $0xb0] sm:$0xff]
  %v2610 = vld [vmem:[#allocation3 + $0xb8] sm:$0xff]
  %v2611 = vld [vmem:[#allocation3 + $0xc0] sm:$0xff]
  %v2612 = vld [vmem:[#allocation3 + $0xc8] sm:$0xff]
  %v2613 = vld [vmem:[#allocation3 + $0xd0] sm:$0xff]
  %v2614 = vld [vmem:[#allocation3 + $0xd8] sm:$0xff]
  %v2615 = vld [vmem:[#allocation3 + $0xe0] sm:$0xff]
  %v2616 = vld [vmem:[#allocation3 + $0xe8] sm:$0xff]
  %v2617 = vld [vmem:[#allocation3 + $0xf0] sm:$0xff]
  %v2618 = vld [vmem:[#allocation3 + $0xf8] sm:$0xff]
  %v2619 = vld [vmem:[#allocation3 + $0x100] sm:$0xff]
  %v2620 = vld [vmem:[#allocation3 + $0x108] sm:$0xff]
  %v2621 = vld [vmem:[#allocation3 + $0x110] sm:$0xff]
  %v2622 = vld [vmem:[#allocation3 + $0x118] sm:$0xff]
  %v2623 = vld [vmem:[#allocation3 + $0x120] sm:$0xff]
  %v2624 = vld [vmem:[#allocation3 + $0x128] sm:$0xff]
  %v2625 = vld [vmem:[#allocation3 + $0x130] sm:$0xff]
  %v2626 = vld [vmem:[#allocation3 + $0x138] sm:$0xff]
  %v2628 = vsel %vm579, %v2106, 0
  %2630 = vmatprep.subr.mxu0 %v2588
  %2631 = vmatpush1.msra.mxu0 %v2587
  %2632 = vmatprep.subr.mxu0 %v2592
  %2633 = vmatpush1.msra.mxu0 %v2591
  %2634 = vmatprep.subr.mxu0 %v2596
  %2635 = vmatpush1.msra.mxu0 %v2595
  %2636 = vmatprep.subr.mxu0 %v2600
  %2637 = vmatpush1.msra.mxu0 %v2599
  %2638 = vmatprep.subr.mxu0 %v2604
  %2639 = vmatpush1.msra.mxu0 %v2603
  %2640 = vmatprep.subr.mxu0 %v2608
  %2641 = vmatpush1.msra.mxu0 %v2607
  %2642 = vmatprep.subr.mxu0 %v2612
  %2643 = vmatpush1.msra.mxu0 %v2611
  %2644 = vmatprep.subr.mxu0 %v2616
  %2645 = vmatpush1.msra.mxu0 %v2615
  %2646 = vmatprep.subr.mxu0 %v2620
  %2647 = vmatpush1.msra.mxu0 %v2619
  %2648 = vmatprep.subr.mxu0 %v2624
  %2649 = vmatpush1.msra.mxu0 %v2623
  %2650 = vmatprep.subr.mxu0 0.0
  %2651 = vmatpush1.msra.mxu0 0.0
  %2652 = vmatprep.subr.mxu0 0.0
  %2653 = vmatpush1.msra.mxu0 0.0
  %2654 = vmatprep.subr.mxu0 0.0
  %2655 = vmatpush1.msra.mxu0 0.0
  %2656 = vmatprep.subr.mxu0 0.0
  %2657 = vmatpush1.msra.mxu0 0.0
  %2658 = vmatprep.subr.mxu0 0.0
  %2659 = vmatpush1.msra.mxu0 0.0
  %2660 = vmatprep.subr.mxu0 0.0
  %2661 = vmatpush1.msra.mxu0 0.0
  %2662 = vmatprep.subr.mxu0 0.0
  %2663 = vmatpush1.msra.mxu0 0.0
  %2664 = vmatprep.subr.mxu0 0.0
  %2665 = vmatpush1.msra.mxu0 0.0
  %2666 = vmatprep.subr.mxu0 0.0
  %2667 = vmatpush1.msra.mxu0 0.0
  %2668 = vmatprep.subr.mxu0 0.0
  %2669 = vmatpush1.msra.mxu0 0.0
  %2670 = vmatprep.subr.mxu0 0.0
  %2671 = vmatpush1.msra.mxu0 0.0
  %2672 = vmatprep.subr.mxu0 0.0
  %2673 = vmatpush1.msra.mxu0 0.0
  %2674 = vmatprep.subr.mxu0 0.0
  %2675 = vmatpush1.msra.mxu0 0.0
  %2676 = vmatprep.subr.mxu0 0.0
  %2677 = vmatpush1.msra.mxu0 0.0
  %2678 = vmatprep.subr.mxu0 0.0
  %2679 = vmatpush1.msra.mxu0 0.0
  %2680 = vmatprep.subr.mxu0 0.0
  %2681 = vmatpush1.msra.mxu0 0.0
  %2682 = vmatprep.subr.mxu0 0.0
  %2683 = vmatpush1.msra.mxu0 0.0
  %2684 = vmatprep.subr.mxu0 0.0
  %2685 = vmatpush1.msra.mxu0 0.0
  %2686 = vmatprep.subr.mxu0 0.0
  %2687 = vmatpush1.msra.mxu0 0.0
  %2688 = vmatprep.subr.mxu0 0.0
  %2689 = vmatpush1.msra.mxu0 0.0
  %2690 = vmatprep.subr.mxu0 0.0
  %2691 = vmatpush1.msra.mxu0 0.0
  %2692 = vmatprep.subr.mxu0 0.0
  %2693 = vmatpush1.msra.mxu0 0.0
  %2694 = vmatprep.mubr.f32.mxu0 0.0
  %2695 = vmatmul.mubr.f32.gmra.mrb[0].mxu0 %v2628
  %v2696 = vpop.f32.mrb[0].mxu0
  %v2697 = vadd.f32 0.0, %v2696
  %v2698 = vpop.f32.mrb[0].mxu0
  %v2699 = vadd.f32 0.0, %v2698
  %2700 = vdwg.mxu0
  %2701 = vmatprep.subr.mxu0 %v2590
  %2702 = vmatpush1.msra.mxu0 %v2589
  %2703 = vmatprep.subr.mxu0 %v2594
  %2704 = vmatpush1.msra.mxu0 %v2593
  %2705 = vmatprep.subr.mxu0 %v2598
  %2706 = vmatpush1.msra.mxu0 %v2597
  %2707 = vmatprep.subr.mxu0 %v2602
  %2708 = vmatpush1.msra.mxu0 %v2601
  %2709 = vmatprep.subr.mxu0 %v2606
  %2710 = vmatpush1.msra.mxu0 %v2605
  %2711 = vmatprep.subr.mxu0 %v2610
  %2712 = vmatpush1.msra.mxu0 %v2609
  %2713 = vmatprep.subr.mxu0 %v2614
  %2714 = vmatpush1.msra.mxu0 %v2613
  %2715 = vmatprep.subr.mxu0 %v2618
  %2716 = vmatpush1.msra.mxu0 %v2617
  %2717 = vmatprep.subr.mxu0 %v2622
  %2718 = vmatpush1.msra.mxu0 %v2621
  %2719 = vmatprep.subr.mxu0 %v2626
  %2720 = vmatpush1.msra.mxu0 %v2625
  %2721 = vmatprep.subr.mxu0 0.0
  %2722 = vmatpush1.msra.mxu0 0.0
  %2723 = vmatprep.subr.mxu0 0.0
  %2724 = vmatpush1.msra.mxu0 0.0
  %2725 = vmatprep.subr.mxu0 0.0
  %2726 = vmatpush1.msra.mxu0 0.0
  %2727 = vmatprep.subr.mxu0 0.0
  %2728 = vmatpush1.msra.mxu0 0.0
  %2729 = vmatprep.subr.mxu0 0.0
  %2730 = vmatpush1.msra.mxu0 0.0
  %2731 = vmatprep.subr.mxu0 0.0
  %2732 = vmatpush1.msra.mxu0 0.0
  %2733 = vmatprep.subr.mxu0 0.0
  %2734 = vmatpush1.msra.mxu0 0.0
  %2735 = vmatprep.subr.mxu0 0.0
  %2736 = vmatpush1.msra.mxu0 0.0
  %2737 = vmatprep.subr.mxu0 0.0
  %2738 = vmatpush1.msra.mxu0 0.0
  %2739 = vmatprep.subr.mxu0 0.0
  %2740 = vmatpush1.msra.mxu0 0.0
  %2741 = vmatprep.subr.mxu0 0.0
  %2742 = vmatpush1.msra.mxu0 0.0
  %2743 = vmatprep.subr.mxu0 0.0
  %2744 = vmatpush1.msra.mxu0 0.0
  %2745 = vmatprep.subr.mxu0 0.0
  %2746 = vmatpush1.msra.mxu0 0.0
  %2747 = vmatprep.subr.mxu0 0.0
  %2748 = vmatpush1.msra.mxu0 0.0
  %2749 = vmatprep.subr.mxu0 0.0
  %2750 = vmatpush1.msra.mxu0 0.0
  %2751 = vmatprep.subr.mxu0 0.0
  %2752 = vmatpush1.msra.mxu0 0.0
  %2753 = vmatprep.subr.mxu0 0.0
  %2754 = vmatpush1.msra.mxu0 0.0
  %2755 = vmatprep.subr.mxu0 0.0
  %2756 = vmatpush1.msra.mxu0 0.0
  %2757 = vmatprep.subr.mxu0 0.0
  %2758 = vmatpush1.msra.mxu0 0.0
  %2759 = vmatprep.subr.mxu0 0.0
  %2760 = vmatpush1.msra.mxu0 0.0
  %2761 = vmatprep.subr.mxu0 0.0
  %2762 = vmatpush1.msra.mxu0 0.0
  %2763 = vmatprep.subr.mxu0 0.0
  %2764 = vmatpush1.msra.mxu0 0.0
  %2765 = vmatprep.mubr.f32.mxu0 0.0
  %2766 = vmatmul.mubr.f32.gmra.mrb[0].mxu0 %v2628
  %v2767 = vpop.f32.mrb[0].mxu0
  %v2768 = vadd.f32 0.0, %v2767
  %v2769 = vpop.f32.mrb[0].mxu0
  %v2770 = vadd.f32 0.0, %v2769
  %2771 = vdwg.mxu0
  %v2772 = vld [vmem:[#allocation4] sm:$0xff]
  %v2775 = vcombine.low %v2697, %v2699
  %v2777 = vadd.f32 %v2772, %v2775
  %2778 = vst [vmem:[#allocation4] sm:$0xff] %v2777
  %v2779 = vld [vmem:[%s45] sm:$0xff]
  %v2782 = vcombine.low %v2768, %v2770
  %v2784 = vadd.f32 %v2779, %v2782
  %2785 = vst [vmem:[%s45] sm:$0xff] %v2784
  %v2786 = vld [vmem:[#allocation4] sm:$0xff]
  %v2787 = vld [vmem:[#allocation4 + $0x8] sm:$0xff]
  %v2788 = vld [vmem:[%s0] sm:$0xff]
  %v2789 = vld [vmem:[%s0 + $0x8] sm:$0xff]
  %v2790 = vadd.f32 %v2786, %v2788
  %v2791 = vadd.f32 %v2787, %v2789
  %2792 = vst [vmem:[%s4] sm:$0xff] %v2790
  %2793 = vst [vmem:[%s4 + $0x8] sm:$0xff] %v2791
  // Predicated region
  $region18: #{resnet_block_forward.1} parent=0 // pred_check
    _
  $region19: #{resnet_block_forward.1} parent=0 // pred_check_branch
    %2795 = sbr.rel (0) target = $region21
  $region20: #{resnet_block_forward.1} parent=0 // pred_region
    _
  $region21: #{resnet_block_forward.1} parent=0 // pred_fallthru
    _
  // Predicated region
  $region22: #{resnet_block_forward.1} parent=0 // pred_check
    _
  $region23: #{resnet_block_forward.1} parent=0 // pred_check_branch
    %2797 = sbr.rel (0) target = $region25
  $region24: #{resnet_block_forward.1} parent=0 // pred_region
    _
  $region25: #{resnet_block_forward.1} parent=0 // pred_fallthru
    _

// kernel: resnet_block_forward.1
$region0: #{resnet_block_forward.1}
  #allocation0 [shape = 'u32[]', space=smem, size = 0x4, offset = 0x4, fixed_abs, tag = 'smem constant byte address 0x4 - core index']
  #allocation1 [shape = 'u32[144,128]{1,0:T(1,128)}', space=vmem, size = 0x12000, scoped, tag = 'internal scratch']
  #allocation2 [shape = 'f32[2,8,512]{2,1,0:T(8,128)}', space=vmem, size = 0x8000, scoped, tag = 'scratch operand']
  #allocation3 [shape = 'f32[80,512]{1,0:T(8,128)}', space=vmem, size = 0x28000, scoped, tag = 'scratch operand']
  #allocation4 [shape = 'f32[2,4,256]{2,1,0:T(4,128)}', space=vmem, size = 0x2000, scoped, tag = 'scratch operand']
  %s0 = inlined_call_operand.vmem [shape: f32[2,4,256], index: 0, kind: input, shape index: {}]
  %s1 = inlined_call_operand.vmem [shape: f32[2,4,80], index: 1, kind: input, shape index: {}]
  %s2 = inlined_call_operand.vmem [shape: f32[2,4,80], index: 2, kind: input, shape index: {}]
  %s3 = inlined_call_operand.vmem [shape: f32[4,8,256], index: 3, kind: input, shape index: {}]
  %s4 = inlined_call_operand.vmem [shape: f32[2,4,256], index: 4, kind: output, shape index: {}]
  %s5 = sld [smem:[#allocation0]]
  $region26: #{resnet_block_forward.1} parent=0
    _
  %s7 = ssub.s32 1, %s5
  %s8 = scalar_select 0, %s7, %s5
  // Predicated region
  $region2: #{resnet_block_forward.1} parent=0 // pred_check
    _
  $region3: #{resnet_block_forward.1} parent=0 // pred_check_branch
    %10 = sbr.rel (0) target = $region5
  $region4: #{resnet_block_forward.1} parent=0 // pred_region
    _
  $region5: #{resnet_block_forward.1} parent=0 // pred_fallthru
    _
  // Predicated region
  $region6: #{resnet_block_forward.1} parent=0 // pred_check
    _
  $region7: #{resnet_block_forward.1} parent=0 // pred_check_branch
    %12 = sbr.rel (0) target = $region9
  $region8: #{resnet_block_forward.1} parent=0 // pred_region
    _
  $region9: #{resnet_block_forward.1} parent=0 // pred_fallthru
    _
  // Predicated region
  $region10: #{resnet_block_forward.1} parent=0 // pred_check
    _
  $region11: #{resnet_block_forward.1} parent=0 // pred_check_branch
    %14 = sbr.rel (0) target = $region13
  $region12: #{resnet_block_forward.1} parent=0 // pred_region
    _
  $region13: #{resnet_block_forward.1} parent=0 // pred_fallthru
    _
  // Predicated region
  $region14: #{resnet_block_forward.1} parent=0 // pred_check
    _
  $region15: #{resnet_block_forward.1} parent=0 // pred_check_branch
    %16 = sbr.rel (0) target = $region17
  $region16: #{resnet_block_forward.1} parent=0 // pred_region
    _
  $region17: #{resnet_block_forward.1} parent=0 // pred_fallthru
    _
  %17 = vst [vmem:[#allocation2] sm:$0xff] 0.0
  %18 = vst [vmem:[#allocation2 + $0x20] sm:$0xff] 0.0
  %19 = vst [vmem:[#allocation2 + $0x18] sm:$0xff] 0.0
  %20 = vst [vmem:[#allocation2 + $0x38] sm:$0xff] 0.0
  %21 = vst [vmem:[#allocation2 + $0x8] sm:$0xf0] 0.0
  %22 = vst [vmem:[#allocation2 + $0x10] sm:$0xf0] 0.0
  %23 = vst [vmem:[#allocation2 + $0x28] sm:$0xf0] 0.0
  %24 = vst [vmem:[#allocation2 + $0x30] sm:$0xf0] 0.0
  %v25 = vlaneseq
  %v26 = vshrl.u32 %v25, 7
  %vm27 = vcmp.eq.s32.totalorder %v26, 0
  %v28 = vsel %vm27, 1, 0
  %v29 = vcvt.s32.f32 %v28
  %30 = vst [vmem:[#allocation3 + $0x120] sm:$0xff] %v29
  %31 = vst [vmem:[#allocation3 + $0x128] sm:$0xff] %v29
  %32 = vst [vmem:[#allocation3 + $0x130] sm:$0xff] %v29
  %33 = vst [vmem:[#allocation3 + $0x138] sm:$0xff] %v29
  %v34 = vld [vmem:[%s0] sm:$0xff]
  %v35 = vld [vmem:[%s0 + $0x8] sm:$0xff]
  %36 = vst [vmem:[#allocation4] sm:$0xff] %v34
  %37 = vst [vmem:[#allocation4 + $0x8] sm:$0xff] %v35
  %v38 = vld [vmem:[%s1] sm:$0xf]
  %v39 = vld [vmem:[#allocation4] sm:$0xff]
  %v41 = vcombine.high %v39, %v39
  %43 = vst [vmem:[#allocation2 + $0x8] sm:$0xf] %v39
  %44 = vst [vmem:[#allocation2 + $0x10] sm:$0xf] %v41
  %s45 = scalar_lea.vmem [#allocation4], 8
  %v46 = vld [vmem:[%s45] sm:$0xff]
  %v48 = vcombine.high %v46, %v46
  %s50 = scalar_lea.vmem [#allocation2], 32
  %51 = vst [vmem:[%s50 + $0x8] sm:$0xf] %v46
  %52 = vst [vmem:[%s50 + $0x10] sm:$0xf] %v48
  %v53 = vld [vmem:[#allocation2] sm:$0xff]
  %v54 = vld [vmem:[#allocation2 + $0x8] sm:$0xff]
  %v55 = vld [vmem:[#allocation2 + $0x10] sm:$0xff]
  %s56 = scalar_lea.vmem %s3, 16
  %v57 = vld [vmem:[%s56] sm:$0xff]
  %v58 = vld [vmem:[%s56 + $0x8] sm:$0xff]
  %61 = vrot.lane.b32.xlu0 %v57, 111
  %v62 = vpop.permute.xlu0 %61
  %63 = vrot.lane.b32.xlu0 %v58, 111
  %v64 = vpop.permute.xlu0 %63
  %vm65 = vcmask 908288
  %v66 = vsel %vm65, %v62, %v64
  %v70 = vmul.f32 %v53, %v62
  %v71 = vmul.f32 %v54, %v66
  %v72 = vmul.f32 %v55, %v64
  %76 = vrot.lane.b32.xlu0 %v70, 17
  %v77 = vpop.permute.xlu0 %76
  %78 = vrot.lane.b32.xlu0 %v71, 17
  %v79 = vpop.permute.xlu0 %78
  %80 = vrot.lane.b32.xlu0 %v72, 17
  %v81 = vpop.permute.xlu0 %80
  %vm82 = vcmask 138240
  %v83 = vsel %vm82, %v77, %v79
  %v84 = vsel %vm82, %v79, %v81
  %87 = vst [vmem:[#allocation3] sm:$0xff] %v83
  %88 = vst [vmem:[#allocation3 + $0x8] sm:$0xff] %v84
  %v89 = vld [vmem:[%s50] sm:$0xff]
  %v90 = vld [vmem:[%s50 + $0x8] sm:$0xff]
  %v91 = vld [vmem:[%s50 + $0x10] sm:$0xff]
  %v92 = vld [vmem:[%s56] sm:$0xff]
  %v93 = vld [vmem:[%s56 + $0x8] sm:$0xff]
  %96 = vrot.lane.b32.xlu0 %v92, 111
  %v97 = vpop.permute.xlu0 %96
  %98 = vrot.lane.b32.xlu0 %v93, 111
  %v99 = vpop.permute.xlu0 %98
  %v100 = vsel %vm65, %v97, %v99
  %v104 = vmul.f32 %v89, %v97
  %v105 = vmul.f32 %v90, %v100
  %v106 = vmul.f32 %v91, %v99
  %110 = vrot.lane.b32.xlu0 %v104, 17
  %v111 = vpop.permute.xlu0 %110
  %112 = vrot.lane.b32.xlu0 %v105, 17
  %v113 = vpop.permute.xlu0 %112
  %114 = vrot.lane.b32.xlu0 %v106, 17
  %v115 = vpop.permute.xlu0 %114
  %v116 = vsel %vm82, %v111, %v113
  %v117 = vsel %vm82, %v113, %v115
  %120 = vst [vmem:[#allocation3 + $0x10] sm:$0xff] %v116
  %121 = vst [vmem:[#allocation3 + $0x18] sm:$0xff] %v117
  %v122 = vld [vmem:[#allocation2] sm:$0xff]
  %v123 = vld [vmem:[#allocation2 + $0x8] sm:$0xff]
  %v124 = vld [vmem:[#allocation2 + $0x10] sm:$0xff]
  %128 = vrot.lane.b32.xlu0 %v122, 16
  %v129 = vpop.permute.xlu0 %128
  %130 = vrot.lane.b32.xlu0 %v123, 16
  %v131 = vpop.permute.xlu0 %130
  %132 = vrot.lane.b32.xlu0 %v124, 16
  %v133 = vpop.permute.xlu0 %132
  %vm134 = vcmask 130048
  %v135 = vsel %vm134, %v129, %v131
  %v136 = vsel %vm134, %v131, %v133
  %139 = vst [vmem:[#allocation3 + $0x20] sm:$0xff] %v135
  %140 = vst [vmem:[#allocation3 + $0x28] sm:$0xff] %v136
  %v141 = vld [vmem:[%s50] sm:$0xff]
  %v142 = vld [vmem:[%s50 + $0x8] sm:$0xff]
  %v143 = vld [vmem:[%s50 + $0x10] sm:$0xff]
  %147 = vrot.lane.b32.xlu0 %v141, 16
  %v148 = vpop.permute.xlu0 %147
  %149 = vrot.lane.b32.xlu0 %v142, 16
  %v150 = vpop.permute.xlu0 %149
  %151 = vrot.lane.b32.xlu0 %v143, 16
  %v152 = vpop.permute.xlu0 %151
  %v153 = vsel %vm134, %v148, %v150
  %v154 = vsel %vm134, %v150, %v152
  %157 = vst [vmem:[#allocation3 + $0x30] sm:$0xff] %v153
  %158 = vst [vmem:[#allocation3 + $0x38] sm:$0xff] %v154
  %v159 = vld [vmem:[#allocation2] sm:$0xff]
  %v160 = vld [vmem:[#allocation2 + $0x8] sm:$0xff]
  %v161 = vld [vmem:[#allocation2 + $0x10] sm:$0xff]
  %s162 = scalar_lea.vmem %s3, 32
  %v163 = vld [vmem:[%s162] sm:$0xff]
  %v164 = vld [vmem:[%s162 + $0x8] sm:$0xff]
  %167 = vrot.lane.b32.xlu0 %v163, 113
  %v168 = vpop.permute.xlu0 %167
  %169 = vrot.lane.b32.xlu0 %v164, 113
  %v170 = vpop.permute.xlu0 %169
  %vm171 = vcmask 924672
  %v172 = vsel %vm171, %v168, %v170
  %v176 = vmul.f32 %v159, %v168
  %v177 = vmul.f32 %v160, %v172
  %v178 = vmul.f32 %v161, %v170
  %182 = vrot.lane.b32.xlu0 %v176, 15
  %v183 = vpop.permute.xlu0 %182
  %184 = vrot.lane.b32.xlu0 %v177, 15
  %v185 = vpop.permute.xlu0 %184
  %186 = vrot.lane.b32.xlu0 %v178, 15
  %v187 = vpop.permute.xlu0 %186
  %vm188 = vcmask 121856
  %v189 = vsel %vm188, %v183, %v185
  %v190 = vsel %vm188, %v185, %v187
  %193 = vst [vmem:[#allocation3 + $0x40] sm:$0xff] %v189
  %194 = vst [vmem:[#allocation3 + $0x48] sm:$0xff] %v190
  %v195 = vld [vmem:[%s50] sm:$0xff]
  %v196 = vld [vmem:[%s50 + $0x8] sm:$0xff]
  %v197 = vld [vmem:[%s50 + $0x10] sm:$0xff]
  %v198 = vld [vmem:[%s162] sm:$0xff]
  %v199 = vld [vmem:[%s162 + $0x8] sm:$0xff]
  %202 = vrot.lane.b32.xlu0 %v198, 113
  %v203 = vpop.permute.xlu0 %202
  %204 = vrot.lane.b32.xlu0 %v199, 113
  %v205 = vpop.permute.xlu0 %204
  %v206 = vsel %vm171, %v203, %v205
  %v210 = vmul.f32 %v195, %v203
  %v211 = vmul.f32 %v196, %v206
  %v212 = vmul.f32 %v197, %v205
  %216 = vrot.lane.b32.xlu0 %v210, 15
  %v217 = vpop.permute.xlu0 %216
  %218 = vrot.lane.b32.xlu0 %v211, 15
  %v219 = vpop.permute.xlu0 %218
  %220 = vrot.lane.b32.xlu0 %v212, 15
  %v221 = vpop.permute.xlu0 %220
  %v222 = vsel %vm188, %v217, %v219
  %v223 = vsel %vm188, %v219, %v221
  %226 = vst [vmem:[#allocation3 + $0x50] sm:$0xff] %v222
  %227 = vst [vmem:[#allocation3 + $0x58] sm:$0xff] %v223
  %v228 = vld [vmem:[#allocation2] sm:$0xff]
  %v229 = vld [vmem:[#allocation2 + $0x8] sm:$0xff]
  %v230 = vld [vmem:[#allocation2 + $0x10] sm:$0xff]
  %v231 = vld [vmem:[%s56] sm:$0xff]
  %v232 = vld [vmem:[%s56 + $0x8] sm:$0xff]
  %235 = vrot.lane.b32.xlu0 %v231, 127
  %v236 = vpop.permute.xlu0 %235
  %237 = vrot.lane.b32.xlu0 %v232, 127
  %v238 = vpop.permute.xlu0 %237
  %vm239 = vcmask 1039360
  %v240 = vsel %vm239, %v236, %v238
  %v244 = vmul.f32 %v228, %v236
  %v245 = vmul.f32 %v229, %v240
  %v246 = vmul.f32 %v230, %v238
  %250 = vrot.lane.b32.xlu0 %v244, 1
  %v251 = vpop.permute.xlu0 %250
  %252 = vrot.lane.b32.xlu0 %v245, 1
  %v253 = vpop.permute.xlu0 %252
  %254 = vrot.lane.b32.xlu0 %v246, 1
  %v255 = vpop.permute.xlu0 %254
  %vm256 = vcmask 7168
  %v257 = vsel %vm256, %v251, %v253
  %v258 = vsel %vm256, %v253, %v255
  %261 = vst [vmem:[#allocation3 + $0x60] sm:$0xff] %v257
  %262 = vst [vmem:[#allocation3 + $0x68] sm:$0xff] %v258
  %v263 = vld [vmem:[%s50] sm:$0xff]
  %v264 = vld [vmem:[%s50 + $0x8] sm:$0xff]
  %v265 = vld [vmem:[%s50 + $0x10] sm:$0xff]
  %v266 = vld [vmem:[%s56] sm:$0xff]
  %v267 = vld [vmem:[%s56 + $0x8] sm:$0xff]
  %270 = vrot.lane.b32.xlu0 %v266, 127
  %v271 = vpop.permute.xlu0 %270
  %272 = vrot.lane.b32.xlu0 %v267, 127
  %v273 = vpop.permute.xlu0 %272
  %v274 = vsel %vm239, %v271, %v273
  %v278 = vmul.f32 %v263, %v271
  %v279 = vmul.f32 %v264, %v274
  %v280 = vmul.f32 %v265, %v273
  %284 = vrot.lane.b32.xlu0 %v278, 1
  %v285 = vpop.permute.xlu0 %284
  %286 = vrot.lane.b32.xlu0 %v279, 1
  %v287 = vpop.permute.xlu0 %286
  %288 = vrot.lane.b32.xlu0 %v280, 1
  %v289 = vpop.permute.xlu0 %288
  %v290 = vsel %vm256, %v285, %v287
  %v291 = vsel %vm256, %v287, %v289
  %294 = vst [vmem:[#allocation3 + $0x70] sm:$0xff] %v290
  %295 = vst [vmem:[#allocation3 + $0x78] sm:$0xff] %v291
  %v296 = vld [vmem:[#allocation2 + $0x8] sm:$0xff]
  %v297 = vld [vmem:[#allocation2 + $0x10] sm:$0xff]
  %298 = vst [vmem:[#allocation3 + $0x80] sm:$0xff] %v296
  %299 = vst [vmem:[#allocation3 + $0x88] sm:$0xff] %v297
  %v300 = vld [vmem:[%s50 + $0x8] sm:$0xff]
  %v301 = vld [vmem:[%s50 + $0x10] sm:$0xff]
  %302 = vst [vmem:[#allocation3 + $0x90] sm:$0xff] %v300
  %303 = vst [vmem:[#allocation3 + $0x98] sm:$0xff] %v301
  %v304 = vld [vmem:[#allocation2 + $0x8] sm:$0xff]
  %v305 = vld [vmem:[#allocation2 + $0x10] sm:$0xff]
  %v306 = vld [vmem:[#allocation2 + $0x18] sm:$0xff]
  %v307 = vld [vmem:[%s162] sm:$0xff]
  %v308 = vld [vmem:[%s162 + $0x8] sm:$0xff]
  %311 = vrot.lane.b32.xlu0 %v307, 1
  %v312 = vpop.permute.xlu0 %311
  %313 = vrot.lane.b32.xlu0 %v308, 1
  %v314 = vpop.permute.xlu0 %313
  %v315 = vsel %vm256, %v312, %v314
  %v319 = vmul.f32 %v304, %v312
  %v320 = vmul.f32 %v305, %v315
  %v321 = vmul.f32 %v306, %v314
  %325 = vrot.lane.b32.xlu0 %v319, 127
  %v326 = vpop.permute.xlu0 %325
  %327 = vrot.lane.b32.xlu0 %v320, 127
  %v328 = vpop.permute.xlu0 %327
  %329 = vrot.lane.b32.xlu0 %v321, 127
  %v330 = vpop.permute.xlu0 %329
  %v331 = vsel %vm239, %v326, %v328
  %v332 = vsel %vm239, %v328, %v330
  %335 = vst [vmem:[#allocation3 + $0xa0] sm:$0xff] %v331
  %336 = vst [vmem:[#allocation3 + $0xa8] sm:$0xff] %v332
  %v337 = vld [vmem:[%s50 + $0x8] sm:$0xff]
  %v338 = vld [vmem:[%s50 + $0x10] sm:$0xff]
  %v339 = vld [vmem:[%s50 + $0x18] sm:$0xff]
  %v340 = vld [vmem:[%s162] sm:$0xff]
  %v341 = vld [vmem:[%s162 + $0x8] sm:$0xff]
  %344 = vrot.lane.b32.xlu0 %v340, 1
  %v345 = vpop.permute.xlu0 %344
  %346 = vrot.lane.b32.xlu0 %v341, 1
  %v347 = vpop.permute.xlu0 %346
  %v348 = vsel %vm256, %v345, %v347
  %v352 = vmul.f32 %v337, %v345
  %v353 = vmul.f32 %v338, %v348
  %v354 = vmul.f32 %v339, %v347
  %358 = vrot.lane.b32.xlu0 %v352, 127
  %v359 = vpop.permute.xlu0 %358
  %360 = vrot.lane.b32.xlu0 %v353, 127
  %v361 = vpop.permute.xlu0 %360
  %362 = vrot.lane.b32.xlu0 %v354, 127
  %v363 = vpop.permute.xlu0 %362
  %v364 = vsel %vm239, %v359, %v361
  %v365 = vsel %vm239, %v361, %v363
  %368 = vst [vmem:[#allocation3 + $0xb0] sm:$0xff] %v364
  %369 = vst [vmem:[#allocation3 + $0xb8] sm:$0xff] %v365
  %v370 = vld [vmem:[#allocation2 + $0x8] sm:$0xff]
  %v371 = vld [vmem:[#allocation2 + $0x10] sm:$0xff]
  %v372 = vld [vmem:[#allocation2 + $0x18] sm:$0xff]
  %v373 = vld [vmem:[%s56] sm:$0xff]
  %v374 = vld [vmem:[%s56 + $0x8] sm:$0xff]
  %377 = vrot.lane.b32.xlu0 %v373, 15
  %v378 = vpop.permute.xlu0 %377
  %379 = vrot.lane.b32.xlu0 %v374, 15
  %v380 = vpop.permute.xlu0 %379
  %v381 = vsel %vm188, %v378, %v380
  %v385 = vmul.f32 %v370, %v378
  %v386 = vmul.f32 %v371, %v381
  %v387 = vmul.f32 %v372, %v380
  %391 = vrot.lane.b32.xlu0 %v385, 113
  %v392 = vpop.permute.xlu0 %391
  %393 = vrot.lane.b32.xlu0 %v386, 113
  %v394 = vpop.permute.xlu0 %393
  %395 = vrot.lane.b32.xlu0 %v387, 113
  %v396 = vpop.permute.xlu0 %395
  %v397 = vsel %vm171, %v392, %v394
  %v398 = vsel %vm171, %v394, %v396
  %401 = vst [vmem:[#allocation3 + $0xc0] sm:$0xff] %v397
  %402 = vst [vmem:[#allocation3 + $0xc8] sm:$0xff] %v398
  %v403 = vld [vmem:[%s50 + $0x8] sm:$0xff]
  %v404 = vld [vmem:[%s50 + $0x10] sm:$0xff]
  %v405 = vld [vmem:[%s50 + $0x18] sm:$0xff]
  %v406 = vld [vmem:[%s56] sm:$0xff]
  %v407 = vld [vmem:[%s56 + $0x8] sm:$0xff]
  %410 = vrot.lane.b32.xlu0 %v406, 15
  %v411 = vpop.permute.xlu0 %410
  %412 = vrot.lane.b32.xlu0 %v407, 15
  %v413 = vpop.permute.xlu0 %412
  %v414 = vsel %vm188, %v411, %v413
  %v418 = vmul.f32 %v403, %v411
  %v419 = vmul.f32 %v404, %v414
  %v420 = vmul.f32 %v405, %v413
  %424 = vrot.lane.b32.xlu0 %v418, 113
  %v425 = vpop.permute.xlu0 %424
  %426 = vrot.lane.b32.xlu0 %v419, 113
  %v427 = vpop.permute.xlu0 %426
  %428 = vrot.lane.b32.xlu0 %v420, 113
  %v429 = vpop.permute.xlu0 %428
  %v430 = vsel %vm171, %v425, %v427
  %v431 = vsel %vm171, %v427, %v429
  %434 = vst [vmem:[#allocation3 + $0xd0] sm:$0xff] %v430
  %435 = vst [vmem:[#allocation3 + $0xd8] sm:$0xff] %v431
  %v436 = vld [vmem:[#allocation2 + $0x8] sm:$0xff]
  %v437 = vld [vmem:[#allocation2 + $0x10] sm:$0xff]
  %v438 = vld [vmem:[#allocation2 + $0x18] sm:$0xff]
  %442 = vrot.lane.b32.xlu0 %v436, 112
  %v443 = vpop.permute.xlu0 %442
  %444 = vrot.lane.b32.xlu0 %v437, 112
  %v445 = vpop.permute.xlu0 %444
  %446 = vrot.lane.b32.xlu0 %v438, 112
  %v447 = vpop.permute.xlu0 %446
  %vm448 = vcmask 916480
  %v449 = vsel %vm448, %v443, %v445
  %v450 = vsel %vm448, %v445, %v447
  %453 = vst [vmem:[#allocation3 + $0xe0] sm:$0xff] %v449
  %454 = vst [vmem:[#allocation3 + $0xe8] sm:$0xff] %v450
  %v455 = vld [vmem:[%s50 + $0x8] sm:$0xff]
  %v456 = vld [vmem:[%s50 + $0x10] sm:$0xff]
  %v457 = vld [vmem:[%s50 + $0x18] sm:$0xff]
  %461 = vrot.lane.b32.xlu0 %v455, 112
  %v462 = vpop.permute.xlu0 %461
  %463 = vrot.lane.b32.xlu0 %v456, 112
  %v464 = vpop.permute.xlu0 %463
  %465 = vrot.lane.b32.xlu0 %v457, 112
  %v466 = vpop.permute.xlu0 %465
  %v467 = vsel %vm448, %v462, %v464
  %v468 = vsel %vm448, %v464, %v466
  %471 = vst [vmem:[#allocation3 + $0xf0] sm:$0xff] %v467
  %472 = vst [vmem:[#allocation3 + $0xf8] sm:$0xff] %v468
  %v473 = vld [vmem:[#allocation2 + $0x8] sm:$0xff]
  %v474 = vld [vmem:[#allocation2 + $0x10] sm:$0xff]
  %v475 = vld [vmem:[#allocation2 + $0x18] sm:$0xff]
  %v476 = vld [vmem:[%s162] sm:$0xff]
  %v477 = vld [vmem:[%s162 + $0x8] sm:$0xff]
  %480 = vrot.lane.b32.xlu0 %v476, 17
  %v481 = vpop.permute.xlu0 %480
  %482 = vrot.lane.b32.xlu0 %v477, 17
  %v483 = vpop.permute.xlu0 %482
  %v484 = vsel %vm82, %v481, %v483
  %v488 = vmul.f32 %v473, %v481
  %v489 = vmul.f32 %v474, %v484
  %v490 = vmul.f32 %v475, %v483
  %494 = vrot.lane.b32.xlu0 %v488, 111
  %v495 = vpop.permute.xlu0 %494
  %496 = vrot.lane.b32.xlu0 %v489, 111
  %v497 = vpop.permute.xlu0 %496
  %498 = vrot.lane.b32.xlu0 %v490, 111
  %v499 = vpop.permute.xlu0 %498
  %v500 = vsel %vm65, %v495, %v497
  %v501 = vsel %vm65, %v497, %v499
  %504 = vst [vmem:[#allocation3 + $0x100] sm:$0xff] %v500
  %505 = vst [vmem:[#allocation3 + $0x108] sm:$0xff] %v501
  %v506 = vld [vmem:[%s50 + $0x8] sm:$0xff]
  %v507 = vld [vmem:[%s50 + $0x10] sm:$0xff]
  %v508 = vld [vmem:[%s50 + $0x18] sm:$0xff]
  %v509 = vld [vmem:[%s162] sm:$0xff]
  %v510 = vld [vmem:[%s162 + $0x8] sm:$0xff]
  %513 = vrot.lane.b32.xlu0 %v509, 17
  %v514 = vpop.permute.xlu0 %513
  %515 = vrot.lane.b32.xlu0 %v510, 17
  %v516 = vpop.permute.xlu0 %515
  %v517 = vsel %vm82, %v514, %v516
  %v521 = vmul.f32 %v506, %v514
  %v522 = vmul.f32 %v507, %v517
  %v523 = vmul.f32 %v508, %v516
  %527 = vrot.lane.b32.xlu0 %v521, 111
  %v528 = vpop.permute.xlu0 %527
  %529 = vrot.lane.b32.xlu0 %v522, 111
  %v530 = vpop.permute.xlu0 %529
  %531 = vrot.lane.b32.xlu0 %v523, 111
  %v532 = vpop.permute.xlu0 %531
  %v533 = vsel %vm65, %v528, %v530
  %v534 = vsel %vm65, %v530, %v532
  %537 = vst [vmem:[#allocation3 + $0x110] sm:$0xff] %v533
  %538 = vst [vmem:[#allocation3 + $0x118] sm:$0xff] %v534
  %v539 = vld [vmem:[#allocation3] sm:$0xff]
  %v540 = vld [vmem:[#allocation3 + $0x8] sm:$0xff]
  %v541 = vld [vmem:[#allocation3 + $0x10] sm:$0xff]
  %v542 = vld [vmem:[#allocation3 + $0x18] sm:$0xff]
  %v543 = vld [vmem:[#allocation3 + $0x20] sm:$0xff]
  %v544 = vld [vmem:[#allocation3 + $0x28] sm:$0xff]
  %v545 = vld [vmem:[#allocation3 + $0x30] sm:$0xff]
  %v546 = vld [vmem:[#allocation3 + $0x38] sm:$0xff]
  %v547 = vld [vmem:[#allocation3 + $0x40] sm:$0xff]
  %v548 = vld [vmem:[#allocation3 + $0x48] sm:$0xff]
  %v549 = vld [vmem:[#allocation3 + $0x50] sm:$0xff]
  %v550 = vld [vmem:[#allocation3 + $0x58] sm:$0xff]
  %v551 = vld [vmem:[#allocation3 + $0x60] sm:$0xff]
  %v552 = vld [vmem:[#allocation3 + $0x68] sm:$0xff]
  %v553 = vld [vmem:[#allocation3 + $0x70] sm:$0xff]
  %v554 = vld [vmem:[#allocation3 + $0x78] sm:$0xff]
  %v555 = vld [vmem:[#allocation3 + $0x80] sm:$0xff]
  %v556 = vld [vmem:[#allocation3 + $0x88] sm:$0xff]
  %v557 = vld [vmem:[#allocation3 + $0x90] sm:$0xff]
  %v558 = vld [vmem:[#allocation3 + $0x98] sm:$0xff]
  %v559 = vld [vmem:[#allocation3 + $0xa0] sm:$0xff]
  %v560 = vld [vmem:[#allocation3 + $0xa8] sm:$0xff]
  %v561 = vld [vmem:[#allocation3 + $0xb0] sm:$0xff]
  %v562 = vld [vmem:[#allocation3 + $0xb8] sm:$0xff]
  %v563 = vld [vmem:[#allocation3 + $0xc0] sm:$0xff]
  %v564 = vld [vmem:[#allocation3 + $0xc8] sm:$0xff]
  %v565 = vld [vmem:[#allocation3 + $0xd0] sm:$0xff]
  %v566 = vld [vmem:[#allocation3 + $0xd8] sm:$0xff]
  %v567 = vld [vmem:[#allocation3 + $0xe0] sm:$0xff]
  %v568 = vld [vmem:[#allocation3 + $0xe8] sm:$0xff]
  %v569 = vld [vmem:[#allocation3 + $0xf0] sm:$0xff]
  %v570 = vld [vmem:[#allocation3 + $0xf8] sm:$0xff]
  %v571 = vld [vmem:[#allocation3 + $0x100] sm:$0xff]
  %v572 = vld [vmem:[#allocation3 + $0x108] sm:$0xff]
  %v573 = vld [vmem:[#allocation3 + $0x110] sm:$0xff]
  %v574 = vld [vmem:[#allocation3 + $0x118] sm:$0xff]
  %v575 = vld [vmem:[#allocation3 + $0x120] sm:$0xff]
  %v576 = vld [vmem:[#allocation3 + $0x128] sm:$0xff]
  %v577 = vld [vmem:[#allocation3 + $0x130] sm:$0xff]
  %v578 = vld [vmem:[#allocation3 + $0x138] sm:$0xff]
  %vm579 = vcmask 654336
  %v581 = vsel %vm579, %v38, 0
  %583 = vmatprep.subr.mxu0 %v540
  %584 = vmatpush1.msra.mxu0 %v539
  %585 = vmatprep.subr.mxu0 %v544
  %586 = vmatpush1.msra.mxu0 %v543
  %587 = vmatprep.subr.mxu0 %v548
  %588 = vmatpush1.msra.mxu0 %v547
  %589 = vmatprep.subr.mxu0 %v552
  %590 = vmatpush1.msra.mxu0 %v551
  %591 = vmatprep.subr.mxu0 %v556
  %592 = vmatpush1.msra.mxu0 %v555
  %593 = vmatprep.subr.mxu0 %v560
  %594 = vmatpush1.msra.mxu0 %v559
  %595 = vmatprep.subr.mxu0 %v564
  %596 = vmatpush1.msra.mxu0 %v563
  %597 = vmatprep.subr.mxu0 %v568
  %598 = vmatpush1.msra.mxu0 %v567
  %599 = vmatprep.subr.mxu0 %v572
  %600 = vmatpush1.msra.mxu0 %v571
  %601 = vmatprep.subr.mxu0 %v576
  %602 = vmatpush1.msra.mxu0 %v575
  %603 = vmatprep.subr.mxu0 0.0
  %604 = vmatpush1.msra.mxu0 0.0
  %605 = vmatprep.subr.mxu0 0.0
  %606 = vmatpush1.msra.mxu0 0.0
  %607 = vmatprep.subr.mxu0 0.0
  %608 = vmatpush1.msra.mxu0 0.0
  %609 = vmatprep.subr.mxu0 0.0
  %610 = vmatpush1.msra.mxu0 0.0
  %611 = vmatprep.subr.mxu0 0.0
  %612 = vmatpush1.msra.mxu0 0.0
  %613 = vmatprep.subr.mxu0 0.0
  %614 = vmatpush1.msra.mxu0 0.0
  %615 = vmatprep.subr.mxu0 0.0
  %616 = vmatpush1.msra.mxu0 0.0
  %617 = vmatprep.subr.mxu0 0.0
  %618 = vmatpush1.msra.mxu0 0.0
  %619 = vmatprep.subr.mxu0 0.0
  %620 = vmatpush1.msra.mxu0 0.0
  %621 = vmatprep.subr.mxu0 0.0
  %622 = vmatpush1.msra.mxu0 0.0
  %623 = vmatprep.subr.mxu0 0.0
  %624 = vmatpush1.msra.mxu0 0.0
  %625 = vmatprep.subr.mxu0 0.0
  %626 = vmatpush1.msra.mxu0 0.0
  %627 = vmatprep.subr.mxu0 0.0
  %628 = vmatpush1.msra.mxu0 0.0
  %629 = vmatprep.subr.mxu0 0.0
  %630 = vmatpush1.msra.mxu0 0.0
  %631 = vmatprep.subr.mxu0 0.0
  %632 = vmatpush1.msra.mxu0 0.0
  %633 = vmatprep.subr.mxu0 0.0
  %634 = vmatpush1.msra.mxu0 0.0
  %635 = vmatprep.subr.mxu0 0.0
  %636 = vmatpush1.msra.mxu0 0.0
  %637 = vmatprep.subr.mxu0 0.0
  %638 = vmatpush1.msra.mxu0 0.0
  %639 = vmatprep.subr.mxu0 0.0
  %640 = vmatpush1.msra.mxu0 0.0
  %641 = vmatprep.subr.mxu0 0.0
  %642 = vmatpush1.msra.mxu0 0.0
  %643 = vmatprep.subr.mxu0 0.0
  %644 = vmatpush1.msra.mxu0 0.0
  %645 = vmatprep.subr.mxu0 0.0
  %646 = vmatpush1.msra.mxu0 0.0
  %647 = vmatprep.mubr.f32.mxu0 0.0
  %648 = vmatmul.mubr.f32.gmra.mrb[0].mxu0 %v581
  %v649 = vpop.f32.mrb[0].mxu0
  %v650 = vadd.f32 0.0, %v649
  %v651 = vpop.f32.mrb[0].mxu0
  %v652 = vadd.f32 0.0, %v651
  %653 = vdwg.mxu0
  %654 = vmatprep.subr.mxu0 %v542
  %655 = vmatpush1.msra.mxu0 %v541
  %656 = vmatprep.subr.mxu0 %v546
  %657 = vmatpush1.msra.mxu0 %v545
  %658 = vmatprep.subr.mxu0 %v550
  %659 = vmatpush1.msra.mxu0 %v549
  %660 = vmatprep.subr.mxu0 %v554
  %661 = vmatpush1.msra.mxu0 %v553
  %662 = vmatprep.subr.mxu0 %v558
  %663 = vmatpush1.msra.mxu0 %v557
  %664 = vmatprep.subr.mxu0 %v562
  %665 = vmatpush1.msra.mxu0 %v561
  %666 = vmatprep.subr.mxu0 %v566
  %667 = vmatpush1.msra.mxu0 %v565
  %668 = vmatprep.subr.mxu0 %v570
  %669 = vmatpush1.msra.mxu0 %v569
  %670 = vmatprep.subr.mxu0 %v574
  %671 = vmatpush1.msra.mxu0 %v573
  %672 = vmatprep.subr.mxu0 %v578
  %673 = vmatpush1.msra.mxu0 %v577
  %674 = vmatprep.subr.mxu0 0.0
  %675 = vmatpush1.msra.mxu0 0.0
  %676 = vmatprep.subr.mxu0 0.0
  %677 = vmatpush1.msra.mxu0 0.0
  %678 = vmatprep.subr.mxu0 0.0
  %679 = vmatpush1.msra.mxu0 0.0
  %680 = vmatprep.subr.mxu0 0.0
  %681 = vmatpush1.msra.mxu0 0.0
  %682 = vmatprep.subr.mxu0 0.0
  %683 = vmatpush1.msra.mxu0 0.0
  %684 = vmatprep.subr.mxu0 0.0
  %685 = vmatpush1.msra.mxu0 0.0
  %686 = vmatprep.subr.mxu0 0.0
  %687 = vmatpush1.msra.mxu0 0.0
  %688 = vmatprep.subr.mxu0 0.0
  %689 = vmatpush1.msra.mxu0 0.0
  %690 = vmatprep.subr.mxu0 0.0
  %691 = vmatpush1.msra.mxu0 0.0
  %692 = vmatprep.subr.mxu0 0.0
  %693 = vmatpush1.msra.mxu0 0.0
  %694 = vmatprep.subr.mxu0 0.0
  %695 = vmatpush1.msra.mxu0 0.0
  %696 = vmatprep.subr.mxu0 0.0
  %697 = vmatpush1.msra.mxu0 0.0
  %698 = vmatprep.subr.mxu0 0.0
  %699 = vmatpush1.msra.mxu0 0.0
  %700 = vmatprep.subr.mxu0 0.0
  %701 = vmatpush1.msra.mxu0 0.0
  %702 = vmatprep.subr.mxu0 0.0
  %703 = vmatpush1.msra.mxu0 0.0
  %704 = vmatprep.subr.mxu0 0.0
  %705 = vmatpush1.msra.mxu0 0.0
  %706 = vmatprep.subr.mxu0 0.0
  %707 = vmatpush1.msra.mxu0 0.0
  %708 = vmatprep.subr.mxu0 0.0
  %709 = vmatpush1.msra.mxu0 0.0
  %710 = vmatprep.subr.mxu0 0.0
  %711 = vmatpush1.msra.mxu0 0.0
  %712 = vmatprep.subr.mxu0 0.0
  %713 = vmatpush1.msra.mxu0 0.0
  %714 = vmatprep.subr.mxu0 0.0
  %715 = vmatpush1.msra.mxu0 0.0
  %716 = vmatprep.subr.mxu0 0.0
  %717 = vmatpush1.msra.mxu0 0.0
  %718 = vmatprep.mubr.f32.mxu0 0.0
  %719 = vmatmul.mubr.f32.gmra.mrb[0].mxu0 %v581
  %v720 = vpop.f32.mrb[0].mxu0
  %v721 = vadd.f32 0.0, %v720
  %v722 = vpop.f32.mrb[0].mxu0
  %v723 = vadd.f32 0.0, %v722
  %724 = vdwg.mxu0
  %v725 = vmul.f32 %v650, 0.1
  %v726 = vmul.f32 %v652, 0.1
  %v727 = vmul.f32 %v721, 0.1
  %v728 = vmul.f32 %v723, 0.1
  %v729 = vmax.f32 %v650, %v725
  %v730 = vmax.f32 %v652, %v726
  %v731 = vmax.f32 %v721, %v727
  %v732 = vmax.f32 %v723, %v728
  %v733 = vld [vmem:[%s2] sm:$0xf]
  %734 = vst [vmem:[#allocation2 + $0x8] sm:$0xf] %v729
  %735 = vst [vmem:[#allocation2 + $0x10] sm:$0xf] %v730
  %736 = vst [vmem:[%s50 + $0x8] sm:$0xf] %v731
  %737 = vst [vmem:[%s50 + $0x10] sm:$0xf] %v732
  %v738 = vld [vmem:[#allocation2] sm:$0xff]
  %v739 = vld [vmem:[#allocation2 + $0x8] sm:$0xff]
  %v740 = vld [vmem:[#allocation2 + $0x10] sm:$0xff]
  %v741 = vld [vmem:[%s3] sm:$0xff]
  %v742 = vld [vmem:[%s3 + $0x8] sm:$0xff]
  %745 = vrot.lane.b32.xlu0 %v741, 94
  %v746 = vpop.permute.xlu0 %745
  %747 = vrot.lane.b32.xlu0 %v742, 94
  %v748 = vpop.permute.xlu0 %747
  %vm749 = vcmask 769024
  %v750 = vsel %vm749, %v746, %v748
  %v754 = vmul.f32 %v738, %v746
  %v755 = vmul.f32 %v739, %v750
  %v756 = vmul.f32 %v740, %v748
  %760 = vrot.lane.b32.xlu0 %v754, 34
  %v761 = vpop.permute.xlu0 %760
  %762 = vrot.lane.b32.xlu0 %v755, 34
  %v763 = vpop.permute.xlu0 %762
  %764 = vrot.lane.b32.xlu0 %v756, 34
  %v765 = vpop.permute.xlu0 %764
  %vm766 = vcmask 277504
  %v767 = vsel %vm766, %v761, %v763
  %v768 = vsel %vm766, %v763, %v765
  %771 = vst [vmem:[#allocation3] sm:$0xff] %v767
  %772 = vst [vmem:[#allocation3 + $0x8] sm:$0xff] %v768
  %v773 = vld [vmem:[%s50] sm:$0xff]
  %v774 = vld [vmem:[%s50 + $0x8] sm:$0xff]
  %v775 = vld [vmem:[%s50 + $0x10] sm:$0xff]
  %v776 = vld [vmem:[%s3] sm:$0xff]
  %v777 = vld [vmem:[%s3 + $0x8] sm:$0xff]
  %780 = vrot.lane.b32.xlu0 %v776, 94
  %v781 = vpop.permute.xlu0 %780
  %782 = vrot.lane.b32.xlu0 %v777, 94
  %v783 = vpop.permute.xlu0 %782
  %v784 = vsel %vm749, %v781, %v783
  %v788 = vmul.f32 %v773, %v781
  %v789 = vmul.f32 %v774, %v784
  %v790 = vmul.f32 %v775, %v783
  %794 = vrot.lane.b32.xlu0 %v788, 34
  %v795 = vpop.permute.xlu0 %794
  %796 = vrot.lane.b32.xlu0 %v789, 34
  %v797 = vpop.permute.xlu0 %796
  %798 = vrot.lane.b32.xlu0 %v790, 34
  %v799 = vpop.permute.xlu0 %798
  %v800 = vsel %vm766, %v795, %v797
  %v801 = vsel %vm766, %v797, %v799
  %804 = vst [vmem:[#allocation3 + $0x10] sm:$0xff] %v800
  %805 = vst [vmem:[#allocation3 + $0x18] sm:$0xff] %v801
  %v806 = vld [vmem:[#allocation2] sm:$0xff]
  %v807 = vld [vmem:[#allocation2 + $0x8] sm:$0xff]
  %v808 = vld [vmem:[#allocation2 + $0x10] sm:$0xff]
  %812 = vrot.lane.b32.xlu0 %v806, 32
  %v813 = vpop.permute.xlu0 %812
  %814 = vrot.lane.b32.xlu0 %v807, 32
  %v815 = vpop.permute.xlu0 %814
  %816 = vrot.lane.b32.xlu0 %v808, 32
  %v817 = vpop.permute.xlu0 %816
  %vm818 = vcmask 261120
  %v819 = vsel %vm818, %v813, %v815
  %v820 = vsel %vm818, %v815, %v817
  %823 = vst [vmem:[#allocation3 + $0x20] sm:$0xff] %v819
  %824 = vst [vmem:[#allocation3 + $0x28] sm:$0xff] %v820
  %v825 = vld [vmem:[%s50] sm:$0xff]
  %v826 = vld [vmem:[%s50 + $0x8] sm:$0xff]
  %v827 = vld [vmem:[%s50 + $0x10] sm:$0xff]
  %831 = vrot.lane.b32.xlu0 %v825, 32
  %v832 = vpop.permute.xlu0 %831
  %833 = vrot.lane.b32.xlu0 %v826, 32
  %v834 = vpop.permute.xlu0 %833
  %835 = vrot.lane.b32.xlu0 %v827, 32
  %v836 = vpop.permute.xlu0 %835
  %v837 = vsel %vm818, %v832, %v834
  %v838 = vsel %vm818, %v834, %v836
  %841 = vst [vmem:[#allocation3 + $0x30] sm:$0xff] %v837
  %842 = vst [vmem:[#allocation3 + $0x38] sm:$0xff] %v838
  %v843 = vld [vmem:[#allocation2] sm:$0xff]
  %v844 = vld [vmem:[#allocation2 + $0x8] sm:$0xff]
  %v845 = vld [vmem:[#allocation2 + $0x10] sm:$0xff]
  %s846 = scalar_lea.vmem %s3, 48
  %v847 = vld [vmem:[%s846] sm:$0xff]
  %v848 = vld [vmem:[%s846 + $0x8] sm:$0xff]
  %851 = vrot.lane.b32.xlu0 %v847, 98
  %v852 = vpop.permute.xlu0 %851
  %853 = vrot.lane.b32.xlu0 %v848, 98
  %v854 = vpop.permute.xlu0 %853
  %vm855 = vcmask 801792
  %v856 = vsel %vm855, %v852, %v854
  %v860 = vmul.f32 %v843, %v852
  %v861 = vmul.f32 %v844, %v856
  %v862 = vmul.f32 %v845, %v854
  %866 = vrot.lane.b32.xlu0 %v860, 30
  %v867 = vpop.permute.xlu0 %866
  %868 = vrot.lane.b32.xlu0 %v861, 30
  %v869 = vpop.permute.xlu0 %868
  %870 = vrot.lane.b32.xlu0 %v862, 30
  %v871 = vpop.permute.xlu0 %870
  %vm872 = vcmask 244736
  %v873 = vsel %vm872, %v867, %v869
  %v874 = vsel %vm872, %v869, %v871
  %877 = vst [vmem:[#allocation3 + $0x40] sm:$0xff] %v873
  %878 = vst [vmem:[#allocation3 + $0x48] sm:$0xff] %v874
  %v879 = vld [vmem:[%s50] sm:$0xff]
  %v880 = vld [vmem:[%s50 + $0x8] sm:$0xff]
  %v881 = vld [vmem:[%s50 + $0x10] sm:$0xff]
  %v882 = vld [vmem:[%s846] sm:$0xff]
  %v883 = vld [vmem:[%s846 + $0x8] sm:$0xff]
  %886 = vrot.lane.b32.xlu0 %v882, 98
  %v887 = vpop.permute.xlu0 %886
  %888 = vrot.lane.b32.xlu0 %v883, 98
  %v889 = vpop.permute.xlu0 %888
  %v890 = vsel %vm855, %v887, %v889
  %v894 = vmul.f32 %v879, %v887
  %v895 = vmul.f32 %v880, %v890
  %v896 = vmul.f32 %v881, %v889
  %900 = vrot.lane.b32.xlu0 %v894, 30
  %v901 = vpop.permute.xlu0 %900
  %902 = vrot.lane.b32.xlu0 %v895, 30
  %v903 = vpop.permute.xlu0 %902
  %904 = vrot.lane.b32.xlu0 %v896, 30
  %v905 = vpop.permute.xlu0 %904
  %v906 = vsel %vm872, %v901, %v903
  %v907 = vsel %vm872, %v903, %v905
  %910 = vst [vmem:[#allocation3 + $0x50] sm:$0xff] %v906
  %911 = vst [vmem:[#allocation3 + $0x58] sm:$0xff] %v907
  %v912 = vld [vmem:[#allocation2] sm:$0xff]
  %v913 = vld [vmem:[#allocation2 + $0x8] sm:$0xff]
  %v914 = vld [vmem:[#allocation2 + $0x10] sm:$0xff]
  %v915 = vld [vmem:[%s3] sm:$0xff]
  %v916 = vld [vmem:[%s3 + $0x8] sm:$0xff]
  %919 = vrot.lane.b32.xlu0 %v915, 126
  %v920 = vpop.permute.xlu0 %919
  %921 = vrot.lane.b32.xlu0 %v916, 126
  %v922 = vpop.permute.xlu0 %921
  %vm923 = vcmask 1031168
  %v924 = vsel %vm923, %v920, %v922
  %v928 = vmul.f32 %v912, %v920
  %v929 = vmul.f32 %v913, %v924
  %v930 = vmul.f32 %v914, %v922
  %934 = vrot.lane.b32.xlu0 %v928, 2
  %v935 = vpop.permute.xlu0 %934
  %936 = vrot.lane.b32.xlu0 %v929, 2
  %v937 = vpop.permute.xlu0 %936
  %938 = vrot.lane.b32.xlu0 %v930, 2
  %v939 = vpop.permute.xlu0 %938
  %vm940 = vcmask 15360
  %v941 = vsel %vm940, %v935, %v937
  %v942 = vsel %vm940, %v937, %v939
  %945 = vst [vmem:[#allocation3 + $0x60] sm:$0xff] %v941
  %946 = vst [vmem:[#allocation3 + $0x68] sm:$0xff] %v942
  %v947 = vld [vmem:[%s50] sm:$0xff]
  %v948 = vld [vmem:[%s50 + $0x8] sm:$0xff]
  %v949 = vld [vmem:[%s50 + $0x10] sm:$0xff]
  %v950 = vld [vmem:[%s3] sm:$0xff]
  %v951 = vld [vmem:[%s3 + $0x8] sm:$0xff]
  %954 = vrot.lane.b32.xlu0 %v950, 126
  %v955 = vpop.permute.xlu0 %954
  %956 = vrot.lane.b32.xlu0 %v951, 126
  %v957 = vpop.permute.xlu0 %956
  %v958 = vsel %vm923, %v955, %v957
  %v962 = vmul.f32 %v947, %v955
  %v963 = vmul.f32 %v948, %v958
  %v964 = vmul.f32 %v949, %v957
  %968 = vrot.lane.b32.xlu0 %v962, 2
  %v969 = vpop.permute.xlu0 %968
  %970 = vrot.lane.b32.xlu0 %v963, 2
  %v971 = vpop.permute.xlu0 %970
  %972 = vrot.lane.b32.xlu0 %v964, 2
  %v973 = vpop.permute.xlu0 %972
  %v974 = vsel %vm940, %v969, %v971
  %v975 = vsel %vm940, %v971, %v973
  %978 = vst [vmem:[#allocation3 + $0x70] sm:$0xff] %v974
  %979 = vst [vmem:[#allocation3 + $0x78] sm:$0xff] %v975
  %v980 = vld [vmem:[#allocation2 + $0x8] sm:$0xff]
  %v981 = vld [vmem:[#allocation2 + $0x10] sm:$0xff]
  %982 = vst [vmem:[#allocation3 + $0x80] sm:$0xff] %v980
  %983 = vst [vmem:[#allocation3 + $0x88] sm:$0xff] %v981
  %v984 = vld [vmem:[%s50 + $0x8] sm:$0xff]
  %v985 = vld [vmem:[%s50 + $0x10] sm:$0xff]
  %986 = vst [vmem:[#allocation3 + $0x90] sm:$0xff] %v984
  %987 = vst [vmem:[#allocation3 + $0x98] sm:$0xff] %v985
  %v988 = vld [vmem:[#allocation2 + $0x8] sm:$0xff]
  %v989 = vld [vmem:[#allocation2 + $0x10] sm:$0xff]
  %v990 = vld [vmem:[#allocation2 + $0x18] sm:$0xff]
  %v991 = vld [vmem:[%s846] sm:$0xff]
  %v992 = vld [vmem:[%s846 + $0x8] sm:$0xff]
  %995 = vrot.lane.b32.xlu0 %v991, 2
  %v996 = vpop.permute.xlu0 %995
  %997 = vrot.lane.b32.xlu0 %v992, 2
  %v998 = vpop.permute.xlu0 %997
  %v999 = vsel %vm940, %v996, %v998
  %v1003 = vmul.f32 %v988, %v996
  %v1004 = vmul.f32 %v989, %v999
  %v1005 = vmul.f32 %v990, %v998
  %1009 = vrot.lane.b32.xlu0 %v1003, 126
  %v1010 = vpop.permute.xlu0 %1009
  %1011 = vrot.lane.b32.xlu0 %v1004, 126
  %v1012 = vpop.permute.xlu0 %1011
  %1013 = vrot.lane.b32.xlu0 %v1005, 126
  %v1014 = vpop.permute.xlu0 %1013
  %v1015 = vsel %vm923, %v1010, %v1012
  %v1016 = vsel %vm923, %v1012, %v1014
  %1019 = vst [vmem:[#allocation3 + $0xa0] sm:$0xff] %v1015
  %1020 = vst [vmem:[#allocation3 + $0xa8] sm:$0xff] %v1016
  %v1021 = vld [vmem:[%s50 + $0x8] sm:$0xff]
  %v1022 = vld [vmem:[%s50 + $0x10] sm:$0xff]
  %v1023 = vld [vmem:[%s50 + $0x18] sm:$0xff]
  %v1024 = vld [vmem:[%s846] sm:$0xff]
  %v1025 = vld [vmem:[%s846 + $0x8] sm:$0xff]
  %1028 = vrot.lane.b32.xlu0 %v1024, 2
  %v1029 = vpop.permute.xlu0 %1028
  %1030 = vrot.lane.b32.xlu0 %v1025, 2
  %v1031 = vpop.permute.xlu0 %1030
  %v1032 = vsel %vm940, %v1029, %v1031
  %v1036 = vmul.f32 %v1021, %v1029
  %v1037 = vmul.f32 %v1022, %v1032
  %v1038 = vmul.f32 %v1023, %v1031
  %1042 = vrot.lane.b32.xlu0 %v1036, 126
  %v1043 = vpop.permute.xlu0 %1042
  %1044 = vrot.lane.b32.xlu0 %v1037, 126
  %v1045 = vpop.permute.xlu0 %1044
  %1046 = vrot.lane.b32.xlu0 %v1038, 126
  %v1047 = vpop.permute.xlu0 %1046
  %v1048 = vsel %vm923, %v1043, %v1045
  %v1049 = vsel %vm923, %v1045, %v1047
  %1052 = vst [vmem:[#allocation3 + $0xb0] sm:$0xff] %v1048
  %1053 = vst [vmem:[#allocation3 + $0xb8] sm:$0xff] %v1049
  %v1054 = vld [vmem:[#allocation2 + $0x8] sm:$0xff]
  %v1055 = vld [vmem:[#allocation2 + $0x10] sm:$0xff]
  %v1056 = vld [vmem:[#allocation2 + $0x18] sm:$0xff]
  %v1057 = vld [vmem:[%s3] sm:$0xff]
  %v1058 = vld [vmem:[%s3 + $0x8] sm:$0xff]
  %1061 = vrot.lane.b32.xlu0 %v1057, 30
  %v1062 = vpop.permute.xlu0 %1061
  %1063 = vrot.lane.b32.xlu0 %v1058, 30
  %v1064 = vpop.permute.xlu0 %1063
  %v1065 = vsel %vm872, %v1062, %v1064
  %v1069 = vmul.f32 %v1054, %v1062
  %v1070 = vmul.f32 %v1055, %v1065
  %v1071 = vmul.f32 %v1056, %v1064
  %1075 = vrot.lane.b32.xlu0 %v1069, 98
  %v1076 = vpop.permute.xlu0 %1075
  %1077 = vrot.lane.b32.xlu0 %v1070, 98
  %v1078 = vpop.permute.xlu0 %1077
  %1079 = vrot.lane.b32.xlu0 %v1071, 98
  %v1080 = vpop.permute.xlu0 %1079
  %v1081 = vsel %vm855, %v1076, %v1078
  %v1082 = vsel %vm855, %v1078, %v1080
  %1085 = vst [vmem:[#allocation3 + $0xc0] sm:$0xff] %v1081
  %1086 = vst [vmem:[#allocation3 + $0xc8] sm:$0xff] %v1082
  %v1087 = vld [vmem:[%s50 + $0x8] sm:$0xff]
  %v1088 = vld [vmem:[%s50 + $0x10] sm:$0xff]
  %v1089 = vld [vmem:[%s50 + $0x18] sm:$0xff]
  %v1090 = vld [vmem:[%s3] sm:$0xff]
  %v1091 = vld [vmem:[%s3 + $0x8] sm:$0xff]
  %1094 = vrot.lane.b32.xlu0 %v1090, 30
  %v1095 = vpop.permute.xlu0 %1094
  %1096 = vrot.lane.b32.xlu0 %v1091, 30
  %v1097 = vpop.permute.xlu0 %1096
  %v1098 = vsel %vm872, %v1095, %v1097
  %v1102 = vmul.f32 %v1087, %v1095
  %v1103 = vmul.f32 %v1088, %v1098
  %v1104 = vmul.f32 %v1089, %v1097
  %1108 = vrot.lane.b32.xlu0 %v1102, 98
  %v1109 = vpop.permute.xlu0 %1108
  %1110 = vrot.lane.b32.xlu0 %v1103, 98
  %v1111 = vpop.permute.xlu0 %1110
  %1112 = vrot.lane.b32.xlu0 %v1104, 98
  %v1113 = vpop.permute.xlu0 %1112
  %v1114 = vsel %vm855, %v1109, %v1111
  %v1115 = vsel %vm855, %v1111, %v1113
  %1118 = vst [vmem:[#allocation3 + $0xd0] sm:$0xff] %v1114
  %1119 = vst [vmem:[#allocation3 + $0xd8] sm:$0xff] %v1115
  %v1120 = vld [vmem:[#allocation2 + $0x8] sm:$0xff]
  %v1121 = vld [vmem:[#allocation2 + $0x10] sm:$0xff]
  %v1122 = vld [vmem:[#allocation2 + $0x18] sm:$0xff]
  %1126 = vrot.lane.b32.xlu0 %v1120, 96
  %v1127 = vpop.permute.xlu0 %1126
  %1128 = vrot.lane.b32.xlu0 %v1121, 96
  %v1129 = vpop.permute.xlu0 %1128
  %1130 = vrot.lane.b32.xlu0 %v1122, 96
  %v1131 = vpop.permute.xlu0 %1130
  %vm1132 = vcmask 785408
  %v1133 = vsel %vm1132, %v1127, %v1129
  %v1134 = vsel %vm1132, %v1129, %v1131
  %1137 = vst [vmem:[#allocation3 + $0xe0] sm:$0xff] %v1133
  %1138 = vst [vmem:[#allocation3 + $0xe8] sm:$0xff] %v1134
  %v1139 = vld [vmem:[%s50 + $0x8] sm:$0xff]
  %v1140 = vld [vmem:[%s50 + $0x10] sm:$0xff]
  %v1141 = vld [vmem:[%s50 + $0x18] sm:$0xff]
  %1145 = vrot.lane.b32.xlu0 %v1139, 96
  %v1146 = vpop.permute.xlu0 %1145
  %1147 = vrot.lane.b32.xlu0 %v1140, 96
  %v1148 = vpop.permute.xlu0 %1147
  %1149 = vrot.lane.b32.xlu0 %v1141, 96
  %v1150 = vpop.permute.xlu0 %1149
  %v1151 = vsel %vm1132, %v1146, %v1148
  %v1152 = vsel %vm1132, %v1148, %v1150
  %1155 = vst [vmem:[#allocation3 + $0xf0] sm:$0xff] %v1151
  %1156 = vst [vmem:[#allocation3 + $0xf8] sm:$0xff] %v1152
  %v1157 = vld [vmem:[#allocation2 + $0x8] sm:$0xff]
  %v1158 = vld [vmem:[#allocation2 + $0x10] sm:$0xff]
  %v1159 = vld [vmem:[#allocation2 + $0x18] sm:$0xff]
  %v1160 = vld [vmem:[%s846] sm:$0xff]
  %v1161 = vld [vmem:[%s846 + $0x8] sm:$0xff]
  %1164 = vrot.lane.b32.xlu0 %v1160, 34
  %v1165 = vpop.permute.xlu0 %1164
  %1166 = vrot.lane.b32.xlu0 %v1161, 34
  %v1167 = vpop.permute.xlu0 %1166
  %v1168 = vsel %vm766, %v1165, %v1167
  %v1172 = vmul.f32 %v1157, %v1165
  %v1173 = vmul.f32 %v1158, %v1168
  %v1174 = vmul.f32 %v1159, %v1167
  %1178 = vrot.lane.b32.xlu0 %v1172, 94
  %v1179 = vpop.permute.xlu0 %1178
  %1180 = vrot.lane.b32.xlu0 %v1173, 94
  %v1181 = vpop.permute.xlu0 %1180
  %1182 = vrot.lane.b32.xlu0 %v1174, 94
  %v1183 = vpop.permute.xlu0 %1182
  %v1184 = vsel %vm749, %v1179, %v1181
  %v1185 = vsel %vm749, %v1181, %v1183
  %1188 = vst [vmem:[#allocation3 + $0x100] sm:$0xff] %v1184
  %1189 = vst [vmem:[#allocation3 + $0x108] sm:$0xff] %v1185
  %v1190 = vld [vmem:[%s50 + $0x8] sm:$0xff]
  %v1191 = vld [vmem:[%s50 + $0x10] sm:$0xff]
  %v1192 = vld [vmem:[%s50 + $0x18] sm:$0xff]
  %v1193 = vld [vmem:[%s846] sm:$0xff]
  %v1194 = vld [vmem:[%s846 + $0x8] sm:$0xff]
  %1197 = vrot.lane.b32.xlu0 %v1193, 34
  %v1198 = vpop.permute.xlu0 %1197
  %1199 = vrot.lane.b32.xlu0 %v1194, 34
  %v1200 = vpop.permute.xlu0 %1199
  %v1201 = vsel %vm766, %v1198, %v1200
  %v1205 = vmul.f32 %v1190, %v1198
  %v1206 = vmul.f32 %v1191, %v1201
  %v1207 = vmul.f32 %v1192, %v1200
  %1211 = vrot.lane.b32.xlu0 %v1205, 94
  %v1212 = vpop.permute.xlu0 %1211
  %1213 = vrot.lane.b32.xlu0 %v1206, 94
  %v1214 = vpop.permute.xlu0 %1213
  %1215 = vrot.lane.b32.xlu0 %v1207, 94
  %v1216 = vpop.permute.xlu0 %1215
  %v1217 = vsel %vm749, %v1212, %v1214
  %v1218 = vsel %vm749, %v1214, %v1216
  %1221 = vst [vmem:[#allocation3 + $0x110] sm:$0xff] %v1217
  %1222 = vst [vmem:[#allocation3 + $0x118] sm:$0xff] %v1218
  %v1223 = vld [vmem:[#allocation3] sm:$0xff]
  %v1224 = vld [vmem:[#allocation3 + $0x8] sm:$0xff]
  %v1225 = vld [vmem:[#allocation3 + $0x10] sm:$0xff]
  %v1226 = vld [vmem:[#allocation3 + $0x18] sm:$0xff]
  %v1227 = vld [vmem:[#allocation3 + $0x20] sm:$0xff]
  %v1228 = vld [vmem:[#allocation3 + $0x28] sm:$0xff]
  %v1229 = vld [vmem:[#allocation3 + $0x30] sm:$0xff]
  %v1230 = vld [vmem:[#allocation3 + $0x38] sm:$0xff]
  %v1231 = vld [vmem:[#allocation3 + $0x40] sm:$0xff]
  %v1232 = vld [vmem:[#allocation3 + $0x48] sm:$0xff]
  %v1233 = vld [vmem:[#allocation3 + $0x50] sm:$0xff]
  %v1234 = vld [vmem:[#allocation3 + $0x58] sm:$0xff]
  %v1235 = vld [vmem:[#allocation3 + $0x60] sm:$0xff]
  %v1236 = vld [vmem:[#allocation3 + $0x68] sm:$0xff]
  %v1237 = vld [vmem:[#allocation3 + $0x70] sm:$0xff]
  %v1238 = vld [vmem:[#allocation3 + $0x78] sm:$0xff]
  %v1239 = vld [vmem:[#allocation3 + $0x80] sm:$0xff]
  %v1240 = vld [vmem:[#allocation3 + $0x88] sm:$0xff]
  %v1241 = vld [vmem:[#allocation3 + $0x90] sm:$0xff]
  %v1242 = vld [vmem:[#allocation3 + $0x98] sm:$0xff]
  %v1243 = vld [vmem:[#allocation3 + $0xa0] sm:$0xff]
  %v1244 = vld [vmem:[#allocation3 + $0xa8] sm:$0xff]
  %v1245 = vld [vmem:[#allocation3 + $0xb0] sm:$0xff]
  %v1246 = vld [vmem:[#allocation3 + $0xb8] sm:$0xff]
  %v1247 = vld [vmem:[#allocation3 + $0xc0] sm:$0xff]
  %v1248 = vld [vmem:[#allocation3 + $0xc8] sm:$0xff]
  %v1249 = vld [vmem:[#allocation3 + $0xd0] sm:$0xff]
  %v1250 = vld [vmem:[#allocation3 + $0xd8] sm:$0xff]
  %v1251 = vld [vmem:[#allocation3 + $0xe0] sm:$0xff]
  %v1252 = vld [vmem:[#allocation3 + $0xe8] sm:$0xff]
  %v1253 = vld [vmem:[#allocation3 + $0xf0] sm:$0xff]
  %v1254 = vld [vmem:[#allocation3 + $0xf8] sm:$0xff]
  %v1255 = vld [vmem:[#allocation3 + $0x100] sm:$0xff]
  %v1256 = vld [vmem:[#allocation3 + $0x108] sm:$0xff]
  %v1257 = vld [vmem:[#allocation3 + $0x110] sm:$0xff]
  %v1258 = vld [vmem:[#allocation3 + $0x118] sm:$0xff]
  %v1259 = vld [vmem:[#allocation3 + $0x120] sm:$0xff]
  %v1260 = vld [vmem:[#allocation3 + $0x128] sm:$0xff]
  %v1261 = vld [vmem:[#allocation3 + $0x130] sm:$0xff]
  %v1262 = vld [vmem:[#allocation3 + $0x138] sm:$0xff]
  %v1264 = vsel %vm579, %v733, 0
  %1266 = vmatprep.subr.mxu0 %v1224
  %1267 = vmatpush1.msra.mxu0 %v1223
  %1268 = vmatprep.subr.mxu0 %v1228
  %1269 = vmatpush1.msra.mxu0 %v1227
  %1270 = vmatprep.subr.mxu0 %v1232
  %1271 = vmatpush1.msra.mxu0 %v1231
  %1272 = vmatprep.subr.mxu0 %v1236
  %1273 = vmatpush1.msra.mxu0 %v1235
  %1274 = vmatprep.subr.mxu0 %v1240
  %1275 = vmatpush1.msra.mxu0 %v1239
  %1276 = vmatprep.subr.mxu0 %v1244
  %1277 = vmatpush1.msra.mxu0 %v1243
  %1278 = vmatprep.subr.mxu0 %v1248
  %1279 = vmatpush1.msra.mxu0 %v1247
  %1280 = vmatprep.subr.mxu0 %v1252
  %1281 = vmatpush1.msra.mxu0 %v1251
  %1282 = vmatprep.subr.mxu0 %v1256
  %1283 = vmatpush1.msra.mxu0 %v1255
  %1284 = vmatprep.subr.mxu0 %v1260
  %1285 = vmatpush1.msra.mxu0 %v1259
  %1286 = vmatprep.subr.mxu0 0.0
  %1287 = vmatpush1.msra.mxu0 0.0
  %1288 = vmatprep.subr.mxu0 0.0
  %1289 = vmatpush1.msra.mxu0 0.0
  %1290 = vmatprep.subr.mxu0 0.0
  %1291 = vmatpush1.msra.mxu0 0.0
  %1292 = vmatprep.subr.mxu0 0.0
  %1293 = vmatpush1.msra.mxu0 0.0
  %1294 = vmatprep.subr.mxu0 0.0
  %1295 = vmatpush1.msra.mxu0 0.0
  %1296 = vmatprep.subr.mxu0 0.0
  %1297 = vmatpush1.msra.mxu0 0.0
  %1298 = vmatprep.subr.mxu0 0.0
  %1299 = vmatpush1.msra.mxu0 0.0
  %1300 = vmatprep.subr.mxu0 0.0
  %1301 = vmatpush1.msra.mxu0 0.0
  %1302 = vmatprep.subr.mxu0 0.0
  %1303 = vmatpush1.msra.mxu0 0.0
  %1304 = vmatprep.subr.mxu0 0.0
  %1305 = vmatpush1.msra.mxu0 0.0
  %1306 = vmatprep.subr.mxu0 0.0
  %1307 = vmatpush1.msra.mxu0 0.0
  %1308 = vmatprep.subr.mxu0 0.0
  %1309 = vmatpush1.msra.mxu0 0.0
  %1310 = vmatprep.subr.mxu0 0.0
  %1311 = vmatpush1.msra.mxu0 0.0
  %1312 = vmatprep.subr.mxu0 0.0
  %1313 = vmatpush1.msra.mxu0 0.0
  %1314 = vmatprep.subr.mxu0 0.0
  %1315 = vmatpush1.msra.mxu0 0.0
  %1316 = vmatprep.subr.mxu0 0.0
  %1317 = vmatpush1.msra.mxu0 0.0
  %1318 = vmatprep.subr.mxu0 0.0
  %1319 = vmatpush1.msra.mxu0 0.0
  %1320 = vmatprep.subr.mxu0 0.0
  %1321 = vmatpush1.msra.mxu0 0.0
  %1322 = vmatprep.subr.mxu0 0.0
  %1323 = vmatpush1.msra.mxu0 0.0
  %1324 = vmatprep.subr.mxu0 0.0
  %1325 = vmatpush1.msra.mxu0 0.0
  %1326 = vmatprep.subr.mxu0 0.0
  %1327 = vmatpush1.msra.mxu0 0.0
  %1328 = vmatprep.subr.mxu0 0.0
  %1329 = vmatpush1.msra.mxu0 0.0
  %1330 = vmatprep.mubr.f32.mxu0 0.0
  %1331 = vmatmul.mubr.f32.gmra.mrb[0].mxu0 %v1264
  %v1332 = vpop.f32.mrb[0].mxu0
  %v1333 = vadd.f32 0.0, %v1332
  %v1334 = vpop.f32.mrb[0].mxu0
  %v1335 = vadd.f32 0.0, %v1334
  %1336 = vdwg.mxu0
  %1337 = vmatprep.subr.mxu0 %v1226
  %1338 = vmatpush1.msra.mxu0 %v1225
  %1339 = vmatprep.subr.mxu0 %v1230
  %1340 = vmatpush1.msra.mxu0 %v1229
  %1341 = vmatprep.subr.mxu0 %v1234
  %1342 = vmatpush1.msra.mxu0 %v1233
  %1343 = vmatprep.subr.mxu0 %v1238
  %1344 = vmatpush1.msra.mxu0 %v1237
  %1345 = vmatprep.subr.mxu0 %v1242
  %1346 = vmatpush1.msra.mxu0 %v1241
  %1347 = vmatprep.subr.mxu0 %v1246
  %1348 = vmatpush1.msra.mxu0 %v1245
  %1349 = vmatprep.subr.mxu0 %v1250
  %1350 = vmatpush1.msra.mxu0 %v1249
  %1351 = vmatprep.subr.mxu0 %v1254
  %1352 = vmatpush1.msra.mxu0 %v1253
  %1353 = vmatprep.subr.mxu0 %v1258
  %1354 = vmatpush1.msra.mxu0 %v1257
  %1355 = vmatprep.subr.mxu0 %v1262
  %1356 = vmatpush1.msra.mxu0 %v1261
  %1357 = vmatprep.subr.mxu0 0.0
  %1358 = vmatpush1.msra.mxu0 0.0
  %1359 = vmatprep.subr.mxu0 0.0
  %1360 = vmatpush1.msra.mxu0 0.0
  %1361 = vmatprep.subr.mxu0 0.0
  %1362 = vmatpush1.msra.mxu0 0.0
  %1363 = vmatprep.subr.mxu0 0.0
  %1364 = vmatpush1.msra.mxu0 0.0
  %1365 = vmatprep.subr.mxu0 0.0
  %1366 = vmatpush1.msra.mxu0 0.0
  %1367 = vmatprep.subr.mxu0 0.0
  %1368 = vmatpush1.msra.mxu0 0.0
  %1369 = vmatprep.subr.mxu0 0.0
  %1370 = vmatpush1.msra.mxu0 0.0
  %1371 = vmatprep.subr.mxu0 0.0
  %1372 = vmatpush1.msra.mxu0 0.0
  %1373 = vmatprep.subr.mxu0 0.0
  %1374 = vmatpush1.msra.mxu0 0.0
  %1375 = vmatprep.subr.mxu0 0.0
  %1376 = vmatpush1.msra.mxu0 0.0
  %1377 = vmatprep.subr.mxu0 0.0
  %1378 = vmatpush1.msra.mxu0 0.0
  %1379 = vmatprep.subr.mxu0 0.0
  %1380 = vmatpush1.msra.mxu0 0.0
  %1381 = vmatprep.subr.mxu0 0.0
  %1382 = vmatpush1.msra.mxu0 0.0
  %1383 = vmatprep.subr.mxu0 0.0
  %1384 = vmatpush1.msra.mxu0 0.0
  %1385 = vmatprep.subr.mxu0 0.0
  %1386 = vmatpush1.msra.mxu0 0.0
  %1387 = vmatprep.subr.mxu0 0.0
  %1388 = vmatpush1.msra.mxu0 0.0
  %1389 = vmatprep.subr.mxu0 0.0
  %1390 = vmatpush1.msra.mxu0 0.0
  %1391 = vmatprep.subr.mxu0 0.0
  %1392 = vmatpush1.msra.mxu0 0.0
  %1393 = vmatprep.subr.mxu0 0.0
  %1394 = vmatpush1.msra.mxu0 0.0
  %1395 = vmatprep.subr.mxu0 0.0
  %1396 = vmatpush1.msra.mxu0 0.0
  %1397 = vmatprep.subr.mxu0 0.0
  %1398 = vmatpush1.msra.mxu0 0.0
  %1399 = vmatprep.subr.mxu0 0.0
  %1400 = vmatpush1.msra.mxu0 0.0
  %1401 = vmatprep.mubr.f32.mxu0 0.0
  %1402 = vmatmul.mubr.f32.gmra.mrb[0].mxu0 %v1264
  %v1403 = vpop.f32.mrb[0].mxu0
  %v1404 = vadd.f32 0.0, %v1403
  %v1405 = vpop.f32.mrb[0].mxu0
  %v1406 = vadd.f32 0.0, %v1405
  %1407 = vdwg.mxu0
  %v1408 = vld [vmem:[#allocation4] sm:$0xff]
  %v1411 = vcombine.low %v1333, %v1335
  %v1413 = vadd.f32 %v1408, %v1411
  %1414 = vst [vmem:[#allocation4] sm:$0xff] %v1413
  %v1415 = vld [vmem:[%s45] sm:$0xff]
  %v1418 = vcombine.low %v1404, %v1406
  %v1420 = vadd.f32 %v1415, %v1418
  %1421 = vst [vmem:[%s45] sm:$0xff] %v1420
  %s1422 = scalar_lea.vmem %s1, 4
  %v1423 = vld [vmem:[%s1422] sm:$0xf]
  %v1424 = vld [vmem:[#allocation4] sm:$0xff]
  %v1426 = vcombine.high %v1424, %v1424
  %1428 = vst [vmem:[#allocation2 + $0x8] sm:$0xf] %v1424
  %1429 = vst [vmem:[#allocation2 + $0x10] sm:$0xf] %v1426
  %v1430 = vld [vmem:[%s45] sm:$0xff]
  %v1432 = vcombine.high %v1430, %v1430
  %1434 = vst [vmem:[%s50 + $0x8] sm:$0xf] %v1430
  %1435 = vst [vmem:[%s50 + $0x10] sm:$0xf] %v1432
  %v1436 = vld [vmem:[#allocation2] sm:$0xff]
  %v1437 = vld [vmem:[#allocation2 + $0x8] sm:$0xff]
  %v1438 = vld [vmem:[#allocation2 + $0x10] sm:$0xff]
  %v1439 = vld [vmem:[%s56] sm:$0xff]
  %v1440 = vld [vmem:[%s56 + $0x8] sm:$0xff]
  %1443 = vrot.lane.b32.xlu0 %v1439, 111
  %v1444 = vpop.permute.xlu0 %1443
  %1445 = vrot.lane.b32.xlu0 %v1440, 111
  %v1446 = vpop.permute.xlu0 %1445
  %v1447 = vsel %vm65, %v1444, %v1446
  %v1451 = vmul.f32 %v1436, %v1444
  %v1452 = vmul.f32 %v1437, %v1447
  %v1453 = vmul.f32 %v1438, %v1446
  %1457 = vrot.lane.b32.xlu0 %v1451, 17
  %v1458 = vpop.permute.xlu0 %1457
  %1459 = vrot.lane.b32.xlu0 %v1452, 17
  %v1460 = vpop.permute.xlu0 %1459
  %1461 = vrot.lane.b32.xlu0 %v1453, 17
  %v1462 = vpop.permute.xlu0 %1461
  %v1463 = vsel %vm82, %v1458, %v1460
  %v1464 = vsel %vm82, %v1460, %v1462
  %1467 = vst [vmem:[#allocation3] sm:$0xff] %v1463
  %1468 = vst [vmem:[#allocation3 + $0x8] sm:$0xff] %v1464
  %v1469 = vld [vmem:[%s50] sm:$0xff]
  %v1470 = vld [vmem:[%s50 + $0x8] sm:$0xff]
  %v1471 = vld [vmem:[%s50 + $0x10] sm:$0xff]
  %v1472 = vld [vmem:[%s56] sm:$0xff]
  %v1473 = vld [vmem:[%s56 + $0x8] sm:$0xff]
  %1476 = vrot.lane.b32.xlu0 %v1472, 111
  %v1477 = vpop.permute.xlu0 %1476
  %1478 = vrot.lane.b32.xlu0 %v1473, 111
  %v1479 = vpop.permute.xlu0 %1478
  %v1480 = vsel %vm65, %v1477, %v1479
  %v1484 = vmul.f32 %v1469, %v1477
  %v1485 = vmul.f32 %v1470, %v1480
  %v1486 = vmul.f32 %v1471, %v1479
  %1490 = vrot.lane.b32.xlu0 %v1484, 17
  %v1491 = vpop.permute.xlu0 %1490
  %1492 = vrot.lane.b32.xlu0 %v1485, 17
  %v1493 = vpop.permute.xlu0 %1492
  %1494 = vrot.lane.b32.xlu0 %v1486, 17
  %v1495 = vpop.permute.xlu0 %1494
  %v1496 = vsel %vm82, %v1491, %v1493
  %v1497 = vsel %vm82, %v1493, %v1495
  %1500 = vst [vmem:[#allocation3 + $0x10] sm:$0xff] %v1496
  %1501 = vst [vmem:[#allocation3 + $0x18] sm:$0xff] %v1497
  %v1502 = vld [vmem:[#allocation2] sm:$0xff]
  %v1503 = vld [vmem:[#allocation2 + $0x8] sm:$0xff]
  %v1504 = vld [vmem:[#allocation2 + $0x10] sm:$0xff]
  %1508 = vrot.lane.b32.xlu0 %v1502, 16
  %v1509 = vpop.permute.xlu0 %1508
  %1510 = vrot.lane.b32.xlu0 %v1503, 16
  %v1511 = vpop.permute.xlu0 %1510
  %1512 = vrot.lane.b32.xlu0 %v1504, 16
  %v1513 = vpop.permute.xlu0 %1512
  %v1514 = vsel %vm134, %v1509, %v1511
  %v1515 = vsel %vm134, %v1511, %v1513
  %1518 = vst [vmem:[#allocation3 + $0x20] sm:$0xff] %v1514
  %1519 = vst [vmem:[#allocation3 + $0x28] sm:$0xff] %v1515
  %v1520 = vld [vmem:[%s50] sm:$0xff]
  %v1521 = vld [vmem:[%s50 + $0x8] sm:$0xff]
  %v1522 = vld [vmem:[%s50 + $0x10] sm:$0xff]
  %1526 = vrot.lane.b32.xlu0 %v1520, 16
  %v1527 = vpop.permute.xlu0 %1526
  %1528 = vrot.lane.b32.xlu0 %v1521, 16
  %v1529 = vpop.permute.xlu0 %1528
  %1530 = vrot.lane.b32.xlu0 %v1522, 16
  %v1531 = vpop.permute.xlu0 %1530
  %v1532 = vsel %vm134, %v1527, %v1529
  %v1533 = vsel %vm134, %v1529, %v1531
  %1536 = vst [vmem:[#allocation3 + $0x30] sm:$0xff] %v1532
  %1537 = vst [vmem:[#allocation3 + $0x38] sm:$0xff] %v1533
  %v1538 = vld [vmem:[#allocation2] sm:$0xff]
  %v1539 = vld [vmem:[#allocation2 + $0x8] sm:$0xff]
  %v1540 = vld [vmem:[#allocation2 + $0x10] sm:$0xff]
  %v1541 = vld [vmem:[%s162] sm:$0xff]
  %v1542 = vld [vmem:[%s162 + $0x8] sm:$0xff]
  %1545 = vrot.lane.b32.xlu0 %v1541, 113
  %v1546 = vpop.permute.xlu0 %1545
  %1547 = vrot.lane.b32.xlu0 %v1542, 113
  %v1548 = vpop.permute.xlu0 %1547
  %v1549 = vsel %vm171, %v1546, %v1548
  %v1553 = vmul.f32 %v1538, %v1546
  %v1554 = vmul.f32 %v1539, %v1549
  %v1555 = vmul.f32 %v1540, %v1548
  %1559 = vrot.lane.b32.xlu0 %v1553, 15
  %v1560 = vpop.permute.xlu0 %1559
  %1561 = vrot.lane.b32.xlu0 %v1554, 15
  %v1562 = vpop.permute.xlu0 %1561
  %1563 = vrot.lane.b32.xlu0 %v1555, 15
  %v1564 = vpop.permute.xlu0 %1563
  %v1565 = vsel %vm188, %v1560, %v1562
  %v1566 = vsel %vm188, %v1562, %v1564
  %1569 = vst [vmem:[#allocation3 + $0x40] sm:$0xff] %v1565
  %1570 = vst [vmem:[#allocation3 + $0x48] sm:$0xff] %v1566
  %v1571 = vld [vmem:[%s50] sm:$0xff]
  %v1572 = vld [vmem:[%s50 + $0x8] sm:$0xff]
  %v1573 = vld [vmem:[%s50 + $0x10] sm:$0xff]
  %v1574 = vld [vmem:[%s162] sm:$0xff]
  %v1575 = vld [vmem:[%s162 + $0x8] sm:$0xff]
  %1578 = vrot.lane.b32.xlu0 %v1574, 113
  %v1579 = vpop.permute.xlu0 %1578
  %1580 = vrot.lane.b32.xlu0 %v1575, 113
  %v1581 = vpop.permute.xlu0 %1580
  %v1582 = vsel %vm171, %v1579, %v1581
  %v1586 = vmul.f32 %v1571, %v1579
  %v1587 = vmul.f32 %v1572, %v1582
  %v1588 = vmul.f32 %v1573, %v1581
  %1592 = vrot.lane.b32.xlu0 %v1586, 15
  %v1593 = vpop.permute.xlu0 %1592
  %1594 = vrot.lane.b32.xlu0 %v1587, 15
  %v1595 = vpop.permute.xlu0 %1594
  %1596 = vrot.lane.b32.xlu0 %v1588, 15
  %v1597 = vpop.permute.xlu0 %1596
  %v1598 = vsel %vm188, %v1593, %v1595
  %v1599 = vsel %vm188, %v1595, %v1597
  %1602 = vst [vmem:[#allocation3 + $0x50] sm:$0xff] %v1598
  %1603 = vst [vmem:[#allocation3 + $0x58] sm:$0xff] %v1599
  %v1604 = vld [vmem:[#allocation2] sm:$0xff]
  %v1605 = vld [vmem:[#allocation2 + $0x8] sm:$0xff]
  %v1606 = vld [vmem:[#allocation2 + $0x10] sm:$0xff]
  %v1607 = vld [vmem:[%s56] sm:$0xff]
  %v1608 = vld [vmem:[%s56 + $0x8] sm:$0xff]
  %1611 = vrot.lane.b32.xlu0 %v1607, 127
  %v1612 = vpop.permute.xlu0 %1611
  %1613 = vrot.lane.b32.xlu0 %v1608, 127
  %v1614 = vpop.permute.xlu0 %1613
  %v1615 = vsel %vm239, %v1612, %v1614
  %v1619 = vmul.f32 %v1604, %v1612
  %v1620 = vmul.f32 %v1605, %v1615
  %v1621 = vmul.f32 %v1606, %v1614
  %1625 = vrot.lane.b32.xlu0 %v1619, 1
  %v1626 = vpop.permute.xlu0 %1625
  %1627 = vrot.lane.b32.xlu0 %v1620, 1
  %v1628 = vpop.permute.xlu0 %1627
  %1629 = vrot.lane.b32.xlu0 %v1621, 1
  %v1630 = vpop.permute.xlu0 %1629
  %v1631 = vsel %vm256, %v1626, %v1628
  %v1632 = vsel %vm256, %v1628, %v1630
  %1635 = vst [vmem:[#allocation3 + $0x60] sm:$0xff] %v1631
  %1636 = vst [vmem:[#allocation3 + $0x68] sm:$0xff] %v1632
  %v1637 = vld [vmem:[%s50] sm:$0xff]
  %v1638 = vld [vmem:[%s50 + $0x8] sm:$0xff]
  %v1639 = vld [vmem:[%s50 + $0x10] sm:$0xff]
  %v1640 = vld [vmem:[%s56] sm:$0xff]
  %v1641 = vld [vmem:[%s56 + $0x8] sm:$0xff]
  %1644 = vrot.lane.b32.xlu0 %v1640, 127
  %v1645 = vpop.permute.xlu0 %1644
  %1646 = vrot.lane.b32.xlu0 %v1641, 127
  %v1647 = vpop.permute.xlu0 %1646
  %v1648 = vsel %vm239, %v1645, %v1647
  %v1652 = vmul.f32 %v1637, %v1645
  %v1653 = vmul.f32 %v1638, %v1648
  %v1654 = vmul.f32 %v1639, %v1647
  %1658 = vrot.lane.b32.xlu0 %v1652, 1
  %v1659 = vpop.permute.xlu0 %1658
  %1660 = vrot.lane.b32.xlu0 %v1653, 1
  %v1661 = vpop.permute.xlu0 %1660
  %1662 = vrot.lane.b32.xlu0 %v1654, 1
  %v1663 = vpop.permute.xlu0 %1662
  %v1664 = vsel %vm256, %v1659, %v1661
  %v1665 = vsel %vm256, %v1661, %v1663
  %1668 = vst [vmem:[#allocation3 + $0x70] sm:$0xff] %v1664
  %1669 = vst [vmem:[#allocation3 + $0x78] sm:$0xff] %v1665
  %v1670 = vld [vmem:[#allocation2 + $0x8] sm:$0xff]
  %v1671 = vld [vmem:[#allocation2 + $0x10] sm:$0xff]
  %1672 = vst [vmem:[#allocation3 + $0x80] sm:$0xff] %v1670
  %1673 = vst [vmem:[#allocation3 + $0x88] sm:$0xff] %v1671
  %v1674 = vld [vmem:[%s50 + $0x8] sm:$0xff]
  %v1675 = vld [vmem:[%s50 + $0x10] sm:$0xff]
  %1676 = vst [vmem:[#allocation3 + $0x90] sm:$0xff] %v1674
  %1677 = vst [vmem:[#allocation3 + $0x98] sm:$0xff] %v1675
  %v1678 = vld [vmem:[#allocation2 + $0x8] sm:$0xff]
  %v1679 = vld [vmem:[#allocation2 + $0x10] sm:$0xff]
  %v1680 = vld [vmem:[#allocation2 + $0x18] sm:$0xff]
  %v1681 = vld [vmem:[%s162] sm:$0xff]
  %v1682 = vld [vmem:[%s162 + $0x8] sm:$0xff]
  %1685 = vrot.lane.b32.xlu0 %v1681, 1
  %v1686 = vpop.permute.xlu0 %1685
  %1687 = vrot.lane.b32.xlu0 %v1682, 1
  %v1688 = vpop.permute.xlu0 %1687
  %v1689 = vsel %vm256, %v1686, %v1688
  %v1693 = vmul.f32 %v1678, %v1686
  %v1694 = vmul.f32 %v1679, %v1689
  %v1695 = vmul.f32 %v1680, %v1688
  %1699 = vrot.lane.b32.xlu0 %v1693, 127
  %v1700 = vpop.permute.xlu0 %1699
  %1701 = vrot.lane.b32.xlu0 %v1694, 127
  %v1702 = vpop.permute.xlu0 %1701
  %1703 = vrot.lane.b32.xlu0 %v1695, 127
  %v1704 = vpop.permute.xlu0 %1703
  %v1705 = vsel %vm239, %v1700, %v1702
  %v1706 = vsel %vm239, %v1702, %v1704
  %1709 = vst [vmem:[#allocation3 + $0xa0] sm:$0xff] %v1705
  %1710 = vst [vmem:[#allocation3 + $0xa8] sm:$0xff] %v1706
  %v1711 = vld [vmem:[%s50 + $0x8] sm:$0xff]
  %v1712 = vld [vmem:[%s50 + $0x10] sm:$0xff]
  %v1713 = vld [vmem:[%s50 + $0x18] sm:$0xff]
  %v1714 = vld [vmem:[%s162] sm:$0xff]
  %v1715 = vld [vmem:[%s162 + $0x8] sm:$0xff]
  %1718 = vrot.lane.b32.xlu0 %v1714, 1
  %v1719 = vpop.permute.xlu0 %1718
  %1720 = vrot.lane.b32.xlu0 %v1715, 1
  %v1721 = vpop.permute.xlu0 %1720
  %v1722 = vsel %vm256, %v1719, %v1721
  %v1726 = vmul.f32 %v1711, %v1719
  %v1727 = vmul.f32 %v1712, %v1722
  %v1728 = vmul.f32 %v1713, %v1721
  %1732 = vrot.lane.b32.xlu0 %v1726, 127
  %v1733 = vpop.permute.xlu0 %1732
  %1734 = vrot.lane.b32.xlu0 %v1727, 127
  %v1735 = vpop.permute.xlu0 %1734
  %1736 = vrot.lane.b32.xlu0 %v1728, 127
  %v1737 = vpop.permute.xlu0 %1736
  %v1738 = vsel %vm239, %v1733, %v1735
  %v1739 = vsel %vm239, %v1735, %v1737
  %1742 = vst [vmem:[#allocation3 + $0xb0] sm:$0xff] %v1738
  %1743 = vst [vmem:[#allocation3 + $0xb8] sm:$0xff] %v1739
  %v1744 = vld [vmem:[#allocation2 + $0x8] sm:$0xff]
  %v1745 = vld [vmem:[#allocation2 + $0x10] sm:$0xff]
  %v1746 = vld [vmem:[#allocation2 + $0x18] sm:$0xff]
  %v1747 = vld [vmem:[%s56] sm:$0xff]
  %v1748 = vld [vmem:[%s56 + $0x8] sm:$0xff]
  %1751 = vrot.lane.b32.xlu0 %v1747, 15
  %v1752 = vpop.permute.xlu0 %1751
  %1753 = vrot.lane.b32.xlu0 %v1748, 15
  %v1754 = vpop.permute.xlu0 %1753
  %v1755 = vsel %vm188, %v1752, %v1754
  %v1759 = vmul.f32 %v1744, %v1752
  %v1760 = vmul.f32 %v1745, %v1755
  %v1761 = vmul.f32 %v1746, %v1754
  %1765 = vrot.lane.b32.xlu0 %v1759, 113
  %v1766 = vpop.permute.xlu0 %1765
  %1767 = vrot.lane.b32.xlu0 %v1760, 113
  %v1768 = vpop.permute.xlu0 %1767
  %1769 = vrot.lane.b32.xlu0 %v1761, 113
  %v1770 = vpop.permute.xlu0 %1769
  %v1771 = vsel %vm171, %v1766, %v1768
  %v1772 = vsel %vm171, %v1768, %v1770
  %1775 = vst [vmem:[#allocation3 + $0xc0] sm:$0xff] %v1771
  %1776 = vst [vmem:[#allocation3 + $0xc8] sm:$0xff] %v1772
  %v1777 = vld [vmem:[%s50 + $0x8] sm:$0xff]
  %v1778 = vld [vmem:[%s50 + $0x10] sm:$0xff]
  %v1779 = vld [vmem:[%s50 + $0x18] sm:$0xff]
  %v1780 = vld [vmem:[%s56] sm:$0xff]
  %v1781 = vld [vmem:[%s56 + $0x8] sm:$0xff]
  %1784 = vrot.lane.b32.xlu0 %v1780, 15
  %v1785 = vpop.permute.xlu0 %1784
  %1786 = vrot.lane.b32.xlu0 %v1781, 15
  %v1787 = vpop.permute.xlu0 %1786
  %v1788 = vsel %vm188, %v1785, %v1787
  %v1792 = vmul.f32 %v1777, %v1785
  %v1793 = vmul.f32 %v1778, %v1788
  %v1794 = vmul.f32 %v1779, %v1787
  %1798 = vrot.lane.b32.xlu0 %v1792, 113
  %v1799 = vpop.permute.xlu0 %1798
  %1800 = vrot.lane.b32.xlu0 %v1793, 113
  %v1801 = vpop.permute.xlu0 %1800
  %1802 = vrot.lane.b32.xlu0 %v1794, 113
  %v1803 = vpop.permute.xlu0 %1802
  %v1804 = vsel %vm171, %v1799, %v1801
  %v1805 = vsel %vm171, %v1801, %v1803
  %1808 = vst [vmem:[#allocation3 + $0xd0] sm:$0xff] %v1804
  %1809 = vst [vmem:[#allocation3 + $0xd8] sm:$0xff] %v1805
  %v1810 = vld [vmem:[#allocation2 + $0x8] sm:$0xff]
  %v1811 = vld [vmem:[#allocation2 + $0x10] sm:$0xff]
  %v1812 = vld [vmem:[#allocation2 + $0x18] sm:$0xff]
  %1816 = vrot.lane.b32.xlu0 %v1810, 112
  %v1817 = vpop.permute.xlu0 %1816
  %1818 = vrot.lane.b32.xlu0 %v1811, 112
  %v1819 = vpop.permute.xlu0 %1818
  %1820 = vrot.lane.b32.xlu0 %v1812, 112
  %v1821 = vpop.permute.xlu0 %1820
  %v1822 = vsel %vm448, %v1817, %v1819
  %v1823 = vsel %vm448, %v1819, %v1821
  %1826 = vst [vmem:[#allocation3 + $0xe0] sm:$0xff] %v1822
  %1827 = vst [vmem:[#allocation3 + $0xe8] sm:$0xff] %v1823
  %v1828 = vld [vmem:[%s50 + $0x8] sm:$0xff]
  %v1829 = vld [vmem:[%s50 + $0x10] sm:$0xff]
  %v1830 = vld [vmem:[%s50 + $0x18] sm:$0xff]
  %1834 = vrot.lane.b32.xlu0 %v1828, 112
  %v1835 = vpop.permute.xlu0 %1834
  %1836 = vrot.lane.b32.xlu0 %v1829, 112
  %v1837 = vpop.permute.xlu0 %1836
  %1838 = vrot.lane.b32.xlu0 %v1830, 112
  %v1839 = vpop.permute.xlu0 %1838
  %v1840 = vsel %vm448, %v1835, %v1837
  %v1841 = vsel %vm448, %v1837, %v1839
  %1844 = vst [vmem:[#allocation3 + $0xf0] sm:$0xff] %v1840
  %1845 = vst [vmem:[#allocation3 + $0xf8] sm:$0xff] %v1841
  %v1846 = vld [vmem:[#allocation2 + $0x8] sm:$0xff]
  %v1847 = vld [vmem:[#allocation2 + $0x10] sm:$0xff]
  %v1848 = vld [vmem:[#allocation2 + $0x18] sm:$0xff]
  %v1849 = vld [vmem:[%s162] sm:$0xff]
  %v1850 = vld [vmem:[%s162 + $0x8] sm:$0xff]
  %1853 = vrot.lane.b32.xlu0 %v1849, 17
  %v1854 = vpop.permute.xlu0 %1853
  %1855 = vrot.lane.b32.xlu0 %v1850, 17
  %v1856 = vpop.permute.xlu0 %1855
  %v1857 = vsel %vm82, %v1854, %v1856
  %v1861 = vmul.f32 %v1846, %v1854
  %v1862 = vmul.f32 %v1847, %v1857
  %v1863 = vmul.f32 %v1848, %v1856
  %1867 = vrot.lane.b32.xlu0 %v1861, 111
  %v1868 = vpop.permute.xlu0 %1867
  %1869 = vrot.lane.b32.xlu0 %v1862, 111
  %v1870 = vpop.permute.xlu0 %1869
  %1871 = vrot.lane.b32.xlu0 %v1863, 111
  %v1872 = vpop.permute.xlu0 %1871
  %v1873 = vsel %vm65, %v1868, %v1870
  %v1874 = vsel %vm65, %v1870, %v1872
  %1877 = vst [vmem:[#allocation3 + $0x100] sm:$0xff] %v1873
  %1878 = vst [vmem:[#allocation3 + $0x108] sm:$0xff] %v1874
  %v1879 = vld [vmem:[%s50 + $0x8] sm:$0xff]
  %v1880 = vld [vmem:[%s50 + $0x10] sm:$0xff]
  %v1881 = vld [vmem:[%s50 + $0x18] sm:$0xff]
  %v1882 = vld [vmem:[%s162] sm:$0xff]
  %v1883 = vld [vmem:[%s162 + $0x8] sm:$0xff]
  %1886 = vrot.lane.b32.xlu0 %v1882, 17
  %v1887 = vpop.permute.xlu0 %1886
  %1888 = vrot.lane.b32.xlu0 %v1883, 17
  %v1889 = vpop.permute.xlu0 %1888
  %v1890 = vsel %vm82, %v1887, %v1889
  %v1894 = vmul.f32 %v1879, %v1887
  %v1895 = vmul.f32 %v1880, %v1890
  %v1896 = vmul.f32 %v1881, %v1889
  %1900 = vrot.lane.b32.xlu0 %v1894, 111
  %v1901 = vpop.permute.xlu0 %1900
  %1902 = vrot.lane.b32.xlu0 %v1895, 111
  %v1903 = vpop.permute.xlu0 %1902
  %1904 = vrot.lane.b32.xlu0 %v1896, 111
  %v1905 = vpop.permute.xlu0 %1904
  %v1906 = vsel %vm65, %v1901, %v1903
  %v1907 = vsel %vm65, %v1903, %v1905
  %1910 = vst [vmem:[#allocation3 + $0x110] sm:$0xff] %v1906
  %1911 = vst [vmem:[#allocation3 + $0x118] sm:$0xff] %v1907
  %v1912 = vld [vmem:[#allocation3] sm:$0xff]
  %v1913 = vld [vmem:[#allocation3 + $0x8] sm:$0xff]
  %v1914 = vld [vmem:[#allocation3 + $0x10] sm:$0xff]
  %v1915 = vld [vmem:[#allocation3 + $0x18] sm:$0xff]
  %v1916 = vld [vmem:[#allocation3 + $0x20] sm:$0xff]
  %v1917 = vld [vmem:[#allocation3 + $0x28] sm:$0xff]
  %v1918 = vld [vmem:[#allocation3 + $0x30] sm:$0xff]
  %v1919 = vld [vmem:[#allocation3 + $0x38] sm:$0xff]
  %v1920 = vld [vmem:[#allocation3 + $0x40] sm:$0xff]
  %v1921 = vld [vmem:[#allocation3 + $0x48] sm:$0xff]
  %v1922 = vld [vmem:[#allocation3 + $0x50] sm:$0xff]
  %v1923 = vld [vmem:[#allocation3 + $0x58] sm:$0xff]
  %v1924 = vld [vmem:[#allocation3 + $0x60] sm:$0xff]
  %v1925 = vld [vmem:[#allocation3 + $0x68] sm:$0xff]
  %v1926 = vld [vmem:[#allocation3 + $0x70] sm:$0xff]
  %v1927 = vld [vmem:[#allocation3 + $0x78] sm:$0xff]
  %v1928 = vld [vmem:[#allocation3 + $0x80] sm:$0xff]
  %v1929 = vld [vmem:[#allocation3 + $0x88] sm:$0xff]
  %v1930 = vld [vmem:[#allocation3 + $0x90] sm:$0xff]
  %v1931 = vld [vmem:[#allocation3 + $0x98] sm:$0xff]
  %v1932 = vld [vmem:[#allocation3 + $0xa0] sm:$0xff]
  %v1933 = vld [vmem:[#allocation3 + $0xa8] sm:$0xff]
  %v1934 = vld [vmem:[#allocation3 + $0xb0] sm:$0xff]
  %v1935 = vld [vmem:[#allocation3 + $0xb8] sm:$0xff]
  %v1936 = vld [vmem:[#allocation3 + $0xc0] sm:$0xff]
  %v1937 = vld [vmem:[#allocation3 + $0xc8] sm:$0xff]
  %v1938 = vld [vmem:[#allocation3 + $0xd0] sm:$0xff]
  %v1939 = vld [vmem:[#allocation3 + $0xd8] sm:$0xff]
  %v1940 = vld [vmem:[#allocation3 + $0xe0] sm:$0xff]
  %v1941 = vld [vmem:[#allocation3 + $0xe8] sm:$0xff]
  %v1942 = vld [vmem:[#allocation3 + $0xf0] sm:$0xff]
  %v1943 = vld [vmem:[#allocation3 + $0xf8] sm:$0xff]
  %v1944 = vld [vmem:[#allocation3 + $0x100] sm:$0xff]
  %v1945 = vld [vmem:[#allocation3 + $0x108] sm:$0xff]
  %v1946 = vld [vmem:[#allocation3 + $0x110] sm:$0xff]
  %v1947 = vld [vmem:[#allocation3 + $0x118] sm:$0xff]
  %v1948 = vld [vmem:[#allocation3 + $0x120] sm:$0xff]
  %v1949 = vld [vmem:[#allocation3 + $0x128] sm:$0xff]
  %v1950 = vld [vmem:[#allocation3 + $0x130] sm:$0xff]
  %v1951 = vld [vmem:[#allocation3 + $0x138] sm:$0xff]
  %v1953 = vsel %vm579, %v1423, 0
  %1955 = vmatprep.subr.mxu0 %v1913
  %1956 = vmatpush1.msra.mxu0 %v1912
  %1957 = vmatprep.subr.mxu0 %v1917
  %1958 = vmatpush1.msra.mxu0 %v1916
  %1959 = vmatprep.subr.mxu0 %v1921
  %1960 = vmatpush1.msra.mxu0 %v1920
  %1961 = vmatprep.subr.mxu0 %v1925
  %1962 = vmatpush1.msra.mxu0 %v1924
  %1963 = vmatprep.subr.mxu0 %v1929
  %1964 = vmatpush1.msra.mxu0 %v1928
  %1965 = vmatprep.subr.mxu0 %v1933
  %1966 = vmatpush1.msra.mxu0 %v1932
  %1967 = vmatprep.subr.mxu0 %v1937
  %1968 = vmatpush1.msra.mxu0 %v1936
  %1969 = vmatprep.subr.mxu0 %v1941
  %1970 = vmatpush1.msra.mxu0 %v1940
  %1971 = vmatprep.subr.mxu0 %v1945
  %1972 = vmatpush1.msra.mxu0 %v1944
  %1973 = vmatprep.subr.mxu0 %v1949
  %1974 = vmatpush1.msra.mxu0 %v1948
  %1975 = vmatprep.subr.mxu0 0.0
  %1976 = vmatpush1.msra.mxu0 0.0
  %1977 = vmatprep.subr.mxu0 0.0
  %1978 = vmatpush1.msra.mxu0 0.0
  %1979 = vmatprep.subr.mxu0 0.0
  %1980 = vmatpush1.msra.mxu0 0.0
  %1981 = vmatprep.subr.mxu0 0.0
  %1982 = vmatpush1.msra.mxu0 0.0
  %1983 = vmatprep.subr.mxu0 0.0
  %1984 = vmatpush1.msra.mxu0 0.0
  %1985 = vmatprep.subr.mxu0 0.0
  %1986 = vmatpush1.msra.mxu0 0.0
  %1987 = vmatprep.subr.mxu0 0.0
  %1988 = vmatpush1.msra.mxu0 0.0
  %1989 = vmatprep.subr.mxu0 0.0
  %1990 = vmatpush1.msra.mxu0 0.0
  %1991 = vmatprep.subr.mxu0 0.0
  %1992 = vmatpush1.msra.mxu0 0.0
  %1993 = vmatprep.subr.mxu0 0.0
  %1994 = vmatpush1.msra.mxu0 0.0
  %1995 = vmatprep.subr.mxu0 0.0
  %1996 = vmatpush1.msra.mxu0 0.0
  %1997 = vmatprep.subr.mxu0 0.0
  %1998 = vmatpush1.msra.mxu0 0.0
  %1999 = vmatprep.subr.mxu0 0.0
  %2000 = vmatpush1.msra.mxu0 0.0
  %2001 = vmatprep.subr.mxu0 0.0
  %2002 = vmatpush1.msra.mxu0 0.0
  %2003 = vmatprep.subr.mxu0 0.0
  %2004 = vmatpush1.msra.mxu0 0.0
  %2005 = vmatprep.subr.mxu0 0.0
  %2006 = vmatpush1.msra.mxu0 0.0
  %2007 = vmatprep.subr.mxu0 0.0
  %2008 = vmatpush1.msra.mxu0 0.0
  %2009 = vmatprep.subr.mxu0 0.0
  %2010 = vmatpush1.msra.mxu0 0.0
  %2011 = vmatprep.subr.mxu0 0.0
  %2012 = vmatpush1.msra.mxu0 0.0
  %2013 = vmatprep.subr.mxu0 0.0
  %2014 = vmatpush1.msra.mxu0 0.0
  %2015 = vmatprep.subr.mxu0 0.0
  %2016 = vmatpush1.msra.mxu0 0.0
  %2017 = vmatprep.subr.mxu0 0.0
  %2018 = vmatpush1.msra.mxu0 0.0
  %2019 = vmatprep.mubr.f32.mxu0 0.0
  %2020 = vmatmul.mubr.f32.gmra.mrb[0].mxu0 %v1953
  %v2021 = vpop.f32.mrb[0].mxu0
  %v2022 = vadd.f32 0.0, %v2021
  %v2023 = vpop.f32.mrb[0].mxu0
  %v2024 = vadd.f32 0.0, %v2023
  %2025 = vdwg.mxu0
  %2026 = vmatprep.subr.mxu0 %v1915
  %2027 = vmatpush1.msra.mxu0 %v1914
  %2028 = vmatprep.subr.mxu0 %v1919
  %2029 = vmatpush1.msra.mxu0 %v1918
  %2030 = vmatprep.subr.mxu0 %v1923
  %2031 = vmatpush1.msra.mxu0 %v1922
  %2032 = vmatprep.subr.mxu0 %v1927
  %2033 = vmatpush1.msra.mxu0 %v1926
  %2034 = vmatprep.subr.mxu0 %v1931
  %2035 = vmatpush1.msra.mxu0 %v1930
  %2036 = vmatprep.subr.mxu0 %v1935
  %2037 = vmatpush1.msra.mxu0 %v1934
  %2038 = vmatprep.subr.mxu0 %v1939
  %2039 = vmatpush1.msra.mxu0 %v1938
  %2040 = vmatprep.subr.mxu0 %v1943
  %2041 = vmatpush1.msra.mxu0 %v1942
  %2042 = vmatprep.subr.mxu0 %v1947
  %2043 = vmatpush1.msra.mxu0 %v1946
  %2044 = vmatprep.subr.mxu0 %v1951
  %2045 = vmatpush1.msra.mxu0 %v1950
  %2046 = vmatprep.subr.mxu0 0.0
  %2047 = vmatpush1.msra.mxu0 0.0
  %2048 = vmatprep.subr.mxu0 0.0
  %2049 = vmatpush1.msra.mxu0 0.0
  %2050 = vmatprep.subr.mxu0 0.0
  %2051 = vmatpush1.msra.mxu0 0.0
  %2052 = vmatprep.subr.mxu0 0.0
  %2053 = vmatpush1.msra.mxu0 0.0
  %2054 = vmatprep.subr.mxu0 0.0
  %2055 = vmatpush1.msra.mxu0 0.0
  %2056 = vmatprep.subr.mxu0 0.0
  %2057 = vmatpush1.msra.mxu0 0.0
  %2058 = vmatprep.subr.mxu0 0.0
  %2059 = vmatpush1.msra.mxu0 0.0
  %2060 = vmatprep.subr.mxu0 0.0
  %2061 = vmatpush1.msra.mxu0 0.0
  %2062 = vmatprep.subr.mxu0 0.0
  %2063 = vmatpush1.msra.mxu0 0.0
  %2064 = vmatprep.subr.mxu0 0.0
  %2065 = vmatpush1.msra.mxu0 0.0
  %2066 = vmatprep.subr.mxu0 0.0
  %2067 = vmatpush1.msra.mxu0 0.0
  %2068 = vmatprep.subr.mxu0 0.0
  %2069 = vmatpush1.msra.mxu0 0.0
  %2070 = vmatprep.subr.mxu0 0.0
  %2071 = vmatpush1.msra.mxu0 0.0
  %2072 = vmatprep.subr.mxu0 0.0
  %2073 = vmatpush1.msra.mxu0 0.0
  %2074 = vmatprep.subr.mxu0 0.0
  %2075 = vmatpush1.msra.mxu0 0.0
  %2076 = vmatprep.subr.mxu0 0.0
  %2077 = vmatpush1.msra.mxu0 0.0
  %2078 = vmatprep.subr.mxu0 0.0
  %2079 = vmatpush1.msra.mxu0 0.0
  %2080 = vmatprep.subr.mxu0 0.0
  %2081 = vmatpush1.msra.mxu0 0.0
  %2082 = vmatprep.subr.mxu0 0.0
  %2083 = vmatpush1.msra.mxu0 0.0
  %2084 = vmatprep.subr.mxu0 0.0
  %2085 = vmatpush1.msra.mxu0 0.0
  %2086 = vmatprep.subr.mxu0 0.0
  %2087 = vmatpush1.msra.mxu0 0.0
  %2088 = vmatprep.subr.mxu0 0.0
  %2089 = vmatpush1.msra.mxu0 0.0
  %2090 = vmatprep.mubr.f32.mxu0 0.0
  %2091 = vmatmul.mubr.f32.gmra.mrb[0].mxu0 %v1953
  %v2092 = vpop.f32.mrb[0].mxu0
  %v2093 = vadd.f32 0.0, %v2092
  %v2094 = vpop.f32.mrb[0].mxu0
  %v2095 = vadd.f32 0.0, %v2094
  %2096 = vdwg.mxu0
  %v2097 = vmul.f32 %v2022, 0.1
  %v2098 = vmul.f32 %v2024, 0.1
  %v2099 = vmul.f32 %v2093, 0.1
  %v2100 = vmul.f32 %v2095, 0.1
  %v2101 = vmax.f32 %v2022, %v2097
  %v2102 = vmax.f32 %v2024, %v2098
  %v2103 = vmax.f32 %v2093, %v2099
  %v2104 = vmax.f32 %v2095, %v2100
  %s2105 = scalar_lea.vmem %s2, 4
  %v2106 = vld [vmem:[%s2105] sm:$0xf]
  %2107 = vst [vmem:[#allocation2 + $0x8] sm:$0xf] %v2101
  %2108 = vst [vmem:[#allocation2 + $0x10] sm:$0xf] %v2102
  %2109 = vst [vmem:[%s50 + $0x8] sm:$0xf] %v2103
  %2110 = vst [vmem:[%s50 + $0x10] sm:$0xf] %v2104
  %v2111 = vld [vmem:[#allocation2] sm:$0xff]
  %v2112 = vld [vmem:[#allocation2 + $0x8] sm:$0xff]
  %v2113 = vld [vmem:[#allocation2 + $0x10] sm:$0xff]
  %v2114 = vld [vmem:[%s3] sm:$0xff]
  %v2115 = vld [vmem:[%s3 + $0x8] sm:$0xff]
  %2118 = vrot.lane.b32.xlu0 %v2114, 94
  %v2119 = vpop.permute.xlu0 %2118
  %2120 = vrot.lane.b32.xlu0 %v2115, 94
  %v2121 = vpop.permute.xlu0 %2120
  %v2122 = vsel %vm749, %v2119, %v2121
  %v2126 = vmul.f32 %v2111, %v2119
  %v2127 = vmul.f32 %v2112, %v2122
  %v2128 = vmul.f32 %v2113, %v2121
  %2132 = vrot.lane.b32.xlu0 %v2126, 34
  %v2133 = vpop.permute.xlu0 %2132
  %2134 = vrot.lane.b32.xlu0 %v2127, 34
  %v2135 = vpop.permute.xlu0 %2134
  %2136 = vrot.lane.b32.xlu0 %v2128, 34
  %v2137 = vpop.permute.xlu0 %2136
  %v2138 = vsel %vm766, %v2133, %v2135
  %v2139 = vsel %vm766, %v2135, %v2137
  %2142 = vst [vmem:[#allocation3] sm:$0xff] %v2138
  %2143 = vst [vmem:[#allocation3 + $0x8] sm:$0xff] %v2139
  %v2144 = vld [vmem:[%s50] sm:$0xff]
  %v2145 = vld [vmem:[%s50 + $0x8] sm:$0xff]
  %v2146 = vld [vmem:[%s50 + $0x10] sm:$0xff]
  %v2147 = vld [vmem:[%s3] sm:$0xff]
  %v2148 = vld [vmem:[%s3 + $0x8] sm:$0xff]
  %2151 = vrot.lane.b32.xlu0 %v2147, 94
  %v2152 = vpop.permute.xlu0 %2151
  %2153 = vrot.lane.b32.xlu0 %v2148, 94
  %v2154 = vpop.permute.xlu0 %2153
  %v2155 = vsel %vm749, %v2152, %v2154
  %v2159 = vmul.f32 %v2144, %v2152
  %v2160 = vmul.f32 %v2145, %v2155
  %v2161 = vmul.f32 %v2146, %v2154
  %2165 = vrot.lane.b32.xlu0 %v2159, 34
  %v2166 = vpop.permute.xlu0 %2165
  %2167 = vrot.lane.b32.xlu0 %v2160, 34
  %v2168 = vpop.permute.xlu0 %2167
  %2169 = vrot.lane.b32.xlu0 %v2161, 34
  %v2170 = vpop.permute.xlu0 %2169
  %v2171 = vsel %vm766, %v2166, %v2168
  %v2172 = vsel %vm766, %v2168, %v2170
  %2175 = vst [vmem:[#allocation3 + $0x10] sm:$0xff] %v2171
  %2176 = vst [vmem:[#allocation3 + $0x18] sm:$0xff] %v2172
  %v2177 = vld [vmem:[#allocation2] sm:$0xff]
  %v2178 = vld [vmem:[#allocation2 + $0x8] sm:$0xff]
  %v2179 = vld [vmem:[#allocation2 + $0x10] sm:$0xff]
  %2183 = vrot.lane.b32.xlu0 %v2177, 32
  %v2184 = vpop.permute.xlu0 %2183
  %2185 = vrot.lane.b32.xlu0 %v2178, 32
  %v2186 = vpop.permute.xlu0 %2185
  %2187 = vrot.lane.b32.xlu0 %v2179, 32
  %v2188 = vpop.permute.xlu0 %2187
  %v2189 = vsel %vm818, %v2184, %v2186
  %v2190 = vsel %vm818, %v2186, %v2188
  %2193 = vst [vmem:[#allocation3 + $0x20] sm:$0xff] %v2189
  %2194 = vst [vmem:[#allocation3 + $0x28] sm:$0xff] %v2190
  %v2195 = vld [vmem:[%s50] sm:$0xff]
  %v2196 = vld [vmem:[%s50 + $0x8] sm:$0xff]
  %v2197 = vld [vmem:[%s50 + $0x10] sm:$0xff]
  %2201 = vrot.lane.b32.xlu0 %v2195, 32
  %v2202 = vpop.permute.xlu0 %2201
  %2203 = vrot.lane.b32.xlu0 %v2196, 32
  %v2204 = vpop.permute.xlu0 %2203
  %2205 = vrot.lane.b32.xlu0 %v2197, 32
  %v2206 = vpop.permute.xlu0 %2205
  %v2207 = vsel %vm818, %v2202, %v2204
  %v2208 = vsel %vm818, %v2204, %v2206
  %2211 = vst [vmem:[#allocation3 + $0x30] sm:$0xff] %v2207
  %2212 = vst [vmem:[#allocation3 + $0x38] sm:$0xff] %v2208
  %v2213 = vld [vmem:[#allocation2] sm:$0xff]
  %v2214 = vld [vmem:[#allocation2 + $0x8] sm:$0xff]
  %v2215 = vld [vmem:[#allocation2 + $0x10] sm:$0xff]
  %v2216 = vld [vmem:[%s846] sm:$0xff]
  %v2217 = vld [vmem:[%s846 + $0x8] sm:$0xff]
  %2220 = vrot.lane.b32.xlu0 %v2216, 98
  %v2221 = vpop.permute.xlu0 %2220
  %2222 = vrot.lane.b32.xlu0 %v2217, 98
  %v2223 = vpop.permute.xlu0 %2222
  %v2224 = vsel %vm855, %v2221, %v2223
  %v2228 = vmul.f32 %v2213, %v2221
  %v2229 = vmul.f32 %v2214, %v2224
  %v2230 = vmul.f32 %v2215, %v2223
  %2234 = vrot.lane.b32.xlu0 %v2228, 30
  %v2235 = vpop.permute.xlu0 %2234
  %2236 = vrot.lane.b32.xlu0 %v2229, 30
  %v2237 = vpop.permute.xlu0 %2236
  %2238 = vrot.lane.b32.xlu0 %v2230, 30
  %v2239 = vpop.permute.xlu0 %2238
  %v2240 = vsel %vm872, %v2235, %v2237
  %v2241 = vsel %vm872, %v2237, %v2239
  %2244 = vst [vmem:[#allocation3 + $0x40] sm:$0xff] %v2240
  %2245 = vst [vmem:[#allocation3 + $0x48] sm:$0xff] %v2241
  %v2246 = vld [vmem:[%s50] sm:$0xff]
  %v2247 = vld [vmem:[%s50 + $0x8] sm:$0xff]
  %v2248 = vld [vmem:[%s50 + $0x10] sm:$0xff]
  %v2249 = vld [vmem:[%s846] sm:$0xff]
  %v2250 = vld [vmem:[%s846 + $0x8] sm:$0xff]
  %2253 = vrot.lane.b32.xlu0 %v2249, 98
  %v2254 = vpop.permute.xlu0 %2253
  %2255 = vrot.lane.b32.xlu0 %v2250, 98
  %v2256 = vpop.permute.xlu0 %2255
  %v2257 = vsel %vm855, %v2254, %v2256
  %v2261 = vmul.f32 %v2246, %v2254
  %v2262 = vmul.f32 %v2247, %v2257
  %v2263 = vmul.f32 %v2248, %v2256
  %2267 = vrot.lane.b32.xlu0 %v2261, 30
  %v2268 = vpop.permute.xlu0 %2267
  %2269 = vrot.lane.b32.xlu0 %v2262, 30
  %v2270 = vpop.permute.xlu0 %2269
  %2271 = vrot.lane.b32.xlu0 %v2263, 30
  %v2272 = vpop.permute.xlu0 %2271
  %v2273 = vsel %vm872, %v2268, %v2270
  %v2274 = vsel %vm872, %v2270, %v2272
  %2277 = vst [vmem:[#allocation3 + $0x50] sm:$0xff] %v2273
  %2278 = vst [vmem:[#allocation3 + $0x58] sm:$0xff] %v2274
  %v2279 = vld [vmem:[#allocation2] sm:$0xff]
  %v2280 = vld [vmem:[#allocation2 + $0x8] sm:$0xff]
  %v2281 = vld [vmem:[#allocation2 + $0x10] sm:$0xff]
  %v2282 = vld [vmem:[%s3] sm:$0xff]
  %v2283 = vld [vmem:[%s3 + $0x8] sm:$0xff]
  %2286 = vrot.lane.b32.xlu0 %v2282, 126
  %v2287 = vpop.permute.xlu0 %2286
  %2288 = vrot.lane.b32.xlu0 %v2283, 126
  %v2289 = vpop.permute.xlu0 %2288
  %v2290 = vsel %vm923, %v2287, %v2289
  %v2294 = vmul.f32 %v2279, %v2287
  %v2295 = vmul.f32 %v2280, %v2290
  %v2296 = vmul.f32 %v2281, %v2289
  %2300 = vrot.lane.b32.xlu0 %v2294, 2
  %v2301 = vpop.permute.xlu0 %2300
  %2302 = vrot.lane.b32.xlu0 %v2295, 2
  %v2303 = vpop.permute.xlu0 %2302
  %2304 = vrot.lane.b32.xlu0 %v2296, 2
  %v2305 = vpop.permute.xlu0 %2304
  %v2306 = vsel %vm940, %v2301, %v2303
  %v2307 = vsel %vm940, %v2303, %v2305
  %2310 = vst [vmem:[#allocation3 + $0x60] sm:$0xff] %v2306
  %2311 = vst [vmem:[#allocation3 + $0x68] sm:$0xff] %v2307
  %v2312 = vld [vmem:[%s50] sm:$0xff]
  %v2313 = vld [vmem:[%s50 + $0x8] sm:$0xff]
  %v2314 = vld [vmem:[%s50 + $0x10] sm:$0xff]
  %v2315 = vld [vmem:[%s3] sm:$0xff]
  %v2316 = vld [vmem:[%s3 + $0x8] sm:$0xff]
  %2319 = vrot.lane.b32.xlu0 %v2315, 126
  %v2320 = vpop.permute.xlu0 %2319
  %2321 = vrot.lane.b32.xlu0 %v2316, 126
  %v2322 = vpop.permute.xlu0 %2321
  %v2323 = vsel %vm923, %v2320, %v2322
  %v2327 = vmul.f32 %v2312, %v2320
  %v2328 = vmul.f32 %v2313, %v2323
  %v2329 = vmul.f32 %v2314, %v2322
  %2333 = vrot.lane.b32.xlu0 %v2327, 2
  %v2334 = vpop.permute.xlu0 %2333
  %2335 = vrot.lane.b32.xlu0 %v2328, 2
  %v2336 = vpop.permute.xlu0 %2335
  %2337 = vrot.lane.b32.xlu0 %v2329, 2
  %v2338 = vpop.permute.xlu0 %2337
  %v2339 = vsel %vm940, %v2334, %v2336
  %v2340 = vsel %vm940, %v2336, %v2338
  %2343 = vst [vmem:[#allocation3 + $0x70] sm:$0xff] %v2339
  %2344 = vst [vmem:[#allocation3 + $0x78] sm:$0xff] %v2340
  %v2345 = vld [vmem:[#allocation2 + $0x8] sm:$0xff]
  %v2346 = vld [vmem:[#allocation2 + $0x10] sm:$0xff]
  %2347 = vst [vmem:[#allocation3 + $0x80] sm:$0xff] %v2345
  %2348 = vst [vmem:[#allocation3 + $0x88] sm:$0xff] %v2346
  %v2349 = vld [vmem:[%s50 + $0x8] sm:$0xff]
  %v2350 = vld [vmem:[%s50 + $0x10] sm:$0xff]
  %2351 = vst [vmem:[#allocation3 + $0x90] sm:$0xff] %v2349
  %2352 = vst [vmem:[#allocation3 + $0x98] sm:$0xff] %v2350
  %v2353 = vld [vmem:[#allocation2 + $0x8] sm:$0xff]
  %v2354 = vld [vmem:[#allocation2 + $0x10] sm:$0xff]
  %v2355 = vld [vmem:[#allocation2 + $0x18] sm:$0xff]
  %v2356 = vld [vmem:[%s846] sm:$0xff]
  %v2357 = vld [vmem:[%s846 + $0x8] sm:$0xff]
  %2360 = vrot.lane.b32.xlu0 %v2356, 2
  %v2361 = vpop.permute.xlu0 %2360
  %2362 = vrot.lane.b32.xlu0 %v2357, 2
  %v2363 = vpop.permute.xlu0 %2362
  %v2364 = vsel %vm940, %v2361, %v2363
  %v2368 = vmul.f32 %v2353, %v2361
  %v2369 = vmul.f32 %v2354, %v2364
  %v2370 = vmul.f32 %v2355, %v2363
  %2374 = vrot.lane.b32.xlu0 %v2368, 126
  %v2375 = vpop.permute.xlu0 %2374
  %2376 = vrot.lane.b32.xlu0 %v2369, 126
  %v2377 = vpop.permute.xlu0 %2376
  %2378 = vrot.lane.b32.xlu0 %v2370, 126
  %v2379 = vpop.permute.xlu0 %2378
  %v2380 = vsel %vm923, %v2375, %v2377
  %v2381 = vsel %vm923, %v2377, %v2379
  %2384 = vst [vmem:[#allocation3 + $0xa0] sm:$0xff] %v2380
  %2385 = vst [vmem:[#allocation3 + $0xa8] sm:$0xff] %v2381
  %v2386 = vld [vmem:[%s50 + $0x8] sm:$0xff]
  %v2387 = vld [vmem:[%s50 + $0x10] sm:$0xff]
  %v2388 = vld [vmem:[%s50 + $0x18] sm:$0xff]
  %v2389 = vld [vmem:[%s846] sm:$0xff]
  %v2390 = vld [vmem:[%s846 + $0x8] sm:$0xff]
  %2393 = vrot.lane.b32.xlu0 %v2389, 2
  %v2394 = vpop.permute.xlu0 %2393
  %2395 = vrot.lane.b32.xlu0 %v2390, 2
  %v2396 = vpop.permute.xlu0 %2395
  %v2397 = vsel %vm940, %v2394, %v2396
  %v2401 = vmul.f32 %v2386, %v2394
  %v2402 = vmul.f32 %v2387, %v2397
  %v2403 = vmul.f32 %v2388, %v2396
  %2407 = vrot.lane.b32.xlu0 %v2401, 126
  %v2408 = vpop.permute.xlu0 %2407
  %2409 = vrot.lane.b32.xlu0 %v2402, 126
  %v2410 = vpop.permute.xlu0 %2409
  %2411 = vrot.lane.b32.xlu0 %v2403, 126
  %v2412 = vpop.permute.xlu0 %2411
  %v2413 = vsel %vm923, %v2408, %v2410
  %v2414 = vsel %vm923, %v2410, %v2412
  %2417 = vst [vmem:[#allocation3 + $0xb0] sm:$0xff] %v2413
  %2418 = vst [vmem:[#allocation3 + $0xb8] sm:$0xff] %v2414
  %v2419 = vld [vmem:[#allocation2 + $0x8] sm:$0xff]
  %v2420 = vld [vmem:[#allocation2 + $0x10] sm:$0xff]
  %v2421 = vld [vmem:[#allocation2 + $0x18] sm:$0xff]
  %v2422 = vld [vmem:[%s3] sm:$0xff]
  %v2423 = vld [vmem:[%s3 + $0x8] sm:$0xff]
  %2426 = vrot.lane.b32.xlu0 %v2422, 30
  %v2427 = vpop.permute.xlu0 %2426
  %2428 = vrot.lane.b32.xlu0 %v2423, 30
  %v2429 = vpop.permute.xlu0 %2428
  %v2430 = vsel %vm872, %v2427, %v2429
  %v2434 = vmul.f32 %v2419, %v2427
  %v2435 = vmul.f32 %v2420, %v2430
  %v2436 = vmul.f32 %v2421, %v2429
  %2440 = vrot.lane.b32.xlu0 %v2434, 98
  %v2441 = vpop.permute.xlu0 %2440
  %2442 = vrot.lane.b32.xlu0 %v2435, 98
  %v2443 = vpop.permute.xlu0 %2442
  %2444 = vrot.lane.b32.xlu0 %v2436, 98
  %v2445 = vpop.permute.xlu0 %2444
  %v2446 = vsel %vm855, %v2441, %v2443
  %v2447 = vsel %vm855, %v2443, %v2445
  %2450 = vst [vmem:[#allocation3 + $0xc0] sm:$0xff] %v2446
  %2451 = vst [vmem:[#allocation3 + $0xc8] sm:$0xff] %v2447
  %v2452 = vld [vmem:[%s50 + $0x8] sm:$0xff]
  %v2453 = vld [vmem:[%s50 + $0x10] sm:$0xff]
  %v2454 = vld [vmem:[%s50 + $0x18] sm:$0xff]
  %v2455 = vld [vmem:[%s3] sm:$0xff]
  %v2456 = vld [vmem:[%s3 + $0x8] sm:$0xff]
  %2459 = vrot.lane.b32.xlu0 %v2455, 30
  %v2460 = vpop.permute.xlu0 %2459
  %2461 = vrot.lane.b32.xlu0 %v2456, 30
  %v2462 = vpop.permute.xlu0 %2461
  %v2463 = vsel %vm872, %v2460, %v2462
  %v2467 = vmul.f32 %v2452, %v2460
  %v2468 = vmul.f32 %v2453, %v2463
  %v2469 = vmul.f32 %v2454, %v2462
  %2473 = vrot.lane.b32.xlu0 %v2467, 98
  %v2474 = vpop.permute.xlu0 %2473
  %2475 = vrot.lane.b32.xlu0 %v2468, 98
  %v2476 = vpop.permute.xlu0 %2475
  %2477 = vrot.lane.b32.xlu0 %v2469, 98
  %v2478 = vpop.permute.xlu0 %2477
  %v2479 = vsel %vm855, %v2474, %v2476
  %v2480 = vsel %vm855, %v2476, %v2478
  %2483 = vst [vmem:[#allocation3 + $0xd0] sm:$0xff] %v2479
  %2484 = vst [vmem:[#allocation3 + $0xd8] sm:$0xff] %v2480
  %v2485 = vld [vmem:[#allocation2 + $0x8] sm:$0xff]
  %v2486 = vld [vmem:[#allocation2 + $0x10] sm:$0xff]
  %v2487 = vld [vmem:[#allocation2 + $0x18] sm:$0xff]
  %2491 = vrot.lane.b32.xlu0 %v2485, 96
  %v2492 = vpop.permute.xlu0 %2491
  %2493 = vrot.lane.b32.xlu0 %v2486, 96
  %v2494 = vpop.permute.xlu0 %2493
  %2495 = vrot.lane.b32.xlu0 %v2487, 96
  %v2496 = vpop.permute.xlu0 %2495
  %v2497 = vsel %vm1132, %v2492, %v2494
  %v2498 = vsel %vm1132, %v2494, %v2496
  %2501 = vst [vmem:[#allocation3 + $0xe0] sm:$0xff] %v2497
  %2502 = vst [vmem:[#allocation3 + $0xe8] sm:$0xff] %v2498
  %v2503 = vld [vmem:[%s50 + $0x8] sm:$0xff]
  %v2504 = vld [vmem:[%s50 + $0x10] sm:$0xff]
  %v2505 = vld [vmem:[%s50 + $0x18] sm:$0xff]
  %2509 = vrot.lane.b32.xlu0 %v2503, 96
  %v2510 = vpop.permute.xlu0 %2509
  %2511 = vrot.lane.b32.xlu0 %v2504, 96
  %v2512 = vpop.permute.xlu0 %2511
  %2513 = vrot.lane.b32.xlu0 %v2505, 96
  %v2514 = vpop.permute.xlu0 %2513
  %v2515 = vsel %vm1132, %v2510, %v2512
  %v2516 = vsel %vm1132, %v2512, %v2514
  %2519 = vst [vmem:[#allocation3 + $0xf0] sm:$0xff] %v2515
  %2520 = vst [vmem:[#allocation3 + $0xf8] sm:$0xff] %v2516
  %v2521 = vld [vmem:[#allocation2 + $0x8] sm:$0xff]
  %v2522 = vld [vmem:[#allocation2 + $0x10] sm:$0xff]
  %v2523 = vld [vmem:[#allocation2 + $0x18] sm:$0xff]
  %v2524 = vld [vmem:[%s846] sm:$0xff]
  %v2525 = vld [vmem:[%s846 + $0x8] sm:$0xff]
  %2528 = vrot.lane.b32.xlu0 %v2524, 34
  %v2529 = vpop.permute.xlu0 %2528
  %2530 = vrot.lane.b32.xlu0 %v2525, 34
  %v2531 = vpop.permute.xlu0 %2530
  %v2532 = vsel %vm766, %v2529, %v2531
  %v2536 = vmul.f32 %v2521, %v2529
  %v2537 = vmul.f32 %v2522, %v2532
  %v2538 = vmul.f32 %v2523, %v2531
  %2542 = vrot.lane.b32.xlu0 %v2536, 94
  %v2543 = vpop.permute.xlu0 %2542
  %2544 = vrot.lane.b32.xlu0 %v2537, 94
  %v2545 = vpop.permute.xlu0 %2544
  %2546 = vrot.lane.b32.xlu0 %v2538, 94
  %v2547 = vpop.permute.xlu0 %2546
  %v2548 = vsel %vm749, %v2543, %v2545
  %v2549 = vsel %vm749, %v2545, %v2547
  %2552 = vst [vmem:[#allocation3 + $0x100] sm:$0xff] %v2548
  %2553 = vst [vmem:[#allocation3 + $0x108] sm:$0xff] %v2549
  %v2554 = vld [vmem:[%s50 + $0x8] sm:$0xff]
  %v2555 = vld [vmem:[%s50 + $0x10] sm:$0xff]
  %v2556 = vld [vmem:[%s50 + $0x18] sm:$0xff]
  %v2557 = vld [vmem:[%s846] sm:$0xff]
  %v2558 = vld [vmem:[%s846 + $0x8] sm:$0xff]
  %2561 = vrot.lane.b32.xlu0 %v2557, 34
  %v2562 = vpop.permute.xlu0 %2561
  %2563 = vrot.lane.b32.xlu0 %v2558, 34
  %v2564 = vpop.permute.xlu0 %2563
  %v2565 = vsel %vm766, %v2562, %v2564
  %v2569 = vmul.f32 %v2554, %v2562
  %v2570 = vmul.f32 %v2555, %v2565
  %v2571 = vmul.f32 %v2556, %v2564
  %2575 = vrot.lane.b32.xlu0 %v2569, 94
  %v2576 = vpop.permute.xlu0 %2575
  %2577 = vrot.lane.b32.xlu0 %v2570, 94
  %v2578 = vpop.permute.xlu0 %2577
  %2579 = vrot.lane.b32.xlu0 %v2571, 94
  %v2580 = vpop.permute.xlu0 %2579
  %v2581 = vsel %vm749, %v2576, %v2578
  %v2582 = vsel %vm749, %v2578, %v2580
  %2585 = vst [vmem:[#allocation3 + $0x110] sm:$0xff] %v2581
  %2586 = vst [vmem:[#allocation3 + $0x118] sm:$0xff] %v2582
  %v2587 = vld [vmem:[#allocation3] sm:$0xff]
  %v2588 = vld [vmem:[#allocation3 + $0x8] sm:$0xff]
  %v2589 = vld [vmem:[#allocation3 + $0x10] sm:$0xff]
  %v2590 = vld [vmem:[#allocation3 + $0x18] sm:$0xff]
  %v2591 = vld [vmem:[#allocation3 + $0x20] sm:$0xff]
  %v2592 = vld [vmem:[#allocation3 + $0x28] sm:$0xff]
  %v2593 = vld [vmem:[#allocation3 + $0x30] sm:$0xff]
  %v2594 = vld [vmem:[#allocation3 + $0x38] sm:$0xff]
  %v2595 = vld [vmem:[#allocation3 + $0x40] sm:$0xff]
  %v2596 = vld [vmem:[#allocation3 + $0x48] sm:$0xff]
  %v2597 = vld [vmem:[#allocation3 + $0x50] sm:$0xff]
  %v2598 = vld [vmem:[#allocation3 + $0x58] sm:$0xff]
  %v2599 = vld [vmem:[#allocation3 + $0x60] sm:$0xff]
  %v2600 = vld [vmem:[#allocation3 + $0x68] sm:$0xff]
  %v2601 = vld [vmem:[#allocation3 + $0x70] sm:$0xff]
  %v2602 = vld [vmem:[#allocation3 + $0x78] sm:$0xff]
  %v2603 = vld [vmem:[#allocation3 + $0x80] sm:$0xff]
  %v2604 = vld [vmem:[#allocation3 + $0x88] sm:$0xff]
  %v2605 = vld [vmem:[#allocation3 + $0x90] sm:$0xff]
  %v2606 = vld [vmem:[#allocation3 + $0x98] sm:$0xff]
  %v2607 = vld [vmem:[#allocation3 + $0xa0] sm:$0xff]
  %v2608 = vld [vmem:[#allocation3 + $0xa8] sm:$0xff]
  %v2609 = vld [vmem:[#allocation3 + $0xb0] sm:$0xff]
  %v2610 = vld [vmem:[#allocation3 + $0xb8] sm:$0xff]
  %v2611 = vld [vmem:[#allocation3 + $0xc0] sm:$0xff]
  %v2612 = vld [vmem:[#allocation3 + $0xc8] sm:$0xff]
  %v2613 = vld [vmem:[#allocation3 + $0xd0] sm:$0xff]
  %v2614 = vld [vmem:[#allocation3 + $0xd8] sm:$0xff]
  %v2615 = vld [vmem:[#allocation3 + $0xe0] sm:$0xff]
  %v2616 = vld [vmem:[#allocation3 + $0xe8] sm:$0xff]
  %v2617 = vld [vmem:[#allocation3 + $0xf0] sm:$0xff]
  %v2618 = vld [vmem:[#allocation3 + $0xf8] sm:$0xff]
  %v2619 = vld [vmem:[#allocation3 + $0x100] sm:$0xff]
  %v2620 = vld [vmem:[#allocation3 + $0x108] sm:$0xff]
  %v2621 = vld [vmem:[#allocation3 + $0x110] sm:$0xff]
  %v2622 = vld [vmem:[#allocation3 + $0x118] sm:$0xff]
  %v2623 = vld [vmem:[#allocation3 + $0x120] sm:$0xff]
  %v2624 = vld [vmem:[#allocation3 + $0x128] sm:$0xff]
  %v2625 = vld [vmem:[#allocation3 + $0x130] sm:$0xff]
  %v2626 = vld [vmem:[#allocation3 + $0x138] sm:$0xff]
  %v2628 = vsel %vm579, %v2106, 0
  %2630 = vmatprep.subr.mxu0 %v2588
  %2631 = vmatpush1.msra.mxu0 %v2587
  %2632 = vmatprep.subr.mxu0 %v2592
  %2633 = vmatpush1.msra.mxu0 %v2591
  %2634 = vmatprep.subr.mxu0 %v2596
  %2635 = vmatpush1.msra.mxu0 %v2595
  %2636 = vmatprep.subr.mxu0 %v2600
  %2637 = vmatpush1.msra.mxu0 %v2599
  %2638 = vmatprep.subr.mxu0 %v2604
  %2639 = vmatpush1.msra.mxu0 %v2603
  %2640 = vmatprep.subr.mxu0 %v2608
  %2641 = vmatpush1.msra.mxu0 %v2607
  %2642 = vmatprep.subr.mxu0 %v2612
  %2643 = vmatpush1.msra.mxu0 %v2611
  %2644 = vmatprep.subr.mxu0 %v2616
  %2645 = vmatpush1.msra.mxu0 %v2615
  %2646 = vmatprep.subr.mxu0 %v2620
  %2647 = vmatpush1.msra.mxu0 %v2619
  %2648 = vmatprep.subr.mxu0 %v2624
  %2649 = vmatpush1.msra.mxu0 %v2623
  %2650 = vmatprep.subr.mxu0 0.0
  %2651 = vmatpush1.msra.mxu0 0.0
  %2652 = vmatprep.subr.mxu0 0.0
  %2653 = vmatpush1.msra.mxu0 0.0
  %2654 = vmatprep.subr.mxu0 0.0
  %2655 = vmatpush1.msra.mxu0 0.0
  %2656 = vmatprep.subr.mxu0 0.0
  %2657 = vmatpush1.msra.mxu0 0.0
  %2658 = vmatprep.subr.mxu0 0.0
  %2659 = vmatpush1.msra.mxu0 0.0
  %2660 = vmatprep.subr.mxu0 0.0
  %2661 = vmatpush1.msra.mxu0 0.0
  %2662 = vmatprep.subr.mxu0 0.0
  %2663 = vmatpush1.msra.mxu0 0.0
  %2664 = vmatprep.subr.mxu0 0.0
  %2665 = vmatpush1.msra.mxu0 0.0
  %2666 = vmatprep.subr.mxu0 0.0
  %2667 = vmatpush1.msra.mxu0 0.0
  %2668 = vmatprep.subr.mxu0 0.0
  %2669 = vmatpush1.msra.mxu0 0.0
  %2670 = vmatprep.subr.mxu0 0.0
  %2671 = vmatpush1.msra.mxu0 0.0
  %2672 = vmatprep.subr.mxu0 0.0
  %2673 = vmatpush1.msra.mxu0 0.0
  %2674 = vmatprep.subr.mxu0 0.0
  %2675 = vmatpush1.msra.mxu0 0.0
  %2676 = vmatprep.subr.mxu0 0.0
  %2677 = vmatpush1.msra.mxu0 0.0
  %2678 = vmatprep.subr.mxu0 0.0
  %2679 = vmatpush1.msra.mxu0 0.0
  %2680 = vmatprep.subr.mxu0 0.0
  %2681 = vmatpush1.msra.mxu0 0.0
  %2682 = vmatprep.subr.mxu0 0.0
  %2683 = vmatpush1.msra.mxu0 0.0
  %2684 = vmatprep.subr.mxu0 0.0
  %2685 = vmatpush1.msra.mxu0 0.0
  %2686 = vmatprep.subr.mxu0 0.0
  %2687 = vmatpush1.msra.mxu0 0.0
  %2688 = vmatprep.subr.mxu0 0.0
  %2689 = vmatpush1.msra.mxu0 0.0
  %2690 = vmatprep.subr.mxu0 0.0
  %2691 = vmatpush1.msra.mxu0 0.0
  %2692 = vmatprep.subr.mxu0 0.0
  %2693 = vmatpush1.msra.mxu0 0.0
  %2694 = vmatprep.mubr.f32.mxu0 0.0
  %2695 = vmatmul.mubr.f32.gmra.mrb[0].mxu0 %v2628
  %v2696 = vpop.f32.mrb[0].mxu0
  %v2697 = vadd.f32 0.0, %v2696
  %v2698 = vpop.f32.mrb[0].mxu0
  %v2699 = vadd.f32 0.0, %v2698
  %2700 = vdwg.mxu0
  %2701 = vmatprep.subr.mxu0 %v2590
  %2702 = vmatpush1.msra.mxu0 %v2589
  %2703 = vmatprep.subr.mxu0 %v2594
  %2704 = vmatpush1.msra.mxu0 %v2593
  %2705 = vmatprep.subr.mxu0 %v2598
  %2706 = vmatpush1.msra.mxu0 %v2597
  %2707 = vmatprep.subr.mxu0 %v2602
  %2708 = vmatpush1.msra.mxu0 %v2601
  %2709 = vmatprep.subr.mxu0 %v2606
  %2710 = vmatpush1.msra.mxu0 %v2605
  %2711 = vmatprep.subr.mxu0 %v2610
  %2712 = vmatpush1.msra.mxu0 %v2609
  %2713 = vmatprep.subr.mxu0 %v2614
  %2714 = vmatpush1.msra.mxu0 %v2613
  %2715 = vmatprep.subr.mxu0 %v2618
  %2716 = vmatpush1.msra.mxu0 %v2617
  %2717 = vmatprep.subr.mxu0 %v2622
  %2718 = vmatpush1.msra.mxu0 %v2621
  %2719 = vmatprep.subr.mxu0 %v2626
  %2720 = vmatpush1.msra.mxu0 %v2625
  %2721 = vmatprep.subr.mxu0 0.0
  %2722 = vmatpush1.msra.mxu0 0.0
  %2723 = vmatprep.subr.mxu0 0.0
  %2724 = vmatpush1.msra.mxu0 0.0
  %2725 = vmatprep.subr.mxu0 0.0
  %2726 = vmatpush1.msra.mxu0 0.0
  %2727 = vmatprep.subr.mxu0 0.0
  %2728 = vmatpush1.msra.mxu0 0.0
  %2729 = vmatprep.subr.mxu0 0.0
  %2730 = vmatpush1.msra.mxu0 0.0
  %2731 = vmatprep.subr.mxu0 0.0
  %2732 = vmatpush1.msra.mxu0 0.0
  %2733 = vmatprep.subr.mxu0 0.0
  %2734 = vmatpush1.msra.mxu0 0.0
  %2735 = vmatprep.subr.mxu0 0.0
  %2736 = vmatpush1.msra.mxu0 0.0
  %2737 = vmatprep.subr.mxu0 0.0
  %2738 = vmatpush1.msra.mxu0 0.0
  %2739 = vmatprep.subr.mxu0 0.0
  %2740 = vmatpush1.msra.mxu0 0.0
  %2741 = vmatprep.subr.mxu0 0.0
  %2742 = vmatpush1.msra.mxu0 0.0
  %2743 = vmatprep.subr.mxu0 0.0
  %2744 = vmatpush1.msra.mxu0 0.0
  %2745 = vmatprep.subr.mxu0 0.0
  %2746 = vmatpush1.msra.mxu0 0.0
  %2747 = vmatprep.subr.mxu0 0.0
  %2748 = vmatpush1.msra.mxu0 0.0
  %2749 = vmatprep.subr.mxu0 0.0
  %2750 = vmatpush1.msra.mxu0 0.0
  %2751 = vmatprep.subr.mxu0 0.0
  %2752 = vmatpush1.msra.mxu0 0.0
  %2753 = vmatprep.subr.mxu0 0.0
  %2754 = vmatpush1.msra.mxu0 0.0
  %2755 = vmatprep.subr.mxu0 0.0
  %2756 = vmatpush1.msra.mxu0 0.0
  %2757 = vmatprep.subr.mxu0 0.0
  %2758 = vmatpush1.msra.mxu0 0.0
  %2759 = vmatprep.subr.mxu0 0.0
  %2760 = vmatpush1.msra.mxu0 0.0
  %2761 = vmatprep.subr.mxu0 0.0
  %2762 = vmatpush1.msra.mxu0 0.0
  %2763 = vmatprep.subr.mxu0 0.0
  %2764 = vmatpush1.msra.mxu0 0.0
  %2765 = vmatprep.mubr.f32.mxu0 0.0
  %2766 = vmatmul.mubr.f32.gmra.mrb[0].mxu0 %v2628
  %v2767 = vpop.f32.mrb[0].mxu0
  %v2768 = vadd.f32 0.0, %v2767
  %v2769 = vpop.f32.mrb[0].mxu0
  %v2770 = vadd.f32 0.0, %v2769
  %2771 = vdwg.mxu0
  %v2772 = vld [vmem:[#allocation4] sm:$0xff]
  %v2775 = vcombine.low %v2697, %v2699
  %v2777 = vadd.f32 %v2772, %v2775
  %2778 = vst [vmem:[#allocation4] sm:$0xff] %v2777
  %v2779 = vld [vmem:[%s45] sm:$0xff]
  %v2782 = vcombine.low %v2768, %v2770
  %v2784 = vadd.f32 %v2779, %v2782
  %2785 = vst [vmem:[%s45] sm:$0xff] %v2784
  %v2786 = vld [vmem:[#allocation4] sm:$0xff]
  %v2787 = vld [vmem:[#allocation4 + $0x8] sm:$0xff]
  %v2788 = vld [vmem:[%s0] sm:$0xff]
  %v2789 = vld [vmem:[%s0 + $0x8] sm:$0xff]
  %v2790 = vadd.f32 %v2786, %v2788
  %v2791 = vadd.f32 %v2787, %v2789
  %2792 = vst [vmem:[%s4] sm:$0xff] %v2790
  %2793 = vst [vmem:[%s4 + $0x8] sm:$0xff] %v2791
  // Predicated region
  $region18: #{resnet_block_forward.1} parent=0 // pred_check
    _
  $region19: #{resnet_block_forward.1} parent=0 // pred_check_branch
    %2795 = sbr.rel (0) target = $region21
  $region20: #{resnet_block_forward.1} parent=0 // pred_region
    _
  $region21: #{resnet_block_forward.1} parent=0 // pred_fallthru
    _
  // Predicated region
  $region22: #{resnet_block_forward.1} parent=0 // pred_check
    _
  $region23: #{resnet_block_forward.1} parent=0 // pred_check_branch
    %2797 = sbr.rel (0) target = $region25
  $region24: #{resnet_block_forward.1} parent=0 // pred_region
    _
  $region25: #{resnet_block_forward.1} parent=0 // pred_fallthru
    _

</llo_original>
